<compile_context>
chip_gen: v6e
topology: v6e:2x2x1
jax: 0.10.0
libtpu: 0.0.40
codegen_flags: <defaults>
</compile_context>

<pallas_src>
import math

import jax
import jax.numpy as jnp
from jax.experimental import pallas as pl
from jax.experimental.pallas import tpu as pltpu

# Make plain-JAX reference matmuls f32-accurate on TPU (default is a single
# bf16 MXU pass, which is what broke the previous comparison).
jax.config.update("jax_default_matmul_precision", "highest")

# ---------------- problem sizes (small, synthetic) ----------------
B = 2           # batch
L = 8           # seq len (query_len == key_len)
D = 32          # model_dim
H = 4           # head_count
DH = D // H     # dim_per_head

MXU_IN_DTYPE = jnp.float32          # jnp.bfloat16 at production shapes
_HI = jax.lax.Precision.HIGHEST


def mha_kernel(q_ref, k_ref, v_ref,
               wq_ref, bq_ref, wk_ref, bk_ref, wv_ref, bv_ref,
               wo_ref, bo_ref, out_ref, ctx_ref):
    """One batch element per grid step: dense QKV projections, per-head
    attention, and a single full-depth final linear."""

    def mm(a, b):
        return jnp.dot(a.astype(MXU_IN_DTYPE), b.astype(MXU_IN_DTYPE),
                       preferred_element_type=jnp.float32, precision=_HI)

    # Dense full-depth projections (one MXU push each, f32 accumulation).
    q = mm(q_ref[...], wq_ref[...]) + bq_ref[...]          # (L, D)
    k = mm(k_ref[...], wk_ref[...]) + bk_ref[...]          # (L, D)
    v = mm(v_ref[...], wv_ref[...]) + bv_ref[...]          # (L, D)
    q = q * (1.0 / math.sqrt(DH))

    # Per-head attention.  H is small & static -> unrolled; every head writes
    # a disjoint column block of the VMEM context slab, so nothing accumulates
    # in registers across the loop.  (At production DH >= 128 these slices are
    # lane-tile aligned; DH=8 here is a toy-size artifact.)
    contract_last = (((1,), (1,)), ((), ()))               # q @ k^T, no .T
    for h in range(H):
        sl = slice(h * DH, (h + 1) * DH)
        qh = q[:, sl]
        kh = k[:, sl]
        vh = v[:, sl]
        s = jax.lax.dot_general(qh.astype(MXU_IN_DTYPE), kh.astype(MXU_IN_DTYPE),
                                contract_last,
                                preferred_element_type=jnp.float32,
                                precision=_HI)             # (L, L)
        # Softmax element-wise math stays f32 (v5e has no bf16 VPU/EUP).
        s = s - jnp.max(s, axis=-1, keepdims=True)
        p = jnp.exp(s)
        inv_den = pl.reciprocal(jnp.sum(p, axis=-1, keepdims=True), approx=True)
        ctx_ref[:, sl] = mm(p, vh) * inv_den               # (L, DH)

    # ONE full-depth final linear over the recombined context slab.
    out_ref[...] = (mm(ctx_ref[...], wo_ref[...]) + bo_ref[...]).astype(out_ref.dtype)


def multi_headed_attention(key, value, query, params):
    """key/value/query: [B, L, D] f32.  params: dict of [in, out] weights."""
    act_spec = pl.BlockSpec((None, L, D), lambda b: (b, 0, 0))   # squeeze batch
    w_spec = pl.BlockSpec((D, D), lambda b: (0, 0))
    b_spec = pl.BlockSpec((1, D), lambda b: (0, 0))

    return pl.pallas_call(
        mha_kernel,
        out_shape=jax.ShapeDtypeStruct((B, L, D), jnp.float32),
        grid_spec=pltpu.PrefetchScalarGridSpec(
            num_scalar_prefetch=0,
            grid=(B,),
            in_specs=[act_spec, act_spec, act_spec,
                      w_spec, b_spec, w_spec, b_spec, w_spec, b_spec,
                      w_spec, b_spec],
            out_specs=act_spec,
            scratch_shapes=[pltpu.VMEM((L, D), jnp.float32)]),
        compiler_params=pltpu.CompilerParams(
            dimension_semantics=("parallel",)),
    )(query, key, value,
      params["wq"], params["bq"], params["wk"], params["bk"],
      params["wv"], params["bv"], params["wo"], params["bo"])


def reference_mha(key, value, query, params):
    """Pure-JAX reference mirroring the PyTorch forward (mask=None, eval)."""
    def lin(x, w, b):
        return jnp.matmul(x, w, precision=_HI) + b

    qp = lin(query, params["wq"], params["bq"])
    kp = lin(key, params["wk"], params["bk"])
    vp = lin(value, params["wv"], params["bv"])

    def shape(x):  # [B, L, D] -> [B, H, L, DH]
        return x.reshape(B, L, H, DH).transpose(0, 2, 1, 3)

    q = shape(qp) / math.sqrt(DH)
    k = shape(kp)
    v = shape(vp)
    scores = jnp.einsum("bhqd,bhkd->bhqk", q, k, precision=_HI)
    attn = jax.nn.softmax(scores, axis=-1)
    ctx = jnp.einsum("bhqk,bhkd->bhqd", attn, v, precision=_HI)
    ctx = ctx.transpose(0, 2, 1, 3).reshape(B, L, D)
    return lin(ctx, params["wo"], params["bo"])


def init_params(rng):
    """Deterministic xavier-uniform-ish init; weights stored as [in, out]."""
    keys = jax.random.split(rng, 8)
    lim = math.sqrt(6.0 / (D + D))

    def w(k):
        return jax.random.uniform(k, (D, D), jnp.float32, -lim, lim)

    def bias(k):
        return jax.random.uniform(k, (1, D), jnp.float32, -0.05, 0.05)

    return {
        "wq": w(keys[0]), "bq": bias(keys[1]),
        "wk": w(keys[2]), "bk": bias(keys[3]),
        "wv": w(keys[4]), "bv": bias(keys[5]),
        "wo": w(keys[6]), "bo": bias(keys[7]),
    }


if __name__ == "__main__":
    root = jax.random.PRNGKey(0)
    k_par, k_q, k_k, k_v = jax.random.split(root, 4)
    params = init_params(k_par)
    query = jax.random.normal(k_q, (B, L, D), jnp.float32)
    key = jax.random.normal(k_k, (B, L, D), jnp.float32)
    value = jax.random.normal(k_v, (B, L, D), jnp.float32)

    out = multi_headed_attention(key, value, query, params)
    out = jax.block_until_ready(out)

    ref = reference_mha(key, value, query, params)
    assert out.shape == (B, L, D)
    # Everything is f32-accurate (Precision.HIGHEST on both sides); only the
    # approx EUP reciprocal (~1e-4 relative) separates kernel from reference.
    assert jnp.allclose(out, ref, atol=5e-3, rtol=5e-3), "mismatch vs. reference"
    print("KERNEL_OK")
</pallas_src>

<mosaic_0001>
module attributes {stable_mosaic.version = 11 : i64} {
  func.func @mha_kernel(%arg0: i32, %arg1: memref<1x8x32xf32, #tpu.memory_space<vmem>>, %arg2: memref<1x8x32xf32, #tpu.memory_space<vmem>>, %arg3: memref<1x8x32xf32, #tpu.memory_space<vmem>>, %arg4: memref<32x32xf32, #tpu.memory_space<vmem>>, %arg5: memref<1x32xf32, #tpu.memory_space<vmem>>, %arg6: memref<32x32xf32, #tpu.memory_space<vmem>>, %arg7: memref<1x32xf32, #tpu.memory_space<vmem>>, %arg8: memref<32x32xf32, #tpu.memory_space<vmem>>, %arg9: memref<1x32xf32, #tpu.memory_space<vmem>>, %arg10: memref<32x32xf32, #tpu.memory_space<vmem>>, %arg11: memref<1x32xf32, #tpu.memory_space<vmem>>, %arg12: memref<1x8x32xf32, #tpu.memory_space<vmem>>, %arg13: memref<8x32xf32, #tpu.memory_space<vmem>>) attributes {dimension_semantics = [#tpu.dimension_semantics<parallel>], iteration_bounds = array<i64: 2>, scalar_prefetch = 0 : i64, scratch_operands = 1 : i64, tpu.core_type = #tpu.core_type<tc>, window_params = [{transform_indices = @transform_0, window_bounds = array<i64: 1, 8, 32>}, {transform_indices = @transform_1, window_bounds = array<i64: 1, 8, 32>}, {transform_indices = @transform_2, window_bounds = array<i64: 1, 8, 32>}, {pipeline_mode = #tpu.pipeline_mode<synchronous>, transform_indices = @transform_3, window_bounds = array<i64: 32, 32>}, {pipeline_mode = #tpu.pipeline_mode<synchronous>, transform_indices = @transform_4, window_bounds = array<i64: 1, 32>}, {pipeline_mode = #tpu.pipeline_mode<synchronous>, transform_indices = @transform_5, window_bounds = array<i64: 32, 32>}, {pipeline_mode = #tpu.pipeline_mode<synchronous>, transform_indices = @transform_6, window_bounds = array<i64: 1, 32>}, {pipeline_mode = #tpu.pipeline_mode<synchronous>, transform_indices = @transform_7, window_bounds = array<i64: 32, 32>}, {pipeline_mode = #tpu.pipeline_mode<synchronous>, transform_indices = @transform_8, window_bounds = array<i64: 1, 32>}, {pipeline_mode = #tpu.pipeline_mode<synchronous>, transform_indices = @transform_9, window_bounds = array<i64: 32, 32>}, {pipeline_mode = #tpu.pipeline_mode<synchronous>, transform_indices = @transform_10, window_bounds = array<i64: 1, 32>}, {transform_indices = @transform_11, window_bounds = array<i64: 1, 8, 32>}]} {
    %c0 = arith.constant 0 : index
    %c0_0 = arith.constant 0 : index
    %c0_1 = arith.constant 0 : index
    %0 = vector.load %arg1[%c0, %c0_0, %c0_1] : memref<1x8x32xf32, #tpu.memory_space<vmem>>, vector<1x8x32xf32>
    %1 = vector.shape_cast %0 : vector<1x8x32xf32> to vector<8x32xf32>
    %c0_2 = arith.constant 0 : index
    %c0_3 = arith.constant 0 : index
    %2 = vector.load %arg4[%c0_2, %c0_3] : memref<32x32xf32, #tpu.memory_space<vmem>>, vector<32x32xf32>
    %cst = arith.constant dense<0.000000e+00> : vector<8x32xf32>
    %3 = tpu.matmul %1, %2, %cst {dimension_numbers = #tpu.dot_dimension_numbers<[1], [0], [0], [1], [0, 0, 1, 1], [], []>, precision = #tpu.contract_precision<fp32>} : vector<8x32xf32>, vector<32x32xf32>, vector<8x32xf32> -> vector<8x32xf32>
    %c0_4 = arith.constant 0 : index
    %c0_5 = arith.constant 0 : index
    %4 = vector.load %arg5[%c0_4, %c0_5] : memref<1x32xf32, #tpu.memory_space<vmem>>, vector<1x32xf32>
    %5 = vector.broadcast %4 : vector<1x32xf32> to vector<8x32xf32>
    %6 = arith.addf %3, %5 : vector<8x32xf32>
    %c0_6 = arith.constant 0 : index
    %c0_7 = arith.constant 0 : index
    %c0_8 = arith.constant 0 : index
    %7 = vector.load %arg2[%c0_6, %c0_7, %c0_8] : memref<1x8x32xf32, #tpu.memory_space<vmem>>, vector<1x8x32xf32>
    %8 = vector.shape_cast %7 : vector<1x8x32xf32> to vector<8x32xf32>
    %c0_9 = arith.constant 0 : index
    %c0_10 = arith.constant 0 : index
    %9 = vector.load %arg6[%c0_9, %c0_10] : memref<32x32xf32, #tpu.memory_space<vmem>>, vector<32x32xf32>
    %cst_11 = arith.constant dense<0.000000e+00> : vector<8x32xf32>
    %10 = tpu.matmul %8, %9, %cst_11 {dimension_numbers = #tpu.dot_dimension_numbers<[1], [0], [0], [1], [0, 0, 1, 1], [], []>, precision = #tpu.contract_precision<fp32>} : vector<8x32xf32>, vector<32x32xf32>, vector<8x32xf32> -> vector<8x32xf32>
    %c0_12 = arith.constant 0 : index
    %c0_13 = arith.constant 0 : index
    %11 = vector.load %arg7[%c0_12, %c0_13] : memref<1x32xf32, #tpu.memory_space<vmem>>, vector<1x32xf32>
    %12 = vector.broadcast %11 : vector<1x32xf32> to vector<8x32xf32>
    %13 = arith.addf %10, %12 : vector<8x32xf32>
    %c0_14 = arith.constant 0 : index
    %c0_15 = arith.constant 0 : index
    %c0_16 = arith.constant 0 : index
    %14 = vector.load %arg3[%c0_14, %c0_15, %c0_16] : memref<1x8x32xf32, #tpu.memory_space<vmem>>, vector<1x8x32xf32>
    %15 = vector.shape_cast %14 : vector<1x8x32xf32> to vector<8x32xf32>
    %c0_17 = arith.constant 0 : index
    %c0_18 = arith.constant 0 : index
    %16 = vector.load %arg8[%c0_17, %c0_18] : memref<32x32xf32, #tpu.memory_space<vmem>>, vector<32x32xf32>
    %cst_19 = arith.constant dense<0.000000e+00> : vector<8x32xf32>
    %17 = tpu.matmul %15, %16, %cst_19 {dimension_numbers = #tpu.dot_dimension_numbers<[1], [0], [0], [1], [0, 0, 1, 1], [], []>, precision = #tpu.contract_precision<fp32>} : vector<8x32xf32>, vector<32x32xf32>, vector<8x32xf32> -> vector<8x32xf32>
    %c0_20 = arith.constant 0 : index
    %c0_21 = arith.constant 0 : index
    %18 = vector.load %arg9[%c0_20, %c0_21] : memref<1x32xf32, #tpu.memory_space<vmem>>, vector<1x32xf32>
    %19 = vector.broadcast %18 : vector<1x32xf32> to vector<8x32xf32>
    %20 = arith.addf %17, %19 : vector<8x32xf32>
    %cst_22 = arith.constant 0.353553385 : f32
    %21 = vector.broadcast %cst_22 : f32 to vector<8x32xf32>
    %22 = arith.mulf %6, %21 : vector<8x32xf32>
    %23 = vector.extract_strided_slice %22 {offsets = [0, 0], sizes = [8, 8], strides = [1, 1]} : vector<8x32xf32> to vector<8x8xf32>
    %24 = vector.extract_strided_slice %13 {offsets = [0, 0], sizes = [8, 8], strides = [1, 1]} : vector<8x32xf32> to vector<8x8xf32>
    %25 = vector.extract_strided_slice %20 {offsets = [0, 0], sizes = [8, 8], strides = [1, 1]} : vector<8x32xf32> to vector<8x8xf32>
    %cst_23 = arith.constant dense<0.000000e+00> : vector<8x8xf32>
    %26 = tpu.matmul %23, %24, %cst_23 {dimension_numbers = #tpu.dot_dimension_numbers<[1], [1], [0], [0], [0, 0, 1, 0], [], []>, precision = #tpu.contract_precision<fp32>} : vector<8x8xf32>, vector<8x8xf32>, vector<8x8xf32> -> vector<8x8xf32>
    %cst_24 = arith.constant dense<0xFF800000> : vector<8xf32>
    %27 = vector.multi_reduction <maximumf>, %26, %cst_24 [1] : vector<8x8xf32> to vector<8xf32>
    %28 = vector.shape_cast %27 : vector<8xf32> to vector<8x1xf32>
    %29 = vector.broadcast %28 : vector<8x1xf32> to vector<8x8xf32>
    %30 = arith.subf %26, %29 : vector<8x8xf32>
    %31 = math.exp %30 : vector<8x8xf32>
    %cst_25 = arith.constant dense<0.000000e+00> : vector<8xf32>
    %32 = vector.multi_reduction <add>, %31, %cst_25 [1] : vector<8x8xf32> to vector<8xf32>
    %33 = vector.shape_cast %32 : vector<8xf32> to vector<8x1xf32>
    %34 = tpu.reciprocal %33 {approx = true} : vector<8x1xf32> -> vector<8x1xf32>
    %cst_26 = arith.constant dense<0.000000e+00> : vector<8x8xf32>
    %35 = tpu.matmul %31, %25, %cst_26 {dimension_numbers = #tpu.dot_dimension_numbers<[1], [0], [0], [1], [0, 0, 1, 1], [], []>, precision = #tpu.contract_precision<fp32>} : vector<8x8xf32>, vector<8x8xf32>, vector<8x8xf32> -> vector<8x8xf32>
    %36 = vector.broadcast %34 : vector<8x1xf32> to vector<8x8xf32>
    %37 = arith.mulf %35, %36 : vector<8x8xf32>
    %c0_27 = arith.constant 0 : index
    %c0_28 = arith.constant 0 : index
    %38 = vector.load %arg13[%c0_27, %c0_28] : memref<8x32xf32, #tpu.memory_space<vmem>>, vector<8x8xf32>
    tpu.vector_store %arg13[%c0_27, %c0_28], %37 {strides = array<i32>} : memref<8x32xf32, #tpu.memory_space<vmem>>, vector<8x8xf32>,
    %39 = vector.extract_strided_slice %22 {offsets = [0, 8], sizes = [8, 8], strides = [1, 1]} : vector<8x32xf32> to vector<8x8xf32>
    %40 = vector.extract_strided_slice %13 {offsets = [0, 8], sizes = [8, 8], strides = [1, 1]} : vector<8x32xf32> to vector<8x8xf32>
    %41 = vector.extract_strided_slice %20 {offsets = [0, 8], sizes = [8, 8], strides = [1, 1]} : vector<8x32xf32> to vector<8x8xf32>
    %cst_29 = arith.constant dense<0.000000e+00> : vector<8x8xf32>
    %42 = tpu.matmul %39, %40, %cst_29 {dimension_numbers = #tpu.dot_dimension_numbers<[1], [1], [0], [0], [0, 0, 1, 0], [], []>, precision = #tpu.contract_precision<fp32>} : vector<8x8xf32>, vector<8x8xf32>, vector<8x8xf32> -> vector<8x8xf32>
    %cst_30 = arith.constant dense<0xFF800000> : vector<8xf32>
    %43 = vector.multi_reduction <maximumf>, %42, %cst_30 [1] : vector<8x8xf32> to vector<8xf32>
    %44 = vector.shape_cast %43 : vector<8xf32> to vector<8x1xf32>
    %45 = vector.broadcast %44 : vector<8x1xf32> to vector<8x8xf32>
    %46 = arith.subf %42, %45 : vector<8x8xf32>
    %47 = math.exp %46 : vector<8x8xf32>
    %cst_31 = arith.constant dense<0.000000e+00> : vector<8xf32>
    %48 = vector.multi_reduction <add>, %47, %cst_31 [1] : vector<8x8xf32> to vector<8xf32>
    %49 = vector.shape_cast %48 : vector<8xf32> to vector<8x1xf32>
    %50 = tpu.reciprocal %49 {approx = true} : vector<8x1xf32> -> vector<8x1xf32>
    %cst_32 = arith.constant dense<0.000000e+00> : vector<8x8xf32>
    %51 = tpu.matmul %47, %41, %cst_32 {dimension_numbers = #tpu.dot_dimension_numbers<[1], [0], [0], [1], [0, 0, 1, 1], [], []>, precision = #tpu.contract_precision<fp32>} : vector<8x8xf32>, vector<8x8xf32>, vector<8x8xf32> -> vector<8x8xf32>
    %52 = vector.broadcast %50 : vector<8x1xf32> to vector<8x8xf32>
    %53 = arith.mulf %51, %52 : vector<8x8xf32>
    %c0_33 = arith.constant 0 : index
    %c8 = arith.constant 8 : index
    %54 = vector.load %arg13[%c0_33, %c8] : memref<8x32xf32, #tpu.memory_space<vmem>>, vector<8x8xf32>
    tpu.vector_store %arg13[%c0_33, %c8], %53 {strides = array<i32>} : memref<8x32xf32, #tpu.memory_space<vmem>>, vector<8x8xf32>,
    %55 = vector.extract_strided_slice %22 {offsets = [0, 16], sizes = [8, 8], strides = [1, 1]} : vector<8x32xf32> to vector<8x8xf32>
    %56 = vector.extract_strided_slice %13 {offsets = [0, 16], sizes = [8, 8], strides = [1, 1]} : vector<8x32xf32> to vector<8x8xf32>
    %57 = vector.extract_strided_slice %20 {offsets = [0, 16], sizes = [8, 8], strides = [1, 1]} : vector<8x32xf32> to vector<8x8xf32>
    %cst_34 = arith.constant dense<0.000000e+00> : vector<8x8xf32>
    %58 = tpu.matmul %55, %56, %cst_34 {dimension_numbers = #tpu.dot_dimension_numbers<[1], [1], [0], [0], [0, 0, 1, 0], [], []>, precision = #tpu.contract_precision<fp32>} : vector<8x8xf32>, vector<8x8xf32>, vector<8x8xf32> -> vector<8x8xf32>
    %cst_35 = arith.constant dense<0xFF800000> : vector<8xf32>
    %59 = vector.multi_reduction <maximumf>, %58, %cst_35 [1] : vector<8x8xf32> to vector<8xf32>
    %60 = vector.shape_cast %59 : vector<8xf32> to vector<8x1xf32>
    %61 = vector.broadcast %60 : vector<8x1xf32> to vector<8x8xf32>
    %62 = arith.subf %58, %61 : vector<8x8xf32>
    %63 = math.exp %62 : vector<8x8xf32>
    %cst_36 = arith.constant dense<0.000000e+00> : vector<8xf32>
    %64 = vector.multi_reduction <add>, %63, %cst_36 [1] : vector<8x8xf32> to vector<8xf32>
    %65 = vector.shape_cast %64 : vector<8xf32> to vector<8x1xf32>
    %66 = tpu.reciprocal %65 {approx = true} : vector<8x1xf32> -> vector<8x1xf32>
    %cst_37 = arith.constant dense<0.000000e+00> : vector<8x8xf32>
    %67 = tpu.matmul %63, %57, %cst_37 {dimension_numbers = #tpu.dot_dimension_numbers<[1], [0], [0], [1], [0, 0, 1, 1], [], []>, precision = #tpu.contract_precision<fp32>} : vector<8x8xf32>, vector<8x8xf32>, vector<8x8xf32> -> vector<8x8xf32>
    %68 = vector.broadcast %66 : vector<8x1xf32> to vector<8x8xf32>
    %69 = arith.mulf %67, %68 : vector<8x8xf32>
    %c0_38 = arith.constant 0 : index
    %c16 = arith.constant 16 : index
    %70 = vector.load %arg13[%c0_38, %c16] : memref<8x32xf32, #tpu.memory_space<vmem>>, vector<8x8xf32>
    tpu.vector_store %arg13[%c0_38, %c16], %69 {strides = array<i32>} : memref<8x32xf32, #tpu.memory_space<vmem>>, vector<8x8xf32>,
    %71 = vector.extract_strided_slice %22 {offsets = [0, 24], sizes = [8, 8], strides = [1, 1]} : vector<8x32xf32> to vector<8x8xf32>
    %72 = vector.extract_strided_slice %13 {offsets = [0, 24], sizes = [8, 8], strides = [1, 1]} : vector<8x32xf32> to vector<8x8xf32>
    %73 = vector.extract_strided_slice %20 {offsets = [0, 24], sizes = [8, 8], strides = [1, 1]} : vector<8x32xf32> to vector<8x8xf32>
    %cst_39 = arith.constant dense<0.000000e+00> : vector<8x8xf32>
    %74 = tpu.matmul %71, %72, %cst_39 {dimension_numbers = #tpu.dot_dimension_numbers<[1], [1], [0], [0], [0, 0, 1, 0], [], []>, precision = #tpu.contract_precision<fp32>} : vector<8x8xf32>, vector<8x8xf32>, vector<8x8xf32> -> vector<8x8xf32>
    %cst_40 = arith.constant dense<0xFF800000> : vector<8xf32>
    %75 = vector.multi_reduction <maximumf>, %74, %cst_40 [1] : vector<8x8xf32> to vector<8xf32>
    %76 = vector.shape_cast %75 : vector<8xf32> to vector<8x1xf32>
    %77 = vector.broadcast %76 : vector<8x1xf32> to vector<8x8xf32>
    %78 = arith.subf %74, %77 : vector<8x8xf32>
    %79 = math.exp %78 : vector<8x8xf32>
    %cst_41 = arith.constant dense<0.000000e+00> : vector<8xf32>
    %80 = vector.multi_reduction <add>, %79, %cst_41 [1] : vector<8x8xf32> to vector<8xf32>
    %81 = vector.shape_cast %80 : vector<8xf32> to vector<8x1xf32>
    %82 = tpu.reciprocal %81 {approx = true} : vector<8x1xf32> -> vector<8x1xf32>
    %cst_42 = arith.constant dense<0.000000e+00> : vector<8x8xf32>
    %83 = tpu.matmul %79, %73, %cst_42 {dimension_numbers = #tpu.dot_dimension_numbers<[1], [0], [0], [1], [0, 0, 1, 1], [], []>, precision = #tpu.contract_precision<fp32>} : vector<8x8xf32>, vector<8x8xf32>, vector<8x8xf32> -> vector<8x8xf32>
    %84 = vector.broadcast %82 : vector<8x1xf32> to vector<8x8xf32>
    %85 = arith.mulf %83, %84 : vector<8x8xf32>
    %c0_43 = arith.constant 0 : index
    %c24 = arith.constant 24 : index
    %86 = vector.load %arg13[%c0_43, %c24] : memref<8x32xf32, #tpu.memory_space<vmem>>, vector<8x8xf32>
    tpu.vector_store %arg13[%c0_43, %c24], %85 {strides = array<i32>} : memref<8x32xf32, #tpu.memory_space<vmem>>, vector<8x8xf32>,
    %c0_44 = arith.constant 0 : index
    %c0_45 = arith.constant 0 : index
    %87 = vector.load %arg13[%c0_44, %c0_45] : memref<8x32xf32, #tpu.memory_space<vmem>>, vector<8x32xf32>
    %c0_46 = arith.constant 0 : index
    %c0_47 = arith.constant 0 : index
    %88 = vector.load %arg10[%c0_46, %c0_47] : memref<32x32xf32, #tpu.memory_space<vmem>>, vector<32x32xf32>
    %cst_48 = arith.constant dense<0.000000e+00> : vector<8x32xf32>
    %89 = tpu.matmul %87, %88, %cst_48 {dimension_numbers = #tpu.dot_dimension_numbers<[1], [0], [0], [1], [0, 0, 1, 1], [], []>, precision = #tpu.contract_precision<fp32>} : vector<8x32xf32>, vector<32x32xf32>, vector<8x32xf32> -> vector<8x32xf32>
    %c0_49 = arith.constant 0 : index
    %c0_50 = arith.constant 0 : index
    %90 = vector.load %arg11[%c0_49, %c0_50] : memref<1x32xf32, #tpu.memory_space<vmem>>, vector<1x32xf32>
    %91 = vector.broadcast %90 : vector<1x32xf32> to vector<8x32xf32>
    %92 = arith.addf %89, %91 : vector<8x32xf32>
    %c0_51 = arith.constant 0 : index
    %c0_52 = arith.constant 0 : index
    %c0_53 = arith.constant 0 : index
    %93 = vector.load %arg12[%c0_51, %c0_52, %c0_53] : memref<1x8x32xf32, #tpu.memory_space<vmem>>, vector<1x8x32xf32>
    %94 = vector.shape_cast %93 : vector<1x8x32xf32> to vector<8x32xf32>
    %95 = vector.shape_cast %92 : vector<8x32xf32> to vector<1x8x32xf32>
    tpu.vector_store %arg12[%c0_51, %c0_52, %c0_53], %95 {strides = array<i32>} : memref<1x8x32xf32, #tpu.memory_space<vmem>>, vector<1x8x32xf32>,
    return
  }
  func.func @transform_0(%arg0: i32) -> (i32, i32, i32) {
    %c0_i32 = arith.constant 0 : i32
    %c0_i32_0 = arith.constant 0 : i32
    %c0_i32_1 = arith.constant 0 : i32
    return %arg0, %c0_i32, %c0_i32_0 : i32, i32, i32
  }
  func.func @transform_1(%arg0: i32) -> (i32, i32, i32) {
    %c0_i32 = arith.constant 0 : i32
    %c0_i32_0 = arith.constant 0 : i32
    %c0_i32_1 = arith.constant 0 : i32
    return %arg0, %c0_i32, %c0_i32_0 : i32, i32, i32
  }
  func.func @transform_2(%arg0: i32) -> (i32, i32, i32) {
    %c0_i32 = arith.constant 0 : i32
    %c0_i32_0 = arith.constant 0 : i32
    %c0_i32_1 = arith.constant 0 : i32
    return %arg0, %c0_i32, %c0_i32_0 : i32, i32, i32
  }
  func.func @transform_3(%arg0: i32) -> (i32, i32) {
    %c0_i32 = arith.constant 0 : i32
    %c0_i32_0 = arith.constant 0 : i32
    %c0_i32_1 = arith.constant 0 : i32
    return %c0_i32, %c0_i32_0 : i32, i32
  }
  func.func @transform_4(%arg0: i32) -> (i32, i32) {
    %c0_i32 = arith.constant 0 : i32
    %c0_i32_0 = arith.constant 0 : i32
    %c0_i32_1 = arith.constant 0 : i32
    return %c0_i32, %c0_i32_0 : i32, i32
  }
  func.func @transform_5(%arg0: i32) -> (i32, i32) {
    %c0_i32 = arith.constant 0 : i32
    %c0_i32_0 = arith.constant 0 : i32
    %c0_i32_1 = arith.constant 0 : i32
    return %c0_i32, %c0_i32_0 : i32, i32
  }
  func.func @transform_6(%arg0: i32) -> (i32, i32) {
    %c0_i32 = arith.constant 0 : i32
    %c0_i32_0 = arith.constant 0 : i32
    %c0_i32_1 = arith.constant 0 : i32
    return %c0_i32, %c0_i32_0 : i32, i32
  }
  func.func @transform_7(%arg0: i32) -> (i32, i32) {
    %c0_i32 = arith.constant 0 : i32
    %c0_i32_0 = arith.constant 0 : i32
    %c0_i32_1 = arith.constant 0 : i32
    return %c0_i32, %c0_i32_0 : i32, i32
  }
  func.func @transform_8(%arg0: i32) -> (i32, i32) {
    %c0_i32 = arith.constant 0 : i32
    %c0_i32_0 = arith.constant 0 : i32
    %c0_i32_1 = arith.constant 0 : i32
    return %c0_i32, %c0_i32_0 : i32, i32
  }
  func.func @transform_9(%arg0: i32) -> (i32, i32) {
    %c0_i32 = arith.constant 0 : i32
    %c0_i32_0 = arith.constant 0 : i32
    %c0_i32_1 = arith.constant 0 : i32
    return %c0_i32, %c0_i32_0 : i32, i32
  }
  func.func @transform_10(%arg0: i32) -> (i32, i32) {
    %c0_i32 = arith.constant 0 : i32
    %c0_i32_0 = arith.constant 0 : i32
    %c0_i32_1 = arith.constant 0 : i32
    return %c0_i32, %c0_i32_0 : i32, i32
  }
  func.func @transform_11(%arg0: i32) -> (i32, i32, i32) {
    %c0_i32 = arith.constant 0 : i32
    %c0_i32_0 = arith.constant 0 : i32
    %c0_i32_1 = arith.constant 0 : i32
    return %arg0, %c0_i32, %c0_i32_0 : i32, i32, i32
  }
}

</mosaic_0001>

<llo_original>
// kernel: tpu_custom_call.1
$region0: #{tpu_custom_call.1}
  #allocation0 [shape = 'u32[]', space=smem, size = 0x4, offset = 0x4, fixed_abs, tag = 'smem constant byte address 0x4 - core index']
  #allocation1 [shape = 'u32[144,128]{1,0:T(1,128)}', space=vmem, size = 0x12000, scoped, tag = 'internal scratch']
  #allocation2 [shape = 'f32[8,32]{1,0:T(8,128)}', space=vmem, size = 0x1000, scoped, tag = 'scratch operand']
  %s0 = inlined_call_operand.hbm [shape: f32[2,8,32], index: 0, kind: input, shape index: {}]
  %s1 = inlined_call_operand.hbm [shape: f32[2,8,32], index: 1, kind: input, shape index: {}]
  %s2 = inlined_call_operand.hbm [shape: f32[2,8,32], index: 2, kind: input, shape index: {}]
  %s3 = inlined_call_operand.hbm [shape: f32[32,32], index: 3, kind: input, shape index: {}]
  %s4 = inlined_call_operand.vmem [shape: f32[1,32], index: 4, kind: input, shape index: {}]
  %s5 = inlined_call_operand.hbm [shape: f32[32,32], index: 5, kind: input, shape index: {}]
  %s6 = inlined_call_operand.vmem [shape: f32[1,32], index: 6, kind: input, shape index: {}]
  %s7 = inlined_call_operand.hbm [shape: f32[32,32], index: 7, kind: input, shape index: {}]
  %s8 = inlined_call_operand.vmem [shape: f32[1,32], index: 8, kind: input, shape index: {}]
  %s9 = inlined_call_operand.hbm [shape: f32[32,32], index: 9, kind: input, shape index: {}]
  %s10 = inlined_call_operand.vmem [shape: f32[1,32], index: 10, kind: input, shape index: {}]
  %s11 = inlined_call_operand.hbm [shape: f32[2,8,32], index: 11, kind: output, shape index: {}]
  %s12 = sld [smem:[#allocation0]]
  $region105: #{tpu_custom_call.1} parent=0
    _
  %s14 = ssub.s32 1, %s12
  %s15 = scalar_select 0, %s14, %s12
  $region1: #{tpu_custom_call.1} parent=0
    #allocation3 [shape = 'u8[8192]{0}', space=vmem, size = 0x2000, scoped, tag = 'input window, operand 0']
    #allocation4 [shape = 's32[2]{0}', space=sflag, size = 0x8, scoped, tag = 'scoped memory for tpu_custom_call.1']
    #allocation5 [shape = 's32[2]{0}', space=sflag, size = 0x8, scoped, tag = 'scoped memory for tpu_custom_call.1']
    #allocation6 [shape = 'u8[8192]{0}', space=vmem, size = 0x2000, scoped, tag = 'input window, operand 1']
    #allocation7 [shape = 's32[2]{0}', space=sflag, size = 0x8, scoped, tag = 'scoped memory for tpu_custom_call.1']
    #allocation8 [shape = 'u8[8192]{0}', space=vmem, size = 0x2000, scoped, tag = 'input window, operand 2']
    #allocation9 [shape = 'u8[16384]{0}', space=vmem, size = 0x4000, scoped, tag = 'input window, operand 3, single buffered']
    #allocation10 [shape = 's32[1]{0}', space=sflag, size = 0x4, scoped, tag = 'scoped memory for tpu_custom_call.1']
    #allocation11 [shape = 'u8[16384]{0}', space=vmem, size = 0x4000, scoped, tag = 'input window, operand 5, single buffered']
    #allocation12 [shape = 'u8[16384]{0}', space=vmem, size = 0x4000, scoped, tag = 'input window, operand 7, single buffered']
    #allocation13 [shape = 's32[1]{0}', space=sflag, size = 0x4, scoped, tag = 'scoped memory for tpu_custom_call.1']
    #allocation14 [shape = 'u8[16384]{0}', space=vmem, size = 0x4000, scoped, tag = 'input window, operand 9, single buffered']
    #allocation15 [shape = 'u8[8192]{0}', space=vmem, size = 0x2000, scoped, tag = 'output window, operand 0']
    %16 = vsyncpa [#allocation4], 0
    %s17 = scalar_lea.sflag [#allocation4], 1
    %18 = vsyncpa %s17, 0
    %19 = vsyncpa [#allocation7], 0
    %s20 = scalar_lea.sflag [#allocation7], 1
    %21 = vsyncpa %s20, 0
    %22 = vsyncpa [#allocation10], 0
    %23 = vsyncpa [#allocation13], 0
    %24 = vsyncpa [#allocation5], 0
    %s25 = scalar_lea.sflag [#allocation5], 1
    %26 = vsyncpa %s25, 0
    loop: start=0, step=1, limit=4
    $region2: #{tpu_custom_call.1} parent=1 // loop_pre_header
      _
    $region3: #{tpu_custom_call.1} parent=1 // loop_header
      %s28 = sphi 0, %s32
      %p29 = scmp.ge.s32.totalorder %s28, 4
      %s38 = sphi 0, %s40
      %s41 = sphi 0, %s38
      %s42 = sphi 0, %s41
      %s58 = sphi 0, %s42
      %s64 = sphi 0, %s66
      %s67 = sphi 0, %s64
      %s68 = sphi 0, %s67
      %s84 = sphi 0, %s68
      %s90 = sphi 0, %s92
      %s93 = sphi 0, %s90
      %s94 = sphi 0, %s93
      %s110 = sphi 0, %s94
      %s114 = sphi 0, %s114
      %s116 = sphi 0, %s114
      %s117 = sphi 0, %s116
      %s131 = sphi 0, %s117
      %s135 = sphi 0, %s135
      %s137 = sphi 0, %s135
      %s138 = sphi 0, %s137
      %s152 = sphi 0, %s138
      %s156 = sphi 0, %s156
      %s158 = sphi 0, %s156
      %s159 = sphi 0, %s158
      %s173 = sphi 0, %s159
      %s177 = sphi 0, %s177
      %s179 = sphi 0, %s177
      %s180 = sphi 0, %s179
      %s194 = sphi 0, %s180
      %s198 = sphi 0, %s198
      %s200 = sphi 0, %s198
      %s201 = sphi 0, %s200
      %s215 = sphi 0, %s201
      %s219 = sphi 0, %s219
      %s221 = sphi 0, %s219
      %s222 = sphi 0, %s221
      %s236 = sphi 0, %s222
      %s240 = sphi 0, %s240
      %s242 = sphi 0, %s240
      %s243 = sphi 0, %s242
      %s257 = sphi 0, %s243
      %s261 = sphi 0, %s261
      %s263 = sphi 0, %s261
      %s264 = sphi 0, %s263
      %s278 = sphi 0, %s264
      %s284 = sphi 0, %s286
      %s287 = sphi 0, %s284
      %s288 = sphi 0, %s287
      %s304 = sphi 0, %s288
    $region4: #{tpu_custom_call.1} parent=1 // loop_header_branch
      %31 = sbr.rel (%p29) target = $region8
    $region5: #{tpu_custom_call.1} parent=1 // loop_body
      %s33 = ssub.s32 %s28, 1
      %s34 = ssub.s32 %s28, 2
      %s35 = sadd.s32 %s28, 1
      %s36 = ssub.s32 %s28, %s35
      %p37 = scmp.eq.s32.totalorder %s36, 0
      %s39 = sadd.s32 %s38, 1
      %s40 = scalar_select %p37, %s38, %s39
      %p43 = pneg %p37
      %p44 = scmp.eq.s32.totalorder %s28, 1
      %p45 = por %p43, %p44
      %p46 = scmp.ne.s32.totalorder %s38, %s41
      %p47 = scmp.eq.s32.totalorder %s28, 0
      %p48 = por %p46, %p47
      %p49 = scmp.ne.s32.totalorder %s38, %s41
      %p50 = scmp.eq.s32.totalorder %s33, 1
      %p51 = por %p49, %p50
      %p52 = scmp.ne.s32.totalorder %s41, %s42
      %p53 = scmp.eq.s32.totalorder %s33, 0
      %p54 = por %p52, %p53
      %p55 = scmp.ne.s32.totalorder %s41, %s42
      %p56 = scmp.eq.s32.totalorder %s34, 1
      %p57 = por %p55, %p56
      %p59 = scmp.ne.s32.totalorder %s42, %s58
      %p60 = scmp.eq.s32.totalorder %s34, 0
      %p61 = por %p59, %p60
      %s62 = ssub.s32 %s28, %s35
      %p63 = scmp.eq.s32.totalorder %s62, 0
      %s65 = sadd.s32 %s64, 1
      %s66 = scalar_select %p63, %s64, %s65
      %p69 = pneg %p63
      %p70 = scmp.eq.s32.totalorder %s28, 1
      %p71 = por %p69, %p70
      %p72 = scmp.ne.s32.totalorder %s64, %s67
      %p73 = scmp.eq.s32.totalorder %s28, 0
      %p74 = por %p72, %p73
      %p75 = scmp.ne.s32.totalorder %s64, %s67
      %p76 = scmp.eq.s32.totalorder %s33, 1
      %p77 = por %p75, %p76
      %p78 = scmp.ne.s32.totalorder %s67, %s68
      %p79 = scmp.eq.s32.totalorder %s33, 0
      %p80 = por %p78, %p79
      %p81 = scmp.ne.s32.totalorder %s67, %s68
      %p82 = scmp.eq.s32.totalorder %s34, 1
      %p83 = por %p81, %p82
      %p85 = scmp.ne.s32.totalorder %s68, %s84
      %p86 = scmp.eq.s32.totalorder %s34, 0
      %p87 = por %p85, %p86
      %s88 = ssub.s32 %s28, %s35
      %p89 = scmp.eq.s32.totalorder %s88, 0
      %s91 = sadd.s32 %s90, 1
      %s92 = scalar_select %p89, %s90, %s91
      %p95 = pneg %p89
      %p96 = scmp.eq.s32.totalorder %s28, 1
      %p97 = por %p95, %p96
      %p98 = scmp.ne.s32.totalorder %s90, %s93
      %p99 = scmp.eq.s32.totalorder %s28, 0
      %p100 = por %p98, %p99
      %p101 = scmp.ne.s32.totalorder %s90, %s93
      %p102 = scmp.eq.s32.totalorder %s33, 1
      %p103 = por %p101, %p102
      %p104 = scmp.ne.s32.totalorder %s93, %s94
      %p105 = scmp.eq.s32.totalorder %s33, 0
      %p106 = por %p104, %p105
      %p107 = scmp.ne.s32.totalorder %s93, %s94
      %p108 = scmp.eq.s32.totalorder %s34, 1
      %p109 = por %p107, %p108
      %p111 = scmp.ne.s32.totalorder %s94, %s110
      %p112 = scmp.eq.s32.totalorder %s34, 0
      %p113 = por %p111, %p112
      %s115 = sadd.s32 %s114, 1
      %p118 = scmp.eq.s32.totalorder %s28, 1
      %p119 = scmp.ne.s32.totalorder %s114, %s116
      %p120 = scmp.eq.s32.totalorder %s28, 0
      %p121 = por %p119, %p120
      %p122 = scmp.ne.s32.totalorder %s114, %s116
      %p123 = scmp.eq.s32.totalorder %s33, 1
      %p124 = por %p122, %p123
      %p125 = scmp.ne.s32.totalorder %s116, %s117
      %p126 = scmp.eq.s32.totalorder %s33, 0
      %p127 = por %p125, %p126
      %p128 = scmp.ne.s32.totalorder %s116, %s117
      %p129 = scmp.eq.s32.totalorder %s34, 1
      %p130 = por %p128, %p129
      %p132 = scmp.ne.s32.totalorder %s117, %s131
      %p133 = scmp.eq.s32.totalorder %s34, 0
      %p134 = por %p132, %p133
      %s136 = sadd.s32 %s135, 1
      %p139 = scmp.eq.s32.totalorder %s28, 1
      %p140 = scmp.ne.s32.totalorder %s135, %s137
      %p141 = scmp.eq.s32.totalorder %s28, 0
      %p142 = por %p140, %p141
      %p143 = scmp.ne.s32.totalorder %s135, %s137
      %p144 = scmp.eq.s32.totalorder %s33, 1
      %p145 = por %p143, %p144
      %p146 = scmp.ne.s32.totalorder %s137, %s138
      %p147 = scmp.eq.s32.totalorder %s33, 0
      %p148 = por %p146, %p147
      %p149 = scmp.ne.s32.totalorder %s137, %s138
      %p150 = scmp.eq.s32.totalorder %s34, 1
      %p151 = por %p149, %p150
      %p153 = scmp.ne.s32.totalorder %s138, %s152
      %p154 = scmp.eq.s32.totalorder %s34, 0
      %p155 = por %p153, %p154
      %s157 = sadd.s32 %s156, 1
      %p160 = scmp.eq.s32.totalorder %s28, 1
      %p161 = scmp.ne.s32.totalorder %s156, %s158
      %p162 = scmp.eq.s32.totalorder %s28, 0
      %p163 = por %p161, %p162
      %p164 = scmp.ne.s32.totalorder %s156, %s158
      %p165 = scmp.eq.s32.totalorder %s33, 1
      %p166 = por %p164, %p165
      %p167 = scmp.ne.s32.totalorder %s158, %s159
      %p168 = scmp.eq.s32.totalorder %s33, 0
      %p169 = por %p167, %p168
      %p170 = scmp.ne.s32.totalorder %s158, %s159
      %p171 = scmp.eq.s32.totalorder %s34, 1
      %p172 = por %p170, %p171
      %p174 = scmp.ne.s32.totalorder %s159, %s173
      %p175 = scmp.eq.s32.totalorder %s34, 0
      %p176 = por %p174, %p175
      %s178 = sadd.s32 %s177, 1
      %p181 = scmp.eq.s32.totalorder %s28, 1
      %p182 = scmp.ne.s32.totalorder %s177, %s179
      %p183 = scmp.eq.s32.totalorder %s28, 0
      %p184 = por %p182, %p183
      %p185 = scmp.ne.s32.totalorder %s177, %s179
      %p186 = scmp.eq.s32.totalorder %s33, 1
      %p187 = por %p185, %p186
      %p188 = scmp.ne.s32.totalorder %s179, %s180
      %p189 = scmp.eq.s32.totalorder %s33, 0
      %p190 = por %p188, %p189
      %p191 = scmp.ne.s32.totalorder %s179, %s180
      %p192 = scmp.eq.s32.totalorder %s34, 1
      %p193 = por %p191, %p192
      %p195 = scmp.ne.s32.totalorder %s180, %s194
      %p196 = scmp.eq.s32.totalorder %s34, 0
      %p197 = por %p195, %p196
      %s199 = sadd.s32 %s198, 1
      %p202 = scmp.eq.s32.totalorder %s28, 1
      %p203 = scmp.ne.s32.totalorder %s198, %s200
      %p204 = scmp.eq.s32.totalorder %s28, 0
      %p205 = por %p203, %p204
      %p206 = scmp.ne.s32.totalorder %s198, %s200
      %p207 = scmp.eq.s32.totalorder %s33, 1
      %p208 = por %p206, %p207
      %p209 = scmp.ne.s32.totalorder %s200, %s201
      %p210 = scmp.eq.s32.totalorder %s33, 0
      %p211 = por %p209, %p210
      %p212 = scmp.ne.s32.totalorder %s200, %s201
      %p213 = scmp.eq.s32.totalorder %s34, 1
      %p214 = por %p212, %p213
      %p216 = scmp.ne.s32.totalorder %s201, %s215
      %p217 = scmp.eq.s32.totalorder %s34, 0
      %p218 = por %p216, %p217
      %s220 = sadd.s32 %s219, 1
      %p223 = scmp.eq.s32.totalorder %s28, 1
      %p224 = scmp.ne.s32.totalorder %s219, %s221
      %p225 = scmp.eq.s32.totalorder %s28, 0
      %p226 = por %p224, %p225
      %p227 = scmp.ne.s32.totalorder %s219, %s221
      %p228 = scmp.eq.s32.totalorder %s33, 1
      %p229 = por %p227, %p228
      %p230 = scmp.ne.s32.totalorder %s221, %s222
      %p231 = scmp.eq.s32.totalorder %s33, 0
      %p232 = por %p230, %p231
      %p233 = scmp.ne.s32.totalorder %s221, %s222
      %p234 = scmp.eq.s32.totalorder %s34, 1
      %p235 = por %p233, %p234
      %p237 = scmp.ne.s32.totalorder %s222, %s236
      %p238 = scmp.eq.s32.totalorder %s34, 0
      %p239 = por %p237, %p238
      %s241 = sadd.s32 %s240, 1
      %p244 = scmp.eq.s32.totalorder %s28, 1
      %p245 = scmp.ne.s32.totalorder %s240, %s242
      %p246 = scmp.eq.s32.totalorder %s28, 0
      %p247 = por %p245, %p246
      %p248 = scmp.ne.s32.totalorder %s240, %s242
      %p249 = scmp.eq.s32.totalorder %s33, 1
      %p250 = por %p248, %p249
      %p251 = scmp.ne.s32.totalorder %s242, %s243
      %p252 = scmp.eq.s32.totalorder %s33, 0
      %p253 = por %p251, %p252
      %p254 = scmp.ne.s32.totalorder %s242, %s243
      %p255 = scmp.eq.s32.totalorder %s34, 1
      %p256 = por %p254, %p255
      %p258 = scmp.ne.s32.totalorder %s243, %s257
      %p259 = scmp.eq.s32.totalorder %s34, 0
      %p260 = por %p258, %p259
      %s262 = sadd.s32 %s261, 1
      %p265 = scmp.eq.s32.totalorder %s28, 1
      %p266 = scmp.ne.s32.totalorder %s261, %s263
      %p267 = scmp.eq.s32.totalorder %s28, 0
      %p268 = por %p266, %p267
      %p269 = scmp.ne.s32.totalorder %s261, %s263
      %p270 = scmp.eq.s32.totalorder %s33, 1
      %p271 = por %p269, %p270
      %p272 = scmp.ne.s32.totalorder %s263, %s264
      %p273 = scmp.eq.s32.totalorder %s33, 0
      %p274 = por %p272, %p273
      %p275 = scmp.ne.s32.totalorder %s263, %s264
      %p276 = scmp.eq.s32.totalorder %s34, 1
      %p277 = por %p275, %p276
      %p279 = scmp.ne.s32.totalorder %s264, %s278
      %p280 = scmp.eq.s32.totalorder %s34, 0
      %p281 = por %p279, %p280
      %s282 = ssub.s32 %s28, %s35
      %p283 = scmp.eq.s32.totalorder %s282, 0
      %s285 = sadd.s32 %s284, 1
      %s286 = scalar_select %p283, %s284, %s285
      %p289 = pneg %p283
      %p290 = scmp.eq.s32.totalorder %s28, 1
      %p291 = por %p289, %p290
      %p292 = scmp.ne.s32.totalorder %s284, %s287
      %p293 = scmp.eq.s32.totalorder %s28, 0
      %p294 = por %p292, %p293
      %p295 = scmp.ne.s32.totalorder %s284, %s287
      %p296 = scmp.eq.s32.totalorder %s33, 1
      %p297 = por %p295, %p296
      %p298 = scmp.ne.s32.totalorder %s287, %s288
      %p299 = scmp.eq.s32.totalorder %s33, 0
      %p300 = por %p298, %p299
      %p301 = scmp.ne.s32.totalorder %s287, %s288
      %p302 = scmp.eq.s32.totalorder %s34, 1
      %p303 = por %p301, %p302
      %p305 = scmp.ne.s32.totalorder %s288, %s304
      %p306 = scmp.eq.s32.totalorder %s34, 0
      %p307 = por %p305, %p306
      %p308 = scmp.le.s32.totalorder 1, %s28
      %p309 = scmp.lt.s32.totalorder %s28, 3
      %p310 = pnand %p308, %p309
      %p311 = pneg %p310
      // Predicated region
      $region9: #{tpu_custom_call.1} parent=5 // pred_check
        _
      $region10: #{tpu_custom_call.1} parent=5 // pred_check_branch
        %313 = sbr.rel (%p310) target = $region12
      $region11: #{tpu_custom_call.1} parent=5 // pred_region
        %s314 = ssub.s32 %s28, 1
        // Predicated region
        $region13: #{tpu_custom_call.1} parent=11 // pred_check
          %p315 = pneg %p127
        $region14: #{tpu_custom_call.1} parent=11 // pred_check_branch
          %317 = sbr.rel (%p315) target = $region16
        $region15: #{tpu_custom_call.1} parent=11 // pred_region
          %s319 = ssub.s32 512, 512
          %320 = vsyncadd [#allocation10], %s319
          %s321 = sshll.u32 [#allocation9], 4
          %s322 = int_to_ptr.vmem [resolvable:$true] %s321
          %327 = dma.hbm_to_vmem [thread:$0]  %s3, 512, %s322, [#allocation10], 128, 128, 8
        $region16: #{tpu_custom_call.1} parent=11 // pred_fallthru
          _
        // Predicated region
        $region17: #{tpu_custom_call.1} parent=11 // pred_check
          %p328 = pneg %p148
        $region18: #{tpu_custom_call.1} parent=11 // pred_check_branch
          %330 = sbr.rel (%p328) target = $region20
        $region19: #{tpu_custom_call.1} parent=11 // pred_region
          _
        $region20: #{tpu_custom_call.1} parent=11 // pred_fallthru
          _
        // Predicated region
        $region21: #{tpu_custom_call.1} parent=11 // pred_check
          %p331 = pneg %p169
        $region22: #{tpu_custom_call.1} parent=11 // pred_check_branch
          %333 = sbr.rel (%p331) target = $region24
        $region23: #{tpu_custom_call.1} parent=11 // pred_region
          %s335 = ssub.s32 512, 512
          %336 = vsyncadd [#allocation10], %s335
          %s337 = sshll.u32 [#allocation11], 4
          %s338 = int_to_ptr.vmem [resolvable:$true] %s337
          %343 = dma.hbm_to_vmem [thread:$0]  %s5, 512, %s338, [#allocation10], 128, 128, 8
        $region24: #{tpu_custom_call.1} parent=11 // pred_fallthru
          _
        // Predicated region
        $region25: #{tpu_custom_call.1} parent=11 // pred_check
          %p344 = pneg %p190
        $region26: #{tpu_custom_call.1} parent=11 // pred_check_branch
          %346 = sbr.rel (%p344) target = $region28
        $region27: #{tpu_custom_call.1} parent=11 // pred_region
          _
        $region28: #{tpu_custom_call.1} parent=11 // pred_fallthru
          _
        // Predicated region
        $region29: #{tpu_custom_call.1} parent=11 // pred_check
          %p347 = pneg %p211
        $region30: #{tpu_custom_call.1} parent=11 // pred_check_branch
          %349 = sbr.rel (%p347) target = $region32
        $region31: #{tpu_custom_call.1} parent=11 // pred_region
          %s351 = ssub.s32 512, 512
          %352 = vsyncadd [#allocation13], %s351
          %s353 = sshll.u32 [#allocation12], 4
          %s354 = int_to_ptr.vmem [resolvable:$true] %s353
          %359 = dma.hbm_to_vmem [thread:$0]  %s7, 512, %s354, [#allocation13], 128, 128, 8
        $region32: #{tpu_custom_call.1} parent=11 // pred_fallthru
          _
        // Predicated region
        $region33: #{tpu_custom_call.1} parent=11 // pred_check
          %p360 = pneg %p232
        $region34: #{tpu_custom_call.1} parent=11 // pred_check_branch
          %362 = sbr.rel (%p360) target = $region36
        $region35: #{tpu_custom_call.1} parent=11 // pred_region
          _
        $region36: #{tpu_custom_call.1} parent=11 // pred_fallthru
          _
        // Predicated region
        $region37: #{tpu_custom_call.1} parent=11 // pred_check
          %p363 = pneg %p253
        $region38: #{tpu_custom_call.1} parent=11 // pred_check_branch
          %365 = sbr.rel (%p363) target = $region40
        $region39: #{tpu_custom_call.1} parent=11 // pred_region
          %s367 = ssub.s32 512, 512
          %368 = vsyncadd [#allocation13], %s367
          %s369 = sshll.u32 [#allocation14], 4
          %s370 = int_to_ptr.vmem [resolvable:$true] %s369
          %375 = dma.hbm_to_vmem [thread:$0]  %s9, 512, %s370, [#allocation13], 128, 128, 8
        $region40: #{tpu_custom_call.1} parent=11 // pred_fallthru
          _
        // Predicated region
        $region41: #{tpu_custom_call.1} parent=11 // pred_check
          %p376 = pneg %p274
        $region42: #{tpu_custom_call.1} parent=11 // pred_check_branch
          %378 = sbr.rel (%p376) target = $region44
        $region43: #{tpu_custom_call.1} parent=11 // pred_region
          _
        $region44: #{tpu_custom_call.1} parent=11 // pred_fallthru
          _
      $region12: #{tpu_custom_call.1} parent=5 // pred_fallthru
        _
      %p379 = scmp.lt.s32.totalorder %s28, 2
      // Predicated region
      $region45: #{tpu_custom_call.1} parent=5 // pred_check
        %p380 = pneg %p379
      $region46: #{tpu_custom_call.1} parent=5 // pred_check_branch
        %382 = sbr.rel (%p380) target = $region48
      $region47: #{tpu_custom_call.1} parent=5 // pred_region
        // Predicated region
        $region49: #{tpu_custom_call.1} parent=47 // pred_check
          %p383 = pneg %p48
        $region50: #{tpu_custom_call.1} parent=47 // pred_check_branch
          %385 = sbr.rel (%p383) target = $region52
        $region51: #{tpu_custom_call.1} parent=47 // pred_region
          %s386 = sand.u32 %s38, 1
          %s387 = scalar_lea.sflag [#allocation4], %s386
          %s388 = sand.u32 %s38, 1
          %s389 = smul.addr %s388, 8
          %s390 = scalar_lea.vmem [#allocation3], %s389
          %s392 = ssub.s32 128, 128
          %393 = vsyncadd %s387, %s392
          %s394 = smul.addr %s28, 128
          %s395 = scalar_lea.hbm %s0, %s394
          %s397 = sshll.u32 %s390, 4
          %s398 = int_to_ptr.vmem [resolvable:$true] %s397
          %400 = dma.hbm_to_vmem [thread:$0]  %s395, 128, %s398, %s387
        $region52: #{tpu_custom_call.1} parent=47 // pred_fallthru
          _
        // Predicated region
        $region53: #{tpu_custom_call.1} parent=47 // pred_check
          %p401 = pneg %p74
        $region54: #{tpu_custom_call.1} parent=47 // pred_check_branch
          %403 = sbr.rel (%p401) target = $region56
        $region55: #{tpu_custom_call.1} parent=47 // pred_region
          %s404 = sand.u32 %s28, 1
          %s405 = scalar_lea.sflag [#allocation7], %s404
          %s406 = sand.u32 %s64, 1
          %s407 = smul.addr %s406, 8
          %s408 = scalar_lea.vmem [#allocation6], %s407
          %s410 = ssub.s32 128, 128
          %411 = vsyncadd %s405, %s410
          %s412 = smul.addr %s28, 128
          %s413 = scalar_lea.hbm %s1, %s412
          %s415 = sshll.u32 %s408, 4
          %s416 = int_to_ptr.vmem [resolvable:$true] %s415
          %418 = dma.hbm_to_vmem [thread:$0]  %s413, 128, %s416, %s405
        $region56: #{tpu_custom_call.1} parent=47 // pred_fallthru
          _
        // Predicated region
        $region57: #{tpu_custom_call.1} parent=47 // pred_check
          %p419 = pneg %p100
        $region58: #{tpu_custom_call.1} parent=47 // pred_check_branch
          %421 = sbr.rel (%p419) target = $region60
        $region59: #{tpu_custom_call.1} parent=47 // pred_region
          %s422 = sand.u32 %s28, 1
          %s423 = scalar_lea.sflag [#allocation7], %s422
          %s424 = sand.u32 %s90, 1
          %s425 = smul.addr %s424, 8
          %s426 = scalar_lea.vmem [#allocation8], %s425
          %s428 = ssub.s32 128, 128
          %429 = vsyncadd %s423, %s428
          %s430 = smul.addr %s28, 128
          %s431 = scalar_lea.hbm %s2, %s430
          %s433 = sshll.u32 %s426, 4
          %s434 = int_to_ptr.vmem [resolvable:$true] %s433
          %436 = dma.hbm_to_vmem [thread:$0]  %s431, 128, %s434, %s423
        $region60: #{tpu_custom_call.1} parent=47 // pred_fallthru
          _
      $region48: #{tpu_custom_call.1} parent=5 // pred_fallthru
        _
      %p437 = scmp.le.s32.totalorder 1, %s28
      %p438 = scmp.lt.s32.totalorder %s28, 3
      %p439 = pnand %p437, %p438
      %p440 = pneg %p439
      // Predicated region
      $region61: #{tpu_custom_call.1} parent=5 // pred_check
        _
      $region62: #{tpu_custom_call.1} parent=5 // pred_check_branch
        %442 = sbr.rel (%p439) target = $region64
      $region63: #{tpu_custom_call.1} parent=5 // pred_region
        %s443 = ssub.s32 %s28, 1
        %s444 = sand.u32 %s41, 1
        %s445 = scalar_lea.sflag [#allocation4], %s444
        %s446 = sand.u32 %s41, 1
        %s447 = smul.addr %s446, 8
        %s448 = scalar_lea.vmem [#allocation3], %s447
        // Predicated region
        $region65: #{tpu_custom_call.1} parent=63 // pred_check
          %p449 = pneg %p54
        $region66: #{tpu_custom_call.1} parent=63 // pred_check_branch
          %451 = sbr.rel (%p449) target = $region68
        $region67: #{tpu_custom_call.1} parent=63 // pred_region
          %452 = dma.done %s445, 128
        $region68: #{tpu_custom_call.1} parent=63 // pred_fallthru
          _
        %s453 = sand.u32 %s33, 1
        %s454 = scalar_lea.sflag [#allocation7], %s453
        %s455 = sand.u32 %s67, 1
        %s456 = smul.addr %s455, 8
        %s457 = scalar_lea.vmem [#allocation6], %s456
        // Predicated region
        $region69: #{tpu_custom_call.1} parent=63 // pred_check
          %p458 = pneg %p80
        $region70: #{tpu_custom_call.1} parent=63 // pred_check_branch
          %460 = sbr.rel (%p458) target = $region72
        $region71: #{tpu_custom_call.1} parent=63 // pred_region
          %461 = dma.done %s454, 128
        $region72: #{tpu_custom_call.1} parent=63 // pred_fallthru
          _
        %s462 = sand.u32 %s33, 1
        %s463 = scalar_lea.sflag [#allocation7], %s462
        %s464 = sand.u32 %s93, 1
        %s465 = smul.addr %s464, 8
        %s466 = scalar_lea.vmem [#allocation8], %s465
        // Predicated region
        $region73: #{tpu_custom_call.1} parent=63 // pred_check
          %p467 = pneg %p106
        $region74: #{tpu_custom_call.1} parent=63 // pred_check_branch
          %469 = sbr.rel (%p467) target = $region76
        $region75: #{tpu_custom_call.1} parent=63 // pred_region
          %470 = dma.done %s463, 128
        $region76: #{tpu_custom_call.1} parent=63 // pred_fallthru
          _
        // Predicated region
        $region77: #{tpu_custom_call.1} parent=63 // pred_check
          %p471 = pneg %p127
        $region78: #{tpu_custom_call.1} parent=63 // pred_check_branch
          %473 = sbr.rel (%p471) target = $region80
        $region79: #{tpu_custom_call.1} parent=63 // pred_region
          %474 = dma.done [#allocation10], 512
        $region80: #{tpu_custom_call.1} parent=63 // pred_fallthru
          _
        // Predicated region
        $region81: #{tpu_custom_call.1} parent=63 // pred_check
          %p475 = pneg %p169
        $region82: #{tpu_custom_call.1} parent=63 // pred_check_branch
          %477 = sbr.rel (%p475) target = $region84
        $region83: #{tpu_custom_call.1} parent=63 // pred_region
          %478 = dma.done [#allocation10], 512
        $region84: #{tpu_custom_call.1} parent=63 // pred_fallthru
          _
        // Predicated region
        $region85: #{tpu_custom_call.1} parent=63 // pred_check
          %p479 = pneg %p211
        $region86: #{tpu_custom_call.1} parent=63 // pred_check_branch
          %481 = sbr.rel (%p479) target = $region88
        $region87: #{tpu_custom_call.1} parent=63 // pred_region
          %482 = dma.done [#allocation13], 512
        $region88: #{tpu_custom_call.1} parent=63 // pred_fallthru
          _
        // Predicated region
        $region89: #{tpu_custom_call.1} parent=63 // pred_check
          %p483 = pneg %p253
        $region90: #{tpu_custom_call.1} parent=63 // pred_check_branch
          %485 = sbr.rel (%p483) target = $region92
        $region91: #{tpu_custom_call.1} parent=63 // pred_region
          %486 = dma.done [#allocation13], 512
        $region92: #{tpu_custom_call.1} parent=63 // pred_fallthru
          _
        %s487 = sand.u32 %s41, 1
        %s488 = scalar_lea.sflag [#allocation4], %s487
        %s489 = sand.u32 %s41, 1
        %s490 = smul.addr %s489, 8
        %s491 = scalar_lea.vmem [#allocation3], %s490
        %p492 = pneg %p54
        %p493 = pneg %p51
        %s494 = sand.u32 %s33, 1
        %s495 = scalar_lea.sflag [#allocation7], %s494
        %s496 = sand.u32 %s67, 1
        %s497 = smul.addr %s496, 8
        %s498 = scalar_lea.vmem [#allocation6], %s497
        %p499 = pneg %p80
        %p500 = pneg %p77
        %s501 = sand.u32 %s33, 1
        %s502 = scalar_lea.sflag [#allocation7], %s501
        %s503 = sand.u32 %s93, 1
        %s504 = smul.addr %s503, 8
        %s505 = scalar_lea.vmem [#allocation8], %s504
        %p506 = pneg %p106
        %p507 = pneg %p103
        %p508 = pneg %p127
        %p509 = pneg %p124
        %p510 = pneg %p148
        %p511 = pneg %p145
        %p512 = pneg %p169
        %p513 = pneg %p166
        %p514 = pneg %p190
        %p515 = pneg %p187
        %p516 = pneg %p211
        %p517 = pneg %p208
        %p518 = pneg %p232
        %p519 = pneg %p229
        %p520 = pneg %p253
        %p521 = pneg %p250
        %p522 = pneg %p274
        %p523 = pneg %p271
        %p524 = pneg %p300
        %p525 = pneg %p297
        %s526 = sand.u32 %s287, 1
        %s527 = scalar_lea.sflag [#allocation5], %s526
        %s528 = sand.u32 %s287, 1
        %s529 = smul.addr %s528, 8
        %s530 = scalar_lea.vmem [#allocation15], %s529
        %v531 = vld [vmem:[%s448] sm:$0xff]
        %v532 = vld [vmem:[#allocation9] sm:$0xff]
        %v533 = vld [vmem:[#allocation9 + $0x8] sm:$0xff]
        %v534 = vld [vmem:[#allocation9 + $0x10] sm:$0xff]
        %v535 = vld [vmem:[#allocation9 + $0x18] sm:$0xff]
        %v536 = vld [vmem:[%s4] sm:$0x1]
        %v538 = vlaneseq
        %v539 = vshrl.u32 %v538, 7
        %v540 = vsub.s32 0, %v539
        %v541 = vrot.slane %v536, %v540
        %vm543 = vcmask 261120
        %v545 = vsel %vm543, %v531, 0
        %547 = vmatprep.subr.mxu0 0.0
        %548 = vmatpush1.msra.mxu0 0.0
        %549 = vmatprep.subr.mxu0 0.0
        %550 = vmatpush1.msra.mxu0 0.0
        %551 = vmatprep.subr.mxu0 0.0
        %552 = vmatpush1.msra.mxu0 0.0
        %553 = vmatprep.subr.mxu0 0.0
        %554 = vmatpush1.msra.mxu0 0.0
        %555 = vmatprep.subr.mxu0 0.0
        %556 = vmatpush1.msra.mxu0 0.0
        %557 = vmatprep.subr.mxu0 0.0
        %558 = vmatpush1.msra.mxu0 0.0
        %559 = vmatprep.subr.mxu0 0.0
        %560 = vmatpush1.msra.mxu0 0.0
        %561 = vmatprep.subr.mxu0 0.0
        %562 = vmatpush1.msra.mxu0 0.0
        %563 = vmatprep.subr.mxu0 0.0
        %564 = vmatpush1.msra.mxu0 0.0
        %565 = vmatprep.subr.mxu0 0.0
        %566 = vmatpush1.msra.mxu0 0.0
        %567 = vmatprep.subr.mxu0 0.0
        %568 = vmatpush1.msra.mxu0 0.0
        %569 = vmatprep.subr.mxu0 0.0
        %570 = vmatpush1.msra.mxu0 0.0
        %571 = vmatprep.subr.mxu0 0.0
        %v572 = vand.u32 %v535, 4294901760
        %573 = vmatpush1.msra.mxu0 %v572
        %574 = vmatprep.subr.mxu0 0.0
        %v575 = vand.u32 %v534, 4294901760
        %576 = vmatpush1.msra.mxu0 %v575
        %577 = vmatprep.subr.mxu0 0.0
        %v578 = vand.u32 %v533, 4294901760
        %579 = vmatpush1.msra.mxu0 %v578
        %580 = vmatprep.subr.mxu0 0.0
        %v581 = vand.u32 %v532, 4294901760
        %582 = vmatpush1.msra.mxu0 %v581
        %583 = vmatprep.subr.mxu0 0.0
        %584 = vmatpush2.msra.mxu0 0.0
        %585 = vmatprep.subr.mxu0 0.0
        %586 = vmatpush2.msra.mxu0 0.0
        %587 = vmatprep.subr.mxu0 0.0
        %588 = vmatpush2.msra.mxu0 0.0
        %589 = vmatprep.subr.mxu0 0.0
        %590 = vmatpush2.msra.mxu0 0.0
        %591 = vmatprep.subr.mxu0 0.0
        %592 = vmatpush2.msra.mxu0 0.0
        %593 = vmatprep.subr.mxu0 0.0
        %594 = vmatpush2.msra.mxu0 0.0
        %595 = vmatprep.subr.mxu0 0.0
        %596 = vmatpush2.msra.mxu0 0.0
        %597 = vmatprep.subr.mxu0 0.0
        %598 = vmatpush2.msra.mxu0 0.0
        %599 = vmatprep.subr.mxu0 0.0
        %600 = vmatpush2.msra.mxu0 0.0
        %601 = vmatprep.subr.mxu0 0.0
        %602 = vmatpush2.msra.mxu0 0.0
        %603 = vmatprep.subr.mxu0 0.0
        %604 = vmatpush2.msra.mxu0 0.0
        %605 = vmatprep.subr.mxu0 0.0
        %606 = vmatpush2.msra.mxu0 0.0
        %607 = vmatprep.subr.mxu0 0.0
        %608 = vmatpush2.msra.mxu0 0.0
        %609 = vmatprep.subr.mxu0 0.0
        %610 = vmatpush2.msra.mxu0 0.0
        %611 = vmatprep.subr.mxu0 0.0
        %612 = vmatpush2.msra.mxu0 0.0
        %613 = vmatprep.subr.mxu0 0.0
        %614 = vmatpush2.msra.mxu0 0.0
        %615 = vmatprep.mubr.f32.mxu0 0.0
        %v616 = vand.u32 %v545, 4294901760
        %v617 = vsub.f32 %v545, %v616
        %v618 = vand.u32 %v617, 4294901760
        %v619 = vsub.f32 %v617, %v618
        %v620 = vand.u32 %v619, 4294901760
        %621 = vmatmul.mubr.f32.gmra.mxu0 %v620
        %v622 = vpop.f32.mrf.mxu0
        %v623 = vadd.f32 %v541, %v622
        %v624 = vpop.f32.mrf.mxu0
        %625 = vdwg.mxu0
        %626 = vmatprep.subr.mxu0 0.0
        %627 = vmatpush1.msra.mxu0 0.0
        %628 = vmatprep.subr.mxu0 0.0
        %629 = vmatpush1.msra.mxu0 0.0
        %630 = vmatprep.subr.mxu0 0.0
        %631 = vmatpush1.msra.mxu0 0.0
        %632 = vmatprep.subr.mxu0 0.0
        %633 = vmatpush1.msra.mxu0 0.0
        %634 = vmatprep.subr.mxu0 0.0
        %635 = vmatpush1.msra.mxu0 0.0
        %636 = vmatprep.subr.mxu0 0.0
        %637 = vmatpush1.msra.mxu0 0.0
        %638 = vmatprep.subr.mxu0 0.0
        %639 = vmatpush1.msra.mxu0 0.0
        %640 = vmatprep.subr.mxu0 0.0
        %641 = vmatpush1.msra.mxu0 0.0
        %642 = vmatprep.subr.mxu0 0.0
        %643 = vmatpush1.msra.mxu0 0.0
        %644 = vmatprep.subr.mxu0 0.0
        %645 = vmatpush1.msra.mxu0 0.0
        %646 = vmatprep.subr.mxu0 0.0
        %647 = vmatpush1.msra.mxu0 0.0
        %648 = vmatprep.subr.mxu0 0.0
        %649 = vmatpush1.msra.mxu0 0.0
        %650 = vmatprep.subr.mxu0 0.0
        %v651 = vand.u32 %v535, 4294901760
        %v652 = vsub.f32 %v535, %v651
        %v653 = vand.u32 %v652, 4294901760
        %v654 = vsub.f32 %v652, %v653
        %v655 = vand.u32 %v654, 4294901760
        %656 = vmatpush1.msra.mxu0 %v655
        %657 = vmatprep.subr.mxu0 0.0
        %v658 = vand.u32 %v534, 4294901760
        %v659 = vsub.f32 %v534, %v658
        %v660 = vand.u32 %v659, 4294901760
        %v661 = vsub.f32 %v659, %v660
        %v662 = vand.u32 %v661, 4294901760
        %663 = vmatpush1.msra.mxu0 %v662
        %664 = vmatprep.subr.mxu0 0.0
        %v665 = vand.u32 %v533, 4294901760
        %v666 = vsub.f32 %v533, %v665
        %v667 = vand.u32 %v666, 4294901760
        %v668 = vsub.f32 %v666, %v667
        %v669 = vand.u32 %v668, 4294901760
        %670 = vmatpush1.msra.mxu0 %v669
        %671 = vmatprep.subr.mxu0 0.0
        %v672 = vand.u32 %v532, 4294901760
        %v673 = vsub.f32 %v532, %v672
        %v674 = vand.u32 %v673, 4294901760
        %v675 = vsub.f32 %v673, %v674
        %v676 = vand.u32 %v675, 4294901760
        %677 = vmatpush1.msra.mxu0 %v676
        %678 = vmatprep.subr.mxu0 0.0
        %679 = vmatpush2.msra.mxu0 0.0
        %680 = vmatprep.subr.mxu0 0.0
        %681 = vmatpush2.msra.mxu0 0.0
        %682 = vmatprep.subr.mxu0 0.0
        %683 = vmatpush2.msra.mxu0 0.0
        %684 = vmatprep.subr.mxu0 0.0
        %685 = vmatpush2.msra.mxu0 0.0
        %686 = vmatprep.subr.mxu0 0.0
        %687 = vmatpush2.msra.mxu0 0.0
        %688 = vmatprep.subr.mxu0 0.0
        %689 = vmatpush2.msra.mxu0 0.0
        %690 = vmatprep.subr.mxu0 0.0
        %691 = vmatpush2.msra.mxu0 0.0
        %692 = vmatprep.subr.mxu0 0.0
        %693 = vmatpush2.msra.mxu0 0.0
        %694 = vmatprep.subr.mxu0 0.0
        %695 = vmatpush2.msra.mxu0 0.0
        %696 = vmatprep.subr.mxu0 0.0
        %697 = vmatpush2.msra.mxu0 0.0
        %698 = vmatprep.subr.mxu0 0.0
        %699 = vmatpush2.msra.mxu0 0.0
        %700 = vmatprep.subr.mxu0 0.0
        %701 = vmatpush2.msra.mxu0 0.0
        %702 = vmatprep.subr.mxu0 0.0
        %703 = vmatpush2.msra.mxu0 0.0
        %704 = vmatprep.subr.mxu0 0.0
        %705 = vmatpush2.msra.mxu0 0.0
        %706 = vmatprep.subr.mxu0 0.0
        %707 = vmatpush2.msra.mxu0 0.0
        %708 = vmatprep.subr.mxu0 0.0
        %709 = vmatpush2.msra.mxu0 0.0
        %710 = vmatprep.mubr.f32.mxu0 0.0
        %v711 = vand.u32 %v545, 4294901760
        %712 = vmatmul.mubr.f32.gmra.mxu0 %v711
        %v713 = vpop.f32.mrf.mxu0
        %v714 = vadd.f32 %v623, %v713
        %v715 = vpop.f32.mrf.mxu0
        %716 = vdwg.mxu0
        %717 = vmatprep.subr.mxu0 0.0
        %718 = vmatpush1.msra.mxu0 0.0
        %719 = vmatprep.subr.mxu0 0.0
        %720 = vmatpush1.msra.mxu0 0.0
        %721 = vmatprep.subr.mxu0 0.0
        %722 = vmatpush1.msra.mxu0 0.0
        %723 = vmatprep.subr.mxu0 0.0
        %724 = vmatpush1.msra.mxu0 0.0
        %725 = vmatprep.subr.mxu0 0.0
        %726 = vmatpush1.msra.mxu0 0.0
        %727 = vmatprep.subr.mxu0 0.0
        %728 = vmatpush1.msra.mxu0 0.0
        %729 = vmatprep.subr.mxu0 0.0
        %730 = vmatpush1.msra.mxu0 0.0
        %731 = vmatprep.subr.mxu0 0.0
        %732 = vmatpush1.msra.mxu0 0.0
        %733 = vmatprep.subr.mxu0 0.0
        %734 = vmatpush1.msra.mxu0 0.0
        %735 = vmatprep.subr.mxu0 0.0
        %736 = vmatpush1.msra.mxu0 0.0
        %737 = vmatprep.subr.mxu0 0.0
        %738 = vmatpush1.msra.mxu0 0.0
        %739 = vmatprep.subr.mxu0 0.0
        %740 = vmatpush1.msra.mxu0 0.0
        %741 = vmatprep.subr.mxu0 0.0
        %v742 = vand.u32 %v535, 4294901760
        %v743 = vsub.f32 %v535, %v742
        %744 = vmatpush1.msra.mxu0 %v743
        %745 = vmatprep.subr.mxu0 0.0
        %v746 = vand.u32 %v534, 4294901760
        %v747 = vsub.f32 %v534, %v746
        %748 = vmatpush1.msra.mxu0 %v747
        %749 = vmatprep.subr.mxu0 0.0
        %v750 = vand.u32 %v533, 4294901760
        %v751 = vsub.f32 %v533, %v750
        %752 = vmatpush1.msra.mxu0 %v751
        %753 = vmatprep.subr.mxu0 0.0
        %v754 = vand.u32 %v532, 4294901760
        %v755 = vsub.f32 %v532, %v754
        %756 = vmatpush1.msra.mxu0 %v755
        %757 = vmatprep.subr.mxu0 0.0
        %758 = vmatpush2.msra.mxu0 0.0
        %759 = vmatprep.subr.mxu0 0.0
        %760 = vmatpush2.msra.mxu0 0.0
        %761 = vmatprep.subr.mxu0 0.0
        %762 = vmatpush2.msra.mxu0 0.0
        %763 = vmatprep.subr.mxu0 0.0
        %764 = vmatpush2.msra.mxu0 0.0
        %765 = vmatprep.subr.mxu0 0.0
        %766 = vmatpush2.msra.mxu0 0.0
        %767 = vmatprep.subr.mxu0 0.0
        %768 = vmatpush2.msra.mxu0 0.0
        %769 = vmatprep.subr.mxu0 0.0
        %770 = vmatpush2.msra.mxu0 0.0
        %771 = vmatprep.subr.mxu0 0.0
        %772 = vmatpush2.msra.mxu0 0.0
        %773 = vmatprep.subr.mxu0 0.0
        %774 = vmatpush2.msra.mxu0 0.0
        %775 = vmatprep.subr.mxu0 0.0
        %776 = vmatpush2.msra.mxu0 0.0
        %777 = vmatprep.subr.mxu0 0.0
        %778 = vmatpush2.msra.mxu0 0.0
        %779 = vmatprep.subr.mxu0 0.0
        %780 = vmatpush2.msra.mxu0 0.0
        %781 = vmatprep.subr.mxu0 0.0
        %782 = vmatpush2.msra.mxu0 0.0
        %783 = vmatprep.subr.mxu0 0.0
        %784 = vmatpush2.msra.mxu0 0.0
        %785 = vmatprep.subr.mxu0 0.0
        %786 = vmatpush2.msra.mxu0 0.0
        %787 = vmatprep.subr.mxu0 0.0
        %788 = vmatpush2.msra.mxu0 0.0
        %789 = vmatprep.mubr.f32.mxu0 0.0
        %v790 = vand.u32 %v545, 4294901760
        %v791 = vsub.f32 %v545, %v790
        %792 = vmatmul.mubr.f32.gmra.mxu0 %v791
        %v793 = vpop.f32.mrf.mxu0
        %v794 = vadd.f32 %v714, %v793
        %v795 = vpop.f32.mrf.mxu0
        %796 = vdwg.mxu0
        %797 = vmatprep.subr.mxu0 0.0
        %798 = vmatpush1.msra.mxu0 0.0
        %799 = vmatprep.subr.mxu0 0.0
        %800 = vmatpush1.msra.mxu0 0.0
        %801 = vmatprep.subr.mxu0 0.0
        %802 = vmatpush1.msra.mxu0 0.0
        %803 = vmatprep.subr.mxu0 0.0
        %804 = vmatpush1.msra.mxu0 0.0
        %805 = vmatprep.subr.mxu0 0.0
        %806 = vmatpush1.msra.mxu0 0.0
        %807 = vmatprep.subr.mxu0 0.0
        %808 = vmatpush1.msra.mxu0 0.0
        %809 = vmatprep.subr.mxu0 0.0
        %810 = vmatpush1.msra.mxu0 0.0
        %811 = vmatprep.subr.mxu0 0.0
        %812 = vmatpush1.msra.mxu0 0.0
        %813 = vmatprep.subr.mxu0 0.0
        %814 = vmatpush1.msra.mxu0 0.0
        %815 = vmatprep.subr.mxu0 0.0
        %816 = vmatpush1.msra.mxu0 0.0
        %817 = vmatprep.subr.mxu0 0.0
        %818 = vmatpush1.msra.mxu0 0.0
        %819 = vmatprep.subr.mxu0 0.0
        %820 = vmatpush1.msra.mxu0 0.0
        %821 = vmatprep.subr.mxu0 0.0
        %v822 = vand.u32 %v535, 4294901760
        %823 = vmatpush1.msra.mxu0 %v822
        %824 = vmatprep.subr.mxu0 0.0
        %v825 = vand.u32 %v534, 4294901760
        %826 = vmatpush1.msra.mxu0 %v825
        %827 = vmatprep.subr.mxu0 0.0
        %v828 = vand.u32 %v533, 4294901760
        %829 = vmatpush1.msra.mxu0 %v828
        %830 = vmatprep.subr.mxu0 0.0
        %v831 = vand.u32 %v532, 4294901760
        %832 = vmatpush1.msra.mxu0 %v831
        %833 = vmatprep.subr.mxu0 0.0
        %834 = vmatpush2.msra.mxu0 0.0
        %835 = vmatprep.subr.mxu0 0.0
        %836 = vmatpush2.msra.mxu0 0.0
        %837 = vmatprep.subr.mxu0 0.0
        %838 = vmatpush2.msra.mxu0 0.0
        %839 = vmatprep.subr.mxu0 0.0
        %840 = vmatpush2.msra.mxu0 0.0
        %841 = vmatprep.subr.mxu0 0.0
        %842 = vmatpush2.msra.mxu0 0.0
        %843 = vmatprep.subr.mxu0 0.0
        %844 = vmatpush2.msra.mxu0 0.0
        %845 = vmatprep.subr.mxu0 0.0
        %846 = vmatpush2.msra.mxu0 0.0
        %847 = vmatprep.subr.mxu0 0.0
        %848 = vmatpush2.msra.mxu0 0.0
        %849 = vmatprep.subr.mxu0 0.0
        %850 = vmatpush2.msra.mxu0 0.0
        %851 = vmatprep.subr.mxu0 0.0
        %852 = vmatpush2.msra.mxu0 0.0
        %853 = vmatprep.subr.mxu0 0.0
        %854 = vmatpush2.msra.mxu0 0.0
        %855 = vmatprep.subr.mxu0 0.0
        %856 = vmatpush2.msra.mxu0 0.0
        %857 = vmatprep.subr.mxu0 0.0
        %858 = vmatpush2.msra.mxu0 0.0
        %859 = vmatprep.subr.mxu0 0.0
        %860 = vmatpush2.msra.mxu0 0.0
        %861 = vmatprep.subr.mxu0 0.0
        %862 = vmatpush2.msra.mxu0 0.0
        %863 = vmatprep.subr.mxu0 0.0
        %864 = vmatpush2.msra.mxu0 0.0
        %865 = vmatprep.mubr.f32.mxu0 0.0
        %v866 = vand.u32 %v545, 4294901760
        %v867 = vsub.f32 %v545, %v866
        %v868 = vand.u32 %v867, 4294901760
        %869 = vmatmul.mubr.f32.gmra.mxu0 %v868
        %v870 = vpop.f32.mrf.mxu0
        %v871 = vadd.f32 %v794, %v870
        %v872 = vpop.f32.mrf.mxu0
        %873 = vdwg.mxu0
        %874 = vmatprep.subr.mxu0 0.0
        %875 = vmatpush1.msra.mxu0 0.0
        %876 = vmatprep.subr.mxu0 0.0
        %877 = vmatpush1.msra.mxu0 0.0
        %878 = vmatprep.subr.mxu0 0.0
        %879 = vmatpush1.msra.mxu0 0.0
        %880 = vmatprep.subr.mxu0 0.0
        %881 = vmatpush1.msra.mxu0 0.0
        %882 = vmatprep.subr.mxu0 0.0
        %883 = vmatpush1.msra.mxu0 0.0
        %884 = vmatprep.subr.mxu0 0.0
        %885 = vmatpush1.msra.mxu0 0.0
        %886 = vmatprep.subr.mxu0 0.0
        %887 = vmatpush1.msra.mxu0 0.0
        %888 = vmatprep.subr.mxu0 0.0
        %889 = vmatpush1.msra.mxu0 0.0
        %890 = vmatprep.subr.mxu0 0.0
        %891 = vmatpush1.msra.mxu0 0.0
        %892 = vmatprep.subr.mxu0 0.0
        %893 = vmatpush1.msra.mxu0 0.0
        %894 = vmatprep.subr.mxu0 0.0
        %895 = vmatpush1.msra.mxu0 0.0
        %896 = vmatprep.subr.mxu0 0.0
        %897 = vmatpush1.msra.mxu0 0.0
        %898 = vmatprep.subr.mxu0 0.0
        %v899 = vand.u32 %v535, 4294901760
        %v900 = vsub.f32 %v535, %v899
        %v901 = vand.u32 %v900, 4294901760
        %902 = vmatpush1.msra.mxu0 %v901
        %903 = vmatprep.subr.mxu0 0.0
        %v904 = vand.u32 %v534, 4294901760
        %v905 = vsub.f32 %v534, %v904
        %v906 = vand.u32 %v905, 4294901760
        %907 = vmatpush1.msra.mxu0 %v906
        %908 = vmatprep.subr.mxu0 0.0
        %v909 = vand.u32 %v533, 4294901760
        %v910 = vsub.f32 %v533, %v909
        %v911 = vand.u32 %v910, 4294901760
        %912 = vmatpush1.msra.mxu0 %v911
        %913 = vmatprep.subr.mxu0 0.0
        %v914 = vand.u32 %v532, 4294901760
        %v915 = vsub.f32 %v532, %v914
        %v916 = vand.u32 %v915, 4294901760
        %917 = vmatpush1.msra.mxu0 %v916
        %918 = vmatprep.subr.mxu0 0.0
        %919 = vmatpush2.msra.mxu0 0.0
        %920 = vmatprep.subr.mxu0 0.0
        %921 = vmatpush2.msra.mxu0 0.0
        %922 = vmatprep.subr.mxu0 0.0
        %923 = vmatpush2.msra.mxu0 0.0
        %924 = vmatprep.subr.mxu0 0.0
        %925 = vmatpush2.msra.mxu0 0.0
        %926 = vmatprep.subr.mxu0 0.0
        %927 = vmatpush2.msra.mxu0 0.0
        %928 = vmatprep.subr.mxu0 0.0
        %929 = vmatpush2.msra.mxu0 0.0
        %930 = vmatprep.subr.mxu0 0.0
        %931 = vmatpush2.msra.mxu0 0.0
        %932 = vmatprep.subr.mxu0 0.0
        %933 = vmatpush2.msra.mxu0 0.0
        %934 = vmatprep.subr.mxu0 0.0
        %935 = vmatpush2.msra.mxu0 0.0
        %936 = vmatprep.subr.mxu0 0.0
        %937 = vmatpush2.msra.mxu0 0.0
        %938 = vmatprep.subr.mxu0 0.0
        %939 = vmatpush2.msra.mxu0 0.0
        %940 = vmatprep.subr.mxu0 0.0
        %941 = vmatpush2.msra.mxu0 0.0
        %942 = vmatprep.subr.mxu0 0.0
        %943 = vmatpush2.msra.mxu0 0.0
        %944 = vmatprep.subr.mxu0 0.0
        %945 = vmatpush2.msra.mxu0 0.0
        %946 = vmatprep.subr.mxu0 0.0
        %947 = vmatpush2.msra.mxu0 0.0
        %948 = vmatprep.subr.mxu0 0.0
        %949 = vmatpush2.msra.mxu0 0.0
        %950 = vmatprep.mubr.f32.mxu0 0.0
        %v951 = vand.u32 %v545, 4294901760
        %952 = vmatmul.mubr.f32.gmra.mxu0 %v951
        %v953 = vpop.f32.mrf.mxu0
        %v954 = vadd.f32 %v871, %v953
        %v955 = vpop.f32.mrf.mxu0
        %956 = vdwg.mxu0
        %957 = vmatprep.subr.mxu0 0.0
        %958 = vmatpush1.msra.mxu0 0.0
        %959 = vmatprep.subr.mxu0 0.0
        %960 = vmatpush1.msra.mxu0 0.0
        %961 = vmatprep.subr.mxu0 0.0
        %962 = vmatpush1.msra.mxu0 0.0
        %963 = vmatprep.subr.mxu0 0.0
        %964 = vmatpush1.msra.mxu0 0.0
        %965 = vmatprep.subr.mxu0 0.0
        %966 = vmatpush1.msra.mxu0 0.0
        %967 = vmatprep.subr.mxu0 0.0
        %968 = vmatpush1.msra.mxu0 0.0
        %969 = vmatprep.subr.mxu0 0.0
        %970 = vmatpush1.msra.mxu0 0.0
        %971 = vmatprep.subr.mxu0 0.0
        %972 = vmatpush1.msra.mxu0 0.0
        %973 = vmatprep.subr.mxu0 0.0
        %974 = vmatpush1.msra.mxu0 0.0
        %975 = vmatprep.subr.mxu0 0.0
        %976 = vmatpush1.msra.mxu0 0.0
        %977 = vmatprep.subr.mxu0 0.0
        %978 = vmatpush1.msra.mxu0 0.0
        %979 = vmatprep.subr.mxu0 0.0
        %980 = vmatpush1.msra.mxu0 0.0
        %981 = vmatprep.subr.mxu0 0.0
        %v982 = vand.u32 %v535, 4294901760
        %983 = vmatpush1.msra.mxu0 %v982
        %984 = vmatprep.subr.mxu0 0.0
        %v985 = vand.u32 %v534, 4294901760
        %986 = vmatpush1.msra.mxu0 %v985
        %987 = vmatprep.subr.mxu0 0.0
        %v988 = vand.u32 %v533, 4294901760
        %989 = vmatpush1.msra.mxu0 %v988
        %990 = vmatprep.subr.mxu0 0.0
        %v991 = vand.u32 %v532, 4294901760
        %992 = vmatpush1.msra.mxu0 %v991
        %993 = vmatprep.subr.mxu0 0.0
        %994 = vmatpush2.msra.mxu0 0.0
        %995 = vmatprep.subr.mxu0 0.0
        %996 = vmatpush2.msra.mxu0 0.0
        %997 = vmatprep.subr.mxu0 0.0
        %998 = vmatpush2.msra.mxu0 0.0
        %999 = vmatprep.subr.mxu0 0.0
        %1000 = vmatpush2.msra.mxu0 0.0
        %1001 = vmatprep.subr.mxu0 0.0
        %1002 = vmatpush2.msra.mxu0 0.0
        %1003 = vmatprep.subr.mxu0 0.0
        %1004 = vmatpush2.msra.mxu0 0.0
        %1005 = vmatprep.subr.mxu0 0.0
        %1006 = vmatpush2.msra.mxu0 0.0
        %1007 = vmatprep.subr.mxu0 0.0
        %1008 = vmatpush2.msra.mxu0 0.0
        %1009 = vmatprep.subr.mxu0 0.0
        %1010 = vmatpush2.msra.mxu0 0.0
        %1011 = vmatprep.subr.mxu0 0.0
        %1012 = vmatpush2.msra.mxu0 0.0
        %1013 = vmatprep.subr.mxu0 0.0
        %1014 = vmatpush2.msra.mxu0 0.0
        %1015 = vmatprep.subr.mxu0 0.0
        %1016 = vmatpush2.msra.mxu0 0.0
        %1017 = vmatprep.subr.mxu0 0.0
        %1018 = vmatpush2.msra.mxu0 0.0
        %1019 = vmatprep.subr.mxu0 0.0
        %1020 = vmatpush2.msra.mxu0 0.0
        %1021 = vmatprep.subr.mxu0 0.0
        %1022 = vmatpush2.msra.mxu0 0.0
        %1023 = vmatprep.subr.mxu0 0.0
        %1024 = vmatpush2.msra.mxu0 0.0
        %1025 = vmatprep.mubr.f32.mxu0 0.0
        %v1026 = vand.u32 %v545, 4294901760
        %1027 = vmatmul.mubr.f32.gmra.mxu0 %v1026
        %v1028 = vpop.f32.mrf.mxu0
        %v1029 = vadd.f32 %v954, %v1028
        %v1030 = vpop.f32.mrf.mxu0
        %1031 = vdwg.mxu0
        %v1032 = vld [vmem:[%s457] sm:$0xff]
        %v1033 = vld [vmem:[#allocation11] sm:$0xff]
        %v1034 = vld [vmem:[#allocation11 + $0x8] sm:$0xff]
        %v1035 = vld [vmem:[#allocation11 + $0x10] sm:$0xff]
        %v1036 = vld [vmem:[#allocation11 + $0x18] sm:$0xff]
        %v1037 = vld [vmem:[%s6] sm:$0x1]
        %v1039 = vlaneseq
        %v1040 = vshrl.u32 %v1039, 7
        %v1041 = vsub.s32 0, %v1040
        %v1042 = vrot.slane %v1037, %v1041
        %v1045 = vsel %vm543, %v1032, 0
        %1047 = vmatprep.subr.mxu0 0.0
        %1048 = vmatpush1.msra.mxu0 0.0
        %1049 = vmatprep.subr.mxu0 0.0
        %1050 = vmatpush1.msra.mxu0 0.0
        %1051 = vmatprep.subr.mxu0 0.0
        %1052 = vmatpush1.msra.mxu0 0.0
        %1053 = vmatprep.subr.mxu0 0.0
        %1054 = vmatpush1.msra.mxu0 0.0
        %1055 = vmatprep.subr.mxu0 0.0
        %1056 = vmatpush1.msra.mxu0 0.0
        %1057 = vmatprep.subr.mxu0 0.0
        %1058 = vmatpush1.msra.mxu0 0.0
        %1059 = vmatprep.subr.mxu0 0.0
        %1060 = vmatpush1.msra.mxu0 0.0
        %1061 = vmatprep.subr.mxu0 0.0
        %1062 = vmatpush1.msra.mxu0 0.0
        %1063 = vmatprep.subr.mxu0 0.0
        %1064 = vmatpush1.msra.mxu0 0.0
        %1065 = vmatprep.subr.mxu0 0.0
        %1066 = vmatpush1.msra.mxu0 0.0
        %1067 = vmatprep.subr.mxu0 0.0
        %1068 = vmatpush1.msra.mxu0 0.0
        %1069 = vmatprep.subr.mxu0 0.0
        %1070 = vmatpush1.msra.mxu0 0.0
        %1071 = vmatprep.subr.mxu0 0.0
        %v1072 = vand.u32 %v1036, 4294901760
        %1073 = vmatpush1.msra.mxu0 %v1072
        %1074 = vmatprep.subr.mxu0 0.0
        %v1075 = vand.u32 %v1035, 4294901760
        %1076 = vmatpush1.msra.mxu0 %v1075
        %1077 = vmatprep.subr.mxu0 0.0
        %v1078 = vand.u32 %v1034, 4294901760
        %1079 = vmatpush1.msra.mxu0 %v1078
        %1080 = vmatprep.subr.mxu0 0.0
        %v1081 = vand.u32 %v1033, 4294901760
        %1082 = vmatpush1.msra.mxu0 %v1081
        %1083 = vmatprep.subr.mxu0 0.0
        %1084 = vmatpush2.msra.mxu0 0.0
        %1085 = vmatprep.subr.mxu0 0.0
        %1086 = vmatpush2.msra.mxu0 0.0
        %1087 = vmatprep.subr.mxu0 0.0
        %1088 = vmatpush2.msra.mxu0 0.0
        %1089 = vmatprep.subr.mxu0 0.0
        %1090 = vmatpush2.msra.mxu0 0.0
        %1091 = vmatprep.subr.mxu0 0.0
        %1092 = vmatpush2.msra.mxu0 0.0
        %1093 = vmatprep.subr.mxu0 0.0
        %1094 = vmatpush2.msra.mxu0 0.0
        %1095 = vmatprep.subr.mxu0 0.0
        %1096 = vmatpush2.msra.mxu0 0.0
        %1097 = vmatprep.subr.mxu0 0.0
        %1098 = vmatpush2.msra.mxu0 0.0
        %1099 = vmatprep.subr.mxu0 0.0
        %1100 = vmatpush2.msra.mxu0 0.0
        %1101 = vmatprep.subr.mxu0 0.0
        %1102 = vmatpush2.msra.mxu0 0.0
        %1103 = vmatprep.subr.mxu0 0.0
        %1104 = vmatpush2.msra.mxu0 0.0
        %1105 = vmatprep.subr.mxu0 0.0
        %1106 = vmatpush2.msra.mxu0 0.0
        %1107 = vmatprep.subr.mxu0 0.0
        %1108 = vmatpush2.msra.mxu0 0.0
        %1109 = vmatprep.subr.mxu0 0.0
        %1110 = vmatpush2.msra.mxu0 0.0
        %1111 = vmatprep.subr.mxu0 0.0
        %1112 = vmatpush2.msra.mxu0 0.0
        %1113 = vmatprep.subr.mxu0 0.0
        %1114 = vmatpush2.msra.mxu0 0.0
        %1115 = vmatprep.mubr.f32.mxu0 0.0
        %v1116 = vand.u32 %v1045, 4294901760
        %v1117 = vsub.f32 %v1045, %v1116
        %v1118 = vand.u32 %v1117, 4294901760
        %v1119 = vsub.f32 %v1117, %v1118
        %v1120 = vand.u32 %v1119, 4294901760
        %1121 = vmatmul.mubr.f32.gmra.mxu0 %v1120
        %v1122 = vpop.f32.mrf.mxu0
        %v1123 = vadd.f32 %v1042, %v1122
        %v1124 = vpop.f32.mrf.mxu0
        %1125 = vdwg.mxu0
        %1126 = vmatprep.subr.mxu0 0.0
        %1127 = vmatpush1.msra.mxu0 0.0
        %1128 = vmatprep.subr.mxu0 0.0
        %1129 = vmatpush1.msra.mxu0 0.0
        %1130 = vmatprep.subr.mxu0 0.0
        %1131 = vmatpush1.msra.mxu0 0.0
        %1132 = vmatprep.subr.mxu0 0.0
        %1133 = vmatpush1.msra.mxu0 0.0
        %1134 = vmatprep.subr.mxu0 0.0
        %1135 = vmatpush1.msra.mxu0 0.0
        %1136 = vmatprep.subr.mxu0 0.0
        %1137 = vmatpush1.msra.mxu0 0.0
        %1138 = vmatprep.subr.mxu0 0.0
        %1139 = vmatpush1.msra.mxu0 0.0
        %1140 = vmatprep.subr.mxu0 0.0
        %1141 = vmatpush1.msra.mxu0 0.0
        %1142 = vmatprep.subr.mxu0 0.0
        %1143 = vmatpush1.msra.mxu0 0.0
        %1144 = vmatprep.subr.mxu0 0.0
        %1145 = vmatpush1.msra.mxu0 0.0
        %1146 = vmatprep.subr.mxu0 0.0
        %1147 = vmatpush1.msra.mxu0 0.0
        %1148 = vmatprep.subr.mxu0 0.0
        %1149 = vmatpush1.msra.mxu0 0.0
        %1150 = vmatprep.subr.mxu0 0.0
        %v1151 = vand.u32 %v1036, 4294901760
        %v1152 = vsub.f32 %v1036, %v1151
        %v1153 = vand.u32 %v1152, 4294901760
        %v1154 = vsub.f32 %v1152, %v1153
        %v1155 = vand.u32 %v1154, 4294901760
        %1156 = vmatpush1.msra.mxu0 %v1155
        %1157 = vmatprep.subr.mxu0 0.0
        %v1158 = vand.u32 %v1035, 4294901760
        %v1159 = vsub.f32 %v1035, %v1158
        %v1160 = vand.u32 %v1159, 4294901760
        %v1161 = vsub.f32 %v1159, %v1160
        %v1162 = vand.u32 %v1161, 4294901760
        %1163 = vmatpush1.msra.mxu0 %v1162
        %1164 = vmatprep.subr.mxu0 0.0
        %v1165 = vand.u32 %v1034, 4294901760
        %v1166 = vsub.f32 %v1034, %v1165
        %v1167 = vand.u32 %v1166, 4294901760
        %v1168 = vsub.f32 %v1166, %v1167
        %v1169 = vand.u32 %v1168, 4294901760
        %1170 = vmatpush1.msra.mxu0 %v1169
        %1171 = vmatprep.subr.mxu0 0.0
        %v1172 = vand.u32 %v1033, 4294901760
        %v1173 = vsub.f32 %v1033, %v1172
        %v1174 = vand.u32 %v1173, 4294901760
        %v1175 = vsub.f32 %v1173, %v1174
        %v1176 = vand.u32 %v1175, 4294901760
        %1177 = vmatpush1.msra.mxu0 %v1176
        %1178 = vmatprep.subr.mxu0 0.0
        %1179 = vmatpush2.msra.mxu0 0.0
        %1180 = vmatprep.subr.mxu0 0.0
        %1181 = vmatpush2.msra.mxu0 0.0
        %1182 = vmatprep.subr.mxu0 0.0
        %1183 = vmatpush2.msra.mxu0 0.0
        %1184 = vmatprep.subr.mxu0 0.0
        %1185 = vmatpush2.msra.mxu0 0.0
        %1186 = vmatprep.subr.mxu0 0.0
        %1187 = vmatpush2.msra.mxu0 0.0
        %1188 = vmatprep.subr.mxu0 0.0
        %1189 = vmatpush2.msra.mxu0 0.0
        %1190 = vmatprep.subr.mxu0 0.0
        %1191 = vmatpush2.msra.mxu0 0.0
        %1192 = vmatprep.subr.mxu0 0.0
        %1193 = vmatpush2.msra.mxu0 0.0
        %1194 = vmatprep.subr.mxu0 0.0
        %1195 = vmatpush2.msra.mxu0 0.0
        %1196 = vmatprep.subr.mxu0 0.0
        %1197 = vmatpush2.msra.mxu0 0.0
        %1198 = vmatprep.subr.mxu0 0.0
        %1199 = vmatpush2.msra.mxu0 0.0
        %1200 = vmatprep.subr.mxu0 0.0
        %1201 = vmatpush2.msra.mxu0 0.0
        %1202 = vmatprep.subr.mxu0 0.0
        %1203 = vmatpush2.msra.mxu0 0.0
        %1204 = vmatprep.subr.mxu0 0.0
        %1205 = vmatpush2.msra.mxu0 0.0
        %1206 = vmatprep.subr.mxu0 0.0
        %1207 = vmatpush2.msra.mxu0 0.0
        %1208 = vmatprep.subr.mxu0 0.0
        %1209 = vmatpush2.msra.mxu0 0.0
        %1210 = vmatprep.mubr.f32.mxu0 0.0
        %v1211 = vand.u32 %v1045, 4294901760
        %1212 = vmatmul.mubr.f32.gmra.mxu0 %v1211
        %v1213 = vpop.f32.mrf.mxu0
        %v1214 = vadd.f32 %v1123, %v1213
        %v1215 = vpop.f32.mrf.mxu0
        %1216 = vdwg.mxu0
        %1217 = vmatprep.subr.mxu0 0.0
        %1218 = vmatpush1.msra.mxu0 0.0
        %1219 = vmatprep.subr.mxu0 0.0
        %1220 = vmatpush1.msra.mxu0 0.0
        %1221 = vmatprep.subr.mxu0 0.0
        %1222 = vmatpush1.msra.mxu0 0.0
        %1223 = vmatprep.subr.mxu0 0.0
        %1224 = vmatpush1.msra.mxu0 0.0
        %1225 = vmatprep.subr.mxu0 0.0
        %1226 = vmatpush1.msra.mxu0 0.0
        %1227 = vmatprep.subr.mxu0 0.0
        %1228 = vmatpush1.msra.mxu0 0.0
        %1229 = vmatprep.subr.mxu0 0.0
        %1230 = vmatpush1.msra.mxu0 0.0
        %1231 = vmatprep.subr.mxu0 0.0
        %1232 = vmatpush1.msra.mxu0 0.0
        %1233 = vmatprep.subr.mxu0 0.0
        %1234 = vmatpush1.msra.mxu0 0.0
        %1235 = vmatprep.subr.mxu0 0.0
        %1236 = vmatpush1.msra.mxu0 0.0
        %1237 = vmatprep.subr.mxu0 0.0
        %1238 = vmatpush1.msra.mxu0 0.0
        %1239 = vmatprep.subr.mxu0 0.0
        %1240 = vmatpush1.msra.mxu0 0.0
        %1241 = vmatprep.subr.mxu0 0.0
        %v1242 = vand.u32 %v1036, 4294901760
        %v1243 = vsub.f32 %v1036, %v1242
        %1244 = vmatpush1.msra.mxu0 %v1243
        %1245 = vmatprep.subr.mxu0 0.0
        %v1246 = vand.u32 %v1035, 4294901760
        %v1247 = vsub.f32 %v1035, %v1246
        %1248 = vmatpush1.msra.mxu0 %v1247
        %1249 = vmatprep.subr.mxu0 0.0
        %v1250 = vand.u32 %v1034, 4294901760
        %v1251 = vsub.f32 %v1034, %v1250
        %1252 = vmatpush1.msra.mxu0 %v1251
        %1253 = vmatprep.subr.mxu0 0.0
        %v1254 = vand.u32 %v1033, 4294901760
        %v1255 = vsub.f32 %v1033, %v1254
        %1256 = vmatpush1.msra.mxu0 %v1255
        %1257 = vmatprep.subr.mxu0 0.0
        %1258 = vmatpush2.msra.mxu0 0.0
        %1259 = vmatprep.subr.mxu0 0.0
        %1260 = vmatpush2.msra.mxu0 0.0
        %1261 = vmatprep.subr.mxu0 0.0
        %1262 = vmatpush2.msra.mxu0 0.0
        %1263 = vmatprep.subr.mxu0 0.0
        %1264 = vmatpush2.msra.mxu0 0.0
        %1265 = vmatprep.subr.mxu0 0.0
        %1266 = vmatpush2.msra.mxu0 0.0
        %1267 = vmatprep.subr.mxu0 0.0
        %1268 = vmatpush2.msra.mxu0 0.0
        %1269 = vmatprep.subr.mxu0 0.0
        %1270 = vmatpush2.msra.mxu0 0.0
        %1271 = vmatprep.subr.mxu0 0.0
        %1272 = vmatpush2.msra.mxu0 0.0
        %1273 = vmatprep.subr.mxu0 0.0
        %1274 = vmatpush2.msra.mxu0 0.0
        %1275 = vmatprep.subr.mxu0 0.0
        %1276 = vmatpush2.msra.mxu0 0.0
        %1277 = vmatprep.subr.mxu0 0.0
        %1278 = vmatpush2.msra.mxu0 0.0
        %1279 = vmatprep.subr.mxu0 0.0
        %1280 = vmatpush2.msra.mxu0 0.0
        %1281 = vmatprep.subr.mxu0 0.0
        %1282 = vmatpush2.msra.mxu0 0.0
        %1283 = vmatprep.subr.mxu0 0.0
        %1284 = vmatpush2.msra.mxu0 0.0
        %1285 = vmatprep.subr.mxu0 0.0
        %1286 = vmatpush2.msra.mxu0 0.0
        %1287 = vmatprep.subr.mxu0 0.0
        %1288 = vmatpush2.msra.mxu0 0.0
        %1289 = vmatprep.mubr.f32.mxu0 0.0
        %v1290 = vand.u32 %v1045, 4294901760
        %v1291 = vsub.f32 %v1045, %v1290
        %1292 = vmatmul.mubr.f32.gmra.mxu0 %v1291
        %v1293 = vpop.f32.mrf.mxu0
        %v1294 = vadd.f32 %v1214, %v1293
        %v1295 = vpop.f32.mrf.mxu0
        %1296 = vdwg.mxu0
        %1297 = vmatprep.subr.mxu0 0.0
        %1298 = vmatpush1.msra.mxu0 0.0
        %1299 = vmatprep.subr.mxu0 0.0
        %1300 = vmatpush1.msra.mxu0 0.0
        %1301 = vmatprep.subr.mxu0 0.0
        %1302 = vmatpush1.msra.mxu0 0.0
        %1303 = vmatprep.subr.mxu0 0.0
        %1304 = vmatpush1.msra.mxu0 0.0
        %1305 = vmatprep.subr.mxu0 0.0
        %1306 = vmatpush1.msra.mxu0 0.0
        %1307 = vmatprep.subr.mxu0 0.0
        %1308 = vmatpush1.msra.mxu0 0.0
        %1309 = vmatprep.subr.mxu0 0.0
        %1310 = vmatpush1.msra.mxu0 0.0
        %1311 = vmatprep.subr.mxu0 0.0
        %1312 = vmatpush1.msra.mxu0 0.0
        %1313 = vmatprep.subr.mxu0 0.0
        %1314 = vmatpush1.msra.mxu0 0.0
        %1315 = vmatprep.subr.mxu0 0.0
        %1316 = vmatpush1.msra.mxu0 0.0
        %1317 = vmatprep.subr.mxu0 0.0
        %1318 = vmatpush1.msra.mxu0 0.0
        %1319 = vmatprep.subr.mxu0 0.0
        %1320 = vmatpush1.msra.mxu0 0.0
        %1321 = vmatprep.subr.mxu0 0.0
        %v1322 = vand.u32 %v1036, 4294901760
        %1323 = vmatpush1.msra.mxu0 %v1322
        %1324 = vmatprep.subr.mxu0 0.0
        %v1325 = vand.u32 %v1035, 4294901760
        %1326 = vmatpush1.msra.mxu0 %v1325
        %1327 = vmatprep.subr.mxu0 0.0
        %v1328 = vand.u32 %v1034, 4294901760
        %1329 = vmatpush1.msra.mxu0 %v1328
        %1330 = vmatprep.subr.mxu0 0.0
        %v1331 = vand.u32 %v1033, 4294901760
        %1332 = vmatpush1.msra.mxu0 %v1331
        %1333 = vmatprep.subr.mxu0 0.0
        %1334 = vmatpush2.msra.mxu0 0.0
        %1335 = vmatprep.subr.mxu0 0.0
        %1336 = vmatpush2.msra.mxu0 0.0
        %1337 = vmatprep.subr.mxu0 0.0
        %1338 = vmatpush2.msra.mxu0 0.0
        %1339 = vmatprep.subr.mxu0 0.0
        %1340 = vmatpush2.msra.mxu0 0.0
        %1341 = vmatprep.subr.mxu0 0.0
        %1342 = vmatpush2.msra.mxu0 0.0
        %1343 = vmatprep.subr.mxu0 0.0
        %1344 = vmatpush2.msra.mxu0 0.0
        %1345 = vmatprep.subr.mxu0 0.0
        %1346 = vmatpush2.msra.mxu0 0.0
        %1347 = vmatprep.subr.mxu0 0.0
        %1348 = vmatpush2.msra.mxu0 0.0
        %1349 = vmatprep.subr.mxu0 0.0
        %1350 = vmatpush2.msra.mxu0 0.0
        %1351 = vmatprep.subr.mxu0 0.0
        %1352 = vmatpush2.msra.mxu0 0.0
        %1353 = vmatprep.subr.mxu0 0.0
        %1354 = vmatpush2.msra.mxu0 0.0
        %1355 = vmatprep.subr.mxu0 0.0
        %1356 = vmatpush2.msra.mxu0 0.0
        %1357 = vmatprep.subr.mxu0 0.0
        %1358 = vmatpush2.msra.mxu0 0.0
        %1359 = vmatprep.subr.mxu0 0.0
        %1360 = vmatpush2.msra.mxu0 0.0
        %1361 = vmatprep.subr.mxu0 0.0
        %1362 = vmatpush2.msra.mxu0 0.0
        %1363 = vmatprep.subr.mxu0 0.0
        %1364 = vmatpush2.msra.mxu0 0.0
        %1365 = vmatprep.mubr.f32.mxu0 0.0
        %v1366 = vand.u32 %v1045, 4294901760
        %v1367 = vsub.f32 %v1045, %v1366
        %v1368 = vand.u32 %v1367, 4294901760
        %1369 = vmatmul.mubr.f32.gmra.mxu0 %v1368
        %v1370 = vpop.f32.mrf.mxu0
        %v1371 = vadd.f32 %v1294, %v1370
        %v1372 = vpop.f32.mrf.mxu0
        %1373 = vdwg.mxu0
        %1374 = vmatprep.subr.mxu0 0.0
        %1375 = vmatpush1.msra.mxu0 0.0
        %1376 = vmatprep.subr.mxu0 0.0
        %1377 = vmatpush1.msra.mxu0 0.0
        %1378 = vmatprep.subr.mxu0 0.0
        %1379 = vmatpush1.msra.mxu0 0.0
        %1380 = vmatprep.subr.mxu0 0.0
        %1381 = vmatpush1.msra.mxu0 0.0
        %1382 = vmatprep.subr.mxu0 0.0
        %1383 = vmatpush1.msra.mxu0 0.0
        %1384 = vmatprep.subr.mxu0 0.0
        %1385 = vmatpush1.msra.mxu0 0.0
        %1386 = vmatprep.subr.mxu0 0.0
        %1387 = vmatpush1.msra.mxu0 0.0
        %1388 = vmatprep.subr.mxu0 0.0
        %1389 = vmatpush1.msra.mxu0 0.0
        %1390 = vmatprep.subr.mxu0 0.0
        %1391 = vmatpush1.msra.mxu0 0.0
        %1392 = vmatprep.subr.mxu0 0.0
        %1393 = vmatpush1.msra.mxu0 0.0
        %1394 = vmatprep.subr.mxu0 0.0
        %1395 = vmatpush1.msra.mxu0 0.0
        %1396 = vmatprep.subr.mxu0 0.0
        %1397 = vmatpush1.msra.mxu0 0.0
        %1398 = vmatprep.subr.mxu0 0.0
        %v1399 = vand.u32 %v1036, 4294901760
        %v1400 = vsub.f32 %v1036, %v1399
        %v1401 = vand.u32 %v1400, 4294901760
        %1402 = vmatpush1.msra.mxu0 %v1401
        %1403 = vmatprep.subr.mxu0 0.0
        %v1404 = vand.u32 %v1035, 4294901760
        %v1405 = vsub.f32 %v1035, %v1404
        %v1406 = vand.u32 %v1405, 4294901760
        %1407 = vmatpush1.msra.mxu0 %v1406
        %1408 = vmatprep.subr.mxu0 0.0
        %v1409 = vand.u32 %v1034, 4294901760
        %v1410 = vsub.f32 %v1034, %v1409
        %v1411 = vand.u32 %v1410, 4294901760
        %1412 = vmatpush1.msra.mxu0 %v1411
        %1413 = vmatprep.subr.mxu0 0.0
        %v1414 = vand.u32 %v1033, 4294901760
        %v1415 = vsub.f32 %v1033, %v1414
        %v1416 = vand.u32 %v1415, 4294901760
        %1417 = vmatpush1.msra.mxu0 %v1416
        %1418 = vmatprep.subr.mxu0 0.0
        %1419 = vmatpush2.msra.mxu0 0.0
        %1420 = vmatprep.subr.mxu0 0.0
        %1421 = vmatpush2.msra.mxu0 0.0
        %1422 = vmatprep.subr.mxu0 0.0
        %1423 = vmatpush2.msra.mxu0 0.0
        %1424 = vmatprep.subr.mxu0 0.0
        %1425 = vmatpush2.msra.mxu0 0.0
        %1426 = vmatprep.subr.mxu0 0.0
        %1427 = vmatpush2.msra.mxu0 0.0
        %1428 = vmatprep.subr.mxu0 0.0
        %1429 = vmatpush2.msra.mxu0 0.0
        %1430 = vmatprep.subr.mxu0 0.0
        %1431 = vmatpush2.msra.mxu0 0.0
        %1432 = vmatprep.subr.mxu0 0.0
        %1433 = vmatpush2.msra.mxu0 0.0
        %1434 = vmatprep.subr.mxu0 0.0
        %1435 = vmatpush2.msra.mxu0 0.0
        %1436 = vmatprep.subr.mxu0 0.0
        %1437 = vmatpush2.msra.mxu0 0.0
        %1438 = vmatprep.subr.mxu0 0.0
        %1439 = vmatpush2.msra.mxu0 0.0
        %1440 = vmatprep.subr.mxu0 0.0
        %1441 = vmatpush2.msra.mxu0 0.0
        %1442 = vmatprep.subr.mxu0 0.0
        %1443 = vmatpush2.msra.mxu0 0.0
        %1444 = vmatprep.subr.mxu0 0.0
        %1445 = vmatpush2.msra.mxu0 0.0
        %1446 = vmatprep.subr.mxu0 0.0
        %1447 = vmatpush2.msra.mxu0 0.0
        %1448 = vmatprep.subr.mxu0 0.0
        %1449 = vmatpush2.msra.mxu0 0.0
        %1450 = vmatprep.mubr.f32.mxu0 0.0
        %v1451 = vand.u32 %v1045, 4294901760
        %1452 = vmatmul.mubr.f32.gmra.mxu0 %v1451
        %v1453 = vpop.f32.mrf.mxu0
        %v1454 = vadd.f32 %v1371, %v1453
        %v1455 = vpop.f32.mrf.mxu0
        %1456 = vdwg.mxu0
        %1457 = vmatprep.subr.mxu0 0.0
        %1458 = vmatpush1.msra.mxu0 0.0
        %1459 = vmatprep.subr.mxu0 0.0
        %1460 = vmatpush1.msra.mxu0 0.0
        %1461 = vmatprep.subr.mxu0 0.0
        %1462 = vmatpush1.msra.mxu0 0.0
        %1463 = vmatprep.subr.mxu0 0.0
        %1464 = vmatpush1.msra.mxu0 0.0
        %1465 = vmatprep.subr.mxu0 0.0
        %1466 = vmatpush1.msra.mxu0 0.0
        %1467 = vmatprep.subr.mxu0 0.0
        %1468 = vmatpush1.msra.mxu0 0.0
        %1469 = vmatprep.subr.mxu0 0.0
        %1470 = vmatpush1.msra.mxu0 0.0
        %1471 = vmatprep.subr.mxu0 0.0
        %1472 = vmatpush1.msra.mxu0 0.0
        %1473 = vmatprep.subr.mxu0 0.0
        %1474 = vmatpush1.msra.mxu0 0.0
        %1475 = vmatprep.subr.mxu0 0.0
        %1476 = vmatpush1.msra.mxu0 0.0
        %1477 = vmatprep.subr.mxu0 0.0
        %1478 = vmatpush1.msra.mxu0 0.0
        %1479 = vmatprep.subr.mxu0 0.0
        %1480 = vmatpush1.msra.mxu0 0.0
        %1481 = vmatprep.subr.mxu0 0.0
        %v1482 = vand.u32 %v1036, 4294901760
        %1483 = vmatpush1.msra.mxu0 %v1482
        %1484 = vmatprep.subr.mxu0 0.0
        %v1485 = vand.u32 %v1035, 4294901760
        %1486 = vmatpush1.msra.mxu0 %v1485
        %1487 = vmatprep.subr.mxu0 0.0
        %v1488 = vand.u32 %v1034, 4294901760
        %1489 = vmatpush1.msra.mxu0 %v1488
        %1490 = vmatprep.subr.mxu0 0.0
        %v1491 = vand.u32 %v1033, 4294901760
        %1492 = vmatpush1.msra.mxu0 %v1491
        %1493 = vmatprep.subr.mxu0 0.0
        %1494 = vmatpush2.msra.mxu0 0.0
        %1495 = vmatprep.subr.mxu0 0.0
        %1496 = vmatpush2.msra.mxu0 0.0
        %1497 = vmatprep.subr.mxu0 0.0
        %1498 = vmatpush2.msra.mxu0 0.0
        %1499 = vmatprep.subr.mxu0 0.0
        %1500 = vmatpush2.msra.mxu0 0.0
        %1501 = vmatprep.subr.mxu0 0.0
        %1502 = vmatpush2.msra.mxu0 0.0
        %1503 = vmatprep.subr.mxu0 0.0
        %1504 = vmatpush2.msra.mxu0 0.0
        %1505 = vmatprep.subr.mxu0 0.0
        %1506 = vmatpush2.msra.mxu0 0.0
        %1507 = vmatprep.subr.mxu0 0.0
        %1508 = vmatpush2.msra.mxu0 0.0
        %1509 = vmatprep.subr.mxu0 0.0
        %1510 = vmatpush2.msra.mxu0 0.0
        %1511 = vmatprep.subr.mxu0 0.0
        %1512 = vmatpush2.msra.mxu0 0.0
        %1513 = vmatprep.subr.mxu0 0.0
        %1514 = vmatpush2.msra.mxu0 0.0
        %1515 = vmatprep.subr.mxu0 0.0
        %1516 = vmatpush2.msra.mxu0 0.0
        %1517 = vmatprep.subr.mxu0 0.0
        %1518 = vmatpush2.msra.mxu0 0.0
        %1519 = vmatprep.subr.mxu0 0.0
        %1520 = vmatpush2.msra.mxu0 0.0
        %1521 = vmatprep.subr.mxu0 0.0
        %1522 = vmatpush2.msra.mxu0 0.0
        %1523 = vmatprep.subr.mxu0 0.0
        %1524 = vmatpush2.msra.mxu0 0.0
        %1525 = vmatprep.mubr.f32.mxu0 0.0
        %v1526 = vand.u32 %v1045, 4294901760
        %1527 = vmatmul.mubr.f32.gmra.mxu0 %v1526
        %v1528 = vpop.f32.mrf.mxu0
        %v1529 = vadd.f32 %v1454, %v1528
        %v1530 = vpop.f32.mrf.mxu0
        %1531 = vdwg.mxu0
        %v1532 = vld [vmem:[%s466] sm:$0xff]
        %v1533 = vld [vmem:[#allocation12] sm:$0xff]
        %v1534 = vld [vmem:[#allocation12 + $0x8] sm:$0xff]
        %v1535 = vld [vmem:[#allocation12 + $0x10] sm:$0xff]
        %v1536 = vld [vmem:[#allocation12 + $0x18] sm:$0xff]
        %v1537 = vld [vmem:[%s8] sm:$0x1]
        %v1539 = vlaneseq
        %v1540 = vshrl.u32 %v1539, 7
        %v1541 = vsub.s32 0, %v1540
        %v1542 = vrot.slane %v1537, %v1541
        %v1545 = vsel %vm543, %v1532, 0
        %1547 = vmatprep.subr.mxu0 0.0
        %1548 = vmatpush1.msra.mxu0 0.0
        %1549 = vmatprep.subr.mxu0 0.0
        %1550 = vmatpush1.msra.mxu0 0.0
        %1551 = vmatprep.subr.mxu0 0.0
        %1552 = vmatpush1.msra.mxu0 0.0
        %1553 = vmatprep.subr.mxu0 0.0
        %1554 = vmatpush1.msra.mxu0 0.0
        %1555 = vmatprep.subr.mxu0 0.0
        %1556 = vmatpush1.msra.mxu0 0.0
        %1557 = vmatprep.subr.mxu0 0.0
        %1558 = vmatpush1.msra.mxu0 0.0
        %1559 = vmatprep.subr.mxu0 0.0
        %1560 = vmatpush1.msra.mxu0 0.0
        %1561 = vmatprep.subr.mxu0 0.0
        %1562 = vmatpush1.msra.mxu0 0.0
        %1563 = vmatprep.subr.mxu0 0.0
        %1564 = vmatpush1.msra.mxu0 0.0
        %1565 = vmatprep.subr.mxu0 0.0
        %1566 = vmatpush1.msra.mxu0 0.0
        %1567 = vmatprep.subr.mxu0 0.0
        %1568 = vmatpush1.msra.mxu0 0.0
        %1569 = vmatprep.subr.mxu0 0.0
        %1570 = vmatpush1.msra.mxu0 0.0
        %1571 = vmatprep.subr.mxu0 0.0
        %v1572 = vand.u32 %v1536, 4294901760
        %1573 = vmatpush1.msra.mxu0 %v1572
        %1574 = vmatprep.subr.mxu0 0.0
        %v1575 = vand.u32 %v1535, 4294901760
        %1576 = vmatpush1.msra.mxu0 %v1575
        %1577 = vmatprep.subr.mxu0 0.0
        %v1578 = vand.u32 %v1534, 4294901760
        %1579 = vmatpush1.msra.mxu0 %v1578
        %1580 = vmatprep.subr.mxu0 0.0
        %v1581 = vand.u32 %v1533, 4294901760
        %1582 = vmatpush1.msra.mxu0 %v1581
        %1583 = vmatprep.subr.mxu0 0.0
        %1584 = vmatpush2.msra.mxu0 0.0
        %1585 = vmatprep.subr.mxu0 0.0
        %1586 = vmatpush2.msra.mxu0 0.0
        %1587 = vmatprep.subr.mxu0 0.0
        %1588 = vmatpush2.msra.mxu0 0.0
        %1589 = vmatprep.subr.mxu0 0.0
        %1590 = vmatpush2.msra.mxu0 0.0
        %1591 = vmatprep.subr.mxu0 0.0
        %1592 = vmatpush2.msra.mxu0 0.0
        %1593 = vmatprep.subr.mxu0 0.0
        %1594 = vmatpush2.msra.mxu0 0.0
        %1595 = vmatprep.subr.mxu0 0.0
        %1596 = vmatpush2.msra.mxu0 0.0
        %1597 = vmatprep.subr.mxu0 0.0
        %1598 = vmatpush2.msra.mxu0 0.0
        %1599 = vmatprep.subr.mxu0 0.0
        %1600 = vmatpush2.msra.mxu0 0.0
        %1601 = vmatprep.subr.mxu0 0.0
        %1602 = vmatpush2.msra.mxu0 0.0
        %1603 = vmatprep.subr.mxu0 0.0
        %1604 = vmatpush2.msra.mxu0 0.0
        %1605 = vmatprep.subr.mxu0 0.0
        %1606 = vmatpush2.msra.mxu0 0.0
        %1607 = vmatprep.subr.mxu0 0.0
        %1608 = vmatpush2.msra.mxu0 0.0
        %1609 = vmatprep.subr.mxu0 0.0
        %1610 = vmatpush2.msra.mxu0 0.0
        %1611 = vmatprep.subr.mxu0 0.0
        %1612 = vmatpush2.msra.mxu0 0.0
        %1613 = vmatprep.subr.mxu0 0.0
        %1614 = vmatpush2.msra.mxu0 0.0
        %1615 = vmatprep.mubr.f32.mxu0 0.0
        %v1616 = vand.u32 %v1545, 4294901760
        %v1617 = vsub.f32 %v1545, %v1616
        %v1618 = vand.u32 %v1617, 4294901760
        %v1619 = vsub.f32 %v1617, %v1618
        %v1620 = vand.u32 %v1619, 4294901760
        %1621 = vmatmul.mubr.f32.gmra.mxu0 %v1620
        %v1622 = vpop.f32.mrf.mxu0
        %v1623 = vadd.f32 %v1542, %v1622
        %v1624 = vpop.f32.mrf.mxu0
        %1625 = vdwg.mxu0
        %1626 = vmatprep.subr.mxu0 0.0
        %1627 = vmatpush1.msra.mxu0 0.0
        %1628 = vmatprep.subr.mxu0 0.0
        %1629 = vmatpush1.msra.mxu0 0.0
        %1630 = vmatprep.subr.mxu0 0.0
        %1631 = vmatpush1.msra.mxu0 0.0
        %1632 = vmatprep.subr.mxu0 0.0
        %1633 = vmatpush1.msra.mxu0 0.0
        %1634 = vmatprep.subr.mxu0 0.0
        %1635 = vmatpush1.msra.mxu0 0.0
        %1636 = vmatprep.subr.mxu0 0.0
        %1637 = vmatpush1.msra.mxu0 0.0
        %1638 = vmatprep.subr.mxu0 0.0
        %1639 = vmatpush1.msra.mxu0 0.0
        %1640 = vmatprep.subr.mxu0 0.0
        %1641 = vmatpush1.msra.mxu0 0.0
        %1642 = vmatprep.subr.mxu0 0.0
        %1643 = vmatpush1.msra.mxu0 0.0
        %1644 = vmatprep.subr.mxu0 0.0
        %1645 = vmatpush1.msra.mxu0 0.0
        %1646 = vmatprep.subr.mxu0 0.0
        %1647 = vmatpush1.msra.mxu0 0.0
        %1648 = vmatprep.subr.mxu0 0.0
        %1649 = vmatpush1.msra.mxu0 0.0
        %1650 = vmatprep.subr.mxu0 0.0
        %v1651 = vand.u32 %v1536, 4294901760
        %v1652 = vsub.f32 %v1536, %v1651
        %v1653 = vand.u32 %v1652, 4294901760
        %v1654 = vsub.f32 %v1652, %v1653
        %v1655 = vand.u32 %v1654, 4294901760
        %1656 = vmatpush1.msra.mxu0 %v1655
        %1657 = vmatprep.subr.mxu0 0.0
        %v1658 = vand.u32 %v1535, 4294901760
        %v1659 = vsub.f32 %v1535, %v1658
        %v1660 = vand.u32 %v1659, 4294901760
        %v1661 = vsub.f32 %v1659, %v1660
        %v1662 = vand.u32 %v1661, 4294901760
        %1663 = vmatpush1.msra.mxu0 %v1662
        %1664 = vmatprep.subr.mxu0 0.0
        %v1665 = vand.u32 %v1534, 4294901760
        %v1666 = vsub.f32 %v1534, %v1665
        %v1667 = vand.u32 %v1666, 4294901760
        %v1668 = vsub.f32 %v1666, %v1667
        %v1669 = vand.u32 %v1668, 4294901760
        %1670 = vmatpush1.msra.mxu0 %v1669
        %1671 = vmatprep.subr.mxu0 0.0
        %v1672 = vand.u32 %v1533, 4294901760
        %v1673 = vsub.f32 %v1533, %v1672
        %v1674 = vand.u32 %v1673, 4294901760
        %v1675 = vsub.f32 %v1673, %v1674
        %v1676 = vand.u32 %v1675, 4294901760
        %1677 = vmatpush1.msra.mxu0 %v1676
        %1678 = vmatprep.subr.mxu0 0.0
        %1679 = vmatpush2.msra.mxu0 0.0
        %1680 = vmatprep.subr.mxu0 0.0
        %1681 = vmatpush2.msra.mxu0 0.0
        %1682 = vmatprep.subr.mxu0 0.0
        %1683 = vmatpush2.msra.mxu0 0.0
        %1684 = vmatprep.subr.mxu0 0.0
        %1685 = vmatpush2.msra.mxu0 0.0
        %1686 = vmatprep.subr.mxu0 0.0
        %1687 = vmatpush2.msra.mxu0 0.0
        %1688 = vmatprep.subr.mxu0 0.0
        %1689 = vmatpush2.msra.mxu0 0.0
        %1690 = vmatprep.subr.mxu0 0.0
        %1691 = vmatpush2.msra.mxu0 0.0
        %1692 = vmatprep.subr.mxu0 0.0
        %1693 = vmatpush2.msra.mxu0 0.0
        %1694 = vmatprep.subr.mxu0 0.0
        %1695 = vmatpush2.msra.mxu0 0.0
        %1696 = vmatprep.subr.mxu0 0.0
        %1697 = vmatpush2.msra.mxu0 0.0
        %1698 = vmatprep.subr.mxu0 0.0
        %1699 = vmatpush2.msra.mxu0 0.0
        %1700 = vmatprep.subr.mxu0 0.0
        %1701 = vmatpush2.msra.mxu0 0.0
        %1702 = vmatprep.subr.mxu0 0.0
        %1703 = vmatpush2.msra.mxu0 0.0
        %1704 = vmatprep.subr.mxu0 0.0
        %1705 = vmatpush2.msra.mxu0 0.0
        %1706 = vmatprep.subr.mxu0 0.0
        %1707 = vmatpush2.msra.mxu0 0.0
        %1708 = vmatprep.subr.mxu0 0.0
        %1709 = vmatpush2.msra.mxu0 0.0
        %1710 = vmatprep.mubr.f32.mxu0 0.0
        %v1711 = vand.u32 %v1545, 4294901760
        %1712 = vmatmul.mubr.f32.gmra.mxu0 %v1711
        %v1713 = vpop.f32.mrf.mxu0
        %v1714 = vadd.f32 %v1623, %v1713
        %v1715 = vpop.f32.mrf.mxu0
        %1716 = vdwg.mxu0
        %1717 = vmatprep.subr.mxu0 0.0
        %1718 = vmatpush1.msra.mxu0 0.0
        %1719 = vmatprep.subr.mxu0 0.0
        %1720 = vmatpush1.msra.mxu0 0.0
        %1721 = vmatprep.subr.mxu0 0.0
        %1722 = vmatpush1.msra.mxu0 0.0
        %1723 = vmatprep.subr.mxu0 0.0
        %1724 = vmatpush1.msra.mxu0 0.0
        %1725 = vmatprep.subr.mxu0 0.0
        %1726 = vmatpush1.msra.mxu0 0.0
        %1727 = vmatprep.subr.mxu0 0.0
        %1728 = vmatpush1.msra.mxu0 0.0
        %1729 = vmatprep.subr.mxu0 0.0
        %1730 = vmatpush1.msra.mxu0 0.0
        %1731 = vmatprep.subr.mxu0 0.0
        %1732 = vmatpush1.msra.mxu0 0.0
        %1733 = vmatprep.subr.mxu0 0.0
        %1734 = vmatpush1.msra.mxu0 0.0
        %1735 = vmatprep.subr.mxu0 0.0
        %1736 = vmatpush1.msra.mxu0 0.0
        %1737 = vmatprep.subr.mxu0 0.0
        %1738 = vmatpush1.msra.mxu0 0.0
        %1739 = vmatprep.subr.mxu0 0.0
        %1740 = vmatpush1.msra.mxu0 0.0
        %1741 = vmatprep.subr.mxu0 0.0
        %v1742 = vand.u32 %v1536, 4294901760
        %v1743 = vsub.f32 %v1536, %v1742
        %1744 = vmatpush1.msra.mxu0 %v1743
        %1745 = vmatprep.subr.mxu0 0.0
        %v1746 = vand.u32 %v1535, 4294901760
        %v1747 = vsub.f32 %v1535, %v1746
        %1748 = vmatpush1.msra.mxu0 %v1747
        %1749 = vmatprep.subr.mxu0 0.0
        %v1750 = vand.u32 %v1534, 4294901760
        %v1751 = vsub.f32 %v1534, %v1750
        %1752 = vmatpush1.msra.mxu0 %v1751
        %1753 = vmatprep.subr.mxu0 0.0
        %v1754 = vand.u32 %v1533, 4294901760
        %v1755 = vsub.f32 %v1533, %v1754
        %1756 = vmatpush1.msra.mxu0 %v1755
        %1757 = vmatprep.subr.mxu0 0.0
        %1758 = vmatpush2.msra.mxu0 0.0
        %1759 = vmatprep.subr.mxu0 0.0
        %1760 = vmatpush2.msra.mxu0 0.0
        %1761 = vmatprep.subr.mxu0 0.0
        %1762 = vmatpush2.msra.mxu0 0.0
        %1763 = vmatprep.subr.mxu0 0.0
        %1764 = vmatpush2.msra.mxu0 0.0
        %1765 = vmatprep.subr.mxu0 0.0
        %1766 = vmatpush2.msra.mxu0 0.0
        %1767 = vmatprep.subr.mxu0 0.0
        %1768 = vmatpush2.msra.mxu0 0.0
        %1769 = vmatprep.subr.mxu0 0.0
        %1770 = vmatpush2.msra.mxu0 0.0
        %1771 = vmatprep.subr.mxu0 0.0
        %1772 = vmatpush2.msra.mxu0 0.0
        %1773 = vmatprep.subr.mxu0 0.0
        %1774 = vmatpush2.msra.mxu0 0.0
        %1775 = vmatprep.subr.mxu0 0.0
        %1776 = vmatpush2.msra.mxu0 0.0
        %1777 = vmatprep.subr.mxu0 0.0
        %1778 = vmatpush2.msra.mxu0 0.0
        %1779 = vmatprep.subr.mxu0 0.0
        %1780 = vmatpush2.msra.mxu0 0.0
        %1781 = vmatprep.subr.mxu0 0.0
        %1782 = vmatpush2.msra.mxu0 0.0
        %1783 = vmatprep.subr.mxu0 0.0
        %1784 = vmatpush2.msra.mxu0 0.0
        %1785 = vmatprep.subr.mxu0 0.0
        %1786 = vmatpush2.msra.mxu0 0.0
        %1787 = vmatprep.subr.mxu0 0.0
        %1788 = vmatpush2.msra.mxu0 0.0
        %1789 = vmatprep.mubr.f32.mxu0 0.0
        %v1790 = vand.u32 %v1545, 4294901760
        %v1791 = vsub.f32 %v1545, %v1790
        %1792 = vmatmul.mubr.f32.gmra.mxu0 %v1791
        %v1793 = vpop.f32.mrf.mxu0
        %v1794 = vadd.f32 %v1714, %v1793
        %v1795 = vpop.f32.mrf.mxu0
        %1796 = vdwg.mxu0
        %1797 = vmatprep.subr.mxu0 0.0
        %1798 = vmatpush1.msra.mxu0 0.0
        %1799 = vmatprep.subr.mxu0 0.0
        %1800 = vmatpush1.msra.mxu0 0.0
        %1801 = vmatprep.subr.mxu0 0.0
        %1802 = vmatpush1.msra.mxu0 0.0
        %1803 = vmatprep.subr.mxu0 0.0
        %1804 = vmatpush1.msra.mxu0 0.0
        %1805 = vmatprep.subr.mxu0 0.0
        %1806 = vmatpush1.msra.mxu0 0.0
        %1807 = vmatprep.subr.mxu0 0.0
        %1808 = vmatpush1.msra.mxu0 0.0
        %1809 = vmatprep.subr.mxu0 0.0
        %1810 = vmatpush1.msra.mxu0 0.0
        %1811 = vmatprep.subr.mxu0 0.0
        %1812 = vmatpush1.msra.mxu0 0.0
        %1813 = vmatprep.subr.mxu0 0.0
        %1814 = vmatpush1.msra.mxu0 0.0
        %1815 = vmatprep.subr.mxu0 0.0
        %1816 = vmatpush1.msra.mxu0 0.0
        %1817 = vmatprep.subr.mxu0 0.0
        %1818 = vmatpush1.msra.mxu0 0.0
        %1819 = vmatprep.subr.mxu0 0.0
        %1820 = vmatpush1.msra.mxu0 0.0
        %1821 = vmatprep.subr.mxu0 0.0
        %v1822 = vand.u32 %v1536, 4294901760
        %1823 = vmatpush1.msra.mxu0 %v1822
        %1824 = vmatprep.subr.mxu0 0.0
        %v1825 = vand.u32 %v1535, 4294901760
        %1826 = vmatpush1.msra.mxu0 %v1825
        %1827 = vmatprep.subr.mxu0 0.0
        %v1828 = vand.u32 %v1534, 4294901760
        %1829 = vmatpush1.msra.mxu0 %v1828
        %1830 = vmatprep.subr.mxu0 0.0
        %v1831 = vand.u32 %v1533, 4294901760
        %1832 = vmatpush1.msra.mxu0 %v1831
        %1833 = vmatprep.subr.mxu0 0.0
        %1834 = vmatpush2.msra.mxu0 0.0
        %1835 = vmatprep.subr.mxu0 0.0
        %1836 = vmatpush2.msra.mxu0 0.0
        %1837 = vmatprep.subr.mxu0 0.0
        %1838 = vmatpush2.msra.mxu0 0.0
        %1839 = vmatprep.subr.mxu0 0.0
        %1840 = vmatpush2.msra.mxu0 0.0
        %1841 = vmatprep.subr.mxu0 0.0
        %1842 = vmatpush2.msra.mxu0 0.0
        %1843 = vmatprep.subr.mxu0 0.0
        %1844 = vmatpush2.msra.mxu0 0.0
        %1845 = vmatprep.subr.mxu0 0.0
        %1846 = vmatpush2.msra.mxu0 0.0
        %1847 = vmatprep.subr.mxu0 0.0
        %1848 = vmatpush2.msra.mxu0 0.0
        %1849 = vmatprep.subr.mxu0 0.0
        %1850 = vmatpush2.msra.mxu0 0.0
        %1851 = vmatprep.subr.mxu0 0.0
        %1852 = vmatpush2.msra.mxu0 0.0
        %1853 = vmatprep.subr.mxu0 0.0
        %1854 = vmatpush2.msra.mxu0 0.0
        %1855 = vmatprep.subr.mxu0 0.0
        %1856 = vmatpush2.msra.mxu0 0.0
        %1857 = vmatprep.subr.mxu0 0.0
        %1858 = vmatpush2.msra.mxu0 0.0
        %1859 = vmatprep.subr.mxu0 0.0
        %1860 = vmatpush2.msra.mxu0 0.0
        %1861 = vmatprep.subr.mxu0 0.0
        %1862 = vmatpush2.msra.mxu0 0.0
        %1863 = vmatprep.subr.mxu0 0.0
        %1864 = vmatpush2.msra.mxu0 0.0
        %1865 = vmatprep.mubr.f32.mxu0 0.0
        %v1866 = vand.u32 %v1545, 4294901760
        %v1867 = vsub.f32 %v1545, %v1866
        %v1868 = vand.u32 %v1867, 4294901760
        %1869 = vmatmul.mubr.f32.gmra.mxu0 %v1868
        %v1870 = vpop.f32.mrf.mxu0
        %v1871 = vadd.f32 %v1794, %v1870
        %v1872 = vpop.f32.mrf.mxu0
        %1873 = vdwg.mxu0
        %1874 = vmatprep.subr.mxu0 0.0
        %1875 = vmatpush1.msra.mxu0 0.0
        %1876 = vmatprep.subr.mxu0 0.0
        %1877 = vmatpush1.msra.mxu0 0.0
        %1878 = vmatprep.subr.mxu0 0.0
        %1879 = vmatpush1.msra.mxu0 0.0
        %1880 = vmatprep.subr.mxu0 0.0
        %1881 = vmatpush1.msra.mxu0 0.0
        %1882 = vmatprep.subr.mxu0 0.0
        %1883 = vmatpush1.msra.mxu0 0.0
        %1884 = vmatprep.subr.mxu0 0.0
        %1885 = vmatpush1.msra.mxu0 0.0
        %1886 = vmatprep.subr.mxu0 0.0
        %1887 = vmatpush1.msra.mxu0 0.0
        %1888 = vmatprep.subr.mxu0 0.0
        %1889 = vmatpush1.msra.mxu0 0.0
        %1890 = vmatprep.subr.mxu0 0.0
        %1891 = vmatpush1.msra.mxu0 0.0
        %1892 = vmatprep.subr.mxu0 0.0
        %1893 = vmatpush1.msra.mxu0 0.0
        %1894 = vmatprep.subr.mxu0 0.0
        %1895 = vmatpush1.msra.mxu0 0.0
        %1896 = vmatprep.subr.mxu0 0.0
        %1897 = vmatpush1.msra.mxu0 0.0
        %1898 = vmatprep.subr.mxu0 0.0
        %v1899 = vand.u32 %v1536, 4294901760
        %v1900 = vsub.f32 %v1536, %v1899
        %v1901 = vand.u32 %v1900, 4294901760
        %1902 = vmatpush1.msra.mxu0 %v1901
        %1903 = vmatprep.subr.mxu0 0.0
        %v1904 = vand.u32 %v1535, 4294901760
        %v1905 = vsub.f32 %v1535, %v1904
        %v1906 = vand.u32 %v1905, 4294901760
        %1907 = vmatpush1.msra.mxu0 %v1906
        %1908 = vmatprep.subr.mxu0 0.0
        %v1909 = vand.u32 %v1534, 4294901760
        %v1910 = vsub.f32 %v1534, %v1909
        %v1911 = vand.u32 %v1910, 4294901760
        %1912 = vmatpush1.msra.mxu0 %v1911
        %1913 = vmatprep.subr.mxu0 0.0
        %v1914 = vand.u32 %v1533, 4294901760
        %v1915 = vsub.f32 %v1533, %v1914
        %v1916 = vand.u32 %v1915, 4294901760
        %1917 = vmatpush1.msra.mxu0 %v1916
        %1918 = vmatprep.subr.mxu0 0.0
        %1919 = vmatpush2.msra.mxu0 0.0
        %1920 = vmatprep.subr.mxu0 0.0
        %1921 = vmatpush2.msra.mxu0 0.0
        %1922 = vmatprep.subr.mxu0 0.0
        %1923 = vmatpush2.msra.mxu0 0.0
        %1924 = vmatprep.subr.mxu0 0.0
        %1925 = vmatpush2.msra.mxu0 0.0
        %1926 = vmatprep.subr.mxu0 0.0
        %1927 = vmatpush2.msra.mxu0 0.0
        %1928 = vmatprep.subr.mxu0 0.0
        %1929 = vmatpush2.msra.mxu0 0.0
        %1930 = vmatprep.subr.mxu0 0.0
        %1931 = vmatpush2.msra.mxu0 0.0
        %1932 = vmatprep.subr.mxu0 0.0
        %1933 = vmatpush2.msra.mxu0 0.0
        %1934 = vmatprep.subr.mxu0 0.0
        %1935 = vmatpush2.msra.mxu0 0.0
        %1936 = vmatprep.subr.mxu0 0.0
        %1937 = vmatpush2.msra.mxu0 0.0
        %1938 = vmatprep.subr.mxu0 0.0
        %1939 = vmatpush2.msra.mxu0 0.0
        %1940 = vmatprep.subr.mxu0 0.0
        %1941 = vmatpush2.msra.mxu0 0.0
        %1942 = vmatprep.subr.mxu0 0.0
        %1943 = vmatpush2.msra.mxu0 0.0
        %1944 = vmatprep.subr.mxu0 0.0
        %1945 = vmatpush2.msra.mxu0 0.0
        %1946 = vmatprep.subr.mxu0 0.0
        %1947 = vmatpush2.msra.mxu0 0.0
        %1948 = vmatprep.subr.mxu0 0.0
        %1949 = vmatpush2.msra.mxu0 0.0
        %1950 = vmatprep.mubr.f32.mxu0 0.0
        %v1951 = vand.u32 %v1545, 4294901760
        %1952 = vmatmul.mubr.f32.gmra.mxu0 %v1951
        %v1953 = vpop.f32.mrf.mxu0
        %v1954 = vadd.f32 %v1871, %v1953
        %v1955 = vpop.f32.mrf.mxu0
        %1956 = vdwg.mxu0
        %1957 = vmatprep.subr.mxu0 0.0
        %1958 = vmatpush1.msra.mxu0 0.0
        %1959 = vmatprep.subr.mxu0 0.0
        %1960 = vmatpush1.msra.mxu0 0.0
        %1961 = vmatprep.subr.mxu0 0.0
        %1962 = vmatpush1.msra.mxu0 0.0
        %1963 = vmatprep.subr.mxu0 0.0
        %1964 = vmatpush1.msra.mxu0 0.0
        %1965 = vmatprep.subr.mxu0 0.0
        %1966 = vmatpush1.msra.mxu0 0.0
        %1967 = vmatprep.subr.mxu0 0.0
        %1968 = vmatpush1.msra.mxu0 0.0
        %1969 = vmatprep.subr.mxu0 0.0
        %1970 = vmatpush1.msra.mxu0 0.0
        %1971 = vmatprep.subr.mxu0 0.0
        %1972 = vmatpush1.msra.mxu0 0.0
        %1973 = vmatprep.subr.mxu0 0.0
        %1974 = vmatpush1.msra.mxu0 0.0
        %1975 = vmatprep.subr.mxu0 0.0
        %1976 = vmatpush1.msra.mxu0 0.0
        %1977 = vmatprep.subr.mxu0 0.0
        %1978 = vmatpush1.msra.mxu0 0.0
        %1979 = vmatprep.subr.mxu0 0.0
        %1980 = vmatpush1.msra.mxu0 0.0
        %1981 = vmatprep.subr.mxu0 0.0
        %v1982 = vand.u32 %v1536, 4294901760
        %1983 = vmatpush1.msra.mxu0 %v1982
        %1984 = vmatprep.subr.mxu0 0.0
        %v1985 = vand.u32 %v1535, 4294901760
        %1986 = vmatpush1.msra.mxu0 %v1985
        %1987 = vmatprep.subr.mxu0 0.0
        %v1988 = vand.u32 %v1534, 4294901760
        %1989 = vmatpush1.msra.mxu0 %v1988
        %1990 = vmatprep.subr.mxu0 0.0
        %v1991 = vand.u32 %v1533, 4294901760
        %1992 = vmatpush1.msra.mxu0 %v1991
        %1993 = vmatprep.subr.mxu0 0.0
        %1994 = vmatpush2.msra.mxu0 0.0
        %1995 = vmatprep.subr.mxu0 0.0
        %1996 = vmatpush2.msra.mxu0 0.0
        %1997 = vmatprep.subr.mxu0 0.0
        %1998 = vmatpush2.msra.mxu0 0.0
        %1999 = vmatprep.subr.mxu0 0.0
        %2000 = vmatpush2.msra.mxu0 0.0
        %2001 = vmatprep.subr.mxu0 0.0
        %2002 = vmatpush2.msra.mxu0 0.0
        %2003 = vmatprep.subr.mxu0 0.0
        %2004 = vmatpush2.msra.mxu0 0.0
        %2005 = vmatprep.subr.mxu0 0.0
        %2006 = vmatpush2.msra.mxu0 0.0
        %2007 = vmatprep.subr.mxu0 0.0
        %2008 = vmatpush2.msra.mxu0 0.0
        %2009 = vmatprep.subr.mxu0 0.0
        %2010 = vmatpush2.msra.mxu0 0.0
        %2011 = vmatprep.subr.mxu0 0.0
        %2012 = vmatpush2.msra.mxu0 0.0
        %2013 = vmatprep.subr.mxu0 0.0
        %2014 = vmatpush2.msra.mxu0 0.0
        %2015 = vmatprep.subr.mxu0 0.0
        %2016 = vmatpush2.msra.mxu0 0.0
        %2017 = vmatprep.subr.mxu0 0.0
        %2018 = vmatpush2.msra.mxu0 0.0
        %2019 = vmatprep.subr.mxu0 0.0
        %2020 = vmatpush2.msra.mxu0 0.0
        %2021 = vmatprep.subr.mxu0 0.0
        %2022 = vmatpush2.msra.mxu0 0.0
        %2023 = vmatprep.subr.mxu0 0.0
        %2024 = vmatpush2.msra.mxu0 0.0
        %2025 = vmatprep.mubr.f32.mxu0 0.0
        %v2026 = vand.u32 %v1545, 4294901760
        %2027 = vmatmul.mubr.f32.gmra.mxu0 %v2026
        %v2028 = vpop.f32.mrf.mxu0
        %v2029 = vadd.f32 %v1954, %v2028
        %v2030 = vpop.f32.mrf.mxu0
        %2031 = vdwg.mxu0
        %v2032 = vmul.f32 %v1029, 0.35355338
        %vm2033 = vcmask 64512
        %v2035 = vsel %vm2033, %v2032, 0
        %v2038 = vsel %vm2033, %v1529, 0
        %2040 = vmatprep.subr.mxu0 0.0
        %2041 = vmatpush1.xpose.msra.mxu0 0.0
        %2042 = vmatprep.subr.mxu0 0.0
        %2043 = vmatpush1.xpose.msra.mxu0 0.0
        %2044 = vmatprep.subr.mxu0 0.0
        %2045 = vmatpush1.xpose.msra.mxu0 0.0
        %2046 = vmatprep.subr.mxu0 0.0
        %2047 = vmatpush1.xpose.msra.mxu0 0.0
        %2048 = vmatprep.subr.mxu0 0.0
        %2049 = vmatpush1.xpose.msra.mxu0 0.0
        %2050 = vmatprep.subr.mxu0 0.0
        %2051 = vmatpush1.xpose.msra.mxu0 0.0
        %2052 = vmatprep.subr.mxu0 0.0
        %2053 = vmatpush1.xpose.msra.mxu0 0.0
        %2054 = vmatprep.subr.mxu0 0.0
        %2055 = vmatpush1.xpose.msra.mxu0 0.0
        %2056 = vmatprep.subr.mxu0 0.0
        %2057 = vmatpush1.xpose.msra.mxu0 0.0
        %2058 = vmatprep.subr.mxu0 0.0
        %2059 = vmatpush1.xpose.msra.mxu0 0.0
        %2060 = vmatprep.subr.mxu0 0.0
        %2061 = vmatpush1.xpose.msra.mxu0 0.0
        %2062 = vmatprep.subr.mxu0 0.0
        %2063 = vmatpush1.xpose.msra.mxu0 0.0
        %2064 = vmatprep.subr.mxu0 0.0
        %2065 = vmatpush1.xpose.msra.mxu0 0.0
        %2066 = vmatprep.subr.mxu0 0.0
        %2067 = vmatpush1.xpose.msra.mxu0 0.0
        %2068 = vmatprep.subr.mxu0 0.0
        %2069 = vmatpush1.xpose.msra.mxu0 0.0
        %2070 = vmatprep.subr.mxu0 0.0
        %v2071 = vand.u32 %v2038, 4294901760
        %2072 = vmatpush1.xpose.msra.mxu0 %v2071
        %2073 = vmatprep.subr.mxu0 0.0
        %2074 = vmatpush2.xpose.msra.mxu0 0.0
        %2075 = vmatprep.subr.mxu0 0.0
        %2076 = vmatpush2.xpose.msra.mxu0 0.0
        %2077 = vmatprep.subr.mxu0 0.0
        %2078 = vmatpush2.xpose.msra.mxu0 0.0
        %2079 = vmatprep.subr.mxu0 0.0
        %2080 = vmatpush2.xpose.msra.mxu0 0.0
        %2081 = vmatprep.subr.mxu0 0.0
        %2082 = vmatpush2.xpose.msra.mxu0 0.0
        %2083 = vmatprep.subr.mxu0 0.0
        %2084 = vmatpush2.xpose.msra.mxu0 0.0
        %2085 = vmatprep.subr.mxu0 0.0
        %2086 = vmatpush2.xpose.msra.mxu0 0.0
        %2087 = vmatprep.subr.mxu0 0.0
        %2088 = vmatpush2.xpose.msra.mxu0 0.0
        %2089 = vmatprep.subr.mxu0 0.0
        %2090 = vmatpush2.xpose.msra.mxu0 0.0
        %2091 = vmatprep.subr.mxu0 0.0
        %2092 = vmatpush2.xpose.msra.mxu0 0.0
        %2093 = vmatprep.subr.mxu0 0.0
        %2094 = vmatpush2.xpose.msra.mxu0 0.0
        %2095 = vmatprep.subr.mxu0 0.0
        %2096 = vmatpush2.xpose.msra.mxu0 0.0
        %2097 = vmatprep.subr.mxu0 0.0
        %2098 = vmatpush2.xpose.msra.mxu0 0.0
        %2099 = vmatprep.subr.mxu0 0.0
        %2100 = vmatpush2.xpose.msra.mxu0 0.0
        %2101 = vmatprep.subr.mxu0 0.0
        %2102 = vmatpush2.xpose.msra.mxu0 0.0
        %2103 = vmatprep.subr.mxu0 0.0
        %2104 = vmatpush2.xpose.msra.mxu0 0.0
        %2105 = vmatprep.mubr.f32.mxu0 0.0
        %v2106 = vand.u32 %v2035, 4294901760
        %v2107 = vsub.f32 %v2035, %v2106
        %v2108 = vand.u32 %v2107, 4294901760
        %v2109 = vsub.f32 %v2107, %v2108
        %v2110 = vand.u32 %v2109, 4294901760
        %2111 = vmatmul.mubr.f32.gmra.mxu0 %v2110
        %v2112 = vpop.f32.mrf.mxu0
        %v2113 = vadd.f32 0.0, %v2112
        %v2114 = vpop.f32.mrf.mxu0
        %2115 = vdwg.mxu0
        %2116 = vmatprep.subr.mxu0 0.0
        %2117 = vmatpush1.xpose.msra.mxu0 0.0
        %2118 = vmatprep.subr.mxu0 0.0
        %2119 = vmatpush1.xpose.msra.mxu0 0.0
        %2120 = vmatprep.subr.mxu0 0.0
        %2121 = vmatpush1.xpose.msra.mxu0 0.0
        %2122 = vmatprep.subr.mxu0 0.0
        %2123 = vmatpush1.xpose.msra.mxu0 0.0
        %2124 = vmatprep.subr.mxu0 0.0
        %2125 = vmatpush1.xpose.msra.mxu0 0.0
        %2126 = vmatprep.subr.mxu0 0.0
        %2127 = vmatpush1.xpose.msra.mxu0 0.0
        %2128 = vmatprep.subr.mxu0 0.0
        %2129 = vmatpush1.xpose.msra.mxu0 0.0
        %2130 = vmatprep.subr.mxu0 0.0
        %2131 = vmatpush1.xpose.msra.mxu0 0.0
        %2132 = vmatprep.subr.mxu0 0.0
        %2133 = vmatpush1.xpose.msra.mxu0 0.0
        %2134 = vmatprep.subr.mxu0 0.0
        %2135 = vmatpush1.xpose.msra.mxu0 0.0
        %2136 = vmatprep.subr.mxu0 0.0
        %2137 = vmatpush1.xpose.msra.mxu0 0.0
        %2138 = vmatprep.subr.mxu0 0.0
        %2139 = vmatpush1.xpose.msra.mxu0 0.0
        %2140 = vmatprep.subr.mxu0 0.0
        %2141 = vmatpush1.xpose.msra.mxu0 0.0
        %2142 = vmatprep.subr.mxu0 0.0
        %2143 = vmatpush1.xpose.msra.mxu0 0.0
        %2144 = vmatprep.subr.mxu0 0.0
        %2145 = vmatpush1.xpose.msra.mxu0 0.0
        %2146 = vmatprep.subr.mxu0 0.0
        %v2147 = vand.u32 %v2038, 4294901760
        %v2148 = vsub.f32 %v2038, %v2147
        %v2149 = vand.u32 %v2148, 4294901760
        %v2150 = vsub.f32 %v2148, %v2149
        %v2151 = vand.u32 %v2150, 4294901760
        %2152 = vmatpush1.xpose.msra.mxu0 %v2151
        %2153 = vmatprep.subr.mxu0 0.0
        %2154 = vmatpush2.xpose.msra.mxu0 0.0
        %2155 = vmatprep.subr.mxu0 0.0
        %2156 = vmatpush2.xpose.msra.mxu0 0.0
        %2157 = vmatprep.subr.mxu0 0.0
        %2158 = vmatpush2.xpose.msra.mxu0 0.0
        %2159 = vmatprep.subr.mxu0 0.0
        %2160 = vmatpush2.xpose.msra.mxu0 0.0
        %2161 = vmatprep.subr.mxu0 0.0
        %2162 = vmatpush2.xpose.msra.mxu0 0.0
        %2163 = vmatprep.subr.mxu0 0.0
        %2164 = vmatpush2.xpose.msra.mxu0 0.0
        %2165 = vmatprep.subr.mxu0 0.0
        %2166 = vmatpush2.xpose.msra.mxu0 0.0
        %2167 = vmatprep.subr.mxu0 0.0
        %2168 = vmatpush2.xpose.msra.mxu0 0.0
        %2169 = vmatprep.subr.mxu0 0.0
        %2170 = vmatpush2.xpose.msra.mxu0 0.0
        %2171 = vmatprep.subr.mxu0 0.0
        %2172 = vmatpush2.xpose.msra.mxu0 0.0
        %2173 = vmatprep.subr.mxu0 0.0
        %2174 = vmatpush2.xpose.msra.mxu0 0.0
        %2175 = vmatprep.subr.mxu0 0.0
        %2176 = vmatpush2.xpose.msra.mxu0 0.0
        %2177 = vmatprep.subr.mxu0 0.0
        %2178 = vmatpush2.xpose.msra.mxu0 0.0
        %2179 = vmatprep.subr.mxu0 0.0
        %2180 = vmatpush2.xpose.msra.mxu0 0.0
        %2181 = vmatprep.subr.mxu0 0.0
        %2182 = vmatpush2.xpose.msra.mxu0 0.0
        %2183 = vmatprep.subr.mxu0 0.0
        %2184 = vmatpush2.xpose.msra.mxu0 0.0
        %2185 = vmatprep.mubr.f32.mxu0 0.0
        %v2186 = vand.u32 %v2035, 4294901760
        %2187 = vmatmul.mubr.f32.gmra.mxu0 %v2186
        %v2188 = vpop.f32.mrf.mxu0
        %v2189 = vadd.f32 %v2113, %v2188
        %v2190 = vpop.f32.mrf.mxu0
        %2191 = vdwg.mxu0
        %2192 = vmatprep.subr.mxu0 0.0
        %2193 = vmatpush1.xpose.msra.mxu0 0.0
        %2194 = vmatprep.subr.mxu0 0.0
        %2195 = vmatpush1.xpose.msra.mxu0 0.0
        %2196 = vmatprep.subr.mxu0 0.0
        %2197 = vmatpush1.xpose.msra.mxu0 0.0
        %2198 = vmatprep.subr.mxu0 0.0
        %2199 = vmatpush1.xpose.msra.mxu0 0.0
        %2200 = vmatprep.subr.mxu0 0.0
        %2201 = vmatpush1.xpose.msra.mxu0 0.0
        %2202 = vmatprep.subr.mxu0 0.0
        %2203 = vmatpush1.xpose.msra.mxu0 0.0
        %2204 = vmatprep.subr.mxu0 0.0
        %2205 = vmatpush1.xpose.msra.mxu0 0.0
        %2206 = vmatprep.subr.mxu0 0.0
        %2207 = vmatpush1.xpose.msra.mxu0 0.0
        %2208 = vmatprep.subr.mxu0 0.0
        %2209 = vmatpush1.xpose.msra.mxu0 0.0
        %2210 = vmatprep.subr.mxu0 0.0
        %2211 = vmatpush1.xpose.msra.mxu0 0.0
        %2212 = vmatprep.subr.mxu0 0.0
        %2213 = vmatpush1.xpose.msra.mxu0 0.0
        %2214 = vmatprep.subr.mxu0 0.0
        %2215 = vmatpush1.xpose.msra.mxu0 0.0
        %2216 = vmatprep.subr.mxu0 0.0
        %2217 = vmatpush1.xpose.msra.mxu0 0.0
        %2218 = vmatprep.subr.mxu0 0.0
        %2219 = vmatpush1.xpose.msra.mxu0 0.0
        %2220 = vmatprep.subr.mxu0 0.0
        %2221 = vmatpush1.xpose.msra.mxu0 0.0
        %2222 = vmatprep.subr.mxu0 0.0
        %v2223 = vand.u32 %v2038, 4294901760
        %v2224 = vsub.f32 %v2038, %v2223
        %2225 = vmatpush1.xpose.msra.mxu0 %v2224
        %2226 = vmatprep.subr.mxu0 0.0
        %2227 = vmatpush2.xpose.msra.mxu0 0.0
        %2228 = vmatprep.subr.mxu0 0.0
        %2229 = vmatpush2.xpose.msra.mxu0 0.0
        %2230 = vmatprep.subr.mxu0 0.0
        %2231 = vmatpush2.xpose.msra.mxu0 0.0
        %2232 = vmatprep.subr.mxu0 0.0
        %2233 = vmatpush2.xpose.msra.mxu0 0.0
        %2234 = vmatprep.subr.mxu0 0.0
        %2235 = vmatpush2.xpose.msra.mxu0 0.0
        %2236 = vmatprep.subr.mxu0 0.0
        %2237 = vmatpush2.xpose.msra.mxu0 0.0
        %2238 = vmatprep.subr.mxu0 0.0
        %2239 = vmatpush2.xpose.msra.mxu0 0.0
        %2240 = vmatprep.subr.mxu0 0.0
        %2241 = vmatpush2.xpose.msra.mxu0 0.0
        %2242 = vmatprep.subr.mxu0 0.0
        %2243 = vmatpush2.xpose.msra.mxu0 0.0
        %2244 = vmatprep.subr.mxu0 0.0
        %2245 = vmatpush2.xpose.msra.mxu0 0.0
        %2246 = vmatprep.subr.mxu0 0.0
        %2247 = vmatpush2.xpose.msra.mxu0 0.0
        %2248 = vmatprep.subr.mxu0 0.0
        %2249 = vmatpush2.xpose.msra.mxu0 0.0
        %2250 = vmatprep.subr.mxu0 0.0
        %2251 = vmatpush2.xpose.msra.mxu0 0.0
        %2252 = vmatprep.subr.mxu0 0.0
        %2253 = vmatpush2.xpose.msra.mxu0 0.0
        %2254 = vmatprep.subr.mxu0 0.0
        %2255 = vmatpush2.xpose.msra.mxu0 0.0
        %2256 = vmatprep.subr.mxu0 0.0
        %2257 = vmatpush2.xpose.msra.mxu0 0.0
        %2258 = vmatprep.mubr.f32.mxu0 0.0
        %v2259 = vand.u32 %v2035, 4294901760
        %v2260 = vsub.f32 %v2035, %v2259
        %2261 = vmatmul.mubr.f32.gmra.mxu0 %v2260
        %v2262 = vpop.f32.mrf.mxu0
        %v2263 = vadd.f32 %v2189, %v2262
        %v2264 = vpop.f32.mrf.mxu0
        %2265 = vdwg.mxu0
        %2266 = vmatprep.subr.mxu0 0.0
        %2267 = vmatpush1.xpose.msra.mxu0 0.0
        %2268 = vmatprep.subr.mxu0 0.0
        %2269 = vmatpush1.xpose.msra.mxu0 0.0
        %2270 = vmatprep.subr.mxu0 0.0
        %2271 = vmatpush1.xpose.msra.mxu0 0.0
        %2272 = vmatprep.subr.mxu0 0.0
        %2273 = vmatpush1.xpose.msra.mxu0 0.0
        %2274 = vmatprep.subr.mxu0 0.0
        %2275 = vmatpush1.xpose.msra.mxu0 0.0
        %2276 = vmatprep.subr.mxu0 0.0
        %2277 = vmatpush1.xpose.msra.mxu0 0.0
        %2278 = vmatprep.subr.mxu0 0.0
        %2279 = vmatpush1.xpose.msra.mxu0 0.0
        %2280 = vmatprep.subr.mxu0 0.0
        %2281 = vmatpush1.xpose.msra.mxu0 0.0
        %2282 = vmatprep.subr.mxu0 0.0
        %2283 = vmatpush1.xpose.msra.mxu0 0.0
        %2284 = vmatprep.subr.mxu0 0.0
        %2285 = vmatpush1.xpose.msra.mxu0 0.0
        %2286 = vmatprep.subr.mxu0 0.0
        %2287 = vmatpush1.xpose.msra.mxu0 0.0
        %2288 = vmatprep.subr.mxu0 0.0
        %2289 = vmatpush1.xpose.msra.mxu0 0.0
        %2290 = vmatprep.subr.mxu0 0.0
        %2291 = vmatpush1.xpose.msra.mxu0 0.0
        %2292 = vmatprep.subr.mxu0 0.0
        %2293 = vmatpush1.xpose.msra.mxu0 0.0
        %2294 = vmatprep.subr.mxu0 0.0
        %2295 = vmatpush1.xpose.msra.mxu0 0.0
        %2296 = vmatprep.subr.mxu0 0.0
        %v2297 = vand.u32 %v2038, 4294901760
        %2298 = vmatpush1.xpose.msra.mxu0 %v2297
        %2299 = vmatprep.subr.mxu0 0.0
        %2300 = vmatpush2.xpose.msra.mxu0 0.0
        %2301 = vmatprep.subr.mxu0 0.0
        %2302 = vmatpush2.xpose.msra.mxu0 0.0
        %2303 = vmatprep.subr.mxu0 0.0
        %2304 = vmatpush2.xpose.msra.mxu0 0.0
        %2305 = vmatprep.subr.mxu0 0.0
        %2306 = vmatpush2.xpose.msra.mxu0 0.0
        %2307 = vmatprep.subr.mxu0 0.0
        %2308 = vmatpush2.xpose.msra.mxu0 0.0
        %2309 = vmatprep.subr.mxu0 0.0
        %2310 = vmatpush2.xpose.msra.mxu0 0.0
        %2311 = vmatprep.subr.mxu0 0.0
        %2312 = vmatpush2.xpose.msra.mxu0 0.0
        %2313 = vmatprep.subr.mxu0 0.0
        %2314 = vmatpush2.xpose.msra.mxu0 0.0
        %2315 = vmatprep.subr.mxu0 0.0
        %2316 = vmatpush2.xpose.msra.mxu0 0.0
        %2317 = vmatprep.subr.mxu0 0.0
        %2318 = vmatpush2.xpose.msra.mxu0 0.0
        %2319 = vmatprep.subr.mxu0 0.0
        %2320 = vmatpush2.xpose.msra.mxu0 0.0
        %2321 = vmatprep.subr.mxu0 0.0
        %2322 = vmatpush2.xpose.msra.mxu0 0.0
        %2323 = vmatprep.subr.mxu0 0.0
        %2324 = vmatpush2.xpose.msra.mxu0 0.0
        %2325 = vmatprep.subr.mxu0 0.0
        %2326 = vmatpush2.xpose.msra.mxu0 0.0
        %2327 = vmatprep.subr.mxu0 0.0
        %2328 = vmatpush2.xpose.msra.mxu0 0.0
        %2329 = vmatprep.subr.mxu0 0.0
        %2330 = vmatpush2.xpose.msra.mxu0 0.0
        %2331 = vmatprep.mubr.f32.mxu0 0.0
        %v2332 = vand.u32 %v2035, 4294901760
        %v2333 = vsub.f32 %v2035, %v2332
        %v2334 = vand.u32 %v2333, 4294901760
        %2335 = vmatmul.mubr.f32.gmra.mxu0 %v2334
        %v2336 = vpop.f32.mrf.mxu0
        %v2337 = vadd.f32 %v2263, %v2336
        %v2338 = vpop.f32.mrf.mxu0
        %2339 = vdwg.mxu0
        %2340 = vmatprep.subr.mxu0 0.0
        %2341 = vmatpush1.xpose.msra.mxu0 0.0
        %2342 = vmatprep.subr.mxu0 0.0
        %2343 = vmatpush1.xpose.msra.mxu0 0.0
        %2344 = vmatprep.subr.mxu0 0.0
        %2345 = vmatpush1.xpose.msra.mxu0 0.0
        %2346 = vmatprep.subr.mxu0 0.0
        %2347 = vmatpush1.xpose.msra.mxu0 0.0
        %2348 = vmatprep.subr.mxu0 0.0
        %2349 = vmatpush1.xpose.msra.mxu0 0.0
        %2350 = vmatprep.subr.mxu0 0.0
        %2351 = vmatpush1.xpose.msra.mxu0 0.0
        %2352 = vmatprep.subr.mxu0 0.0
        %2353 = vmatpush1.xpose.msra.mxu0 0.0
        %2354 = vmatprep.subr.mxu0 0.0
        %2355 = vmatpush1.xpose.msra.mxu0 0.0
        %2356 = vmatprep.subr.mxu0 0.0
        %2357 = vmatpush1.xpose.msra.mxu0 0.0
        %2358 = vmatprep.subr.mxu0 0.0
        %2359 = vmatpush1.xpose.msra.mxu0 0.0
        %2360 = vmatprep.subr.mxu0 0.0
        %2361 = vmatpush1.xpose.msra.mxu0 0.0
        %2362 = vmatprep.subr.mxu0 0.0
        %2363 = vmatpush1.xpose.msra.mxu0 0.0
        %2364 = vmatprep.subr.mxu0 0.0
        %2365 = vmatpush1.xpose.msra.mxu0 0.0
        %2366 = vmatprep.subr.mxu0 0.0
        %2367 = vmatpush1.xpose.msra.mxu0 0.0
        %2368 = vmatprep.subr.mxu0 0.0
        %2369 = vmatpush1.xpose.msra.mxu0 0.0
        %2370 = vmatprep.subr.mxu0 0.0
        %v2371 = vand.u32 %v2038, 4294901760
        %v2372 = vsub.f32 %v2038, %v2371
        %v2373 = vand.u32 %v2372, 4294901760
        %2374 = vmatpush1.xpose.msra.mxu0 %v2373
        %2375 = vmatprep.subr.mxu0 0.0
        %2376 = vmatpush2.xpose.msra.mxu0 0.0
        %2377 = vmatprep.subr.mxu0 0.0
        %2378 = vmatpush2.xpose.msra.mxu0 0.0
        %2379 = vmatprep.subr.mxu0 0.0
        %2380 = vmatpush2.xpose.msra.mxu0 0.0
        %2381 = vmatprep.subr.mxu0 0.0
        %2382 = vmatpush2.xpose.msra.mxu0 0.0
        %2383 = vmatprep.subr.mxu0 0.0
        %2384 = vmatpush2.xpose.msra.mxu0 0.0
        %2385 = vmatprep.subr.mxu0 0.0
        %2386 = vmatpush2.xpose.msra.mxu0 0.0
        %2387 = vmatprep.subr.mxu0 0.0
        %2388 = vmatpush2.xpose.msra.mxu0 0.0
        %2389 = vmatprep.subr.mxu0 0.0
        %2390 = vmatpush2.xpose.msra.mxu0 0.0
        %2391 = vmatprep.subr.mxu0 0.0
        %2392 = vmatpush2.xpose.msra.mxu0 0.0
        %2393 = vmatprep.subr.mxu0 0.0
        %2394 = vmatpush2.xpose.msra.mxu0 0.0
        %2395 = vmatprep.subr.mxu0 0.0
        %2396 = vmatpush2.xpose.msra.mxu0 0.0
        %2397 = vmatprep.subr.mxu0 0.0
        %2398 = vmatpush2.xpose.msra.mxu0 0.0
        %2399 = vmatprep.subr.mxu0 0.0
        %2400 = vmatpush2.xpose.msra.mxu0 0.0
        %2401 = vmatprep.subr.mxu0 0.0
        %2402 = vmatpush2.xpose.msra.mxu0 0.0
        %2403 = vmatprep.subr.mxu0 0.0
        %2404 = vmatpush2.xpose.msra.mxu0 0.0
        %2405 = vmatprep.subr.mxu0 0.0
        %2406 = vmatpush2.xpose.msra.mxu0 0.0
        %2407 = vmatprep.mubr.f32.mxu0 0.0
        %v2408 = vand.u32 %v2035, 4294901760
        %2409 = vmatmul.mubr.f32.gmra.mxu0 %v2408
        %v2410 = vpop.f32.mrf.mxu0
        %v2411 = vadd.f32 %v2337, %v2410
        %v2412 = vpop.f32.mrf.mxu0
        %2413 = vdwg.mxu0
        %2414 = vmatprep.subr.mxu0 0.0
        %2415 = vmatpush1.xpose.msra.mxu0 0.0
        %2416 = vmatprep.subr.mxu0 0.0
        %2417 = vmatpush1.xpose.msra.mxu0 0.0
        %2418 = vmatprep.subr.mxu0 0.0
        %2419 = vmatpush1.xpose.msra.mxu0 0.0
        %2420 = vmatprep.subr.mxu0 0.0
        %2421 = vmatpush1.xpose.msra.mxu0 0.0
        %2422 = vmatprep.subr.mxu0 0.0
        %2423 = vmatpush1.xpose.msra.mxu0 0.0
        %2424 = vmatprep.subr.mxu0 0.0
        %2425 = vmatpush1.xpose.msra.mxu0 0.0
        %2426 = vmatprep.subr.mxu0 0.0
        %2427 = vmatpush1.xpose.msra.mxu0 0.0
        %2428 = vmatprep.subr.mxu0 0.0
        %2429 = vmatpush1.xpose.msra.mxu0 0.0
        %2430 = vmatprep.subr.mxu0 0.0
        %2431 = vmatpush1.xpose.msra.mxu0 0.0
        %2432 = vmatprep.subr.mxu0 0.0
        %2433 = vmatpush1.xpose.msra.mxu0 0.0
        %2434 = vmatprep.subr.mxu0 0.0
        %2435 = vmatpush1.xpose.msra.mxu0 0.0
        %2436 = vmatprep.subr.mxu0 0.0
        %2437 = vmatpush1.xpose.msra.mxu0 0.0
        %2438 = vmatprep.subr.mxu0 0.0
        %2439 = vmatpush1.xpose.msra.mxu0 0.0
        %2440 = vmatprep.subr.mxu0 0.0
        %2441 = vmatpush1.xpose.msra.mxu0 0.0
        %2442 = vmatprep.subr.mxu0 0.0
        %2443 = vmatpush1.xpose.msra.mxu0 0.0
        %2444 = vmatprep.subr.mxu0 0.0
        %v2445 = vand.u32 %v2038, 4294901760
        %2446 = vmatpush1.xpose.msra.mxu0 %v2445
        %2447 = vmatprep.subr.mxu0 0.0
        %2448 = vmatpush2.xpose.msra.mxu0 0.0
        %2449 = vmatprep.subr.mxu0 0.0
        %2450 = vmatpush2.xpose.msra.mxu0 0.0
        %2451 = vmatprep.subr.mxu0 0.0
        %2452 = vmatpush2.xpose.msra.mxu0 0.0
        %2453 = vmatprep.subr.mxu0 0.0
        %2454 = vmatpush2.xpose.msra.mxu0 0.0
        %2455 = vmatprep.subr.mxu0 0.0
        %2456 = vmatpush2.xpose.msra.mxu0 0.0
        %2457 = vmatprep.subr.mxu0 0.0
        %2458 = vmatpush2.xpose.msra.mxu0 0.0
        %2459 = vmatprep.subr.mxu0 0.0
        %2460 = vmatpush2.xpose.msra.mxu0 0.0
        %2461 = vmatprep.subr.mxu0 0.0
        %2462 = vmatpush2.xpose.msra.mxu0 0.0
        %2463 = vmatprep.subr.mxu0 0.0
        %2464 = vmatpush2.xpose.msra.mxu0 0.0
        %2465 = vmatprep.subr.mxu0 0.0
        %2466 = vmatpush2.xpose.msra.mxu0 0.0
        %2467 = vmatprep.subr.mxu0 0.0
        %2468 = vmatpush2.xpose.msra.mxu0 0.0
        %2469 = vmatprep.subr.mxu0 0.0
        %2470 = vmatpush2.xpose.msra.mxu0 0.0
        %2471 = vmatprep.subr.mxu0 0.0
        %2472 = vmatpush2.xpose.msra.mxu0 0.0
        %2473 = vmatprep.subr.mxu0 0.0
        %2474 = vmatpush2.xpose.msra.mxu0 0.0
        %2475 = vmatprep.subr.mxu0 0.0
        %2476 = vmatpush2.xpose.msra.mxu0 0.0
        %2477 = vmatprep.subr.mxu0 0.0
        %2478 = vmatpush2.xpose.msra.mxu0 0.0
        %2479 = vmatprep.mubr.f32.mxu0 0.0
        %v2480 = vand.u32 %v2035, 4294901760
        %2481 = vmatmul.mubr.f32.gmra.mxu0 %v2480
        %v2482 = vpop.f32.mrf.mxu0
        %v2483 = vadd.f32 %v2411, %v2482
        %v2484 = vpop.f32.mrf.mxu0
        %2485 = vdwg.mxu0
        %v2486 = vsel %vm2033, %v2483, -inf
        %2487 = vmax.xlane.f32.xlu0 %v2486
        %v2488 = vpop.xlane.xlu0 %2487
        %v2489 = vsub.f32 %v2483, %v2488
        %v2490 = vmul.f32 %v2489, 1.442695
        %v2491 = vpow.pop %v2490
        %v2492 = vsel %vm2033, %v2491, 0.0
        %2493 = vadd.xlane.f32.xlu0 %v2492
        %v2494 = vpop.xlane.xlu0 %2493
        %v2495 = vrcp.pop %v2494
        %v2497 = vsel %vm2033, %v2491, 0
        %2499 = vmatprep.subr.mxu0 0.0
        %2500 = vmatpush1.msra.mxu0 0.0
        %2501 = vmatprep.subr.mxu0 0.0
        %2502 = vmatpush1.msra.mxu0 0.0
        %2503 = vmatprep.subr.mxu0 0.0
        %2504 = vmatpush1.msra.mxu0 0.0
        %2505 = vmatprep.subr.mxu0 0.0
        %2506 = vmatpush1.msra.mxu0 0.0
        %2507 = vmatprep.subr.mxu0 0.0
        %2508 = vmatpush1.msra.mxu0 0.0
        %2509 = vmatprep.subr.mxu0 0.0
        %2510 = vmatpush1.msra.mxu0 0.0
        %2511 = vmatprep.subr.mxu0 0.0
        %2512 = vmatpush1.msra.mxu0 0.0
        %2513 = vmatprep.subr.mxu0 0.0
        %2514 = vmatpush1.msra.mxu0 0.0
        %2515 = vmatprep.subr.mxu0 0.0
        %2516 = vmatpush1.msra.mxu0 0.0
        %2517 = vmatprep.subr.mxu0 0.0
        %2518 = vmatpush1.msra.mxu0 0.0
        %2519 = vmatprep.subr.mxu0 0.0
        %2520 = vmatpush1.msra.mxu0 0.0
        %2521 = vmatprep.subr.mxu0 0.0
        %2522 = vmatpush1.msra.mxu0 0.0
        %2523 = vmatprep.subr.mxu0 0.0
        %2524 = vmatpush1.msra.mxu0 0.0
        %2525 = vmatprep.subr.mxu0 0.0
        %2526 = vmatpush1.msra.mxu0 0.0
        %2527 = vmatprep.subr.mxu0 0.0
        %2528 = vmatpush1.msra.mxu0 0.0
        %2529 = vmatprep.subr.mxu0 0.0
        %v2530 = vand.u32 %v2029, 4294901760
        %2531 = vmatpush1.msra.mxu0 %v2530
        %2532 = vmatprep.subr.mxu0 0.0
        %2533 = vmatpush2.msra.mxu0 0.0
        %2534 = vmatprep.subr.mxu0 0.0
        %2535 = vmatpush2.msra.mxu0 0.0
        %2536 = vmatprep.subr.mxu0 0.0
        %2537 = vmatpush2.msra.mxu0 0.0
        %2538 = vmatprep.subr.mxu0 0.0
        %2539 = vmatpush2.msra.mxu0 0.0
        %2540 = vmatprep.subr.mxu0 0.0
        %2541 = vmatpush2.msra.mxu0 0.0
        %2542 = vmatprep.subr.mxu0 0.0
        %2543 = vmatpush2.msra.mxu0 0.0
        %2544 = vmatprep.subr.mxu0 0.0
        %2545 = vmatpush2.msra.mxu0 0.0
        %2546 = vmatprep.subr.mxu0 0.0
        %2547 = vmatpush2.msra.mxu0 0.0
        %2548 = vmatprep.subr.mxu0 0.0
        %2549 = vmatpush2.msra.mxu0 0.0
        %2550 = vmatprep.subr.mxu0 0.0
        %2551 = vmatpush2.msra.mxu0 0.0
        %2552 = vmatprep.subr.mxu0 0.0
        %2553 = vmatpush2.msra.mxu0 0.0
        %2554 = vmatprep.subr.mxu0 0.0
        %2555 = vmatpush2.msra.mxu0 0.0
        %2556 = vmatprep.subr.mxu0 0.0
        %2557 = vmatpush2.msra.mxu0 0.0
        %2558 = vmatprep.subr.mxu0 0.0
        %2559 = vmatpush2.msra.mxu0 0.0
        %2560 = vmatprep.subr.mxu0 0.0
        %2561 = vmatpush2.msra.mxu0 0.0
        %2562 = vmatprep.subr.mxu0 0.0
        %2563 = vmatpush2.msra.mxu0 0.0
        %2564 = vmatprep.mubr.f32.mxu0 0.0
        %v2565 = vand.u32 %v2497, 4294901760
        %v2566 = vsub.f32 %v2497, %v2565
        %v2567 = vand.u32 %v2566, 4294901760
        %v2568 = vsub.f32 %v2566, %v2567
        %v2569 = vand.u32 %v2568, 4294901760
        %2570 = vmatmul.mubr.f32.gmra.mxu0 %v2569
        %v2571 = vpop.f32.mrf.mxu0
        %v2572 = vadd.f32 0.0, %v2571
        %v2573 = vpop.f32.mrf.mxu0
        %2574 = vdwg.mxu0
        %2575 = vmatprep.subr.mxu0 0.0
        %2576 = vmatpush1.msra.mxu0 0.0
        %2577 = vmatprep.subr.mxu0 0.0
        %2578 = vmatpush1.msra.mxu0 0.0
        %2579 = vmatprep.subr.mxu0 0.0
        %2580 = vmatpush1.msra.mxu0 0.0
        %2581 = vmatprep.subr.mxu0 0.0
        %2582 = vmatpush1.msra.mxu0 0.0
        %2583 = vmatprep.subr.mxu0 0.0
        %2584 = vmatpush1.msra.mxu0 0.0
        %2585 = vmatprep.subr.mxu0 0.0
        %2586 = vmatpush1.msra.mxu0 0.0
        %2587 = vmatprep.subr.mxu0 0.0
        %2588 = vmatpush1.msra.mxu0 0.0
        %2589 = vmatprep.subr.mxu0 0.0
        %2590 = vmatpush1.msra.mxu0 0.0
        %2591 = vmatprep.subr.mxu0 0.0
        %2592 = vmatpush1.msra.mxu0 0.0
        %2593 = vmatprep.subr.mxu0 0.0
        %2594 = vmatpush1.msra.mxu0 0.0
        %2595 = vmatprep.subr.mxu0 0.0
        %2596 = vmatpush1.msra.mxu0 0.0
        %2597 = vmatprep.subr.mxu0 0.0
        %2598 = vmatpush1.msra.mxu0 0.0
        %2599 = vmatprep.subr.mxu0 0.0
        %2600 = vmatpush1.msra.mxu0 0.0
        %2601 = vmatprep.subr.mxu0 0.0
        %2602 = vmatpush1.msra.mxu0 0.0
        %2603 = vmatprep.subr.mxu0 0.0
        %2604 = vmatpush1.msra.mxu0 0.0
        %2605 = vmatprep.subr.mxu0 0.0
        %v2606 = vand.u32 %v2029, 4294901760
        %v2607 = vsub.f32 %v2029, %v2606
        %v2608 = vand.u32 %v2607, 4294901760
        %v2609 = vsub.f32 %v2607, %v2608
        %v2610 = vand.u32 %v2609, 4294901760
        %2611 = vmatpush1.msra.mxu0 %v2610
        %2612 = vmatprep.subr.mxu0 0.0
        %2613 = vmatpush2.msra.mxu0 0.0
        %2614 = vmatprep.subr.mxu0 0.0
        %2615 = vmatpush2.msra.mxu0 0.0
        %2616 = vmatprep.subr.mxu0 0.0
        %2617 = vmatpush2.msra.mxu0 0.0
        %2618 = vmatprep.subr.mxu0 0.0
        %2619 = vmatpush2.msra.mxu0 0.0
        %2620 = vmatprep.subr.mxu0 0.0
        %2621 = vmatpush2.msra.mxu0 0.0
        %2622 = vmatprep.subr.mxu0 0.0
        %2623 = vmatpush2.msra.mxu0 0.0
        %2624 = vmatprep.subr.mxu0 0.0
        %2625 = vmatpush2.msra.mxu0 0.0
        %2626 = vmatprep.subr.mxu0 0.0
        %2627 = vmatpush2.msra.mxu0 0.0
        %2628 = vmatprep.subr.mxu0 0.0
        %2629 = vmatpush2.msra.mxu0 0.0
        %2630 = vmatprep.subr.mxu0 0.0
        %2631 = vmatpush2.msra.mxu0 0.0
        %2632 = vmatprep.subr.mxu0 0.0
        %2633 = vmatpush2.msra.mxu0 0.0
        %2634 = vmatprep.subr.mxu0 0.0
        %2635 = vmatpush2.msra.mxu0 0.0
        %2636 = vmatprep.subr.mxu0 0.0
        %2637 = vmatpush2.msra.mxu0 0.0
        %2638 = vmatprep.subr.mxu0 0.0
        %2639 = vmatpush2.msra.mxu0 0.0
        %2640 = vmatprep.subr.mxu0 0.0
        %2641 = vmatpush2.msra.mxu0 0.0
        %2642 = vmatprep.subr.mxu0 0.0
        %2643 = vmatpush2.msra.mxu0 0.0
        %2644 = vmatprep.mubr.f32.mxu0 0.0
        %v2645 = vand.u32 %v2497, 4294901760
        %2646 = vmatmul.mubr.f32.gmra.mxu0 %v2645
        %v2647 = vpop.f32.mrf.mxu0
        %v2648 = vadd.f32 %v2572, %v2647
        %v2649 = vpop.f32.mrf.mxu0
        %2650 = vdwg.mxu0
        %2651 = vmatprep.subr.mxu0 0.0
        %2652 = vmatpush1.msra.mxu0 0.0
        %2653 = vmatprep.subr.mxu0 0.0
        %2654 = vmatpush1.msra.mxu0 0.0
        %2655 = vmatprep.subr.mxu0 0.0
        %2656 = vmatpush1.msra.mxu0 0.0
        %2657 = vmatprep.subr.mxu0 0.0
        %2658 = vmatpush1.msra.mxu0 0.0
        %2659 = vmatprep.subr.mxu0 0.0
        %2660 = vmatpush1.msra.mxu0 0.0
        %2661 = vmatprep.subr.mxu0 0.0
        %2662 = vmatpush1.msra.mxu0 0.0
        %2663 = vmatprep.subr.mxu0 0.0
        %2664 = vmatpush1.msra.mxu0 0.0
        %2665 = vmatprep.subr.mxu0 0.0
        %2666 = vmatpush1.msra.mxu0 0.0
        %2667 = vmatprep.subr.mxu0 0.0
        %2668 = vmatpush1.msra.mxu0 0.0
        %2669 = vmatprep.subr.mxu0 0.0
        %2670 = vmatpush1.msra.mxu0 0.0
        %2671 = vmatprep.subr.mxu0 0.0
        %2672 = vmatpush1.msra.mxu0 0.0
        %2673 = vmatprep.subr.mxu0 0.0
        %2674 = vmatpush1.msra.mxu0 0.0
        %2675 = vmatprep.subr.mxu0 0.0
        %2676 = vmatpush1.msra.mxu0 0.0
        %2677 = vmatprep.subr.mxu0 0.0
        %2678 = vmatpush1.msra.mxu0 0.0
        %2679 = vmatprep.subr.mxu0 0.0
        %2680 = vmatpush1.msra.mxu0 0.0
        %2681 = vmatprep.subr.mxu0 0.0
        %v2682 = vand.u32 %v2029, 4294901760
        %v2683 = vsub.f32 %v2029, %v2682
        %2684 = vmatpush1.msra.mxu0 %v2683
        %2685 = vmatprep.subr.mxu0 0.0
        %2686 = vmatpush2.msra.mxu0 0.0
        %2687 = vmatprep.subr.mxu0 0.0
        %2688 = vmatpush2.msra.mxu0 0.0
        %2689 = vmatprep.subr.mxu0 0.0
        %2690 = vmatpush2.msra.mxu0 0.0
        %2691 = vmatprep.subr.mxu0 0.0
        %2692 = vmatpush2.msra.mxu0 0.0
        %2693 = vmatprep.subr.mxu0 0.0
        %2694 = vmatpush2.msra.mxu0 0.0
        %2695 = vmatprep.subr.mxu0 0.0
        %2696 = vmatpush2.msra.mxu0 0.0
        %2697 = vmatprep.subr.mxu0 0.0
        %2698 = vmatpush2.msra.mxu0 0.0
        %2699 = vmatprep.subr.mxu0 0.0
        %2700 = vmatpush2.msra.mxu0 0.0
        %2701 = vmatprep.subr.mxu0 0.0
        %2702 = vmatpush2.msra.mxu0 0.0
        %2703 = vmatprep.subr.mxu0 0.0
        %2704 = vmatpush2.msra.mxu0 0.0
        %2705 = vmatprep.subr.mxu0 0.0
        %2706 = vmatpush2.msra.mxu0 0.0
        %2707 = vmatprep.subr.mxu0 0.0
        %2708 = vmatpush2.msra.mxu0 0.0
        %2709 = vmatprep.subr.mxu0 0.0
        %2710 = vmatpush2.msra.mxu0 0.0
        %2711 = vmatprep.subr.mxu0 0.0
        %2712 = vmatpush2.msra.mxu0 0.0
        %2713 = vmatprep.subr.mxu0 0.0
        %2714 = vmatpush2.msra.mxu0 0.0
        %2715 = vmatprep.subr.mxu0 0.0
        %2716 = vmatpush2.msra.mxu0 0.0
        %2717 = vmatprep.mubr.f32.mxu0 0.0
        %v2718 = vand.u32 %v2497, 4294901760
        %v2719 = vsub.f32 %v2497, %v2718
        %2720 = vmatmul.mubr.f32.gmra.mxu0 %v2719
        %v2721 = vpop.f32.mrf.mxu0
        %v2722 = vadd.f32 %v2648, %v2721
        %v2723 = vpop.f32.mrf.mxu0
        %2724 = vdwg.mxu0
        %2725 = vmatprep.subr.mxu0 0.0
        %2726 = vmatpush1.msra.mxu0 0.0
        %2727 = vmatprep.subr.mxu0 0.0
        %2728 = vmatpush1.msra.mxu0 0.0
        %2729 = vmatprep.subr.mxu0 0.0
        %2730 = vmatpush1.msra.mxu0 0.0
        %2731 = vmatprep.subr.mxu0 0.0
        %2732 = vmatpush1.msra.mxu0 0.0
        %2733 = vmatprep.subr.mxu0 0.0
        %2734 = vmatpush1.msra.mxu0 0.0
        %2735 = vmatprep.subr.mxu0 0.0
        %2736 = vmatpush1.msra.mxu0 0.0
        %2737 = vmatprep.subr.mxu0 0.0
        %2738 = vmatpush1.msra.mxu0 0.0
        %2739 = vmatprep.subr.mxu0 0.0
        %2740 = vmatpush1.msra.mxu0 0.0
        %2741 = vmatprep.subr.mxu0 0.0
        %2742 = vmatpush1.msra.mxu0 0.0
        %2743 = vmatprep.subr.mxu0 0.0
        %2744 = vmatpush1.msra.mxu0 0.0
        %2745 = vmatprep.subr.mxu0 0.0
        %2746 = vmatpush1.msra.mxu0 0.0
        %2747 = vmatprep.subr.mxu0 0.0
        %2748 = vmatpush1.msra.mxu0 0.0
        %2749 = vmatprep.subr.mxu0 0.0
        %2750 = vmatpush1.msra.mxu0 0.0
        %2751 = vmatprep.subr.mxu0 0.0
        %2752 = vmatpush1.msra.mxu0 0.0
        %2753 = vmatprep.subr.mxu0 0.0
        %2754 = vmatpush1.msra.mxu0 0.0
        %2755 = vmatprep.subr.mxu0 0.0
        %v2756 = vand.u32 %v2029, 4294901760
        %2757 = vmatpush1.msra.mxu0 %v2756
        %2758 = vmatprep.subr.mxu0 0.0
        %2759 = vmatpush2.msra.mxu0 0.0
        %2760 = vmatprep.subr.mxu0 0.0
        %2761 = vmatpush2.msra.mxu0 0.0
        %2762 = vmatprep.subr.mxu0 0.0
        %2763 = vmatpush2.msra.mxu0 0.0
        %2764 = vmatprep.subr.mxu0 0.0
        %2765 = vmatpush2.msra.mxu0 0.0
        %2766 = vmatprep.subr.mxu0 0.0
        %2767 = vmatpush2.msra.mxu0 0.0
        %2768 = vmatprep.subr.mxu0 0.0
        %2769 = vmatpush2.msra.mxu0 0.0
        %2770 = vmatprep.subr.mxu0 0.0
        %2771 = vmatpush2.msra.mxu0 0.0
        %2772 = vmatprep.subr.mxu0 0.0
        %2773 = vmatpush2.msra.mxu0 0.0
        %2774 = vmatprep.subr.mxu0 0.0
        %2775 = vmatpush2.msra.mxu0 0.0
        %2776 = vmatprep.subr.mxu0 0.0
        %2777 = vmatpush2.msra.mxu0 0.0
        %2778 = vmatprep.subr.mxu0 0.0
        %2779 = vmatpush2.msra.mxu0 0.0
        %2780 = vmatprep.subr.mxu0 0.0
        %2781 = vmatpush2.msra.mxu0 0.0
        %2782 = vmatprep.subr.mxu0 0.0
        %2783 = vmatpush2.msra.mxu0 0.0
        %2784 = vmatprep.subr.mxu0 0.0
        %2785 = vmatpush2.msra.mxu0 0.0
        %2786 = vmatprep.subr.mxu0 0.0
        %2787 = vmatpush2.msra.mxu0 0.0
        %2788 = vmatprep.subr.mxu0 0.0
        %2789 = vmatpush2.msra.mxu0 0.0
        %2790 = vmatprep.mubr.f32.mxu0 0.0
        %v2791 = vand.u32 %v2497, 4294901760
        %v2792 = vsub.f32 %v2497, %v2791
        %v2793 = vand.u32 %v2792, 4294901760
        %2794 = vmatmul.mubr.f32.gmra.mxu0 %v2793
        %v2795 = vpop.f32.mrf.mxu0
        %v2796 = vadd.f32 %v2722, %v2795
        %v2797 = vpop.f32.mrf.mxu0
        %2798 = vdwg.mxu0
        %2799 = vmatprep.subr.mxu0 0.0
        %2800 = vmatpush1.msra.mxu0 0.0
        %2801 = vmatprep.subr.mxu0 0.0
        %2802 = vmatpush1.msra.mxu0 0.0
        %2803 = vmatprep.subr.mxu0 0.0
        %2804 = vmatpush1.msra.mxu0 0.0
        %2805 = vmatprep.subr.mxu0 0.0
        %2806 = vmatpush1.msra.mxu0 0.0
        %2807 = vmatprep.subr.mxu0 0.0
        %2808 = vmatpush1.msra.mxu0 0.0
        %2809 = vmatprep.subr.mxu0 0.0
        %2810 = vmatpush1.msra.mxu0 0.0
        %2811 = vmatprep.subr.mxu0 0.0
        %2812 = vmatpush1.msra.mxu0 0.0
        %2813 = vmatprep.subr.mxu0 0.0
        %2814 = vmatpush1.msra.mxu0 0.0
        %2815 = vmatprep.subr.mxu0 0.0
        %2816 = vmatpush1.msra.mxu0 0.0
        %2817 = vmatprep.subr.mxu0 0.0
        %2818 = vmatpush1.msra.mxu0 0.0
        %2819 = vmatprep.subr.mxu0 0.0
        %2820 = vmatpush1.msra.mxu0 0.0
        %2821 = vmatprep.subr.mxu0 0.0
        %2822 = vmatpush1.msra.mxu0 0.0
        %2823 = vmatprep.subr.mxu0 0.0
        %2824 = vmatpush1.msra.mxu0 0.0
        %2825 = vmatprep.subr.mxu0 0.0
        %2826 = vmatpush1.msra.mxu0 0.0
        %2827 = vmatprep.subr.mxu0 0.0
        %2828 = vmatpush1.msra.mxu0 0.0
        %2829 = vmatprep.subr.mxu0 0.0
        %v2830 = vand.u32 %v2029, 4294901760
        %v2831 = vsub.f32 %v2029, %v2830
        %v2832 = vand.u32 %v2831, 4294901760
        %2833 = vmatpush1.msra.mxu0 %v2832
        %2834 = vmatprep.subr.mxu0 0.0
        %2835 = vmatpush2.msra.mxu0 0.0
        %2836 = vmatprep.subr.mxu0 0.0
        %2837 = vmatpush2.msra.mxu0 0.0
        %2838 = vmatprep.subr.mxu0 0.0
        %2839 = vmatpush2.msra.mxu0 0.0
        %2840 = vmatprep.subr.mxu0 0.0
        %2841 = vmatpush2.msra.mxu0 0.0
        %2842 = vmatprep.subr.mxu0 0.0
        %2843 = vmatpush2.msra.mxu0 0.0
        %2844 = vmatprep.subr.mxu0 0.0
        %2845 = vmatpush2.msra.mxu0 0.0
        %2846 = vmatprep.subr.mxu0 0.0
        %2847 = vmatpush2.msra.mxu0 0.0
        %2848 = vmatprep.subr.mxu0 0.0
        %2849 = vmatpush2.msra.mxu0 0.0
        %2850 = vmatprep.subr.mxu0 0.0
        %2851 = vmatpush2.msra.mxu0 0.0
        %2852 = vmatprep.subr.mxu0 0.0
        %2853 = vmatpush2.msra.mxu0 0.0
        %2854 = vmatprep.subr.mxu0 0.0
        %2855 = vmatpush2.msra.mxu0 0.0
        %2856 = vmatprep.subr.mxu0 0.0
        %2857 = vmatpush2.msra.mxu0 0.0
        %2858 = vmatprep.subr.mxu0 0.0
        %2859 = vmatpush2.msra.mxu0 0.0
        %2860 = vmatprep.subr.mxu0 0.0
        %2861 = vmatpush2.msra.mxu0 0.0
        %2862 = vmatprep.subr.mxu0 0.0
        %2863 = vmatpush2.msra.mxu0 0.0
        %2864 = vmatprep.subr.mxu0 0.0
        %2865 = vmatpush2.msra.mxu0 0.0
        %2866 = vmatprep.mubr.f32.mxu0 0.0
        %v2867 = vand.u32 %v2497, 4294901760
        %2868 = vmatmul.mubr.f32.gmra.mxu0 %v2867
        %v2869 = vpop.f32.mrf.mxu0
        %v2870 = vadd.f32 %v2796, %v2869
        %v2871 = vpop.f32.mrf.mxu0
        %2872 = vdwg.mxu0
        %2873 = vmatprep.subr.mxu0 0.0
        %2874 = vmatpush1.msra.mxu0 0.0
        %2875 = vmatprep.subr.mxu0 0.0
        %2876 = vmatpush1.msra.mxu0 0.0
        %2877 = vmatprep.subr.mxu0 0.0
        %2878 = vmatpush1.msra.mxu0 0.0
        %2879 = vmatprep.subr.mxu0 0.0
        %2880 = vmatpush1.msra.mxu0 0.0
        %2881 = vmatprep.subr.mxu0 0.0
        %2882 = vmatpush1.msra.mxu0 0.0
        %2883 = vmatprep.subr.mxu0 0.0
        %2884 = vmatpush1.msra.mxu0 0.0
        %2885 = vmatprep.subr.mxu0 0.0
        %2886 = vmatpush1.msra.mxu0 0.0
        %2887 = vmatprep.subr.mxu0 0.0
        %2888 = vmatpush1.msra.mxu0 0.0
        %2889 = vmatprep.subr.mxu0 0.0
        %2890 = vmatpush1.msra.mxu0 0.0
        %2891 = vmatprep.subr.mxu0 0.0
        %2892 = vmatpush1.msra.mxu0 0.0
        %2893 = vmatprep.subr.mxu0 0.0
        %2894 = vmatpush1.msra.mxu0 0.0
        %2895 = vmatprep.subr.mxu0 0.0
        %2896 = vmatpush1.msra.mxu0 0.0
        %2897 = vmatprep.subr.mxu0 0.0
        %2898 = vmatpush1.msra.mxu0 0.0
        %2899 = vmatprep.subr.mxu0 0.0
        %2900 = vmatpush1.msra.mxu0 0.0
        %2901 = vmatprep.subr.mxu0 0.0
        %2902 = vmatpush1.msra.mxu0 0.0
        %2903 = vmatprep.subr.mxu0 0.0
        %v2904 = vand.u32 %v2029, 4294901760
        %2905 = vmatpush1.msra.mxu0 %v2904
        %2906 = vmatprep.subr.mxu0 0.0
        %2907 = vmatpush2.msra.mxu0 0.0
        %2908 = vmatprep.subr.mxu0 0.0
        %2909 = vmatpush2.msra.mxu0 0.0
        %2910 = vmatprep.subr.mxu0 0.0
        %2911 = vmatpush2.msra.mxu0 0.0
        %2912 = vmatprep.subr.mxu0 0.0
        %2913 = vmatpush2.msra.mxu0 0.0
        %2914 = vmatprep.subr.mxu0 0.0
        %2915 = vmatpush2.msra.mxu0 0.0
        %2916 = vmatprep.subr.mxu0 0.0
        %2917 = vmatpush2.msra.mxu0 0.0
        %2918 = vmatprep.subr.mxu0 0.0
        %2919 = vmatpush2.msra.mxu0 0.0
        %2920 = vmatprep.subr.mxu0 0.0
        %2921 = vmatpush2.msra.mxu0 0.0
        %2922 = vmatprep.subr.mxu0 0.0
        %2923 = vmatpush2.msra.mxu0 0.0
        %2924 = vmatprep.subr.mxu0 0.0
        %2925 = vmatpush2.msra.mxu0 0.0
        %2926 = vmatprep.subr.mxu0 0.0
        %2927 = vmatpush2.msra.mxu0 0.0
        %2928 = vmatprep.subr.mxu0 0.0
        %2929 = vmatpush2.msra.mxu0 0.0
        %2930 = vmatprep.subr.mxu0 0.0
        %2931 = vmatpush2.msra.mxu0 0.0
        %2932 = vmatprep.subr.mxu0 0.0
        %2933 = vmatpush2.msra.mxu0 0.0
        %2934 = vmatprep.subr.mxu0 0.0
        %2935 = vmatpush2.msra.mxu0 0.0
        %2936 = vmatprep.subr.mxu0 0.0
        %2937 = vmatpush2.msra.mxu0 0.0
        %2938 = vmatprep.mubr.f32.mxu0 0.0
        %v2939 = vand.u32 %v2497, 4294901760
        %2940 = vmatmul.mubr.f32.gmra.mxu0 %v2939
        %v2941 = vpop.f32.mrf.mxu0
        %v2942 = vadd.f32 %v2870, %v2941
        %v2943 = vpop.f32.mrf.mxu0
        %2944 = vdwg.mxu0
        %v2945 = vmul.f32 %v2942, %v2495
        %2946 = vst.msk [vmem:[#allocation2] sm:$0xff] %vm2033, %v2945
        %2947 = vrot.lane.b32.xlu0 %v2032, 120
        %v2948 = vpop.permute.xlu0 %2947
        %2949 = vrot.lane.b32.xlu0 %v1529, 120
        %v2950 = vpop.permute.xlu0 %2949
        %v2951 = vsel %vm2033, %v2948, 0
        %v2953 = vsel %vm2033, %v2950, 0
        %2955 = vmatprep.subr.mxu0 0.0
        %2956 = vmatpush1.xpose.msra.mxu0 0.0
        %2957 = vmatprep.subr.mxu0 0.0
        %2958 = vmatpush1.xpose.msra.mxu0 0.0
        %2959 = vmatprep.subr.mxu0 0.0
        %2960 = vmatpush1.xpose.msra.mxu0 0.0
        %2961 = vmatprep.subr.mxu0 0.0
        %2962 = vmatpush1.xpose.msra.mxu0 0.0
        %2963 = vmatprep.subr.mxu0 0.0
        %2964 = vmatpush1.xpose.msra.mxu0 0.0
        %2965 = vmatprep.subr.mxu0 0.0
        %2966 = vmatpush1.xpose.msra.mxu0 0.0
        %2967 = vmatprep.subr.mxu0 0.0
        %2968 = vmatpush1.xpose.msra.mxu0 0.0
        %2969 = vmatprep.subr.mxu0 0.0
        %2970 = vmatpush1.xpose.msra.mxu0 0.0
        %2971 = vmatprep.subr.mxu0 0.0
        %2972 = vmatpush1.xpose.msra.mxu0 0.0
        %2973 = vmatprep.subr.mxu0 0.0
        %2974 = vmatpush1.xpose.msra.mxu0 0.0
        %2975 = vmatprep.subr.mxu0 0.0
        %2976 = vmatpush1.xpose.msra.mxu0 0.0
        %2977 = vmatprep.subr.mxu0 0.0
        %2978 = vmatpush1.xpose.msra.mxu0 0.0
        %2979 = vmatprep.subr.mxu0 0.0
        %2980 = vmatpush1.xpose.msra.mxu0 0.0
        %2981 = vmatprep.subr.mxu0 0.0
        %2982 = vmatpush1.xpose.msra.mxu0 0.0
        %2983 = vmatprep.subr.mxu0 0.0
        %2984 = vmatpush1.xpose.msra.mxu0 0.0
        %2985 = vmatprep.subr.mxu0 0.0
        %v2986 = vand.u32 %v2953, 4294901760
        %2987 = vmatpush1.xpose.msra.mxu0 %v2986
        %2988 = vmatprep.subr.mxu0 0.0
        %2989 = vmatpush2.xpose.msra.mxu0 0.0
        %2990 = vmatprep.subr.mxu0 0.0
        %2991 = vmatpush2.xpose.msra.mxu0 0.0
        %2992 = vmatprep.subr.mxu0 0.0
        %2993 = vmatpush2.xpose.msra.mxu0 0.0
        %2994 = vmatprep.subr.mxu0 0.0
        %2995 = vmatpush2.xpose.msra.mxu0 0.0
        %2996 = vmatprep.subr.mxu0 0.0
        %2997 = vmatpush2.xpose.msra.mxu0 0.0
        %2998 = vmatprep.subr.mxu0 0.0
        %2999 = vmatpush2.xpose.msra.mxu0 0.0
        %3000 = vmatprep.subr.mxu0 0.0
        %3001 = vmatpush2.xpose.msra.mxu0 0.0
        %3002 = vmatprep.subr.mxu0 0.0
        %3003 = vmatpush2.xpose.msra.mxu0 0.0
        %3004 = vmatprep.subr.mxu0 0.0
        %3005 = vmatpush2.xpose.msra.mxu0 0.0
        %3006 = vmatprep.subr.mxu0 0.0
        %3007 = vmatpush2.xpose.msra.mxu0 0.0
        %3008 = vmatprep.subr.mxu0 0.0
        %3009 = vmatpush2.xpose.msra.mxu0 0.0
        %3010 = vmatprep.subr.mxu0 0.0
        %3011 = vmatpush2.xpose.msra.mxu0 0.0
        %3012 = vmatprep.subr.mxu0 0.0
        %3013 = vmatpush2.xpose.msra.mxu0 0.0
        %3014 = vmatprep.subr.mxu0 0.0
        %3015 = vmatpush2.xpose.msra.mxu0 0.0
        %3016 = vmatprep.subr.mxu0 0.0
        %3017 = vmatpush2.xpose.msra.mxu0 0.0
        %3018 = vmatprep.subr.mxu0 0.0
        %3019 = vmatpush2.xpose.msra.mxu0 0.0
        %3020 = vmatprep.mubr.f32.mxu0 0.0
        %v3021 = vand.u32 %v2951, 4294901760
        %v3022 = vsub.f32 %v2951, %v3021
        %v3023 = vand.u32 %v3022, 4294901760
        %v3024 = vsub.f32 %v3022, %v3023
        %v3025 = vand.u32 %v3024, 4294901760
        %3026 = vmatmul.mubr.f32.gmra.mxu0 %v3025
        %v3027 = vpop.f32.mrf.mxu0
        %v3028 = vadd.f32 0.0, %v3027
        %v3029 = vpop.f32.mrf.mxu0
        %3030 = vdwg.mxu0
        %3031 = vmatprep.subr.mxu0 0.0
        %3032 = vmatpush1.xpose.msra.mxu0 0.0
        %3033 = vmatprep.subr.mxu0 0.0
        %3034 = vmatpush1.xpose.msra.mxu0 0.0
        %3035 = vmatprep.subr.mxu0 0.0
        %3036 = vmatpush1.xpose.msra.mxu0 0.0
        %3037 = vmatprep.subr.mxu0 0.0
        %3038 = vmatpush1.xpose.msra.mxu0 0.0
        %3039 = vmatprep.subr.mxu0 0.0
        %3040 = vmatpush1.xpose.msra.mxu0 0.0
        %3041 = vmatprep.subr.mxu0 0.0
        %3042 = vmatpush1.xpose.msra.mxu0 0.0
        %3043 = vmatprep.subr.mxu0 0.0
        %3044 = vmatpush1.xpose.msra.mxu0 0.0
        %3045 = vmatprep.subr.mxu0 0.0
        %3046 = vmatpush1.xpose.msra.mxu0 0.0
        %3047 = vmatprep.subr.mxu0 0.0
        %3048 = vmatpush1.xpose.msra.mxu0 0.0
        %3049 = vmatprep.subr.mxu0 0.0
        %3050 = vmatpush1.xpose.msra.mxu0 0.0
        %3051 = vmatprep.subr.mxu0 0.0
        %3052 = vmatpush1.xpose.msra.mxu0 0.0
        %3053 = vmatprep.subr.mxu0 0.0
        %3054 = vmatpush1.xpose.msra.mxu0 0.0
        %3055 = vmatprep.subr.mxu0 0.0
        %3056 = vmatpush1.xpose.msra.mxu0 0.0
        %3057 = vmatprep.subr.mxu0 0.0
        %3058 = vmatpush1.xpose.msra.mxu0 0.0
        %3059 = vmatprep.subr.mxu0 0.0
        %3060 = vmatpush1.xpose.msra.mxu0 0.0
        %3061 = vmatprep.subr.mxu0 0.0
        %v3062 = vand.u32 %v2953, 4294901760
        %v3063 = vsub.f32 %v2953, %v3062
        %v3064 = vand.u32 %v3063, 4294901760
        %v3065 = vsub.f32 %v3063, %v3064
        %v3066 = vand.u32 %v3065, 4294901760
        %3067 = vmatpush1.xpose.msra.mxu0 %v3066
        %3068 = vmatprep.subr.mxu0 0.0
        %3069 = vmatpush2.xpose.msra.mxu0 0.0
        %3070 = vmatprep.subr.mxu0 0.0
        %3071 = vmatpush2.xpose.msra.mxu0 0.0
        %3072 = vmatprep.subr.mxu0 0.0
        %3073 = vmatpush2.xpose.msra.mxu0 0.0
        %3074 = vmatprep.subr.mxu0 0.0
        %3075 = vmatpush2.xpose.msra.mxu0 0.0
        %3076 = vmatprep.subr.mxu0 0.0
        %3077 = vmatpush2.xpose.msra.mxu0 0.0
        %3078 = vmatprep.subr.mxu0 0.0
        %3079 = vmatpush2.xpose.msra.mxu0 0.0
        %3080 = vmatprep.subr.mxu0 0.0
        %3081 = vmatpush2.xpose.msra.mxu0 0.0
        %3082 = vmatprep.subr.mxu0 0.0
        %3083 = vmatpush2.xpose.msra.mxu0 0.0
        %3084 = vmatprep.subr.mxu0 0.0
        %3085 = vmatpush2.xpose.msra.mxu0 0.0
        %3086 = vmatprep.subr.mxu0 0.0
        %3087 = vmatpush2.xpose.msra.mxu0 0.0
        %3088 = vmatprep.subr.mxu0 0.0
        %3089 = vmatpush2.xpose.msra.mxu0 0.0
        %3090 = vmatprep.subr.mxu0 0.0
        %3091 = vmatpush2.xpose.msra.mxu0 0.0
        %3092 = vmatprep.subr.mxu0 0.0
        %3093 = vmatpush2.xpose.msra.mxu0 0.0
        %3094 = vmatprep.subr.mxu0 0.0
        %3095 = vmatpush2.xpose.msra.mxu0 0.0
        %3096 = vmatprep.subr.mxu0 0.0
        %3097 = vmatpush2.xpose.msra.mxu0 0.0
        %3098 = vmatprep.subr.mxu0 0.0
        %3099 = vmatpush2.xpose.msra.mxu0 0.0
        %3100 = vmatprep.mubr.f32.mxu0 0.0
        %v3101 = vand.u32 %v2951, 4294901760
        %3102 = vmatmul.mubr.f32.gmra.mxu0 %v3101
        %v3103 = vpop.f32.mrf.mxu0
        %v3104 = vadd.f32 %v3028, %v3103
        %v3105 = vpop.f32.mrf.mxu0
        %3106 = vdwg.mxu0
        %3107 = vmatprep.subr.mxu0 0.0
        %3108 = vmatpush1.xpose.msra.mxu0 0.0
        %3109 = vmatprep.subr.mxu0 0.0
        %3110 = vmatpush1.xpose.msra.mxu0 0.0
        %3111 = vmatprep.subr.mxu0 0.0
        %3112 = vmatpush1.xpose.msra.mxu0 0.0
        %3113 = vmatprep.subr.mxu0 0.0
        %3114 = vmatpush1.xpose.msra.mxu0 0.0
        %3115 = vmatprep.subr.mxu0 0.0
        %3116 = vmatpush1.xpose.msra.mxu0 0.0
        %3117 = vmatprep.subr.mxu0 0.0
        %3118 = vmatpush1.xpose.msra.mxu0 0.0
        %3119 = vmatprep.subr.mxu0 0.0
        %3120 = vmatpush1.xpose.msra.mxu0 0.0
        %3121 = vmatprep.subr.mxu0 0.0
        %3122 = vmatpush1.xpose.msra.mxu0 0.0
        %3123 = vmatprep.subr.mxu0 0.0
        %3124 = vmatpush1.xpose.msra.mxu0 0.0
        %3125 = vmatprep.subr.mxu0 0.0
        %3126 = vmatpush1.xpose.msra.mxu0 0.0
        %3127 = vmatprep.subr.mxu0 0.0
        %3128 = vmatpush1.xpose.msra.mxu0 0.0
        %3129 = vmatprep.subr.mxu0 0.0
        %3130 = vmatpush1.xpose.msra.mxu0 0.0
        %3131 = vmatprep.subr.mxu0 0.0
        %3132 = vmatpush1.xpose.msra.mxu0 0.0
        %3133 = vmatprep.subr.mxu0 0.0
        %3134 = vmatpush1.xpose.msra.mxu0 0.0
        %3135 = vmatprep.subr.mxu0 0.0
        %3136 = vmatpush1.xpose.msra.mxu0 0.0
        %3137 = vmatprep.subr.mxu0 0.0
        %v3138 = vand.u32 %v2953, 4294901760
        %v3139 = vsub.f32 %v2953, %v3138
        %3140 = vmatpush1.xpose.msra.mxu0 %v3139
        %3141 = vmatprep.subr.mxu0 0.0
        %3142 = vmatpush2.xpose.msra.mxu0 0.0
        %3143 = vmatprep.subr.mxu0 0.0
        %3144 = vmatpush2.xpose.msra.mxu0 0.0
        %3145 = vmatprep.subr.mxu0 0.0
        %3146 = vmatpush2.xpose.msra.mxu0 0.0
        %3147 = vmatprep.subr.mxu0 0.0
        %3148 = vmatpush2.xpose.msra.mxu0 0.0
        %3149 = vmatprep.subr.mxu0 0.0
        %3150 = vmatpush2.xpose.msra.mxu0 0.0
        %3151 = vmatprep.subr.mxu0 0.0
        %3152 = vmatpush2.xpose.msra.mxu0 0.0
        %3153 = vmatprep.subr.mxu0 0.0
        %3154 = vmatpush2.xpose.msra.mxu0 0.0
        %3155 = vmatprep.subr.mxu0 0.0
        %3156 = vmatpush2.xpose.msra.mxu0 0.0
        %3157 = vmatprep.subr.mxu0 0.0
        %3158 = vmatpush2.xpose.msra.mxu0 0.0
        %3159 = vmatprep.subr.mxu0 0.0
        %3160 = vmatpush2.xpose.msra.mxu0 0.0
        %3161 = vmatprep.subr.mxu0 0.0
        %3162 = vmatpush2.xpose.msra.mxu0 0.0
        %3163 = vmatprep.subr.mxu0 0.0
        %3164 = vmatpush2.xpose.msra.mxu0 0.0
        %3165 = vmatprep.subr.mxu0 0.0
        %3166 = vmatpush2.xpose.msra.mxu0 0.0
        %3167 = vmatprep.subr.mxu0 0.0
        %3168 = vmatpush2.xpose.msra.mxu0 0.0
        %3169 = vmatprep.subr.mxu0 0.0
        %3170 = vmatpush2.xpose.msra.mxu0 0.0
        %3171 = vmatprep.subr.mxu0 0.0
        %3172 = vmatpush2.xpose.msra.mxu0 0.0
        %3173 = vmatprep.mubr.f32.mxu0 0.0
        %v3174 = vand.u32 %v2951, 4294901760
        %v3175 = vsub.f32 %v2951, %v3174
        %3176 = vmatmul.mubr.f32.gmra.mxu0 %v3175
        %v3177 = vpop.f32.mrf.mxu0
        %v3178 = vadd.f32 %v3104, %v3177
        %v3179 = vpop.f32.mrf.mxu0
        %3180 = vdwg.mxu0
        %3181 = vmatprep.subr.mxu0 0.0
        %3182 = vmatpush1.xpose.msra.mxu0 0.0
        %3183 = vmatprep.subr.mxu0 0.0
        %3184 = vmatpush1.xpose.msra.mxu0 0.0
        %3185 = vmatprep.subr.mxu0 0.0
        %3186 = vmatpush1.xpose.msra.mxu0 0.0
        %3187 = vmatprep.subr.mxu0 0.0
        %3188 = vmatpush1.xpose.msra.mxu0 0.0
        %3189 = vmatprep.subr.mxu0 0.0
        %3190 = vmatpush1.xpose.msra.mxu0 0.0
        %3191 = vmatprep.subr.mxu0 0.0
        %3192 = vmatpush1.xpose.msra.mxu0 0.0
        %3193 = vmatprep.subr.mxu0 0.0
        %3194 = vmatpush1.xpose.msra.mxu0 0.0
        %3195 = vmatprep.subr.mxu0 0.0
        %3196 = vmatpush1.xpose.msra.mxu0 0.0
        %3197 = vmatprep.subr.mxu0 0.0
        %3198 = vmatpush1.xpose.msra.mxu0 0.0
        %3199 = vmatprep.subr.mxu0 0.0
        %3200 = vmatpush1.xpose.msra.mxu0 0.0
        %3201 = vmatprep.subr.mxu0 0.0
        %3202 = vmatpush1.xpose.msra.mxu0 0.0
        %3203 = vmatprep.subr.mxu0 0.0
        %3204 = vmatpush1.xpose.msra.mxu0 0.0
        %3205 = vmatprep.subr.mxu0 0.0
        %3206 = vmatpush1.xpose.msra.mxu0 0.0
        %3207 = vmatprep.subr.mxu0 0.0
        %3208 = vmatpush1.xpose.msra.mxu0 0.0
        %3209 = vmatprep.subr.mxu0 0.0
        %3210 = vmatpush1.xpose.msra.mxu0 0.0
        %3211 = vmatprep.subr.mxu0 0.0
        %v3212 = vand.u32 %v2953, 4294901760
        %3213 = vmatpush1.xpose.msra.mxu0 %v3212
        %3214 = vmatprep.subr.mxu0 0.0
        %3215 = vmatpush2.xpose.msra.mxu0 0.0
        %3216 = vmatprep.subr.mxu0 0.0
        %3217 = vmatpush2.xpose.msra.mxu0 0.0
        %3218 = vmatprep.subr.mxu0 0.0
        %3219 = vmatpush2.xpose.msra.mxu0 0.0
        %3220 = vmatprep.subr.mxu0 0.0
        %3221 = vmatpush2.xpose.msra.mxu0 0.0
        %3222 = vmatprep.subr.mxu0 0.0
        %3223 = vmatpush2.xpose.msra.mxu0 0.0
        %3224 = vmatprep.subr.mxu0 0.0
        %3225 = vmatpush2.xpose.msra.mxu0 0.0
        %3226 = vmatprep.subr.mxu0 0.0
        %3227 = vmatpush2.xpose.msra.mxu0 0.0
        %3228 = vmatprep.subr.mxu0 0.0
        %3229 = vmatpush2.xpose.msra.mxu0 0.0
        %3230 = vmatprep.subr.mxu0 0.0
        %3231 = vmatpush2.xpose.msra.mxu0 0.0
        %3232 = vmatprep.subr.mxu0 0.0
        %3233 = vmatpush2.xpose.msra.mxu0 0.0
        %3234 = vmatprep.subr.mxu0 0.0
        %3235 = vmatpush2.xpose.msra.mxu0 0.0
        %3236 = vmatprep.subr.mxu0 0.0
        %3237 = vmatpush2.xpose.msra.mxu0 0.0
        %3238 = vmatprep.subr.mxu0 0.0
        %3239 = vmatpush2.xpose.msra.mxu0 0.0
        %3240 = vmatprep.subr.mxu0 0.0
        %3241 = vmatpush2.xpose.msra.mxu0 0.0
        %3242 = vmatprep.subr.mxu0 0.0
        %3243 = vmatpush2.xpose.msra.mxu0 0.0
        %3244 = vmatprep.subr.mxu0 0.0
        %3245 = vmatpush2.xpose.msra.mxu0 0.0
        %3246 = vmatprep.mubr.f32.mxu0 0.0
        %v3247 = vand.u32 %v2951, 4294901760
        %v3248 = vsub.f32 %v2951, %v3247
        %v3249 = vand.u32 %v3248, 4294901760
        %3250 = vmatmul.mubr.f32.gmra.mxu0 %v3249
        %v3251 = vpop.f32.mrf.mxu0
        %v3252 = vadd.f32 %v3178, %v3251
        %v3253 = vpop.f32.mrf.mxu0
        %3254 = vdwg.mxu0
        %3255 = vmatprep.subr.mxu0 0.0
        %3256 = vmatpush1.xpose.msra.mxu0 0.0
        %3257 = vmatprep.subr.mxu0 0.0
        %3258 = vmatpush1.xpose.msra.mxu0 0.0
        %3259 = vmatprep.subr.mxu0 0.0
        %3260 = vmatpush1.xpose.msra.mxu0 0.0
        %3261 = vmatprep.subr.mxu0 0.0
        %3262 = vmatpush1.xpose.msra.mxu0 0.0
        %3263 = vmatprep.subr.mxu0 0.0
        %3264 = vmatpush1.xpose.msra.mxu0 0.0
        %3265 = vmatprep.subr.mxu0 0.0
        %3266 = vmatpush1.xpose.msra.mxu0 0.0
        %3267 = vmatprep.subr.mxu0 0.0
        %3268 = vmatpush1.xpose.msra.mxu0 0.0
        %3269 = vmatprep.subr.mxu0 0.0
        %3270 = vmatpush1.xpose.msra.mxu0 0.0
        %3271 = vmatprep.subr.mxu0 0.0
        %3272 = vmatpush1.xpose.msra.mxu0 0.0
        %3273 = vmatprep.subr.mxu0 0.0
        %3274 = vmatpush1.xpose.msra.mxu0 0.0
        %3275 = vmatprep.subr.mxu0 0.0
        %3276 = vmatpush1.xpose.msra.mxu0 0.0
        %3277 = vmatprep.subr.mxu0 0.0
        %3278 = vmatpush1.xpose.msra.mxu0 0.0
        %3279 = vmatprep.subr.mxu0 0.0
        %3280 = vmatpush1.xpose.msra.mxu0 0.0
        %3281 = vmatprep.subr.mxu0 0.0
        %3282 = vmatpush1.xpose.msra.mxu0 0.0
        %3283 = vmatprep.subr.mxu0 0.0
        %3284 = vmatpush1.xpose.msra.mxu0 0.0
        %3285 = vmatprep.subr.mxu0 0.0
        %v3286 = vand.u32 %v2953, 4294901760
        %v3287 = vsub.f32 %v2953, %v3286
        %v3288 = vand.u32 %v3287, 4294901760
        %3289 = vmatpush1.xpose.msra.mxu0 %v3288
        %3290 = vmatprep.subr.mxu0 0.0
        %3291 = vmatpush2.xpose.msra.mxu0 0.0
        %3292 = vmatprep.subr.mxu0 0.0
        %3293 = vmatpush2.xpose.msra.mxu0 0.0
        %3294 = vmatprep.subr.mxu0 0.0
        %3295 = vmatpush2.xpose.msra.mxu0 0.0
        %3296 = vmatprep.subr.mxu0 0.0
        %3297 = vmatpush2.xpose.msra.mxu0 0.0
        %3298 = vmatprep.subr.mxu0 0.0
        %3299 = vmatpush2.xpose.msra.mxu0 0.0
        %3300 = vmatprep.subr.mxu0 0.0
        %3301 = vmatpush2.xpose.msra.mxu0 0.0
        %3302 = vmatprep.subr.mxu0 0.0
        %3303 = vmatpush2.xpose.msra.mxu0 0.0
        %3304 = vmatprep.subr.mxu0 0.0
        %3305 = vmatpush2.xpose.msra.mxu0 0.0
        %3306 = vmatprep.subr.mxu0 0.0
        %3307 = vmatpush2.xpose.msra.mxu0 0.0
        %3308 = vmatprep.subr.mxu0 0.0
        %3309 = vmatpush2.xpose.msra.mxu0 0.0
        %3310 = vmatprep.subr.mxu0 0.0
        %3311 = vmatpush2.xpose.msra.mxu0 0.0
        %3312 = vmatprep.subr.mxu0 0.0
        %3313 = vmatpush2.xpose.msra.mxu0 0.0
        %3314 = vmatprep.subr.mxu0 0.0
        %3315 = vmatpush2.xpose.msra.mxu0 0.0
        %3316 = vmatprep.subr.mxu0 0.0
        %3317 = vmatpush2.xpose.msra.mxu0 0.0
        %3318 = vmatprep.subr.mxu0 0.0
        %3319 = vmatpush2.xpose.msra.mxu0 0.0
        %3320 = vmatprep.subr.mxu0 0.0
        %3321 = vmatpush2.xpose.msra.mxu0 0.0
        %3322 = vmatprep.mubr.f32.mxu0 0.0
        %v3323 = vand.u32 %v2951, 4294901760
        %3324 = vmatmul.mubr.f32.gmra.mxu0 %v3323
        %v3325 = vpop.f32.mrf.mxu0
        %v3326 = vadd.f32 %v3252, %v3325
        %v3327 = vpop.f32.mrf.mxu0
        %3328 = vdwg.mxu0
        %3329 = vmatprep.subr.mxu0 0.0
        %3330 = vmatpush1.xpose.msra.mxu0 0.0
        %3331 = vmatprep.subr.mxu0 0.0
        %3332 = vmatpush1.xpose.msra.mxu0 0.0
        %3333 = vmatprep.subr.mxu0 0.0
        %3334 = vmatpush1.xpose.msra.mxu0 0.0
        %3335 = vmatprep.subr.mxu0 0.0
        %3336 = vmatpush1.xpose.msra.mxu0 0.0
        %3337 = vmatprep.subr.mxu0 0.0
        %3338 = vmatpush1.xpose.msra.mxu0 0.0
        %3339 = vmatprep.subr.mxu0 0.0
        %3340 = vmatpush1.xpose.msra.mxu0 0.0
        %3341 = vmatprep.subr.mxu0 0.0
        %3342 = vmatpush1.xpose.msra.mxu0 0.0
        %3343 = vmatprep.subr.mxu0 0.0
        %3344 = vmatpush1.xpose.msra.mxu0 0.0
        %3345 = vmatprep.subr.mxu0 0.0
        %3346 = vmatpush1.xpose.msra.mxu0 0.0
        %3347 = vmatprep.subr.mxu0 0.0
        %3348 = vmatpush1.xpose.msra.mxu0 0.0
        %3349 = vmatprep.subr.mxu0 0.0
        %3350 = vmatpush1.xpose.msra.mxu0 0.0
        %3351 = vmatprep.subr.mxu0 0.0
        %3352 = vmatpush1.xpose.msra.mxu0 0.0
        %3353 = vmatprep.subr.mxu0 0.0
        %3354 = vmatpush1.xpose.msra.mxu0 0.0
        %3355 = vmatprep.subr.mxu0 0.0
        %3356 = vmatpush1.xpose.msra.mxu0 0.0
        %3357 = vmatprep.subr.mxu0 0.0
        %3358 = vmatpush1.xpose.msra.mxu0 0.0
        %3359 = vmatprep.subr.mxu0 0.0
        %v3360 = vand.u32 %v2953, 4294901760
        %3361 = vmatpush1.xpose.msra.mxu0 %v3360
        %3362 = vmatprep.subr.mxu0 0.0
        %3363 = vmatpush2.xpose.msra.mxu0 0.0
        %3364 = vmatprep.subr.mxu0 0.0
        %3365 = vmatpush2.xpose.msra.mxu0 0.0
        %3366 = vmatprep.subr.mxu0 0.0
        %3367 = vmatpush2.xpose.msra.mxu0 0.0
        %3368 = vmatprep.subr.mxu0 0.0
        %3369 = vmatpush2.xpose.msra.mxu0 0.0
        %3370 = vmatprep.subr.mxu0 0.0
        %3371 = vmatpush2.xpose.msra.mxu0 0.0
        %3372 = vmatprep.subr.mxu0 0.0
        %3373 = vmatpush2.xpose.msra.mxu0 0.0
        %3374 = vmatprep.subr.mxu0 0.0
        %3375 = vmatpush2.xpose.msra.mxu0 0.0
        %3376 = vmatprep.subr.mxu0 0.0
        %3377 = vmatpush2.xpose.msra.mxu0 0.0
        %3378 = vmatprep.subr.mxu0 0.0
        %3379 = vmatpush2.xpose.msra.mxu0 0.0
        %3380 = vmatprep.subr.mxu0 0.0
        %3381 = vmatpush2.xpose.msra.mxu0 0.0
        %3382 = vmatprep.subr.mxu0 0.0
        %3383 = vmatpush2.xpose.msra.mxu0 0.0
        %3384 = vmatprep.subr.mxu0 0.0
        %3385 = vmatpush2.xpose.msra.mxu0 0.0
        %3386 = vmatprep.subr.mxu0 0.0
        %3387 = vmatpush2.xpose.msra.mxu0 0.0
        %3388 = vmatprep.subr.mxu0 0.0
        %3389 = vmatpush2.xpose.msra.mxu0 0.0
        %3390 = vmatprep.subr.mxu0 0.0
        %3391 = vmatpush2.xpose.msra.mxu0 0.0
        %3392 = vmatprep.subr.mxu0 0.0
        %3393 = vmatpush2.xpose.msra.mxu0 0.0
        %3394 = vmatprep.mubr.f32.mxu0 0.0
        %v3395 = vand.u32 %v2951, 4294901760
        %3396 = vmatmul.mubr.f32.gmra.mxu0 %v3395
        %v3397 = vpop.f32.mrf.mxu0
        %v3398 = vadd.f32 %v3326, %v3397
        %v3399 = vpop.f32.mrf.mxu0
        %3400 = vdwg.mxu0
        %v3401 = vsel %vm2033, %v3398, -inf
        %3402 = vmax.xlane.f32.xlu0 %v3401
        %v3403 = vpop.xlane.xlu0 %3402
        %v3404 = vsub.f32 %v3398, %v3403
        %v3405 = vmul.f32 %v3404, 1.442695
        %v3406 = vpow.pop %v3405
        %v3407 = vsel %vm2033, %v3406, 0.0
        %3408 = vadd.xlane.f32.xlu0 %v3407
        %v3409 = vpop.xlane.xlu0 %3408
        %v3410 = vrcp.pop %v3409
        %3412 = vrot.lane.b32.xlu0 %v2029, 120
        %v3413 = vpop.permute.xlu0 %3412
        %v3416 = vsel %vm2033, %v3406, 0
        %3418 = vmatprep.subr.mxu0 0.0
        %3419 = vmatpush1.msra.mxu0 0.0
        %3420 = vmatprep.subr.mxu0 0.0
        %3421 = vmatpush1.msra.mxu0 0.0
        %3422 = vmatprep.subr.mxu0 0.0
        %3423 = vmatpush1.msra.mxu0 0.0
        %3424 = vmatprep.subr.mxu0 0.0
        %3425 = vmatpush1.msra.mxu0 0.0
        %3426 = vmatprep.subr.mxu0 0.0
        %3427 = vmatpush1.msra.mxu0 0.0
        %3428 = vmatprep.subr.mxu0 0.0
        %3429 = vmatpush1.msra.mxu0 0.0
        %3430 = vmatprep.subr.mxu0 0.0
        %3431 = vmatpush1.msra.mxu0 0.0
        %3432 = vmatprep.subr.mxu0 0.0
        %3433 = vmatpush1.msra.mxu0 0.0
        %3434 = vmatprep.subr.mxu0 0.0
        %3435 = vmatpush1.msra.mxu0 0.0
        %3436 = vmatprep.subr.mxu0 0.0
        %3437 = vmatpush1.msra.mxu0 0.0
        %3438 = vmatprep.subr.mxu0 0.0
        %3439 = vmatpush1.msra.mxu0 0.0
        %3440 = vmatprep.subr.mxu0 0.0
        %3441 = vmatpush1.msra.mxu0 0.0
        %3442 = vmatprep.subr.mxu0 0.0
        %3443 = vmatpush1.msra.mxu0 0.0
        %3444 = vmatprep.subr.mxu0 0.0
        %3445 = vmatpush1.msra.mxu0 0.0
        %3446 = vmatprep.subr.mxu0 0.0
        %3447 = vmatpush1.msra.mxu0 0.0
        %3448 = vmatprep.subr.mxu0 0.0
        %v3449 = vand.u32 %v3413, 4294901760
        %3450 = vmatpush1.msra.mxu0 %v3449
        %3451 = vmatprep.subr.mxu0 0.0
        %3452 = vmatpush2.msra.mxu0 0.0
        %3453 = vmatprep.subr.mxu0 0.0
        %3454 = vmatpush2.msra.mxu0 0.0
        %3455 = vmatprep.subr.mxu0 0.0
        %3456 = vmatpush2.msra.mxu0 0.0
        %3457 = vmatprep.subr.mxu0 0.0
        %3458 = vmatpush2.msra.mxu0 0.0
        %3459 = vmatprep.subr.mxu0 0.0
        %3460 = vmatpush2.msra.mxu0 0.0
        %3461 = vmatprep.subr.mxu0 0.0
        %3462 = vmatpush2.msra.mxu0 0.0
        %3463 = vmatprep.subr.mxu0 0.0
        %3464 = vmatpush2.msra.mxu0 0.0
        %3465 = vmatprep.subr.mxu0 0.0
        %3466 = vmatpush2.msra.mxu0 0.0
        %3467 = vmatprep.subr.mxu0 0.0
        %3468 = vmatpush2.msra.mxu0 0.0
        %3469 = vmatprep.subr.mxu0 0.0
        %3470 = vmatpush2.msra.mxu0 0.0
        %3471 = vmatprep.subr.mxu0 0.0
        %3472 = vmatpush2.msra.mxu0 0.0
        %3473 = vmatprep.subr.mxu0 0.0
        %3474 = vmatpush2.msra.mxu0 0.0
        %3475 = vmatprep.subr.mxu0 0.0
        %3476 = vmatpush2.msra.mxu0 0.0
        %3477 = vmatprep.subr.mxu0 0.0
        %3478 = vmatpush2.msra.mxu0 0.0
        %3479 = vmatprep.subr.mxu0 0.0
        %3480 = vmatpush2.msra.mxu0 0.0
        %3481 = vmatprep.subr.mxu0 0.0
        %3482 = vmatpush2.msra.mxu0 0.0
        %3483 = vmatprep.mubr.f32.mxu0 0.0
        %v3484 = vand.u32 %v3416, 4294901760
        %v3485 = vsub.f32 %v3416, %v3484
        %v3486 = vand.u32 %v3485, 4294901760
        %v3487 = vsub.f32 %v3485, %v3486
        %v3488 = vand.u32 %v3487, 4294901760
        %3489 = vmatmul.mubr.f32.gmra.mxu0 %v3488
        %v3490 = vpop.f32.mrf.mxu0
        %v3491 = vadd.f32 0.0, %v3490
        %v3492 = vpop.f32.mrf.mxu0
        %3493 = vdwg.mxu0
        %3494 = vmatprep.subr.mxu0 0.0
        %3495 = vmatpush1.msra.mxu0 0.0
        %3496 = vmatprep.subr.mxu0 0.0
        %3497 = vmatpush1.msra.mxu0 0.0
        %3498 = vmatprep.subr.mxu0 0.0
        %3499 = vmatpush1.msra.mxu0 0.0
        %3500 = vmatprep.subr.mxu0 0.0
        %3501 = vmatpush1.msra.mxu0 0.0
        %3502 = vmatprep.subr.mxu0 0.0
        %3503 = vmatpush1.msra.mxu0 0.0
        %3504 = vmatprep.subr.mxu0 0.0
        %3505 = vmatpush1.msra.mxu0 0.0
        %3506 = vmatprep.subr.mxu0 0.0
        %3507 = vmatpush1.msra.mxu0 0.0
        %3508 = vmatprep.subr.mxu0 0.0
        %3509 = vmatpush1.msra.mxu0 0.0
        %3510 = vmatprep.subr.mxu0 0.0
        %3511 = vmatpush1.msra.mxu0 0.0
        %3512 = vmatprep.subr.mxu0 0.0
        %3513 = vmatpush1.msra.mxu0 0.0
        %3514 = vmatprep.subr.mxu0 0.0
        %3515 = vmatpush1.msra.mxu0 0.0
        %3516 = vmatprep.subr.mxu0 0.0
        %3517 = vmatpush1.msra.mxu0 0.0
        %3518 = vmatprep.subr.mxu0 0.0
        %3519 = vmatpush1.msra.mxu0 0.0
        %3520 = vmatprep.subr.mxu0 0.0
        %3521 = vmatpush1.msra.mxu0 0.0
        %3522 = vmatprep.subr.mxu0 0.0
        %3523 = vmatpush1.msra.mxu0 0.0
        %3524 = vmatprep.subr.mxu0 0.0
        %v3525 = vand.u32 %v3413, 4294901760
        %v3526 = vsub.f32 %v3413, %v3525
        %v3527 = vand.u32 %v3526, 4294901760
        %v3528 = vsub.f32 %v3526, %v3527
        %v3529 = vand.u32 %v3528, 4294901760
        %3530 = vmatpush1.msra.mxu0 %v3529
        %3531 = vmatprep.subr.mxu0 0.0
        %3532 = vmatpush2.msra.mxu0 0.0
        %3533 = vmatprep.subr.mxu0 0.0
        %3534 = vmatpush2.msra.mxu0 0.0
        %3535 = vmatprep.subr.mxu0 0.0
        %3536 = vmatpush2.msra.mxu0 0.0
        %3537 = vmatprep.subr.mxu0 0.0
        %3538 = vmatpush2.msra.mxu0 0.0
        %3539 = vmatprep.subr.mxu0 0.0
        %3540 = vmatpush2.msra.mxu0 0.0
        %3541 = vmatprep.subr.mxu0 0.0
        %3542 = vmatpush2.msra.mxu0 0.0
        %3543 = vmatprep.subr.mxu0 0.0
        %3544 = vmatpush2.msra.mxu0 0.0
        %3545 = vmatprep.subr.mxu0 0.0
        %3546 = vmatpush2.msra.mxu0 0.0
        %3547 = vmatprep.subr.mxu0 0.0
        %3548 = vmatpush2.msra.mxu0 0.0
        %3549 = vmatprep.subr.mxu0 0.0
        %3550 = vmatpush2.msra.mxu0 0.0
        %3551 = vmatprep.subr.mxu0 0.0
        %3552 = vmatpush2.msra.mxu0 0.0
        %3553 = vmatprep.subr.mxu0 0.0
        %3554 = vmatpush2.msra.mxu0 0.0
        %3555 = vmatprep.subr.mxu0 0.0
        %3556 = vmatpush2.msra.mxu0 0.0
        %3557 = vmatprep.subr.mxu0 0.0
        %3558 = vmatpush2.msra.mxu0 0.0
        %3559 = vmatprep.subr.mxu0 0.0
        %3560 = vmatpush2.msra.mxu0 0.0
        %3561 = vmatprep.subr.mxu0 0.0
        %3562 = vmatpush2.msra.mxu0 0.0
        %3563 = vmatprep.mubr.f32.mxu0 0.0
        %v3564 = vand.u32 %v3416, 4294901760
        %3565 = vmatmul.mubr.f32.gmra.mxu0 %v3564
        %v3566 = vpop.f32.mrf.mxu0
        %v3567 = vadd.f32 %v3491, %v3566
        %v3568 = vpop.f32.mrf.mxu0
        %3569 = vdwg.mxu0
        %3570 = vmatprep.subr.mxu0 0.0
        %3571 = vmatpush1.msra.mxu0 0.0
        %3572 = vmatprep.subr.mxu0 0.0
        %3573 = vmatpush1.msra.mxu0 0.0
        %3574 = vmatprep.subr.mxu0 0.0
        %3575 = vmatpush1.msra.mxu0 0.0
        %3576 = vmatprep.subr.mxu0 0.0
        %3577 = vmatpush1.msra.mxu0 0.0
        %3578 = vmatprep.subr.mxu0 0.0
        %3579 = vmatpush1.msra.mxu0 0.0
        %3580 = vmatprep.subr.mxu0 0.0
        %3581 = vmatpush1.msra.mxu0 0.0
        %3582 = vmatprep.subr.mxu0 0.0
        %3583 = vmatpush1.msra.mxu0 0.0
        %3584 = vmatprep.subr.mxu0 0.0
        %3585 = vmatpush1.msra.mxu0 0.0
        %3586 = vmatprep.subr.mxu0 0.0
        %3587 = vmatpush1.msra.mxu0 0.0
        %3588 = vmatprep.subr.mxu0 0.0
        %3589 = vmatpush1.msra.mxu0 0.0
        %3590 = vmatprep.subr.mxu0 0.0
        %3591 = vmatpush1.msra.mxu0 0.0
        %3592 = vmatprep.subr.mxu0 0.0
        %3593 = vmatpush1.msra.mxu0 0.0
        %3594 = vmatprep.subr.mxu0 0.0
        %3595 = vmatpush1.msra.mxu0 0.0
        %3596 = vmatprep.subr.mxu0 0.0
        %3597 = vmatpush1.msra.mxu0 0.0
        %3598 = vmatprep.subr.mxu0 0.0
        %3599 = vmatpush1.msra.mxu0 0.0
        %3600 = vmatprep.subr.mxu0 0.0
        %v3601 = vand.u32 %v3413, 4294901760
        %v3602 = vsub.f32 %v3413, %v3601
        %3603 = vmatpush1.msra.mxu0 %v3602
        %3604 = vmatprep.subr.mxu0 0.0
        %3605 = vmatpush2.msra.mxu0 0.0
        %3606 = vmatprep.subr.mxu0 0.0
        %3607 = vmatpush2.msra.mxu0 0.0
        %3608 = vmatprep.subr.mxu0 0.0
        %3609 = vmatpush2.msra.mxu0 0.0
        %3610 = vmatprep.subr.mxu0 0.0
        %3611 = vmatpush2.msra.mxu0 0.0
        %3612 = vmatprep.subr.mxu0 0.0
        %3613 = vmatpush2.msra.mxu0 0.0
        %3614 = vmatprep.subr.mxu0 0.0
        %3615 = vmatpush2.msra.mxu0 0.0
        %3616 = vmatprep.subr.mxu0 0.0
        %3617 = vmatpush2.msra.mxu0 0.0
        %3618 = vmatprep.subr.mxu0 0.0
        %3619 = vmatpush2.msra.mxu0 0.0
        %3620 = vmatprep.subr.mxu0 0.0
        %3621 = vmatpush2.msra.mxu0 0.0
        %3622 = vmatprep.subr.mxu0 0.0
        %3623 = vmatpush2.msra.mxu0 0.0
        %3624 = vmatprep.subr.mxu0 0.0
        %3625 = vmatpush2.msra.mxu0 0.0
        %3626 = vmatprep.subr.mxu0 0.0
        %3627 = vmatpush2.msra.mxu0 0.0
        %3628 = vmatprep.subr.mxu0 0.0
        %3629 = vmatpush2.msra.mxu0 0.0
        %3630 = vmatprep.subr.mxu0 0.0
        %3631 = vmatpush2.msra.mxu0 0.0
        %3632 = vmatprep.subr.mxu0 0.0
        %3633 = vmatpush2.msra.mxu0 0.0
        %3634 = vmatprep.subr.mxu0 0.0
        %3635 = vmatpush2.msra.mxu0 0.0
        %3636 = vmatprep.mubr.f32.mxu0 0.0
        %v3637 = vand.u32 %v3416, 4294901760
        %v3638 = vsub.f32 %v3416, %v3637
        %3639 = vmatmul.mubr.f32.gmra.mxu0 %v3638
        %v3640 = vpop.f32.mrf.mxu0
        %v3641 = vadd.f32 %v3567, %v3640
        %v3642 = vpop.f32.mrf.mxu0
        %3643 = vdwg.mxu0
        %3644 = vmatprep.subr.mxu0 0.0
        %3645 = vmatpush1.msra.mxu0 0.0
        %3646 = vmatprep.subr.mxu0 0.0
        %3647 = vmatpush1.msra.mxu0 0.0
        %3648 = vmatprep.subr.mxu0 0.0
        %3649 = vmatpush1.msra.mxu0 0.0
        %3650 = vmatprep.subr.mxu0 0.0
        %3651 = vmatpush1.msra.mxu0 0.0
        %3652 = vmatprep.subr.mxu0 0.0
        %3653 = vmatpush1.msra.mxu0 0.0
        %3654 = vmatprep.subr.mxu0 0.0
        %3655 = vmatpush1.msra.mxu0 0.0
        %3656 = vmatprep.subr.mxu0 0.0
        %3657 = vmatpush1.msra.mxu0 0.0
        %3658 = vmatprep.subr.mxu0 0.0
        %3659 = vmatpush1.msra.mxu0 0.0
        %3660 = vmatprep.subr.mxu0 0.0
        %3661 = vmatpush1.msra.mxu0 0.0
        %3662 = vmatprep.subr.mxu0 0.0
        %3663 = vmatpush1.msra.mxu0 0.0
        %3664 = vmatprep.subr.mxu0 0.0
        %3665 = vmatpush1.msra.mxu0 0.0
        %3666 = vmatprep.subr.mxu0 0.0
        %3667 = vmatpush1.msra.mxu0 0.0
        %3668 = vmatprep.subr.mxu0 0.0
        %3669 = vmatpush1.msra.mxu0 0.0
        %3670 = vmatprep.subr.mxu0 0.0
        %3671 = vmatpush1.msra.mxu0 0.0
        %3672 = vmatprep.subr.mxu0 0.0
        %3673 = vmatpush1.msra.mxu0 0.0
        %3674 = vmatprep.subr.mxu0 0.0
        %v3675 = vand.u32 %v3413, 4294901760
        %3676 = vmatpush1.msra.mxu0 %v3675
        %3677 = vmatprep.subr.mxu0 0.0
        %3678 = vmatpush2.msra.mxu0 0.0
        %3679 = vmatprep.subr.mxu0 0.0
        %3680 = vmatpush2.msra.mxu0 0.0
        %3681 = vmatprep.subr.mxu0 0.0
        %3682 = vmatpush2.msra.mxu0 0.0
        %3683 = vmatprep.subr.mxu0 0.0
        %3684 = vmatpush2.msra.mxu0 0.0
        %3685 = vmatprep.subr.mxu0 0.0
        %3686 = vmatpush2.msra.mxu0 0.0
        %3687 = vmatprep.subr.mxu0 0.0
        %3688 = vmatpush2.msra.mxu0 0.0
        %3689 = vmatprep.subr.mxu0 0.0
        %3690 = vmatpush2.msra.mxu0 0.0
        %3691 = vmatprep.subr.mxu0 0.0
        %3692 = vmatpush2.msra.mxu0 0.0
        %3693 = vmatprep.subr.mxu0 0.0
        %3694 = vmatpush2.msra.mxu0 0.0
        %3695 = vmatprep.subr.mxu0 0.0
        %3696 = vmatpush2.msra.mxu0 0.0
        %3697 = vmatprep.subr.mxu0 0.0
        %3698 = vmatpush2.msra.mxu0 0.0
        %3699 = vmatprep.subr.mxu0 0.0
        %3700 = vmatpush2.msra.mxu0 0.0
        %3701 = vmatprep.subr.mxu0 0.0
        %3702 = vmatpush2.msra.mxu0 0.0
        %3703 = vmatprep.subr.mxu0 0.0
        %3704 = vmatpush2.msra.mxu0 0.0
        %3705 = vmatprep.subr.mxu0 0.0
        %3706 = vmatpush2.msra.mxu0 0.0
        %3707 = vmatprep.subr.mxu0 0.0
        %3708 = vmatpush2.msra.mxu0 0.0
        %3709 = vmatprep.mubr.f32.mxu0 0.0
        %v3710 = vand.u32 %v3416, 4294901760
        %v3711 = vsub.f32 %v3416, %v3710
        %v3712 = vand.u32 %v3711, 4294901760
        %3713 = vmatmul.mubr.f32.gmra.mxu0 %v3712
        %v3714 = vpop.f32.mrf.mxu0
        %v3715 = vadd.f32 %v3641, %v3714
        %v3716 = vpop.f32.mrf.mxu0
        %3717 = vdwg.mxu0
        %3718 = vmatprep.subr.mxu0 0.0
        %3719 = vmatpush1.msra.mxu0 0.0
        %3720 = vmatprep.subr.mxu0 0.0
        %3721 = vmatpush1.msra.mxu0 0.0
        %3722 = vmatprep.subr.mxu0 0.0
        %3723 = vmatpush1.msra.mxu0 0.0
        %3724 = vmatprep.subr.mxu0 0.0
        %3725 = vmatpush1.msra.mxu0 0.0
        %3726 = vmatprep.subr.mxu0 0.0
        %3727 = vmatpush1.msra.mxu0 0.0
        %3728 = vmatprep.subr.mxu0 0.0
        %3729 = vmatpush1.msra.mxu0 0.0
        %3730 = vmatprep.subr.mxu0 0.0
        %3731 = vmatpush1.msra.mxu0 0.0
        %3732 = vmatprep.subr.mxu0 0.0
        %3733 = vmatpush1.msra.mxu0 0.0
        %3734 = vmatprep.subr.mxu0 0.0
        %3735 = vmatpush1.msra.mxu0 0.0
        %3736 = vmatprep.subr.mxu0 0.0
        %3737 = vmatpush1.msra.mxu0 0.0
        %3738 = vmatprep.subr.mxu0 0.0
        %3739 = vmatpush1.msra.mxu0 0.0
        %3740 = vmatprep.subr.mxu0 0.0
        %3741 = vmatpush1.msra.mxu0 0.0
        %3742 = vmatprep.subr.mxu0 0.0
        %3743 = vmatpush1.msra.mxu0 0.0
        %3744 = vmatprep.subr.mxu0 0.0
        %3745 = vmatpush1.msra.mxu0 0.0
        %3746 = vmatprep.subr.mxu0 0.0
        %3747 = vmatpush1.msra.mxu0 0.0
        %3748 = vmatprep.subr.mxu0 0.0
        %v3749 = vand.u32 %v3413, 4294901760
        %v3750 = vsub.f32 %v3413, %v3749
        %v3751 = vand.u32 %v3750, 4294901760
        %3752 = vmatpush1.msra.mxu0 %v3751
        %3753 = vmatprep.subr.mxu0 0.0
        %3754 = vmatpush2.msra.mxu0 0.0
        %3755 = vmatprep.subr.mxu0 0.0
        %3756 = vmatpush2.msra.mxu0 0.0
        %3757 = vmatprep.subr.mxu0 0.0
        %3758 = vmatpush2.msra.mxu0 0.0
        %3759 = vmatprep.subr.mxu0 0.0
        %3760 = vmatpush2.msra.mxu0 0.0
        %3761 = vmatprep.subr.mxu0 0.0
        %3762 = vmatpush2.msra.mxu0 0.0
        %3763 = vmatprep.subr.mxu0 0.0
        %3764 = vmatpush2.msra.mxu0 0.0
        %3765 = vmatprep.subr.mxu0 0.0
        %3766 = vmatpush2.msra.mxu0 0.0
        %3767 = vmatprep.subr.mxu0 0.0
        %3768 = vmatpush2.msra.mxu0 0.0
        %3769 = vmatprep.subr.mxu0 0.0
        %3770 = vmatpush2.msra.mxu0 0.0
        %3771 = vmatprep.subr.mxu0 0.0
        %3772 = vmatpush2.msra.mxu0 0.0
        %3773 = vmatprep.subr.mxu0 0.0
        %3774 = vmatpush2.msra.mxu0 0.0
        %3775 = vmatprep.subr.mxu0 0.0
        %3776 = vmatpush2.msra.mxu0 0.0
        %3777 = vmatprep.subr.mxu0 0.0
        %3778 = vmatpush2.msra.mxu0 0.0
        %3779 = vmatprep.subr.mxu0 0.0
        %3780 = vmatpush2.msra.mxu0 0.0
        %3781 = vmatprep.subr.mxu0 0.0
        %3782 = vmatpush2.msra.mxu0 0.0
        %3783 = vmatprep.subr.mxu0 0.0
        %3784 = vmatpush2.msra.mxu0 0.0
        %3785 = vmatprep.mubr.f32.mxu0 0.0
        %v3786 = vand.u32 %v3416, 4294901760
        %3787 = vmatmul.mubr.f32.gmra.mxu0 %v3786
        %v3788 = vpop.f32.mrf.mxu0
        %v3789 = vadd.f32 %v3715, %v3788
        %v3790 = vpop.f32.mrf.mxu0
        %3791 = vdwg.mxu0
        %3792 = vmatprep.subr.mxu0 0.0
        %3793 = vmatpush1.msra.mxu0 0.0
        %3794 = vmatprep.subr.mxu0 0.0
        %3795 = vmatpush1.msra.mxu0 0.0
        %3796 = vmatprep.subr.mxu0 0.0
        %3797 = vmatpush1.msra.mxu0 0.0
        %3798 = vmatprep.subr.mxu0 0.0
        %3799 = vmatpush1.msra.mxu0 0.0
        %3800 = vmatprep.subr.mxu0 0.0
        %3801 = vmatpush1.msra.mxu0 0.0
        %3802 = vmatprep.subr.mxu0 0.0
        %3803 = vmatpush1.msra.mxu0 0.0
        %3804 = vmatprep.subr.mxu0 0.0
        %3805 = vmatpush1.msra.mxu0 0.0
        %3806 = vmatprep.subr.mxu0 0.0
        %3807 = vmatpush1.msra.mxu0 0.0
        %3808 = vmatprep.subr.mxu0 0.0
        %3809 = vmatpush1.msra.mxu0 0.0
        %3810 = vmatprep.subr.mxu0 0.0
        %3811 = vmatpush1.msra.mxu0 0.0
        %3812 = vmatprep.subr.mxu0 0.0
        %3813 = vmatpush1.msra.mxu0 0.0
        %3814 = vmatprep.subr.mxu0 0.0
        %3815 = vmatpush1.msra.mxu0 0.0
        %3816 = vmatprep.subr.mxu0 0.0
        %3817 = vmatpush1.msra.mxu0 0.0
        %3818 = vmatprep.subr.mxu0 0.0
        %3819 = vmatpush1.msra.mxu0 0.0
        %3820 = vmatprep.subr.mxu0 0.0
        %3821 = vmatpush1.msra.mxu0 0.0
        %3822 = vmatprep.subr.mxu0 0.0
        %v3823 = vand.u32 %v3413, 4294901760
        %3824 = vmatpush1.msra.mxu0 %v3823
        %3825 = vmatprep.subr.mxu0 0.0
        %3826 = vmatpush2.msra.mxu0 0.0
        %3827 = vmatprep.subr.mxu0 0.0
        %3828 = vmatpush2.msra.mxu0 0.0
        %3829 = vmatprep.subr.mxu0 0.0
        %3830 = vmatpush2.msra.mxu0 0.0
        %3831 = vmatprep.subr.mxu0 0.0
        %3832 = vmatpush2.msra.mxu0 0.0
        %3833 = vmatprep.subr.mxu0 0.0
        %3834 = vmatpush2.msra.mxu0 0.0
        %3835 = vmatprep.subr.mxu0 0.0
        %3836 = vmatpush2.msra.mxu0 0.0
        %3837 = vmatprep.subr.mxu0 0.0
        %3838 = vmatpush2.msra.mxu0 0.0
        %3839 = vmatprep.subr.mxu0 0.0
        %3840 = vmatpush2.msra.mxu0 0.0
        %3841 = vmatprep.subr.mxu0 0.0
        %3842 = vmatpush2.msra.mxu0 0.0
        %3843 = vmatprep.subr.mxu0 0.0
        %3844 = vmatpush2.msra.mxu0 0.0
        %3845 = vmatprep.subr.mxu0 0.0
        %3846 = vmatpush2.msra.mxu0 0.0
        %3847 = vmatprep.subr.mxu0 0.0
        %3848 = vmatpush2.msra.mxu0 0.0
        %3849 = vmatprep.subr.mxu0 0.0
        %3850 = vmatpush2.msra.mxu0 0.0
        %3851 = vmatprep.subr.mxu0 0.0
        %3852 = vmatpush2.msra.mxu0 0.0
        %3853 = vmatprep.subr.mxu0 0.0
        %3854 = vmatpush2.msra.mxu0 0.0
        %3855 = vmatprep.subr.mxu0 0.0
        %3856 = vmatpush2.msra.mxu0 0.0
        %3857 = vmatprep.mubr.f32.mxu0 0.0
        %v3858 = vand.u32 %v3416, 4294901760
        %3859 = vmatmul.mubr.f32.gmra.mxu0 %v3858
        %v3860 = vpop.f32.mrf.mxu0
        %v3861 = vadd.f32 %v3789, %v3860
        %v3862 = vpop.f32.mrf.mxu0
        %3863 = vdwg.mxu0
        %v3864 = vmul.f32 %v3861, %v3410
        %3866 = vrot.lane.b32.xlu0 %v3864, 8
        %v3867 = vpop.permute.xlu0 %3866
        %vm3869 = vcmask 130112
        %3870 = vst.msk [vmem:[#allocation2] sm:$0xff] %vm3869, %v3867
        %3871 = vrot.lane.b32.xlu0 %v2032, 112
        %v3872 = vpop.permute.xlu0 %3871
        %3873 = vrot.lane.b32.xlu0 %v1529, 112
        %v3874 = vpop.permute.xlu0 %3873
        %v3875 = vsel %vm2033, %v3872, 0
        %v3877 = vsel %vm2033, %v3874, 0
        %3879 = vmatprep.subr.mxu0 0.0
        %3880 = vmatpush1.xpose.msra.mxu0 0.0
        %3881 = vmatprep.subr.mxu0 0.0
        %3882 = vmatpush1.xpose.msra.mxu0 0.0
        %3883 = vmatprep.subr.mxu0 0.0
        %3884 = vmatpush1.xpose.msra.mxu0 0.0
        %3885 = vmatprep.subr.mxu0 0.0
        %3886 = vmatpush1.xpose.msra.mxu0 0.0
        %3887 = vmatprep.subr.mxu0 0.0
        %3888 = vmatpush1.xpose.msra.mxu0 0.0
        %3889 = vmatprep.subr.mxu0 0.0
        %3890 = vmatpush1.xpose.msra.mxu0 0.0
        %3891 = vmatprep.subr.mxu0 0.0
        %3892 = vmatpush1.xpose.msra.mxu0 0.0
        %3893 = vmatprep.subr.mxu0 0.0
        %3894 = vmatpush1.xpose.msra.mxu0 0.0
        %3895 = vmatprep.subr.mxu0 0.0
        %3896 = vmatpush1.xpose.msra.mxu0 0.0
        %3897 = vmatprep.subr.mxu0 0.0
        %3898 = vmatpush1.xpose.msra.mxu0 0.0
        %3899 = vmatprep.subr.mxu0 0.0
        %3900 = vmatpush1.xpose.msra.mxu0 0.0
        %3901 = vmatprep.subr.mxu0 0.0
        %3902 = vmatpush1.xpose.msra.mxu0 0.0
        %3903 = vmatprep.subr.mxu0 0.0
        %3904 = vmatpush1.xpose.msra.mxu0 0.0
        %3905 = vmatprep.subr.mxu0 0.0
        %3906 = vmatpush1.xpose.msra.mxu0 0.0
        %3907 = vmatprep.subr.mxu0 0.0
        %3908 = vmatpush1.xpose.msra.mxu0 0.0
        %3909 = vmatprep.subr.mxu0 0.0
        %v3910 = vand.u32 %v3877, 4294901760
        %3911 = vmatpush1.xpose.msra.mxu0 %v3910
        %3912 = vmatprep.subr.mxu0 0.0
        %3913 = vmatpush2.xpose.msra.mxu0 0.0
        %3914 = vmatprep.subr.mxu0 0.0
        %3915 = vmatpush2.xpose.msra.mxu0 0.0
        %3916 = vmatprep.subr.mxu0 0.0
        %3917 = vmatpush2.xpose.msra.mxu0 0.0
        %3918 = vmatprep.subr.mxu0 0.0
        %3919 = vmatpush2.xpose.msra.mxu0 0.0
        %3920 = vmatprep.subr.mxu0 0.0
        %3921 = vmatpush2.xpose.msra.mxu0 0.0
        %3922 = vmatprep.subr.mxu0 0.0
        %3923 = vmatpush2.xpose.msra.mxu0 0.0
        %3924 = vmatprep.subr.mxu0 0.0
        %3925 = vmatpush2.xpose.msra.mxu0 0.0
        %3926 = vmatprep.subr.mxu0 0.0
        %3927 = vmatpush2.xpose.msra.mxu0 0.0
        %3928 = vmatprep.subr.mxu0 0.0
        %3929 = vmatpush2.xpose.msra.mxu0 0.0
        %3930 = vmatprep.subr.mxu0 0.0
        %3931 = vmatpush2.xpose.msra.mxu0 0.0
        %3932 = vmatprep.subr.mxu0 0.0
        %3933 = vmatpush2.xpose.msra.mxu0 0.0
        %3934 = vmatprep.subr.mxu0 0.0
        %3935 = vmatpush2.xpose.msra.mxu0 0.0
        %3936 = vmatprep.subr.mxu0 0.0
        %3937 = vmatpush2.xpose.msra.mxu0 0.0
        %3938 = vmatprep.subr.mxu0 0.0
        %3939 = vmatpush2.xpose.msra.mxu0 0.0
        %3940 = vmatprep.subr.mxu0 0.0
        %3941 = vmatpush2.xpose.msra.mxu0 0.0
        %3942 = vmatprep.subr.mxu0 0.0
        %3943 = vmatpush2.xpose.msra.mxu0 0.0
        %3944 = vmatprep.mubr.f32.mxu0 0.0
        %v3945 = vand.u32 %v3875, 4294901760
        %v3946 = vsub.f32 %v3875, %v3945
        %v3947 = vand.u32 %v3946, 4294901760
        %v3948 = vsub.f32 %v3946, %v3947
        %v3949 = vand.u32 %v3948, 4294901760
        %3950 = vmatmul.mubr.f32.gmra.mxu0 %v3949
        %v3951 = vpop.f32.mrf.mxu0
        %v3952 = vadd.f32 0.0, %v3951
        %v3953 = vpop.f32.mrf.mxu0
        %3954 = vdwg.mxu0
        %3955 = vmatprep.subr.mxu0 0.0
        %3956 = vmatpush1.xpose.msra.mxu0 0.0
        %3957 = vmatprep.subr.mxu0 0.0
        %3958 = vmatpush1.xpose.msra.mxu0 0.0
        %3959 = vmatprep.subr.mxu0 0.0
        %3960 = vmatpush1.xpose.msra.mxu0 0.0
        %3961 = vmatprep.subr.mxu0 0.0
        %3962 = vmatpush1.xpose.msra.mxu0 0.0
        %3963 = vmatprep.subr.mxu0 0.0
        %3964 = vmatpush1.xpose.msra.mxu0 0.0
        %3965 = vmatprep.subr.mxu0 0.0
        %3966 = vmatpush1.xpose.msra.mxu0 0.0
        %3967 = vmatprep.subr.mxu0 0.0
        %3968 = vmatpush1.xpose.msra.mxu0 0.0
        %3969 = vmatprep.subr.mxu0 0.0
        %3970 = vmatpush1.xpose.msra.mxu0 0.0
        %3971 = vmatprep.subr.mxu0 0.0
        %3972 = vmatpush1.xpose.msra.mxu0 0.0
        %3973 = vmatprep.subr.mxu0 0.0
        %3974 = vmatpush1.xpose.msra.mxu0 0.0
        %3975 = vmatprep.subr.mxu0 0.0
        %3976 = vmatpush1.xpose.msra.mxu0 0.0
        %3977 = vmatprep.subr.mxu0 0.0
        %3978 = vmatpush1.xpose.msra.mxu0 0.0
        %3979 = vmatprep.subr.mxu0 0.0
        %3980 = vmatpush1.xpose.msra.mxu0 0.0
        %3981 = vmatprep.subr.mxu0 0.0
        %3982 = vmatpush1.xpose.msra.mxu0 0.0
        %3983 = vmatprep.subr.mxu0 0.0
        %3984 = vmatpush1.xpose.msra.mxu0 0.0
        %3985 = vmatprep.subr.mxu0 0.0
        %v3986 = vand.u32 %v3877, 4294901760
        %v3987 = vsub.f32 %v3877, %v3986
        %v3988 = vand.u32 %v3987, 4294901760
        %v3989 = vsub.f32 %v3987, %v3988
        %v3990 = vand.u32 %v3989, 4294901760
        %3991 = vmatpush1.xpose.msra.mxu0 %v3990
        %3992 = vmatprep.subr.mxu0 0.0
        %3993 = vmatpush2.xpose.msra.mxu0 0.0
        %3994 = vmatprep.subr.mxu0 0.0
        %3995 = vmatpush2.xpose.msra.mxu0 0.0
        %3996 = vmatprep.subr.mxu0 0.0
        %3997 = vmatpush2.xpose.msra.mxu0 0.0
        %3998 = vmatprep.subr.mxu0 0.0
        %3999 = vmatpush2.xpose.msra.mxu0 0.0
        %4000 = vmatprep.subr.mxu0 0.0
        %4001 = vmatpush2.xpose.msra.mxu0 0.0
        %4002 = vmatprep.subr.mxu0 0.0
        %4003 = vmatpush2.xpose.msra.mxu0 0.0
        %4004 = vmatprep.subr.mxu0 0.0
        %4005 = vmatpush2.xpose.msra.mxu0 0.0
        %4006 = vmatprep.subr.mxu0 0.0
        %4007 = vmatpush2.xpose.msra.mxu0 0.0
        %4008 = vmatprep.subr.mxu0 0.0
        %4009 = vmatpush2.xpose.msra.mxu0 0.0
        %4010 = vmatprep.subr.mxu0 0.0
        %4011 = vmatpush2.xpose.msra.mxu0 0.0
        %4012 = vmatprep.subr.mxu0 0.0
        %4013 = vmatpush2.xpose.msra.mxu0 0.0
        %4014 = vmatprep.subr.mxu0 0.0
        %4015 = vmatpush2.xpose.msra.mxu0 0.0
        %4016 = vmatprep.subr.mxu0 0.0
        %4017 = vmatpush2.xpose.msra.mxu0 0.0
        %4018 = vmatprep.subr.mxu0 0.0
        %4019 = vmatpush2.xpose.msra.mxu0 0.0
        %4020 = vmatprep.subr.mxu0 0.0
        %4021 = vmatpush2.xpose.msra.mxu0 0.0
        %4022 = vmatprep.subr.mxu0 0.0
        %4023 = vmatpush2.xpose.msra.mxu0 0.0
        %4024 = vmatprep.mubr.f32.mxu0 0.0
        %v4025 = vand.u32 %v3875, 4294901760
        %4026 = vmatmul.mubr.f32.gmra.mxu0 %v4025
        %v4027 = vpop.f32.mrf.mxu0
        %v4028 = vadd.f32 %v3952, %v4027
        %v4029 = vpop.f32.mrf.mxu0
        %4030 = vdwg.mxu0
        %4031 = vmatprep.subr.mxu0 0.0
        %4032 = vmatpush1.xpose.msra.mxu0 0.0
        %4033 = vmatprep.subr.mxu0 0.0
        %4034 = vmatpush1.xpose.msra.mxu0 0.0
        %4035 = vmatprep.subr.mxu0 0.0
        %4036 = vmatpush1.xpose.msra.mxu0 0.0
        %4037 = vmatprep.subr.mxu0 0.0
        %4038 = vmatpush1.xpose.msra.mxu0 0.0
        %4039 = vmatprep.subr.mxu0 0.0
        %4040 = vmatpush1.xpose.msra.mxu0 0.0
        %4041 = vmatprep.subr.mxu0 0.0
        %4042 = vmatpush1.xpose.msra.mxu0 0.0
        %4043 = vmatprep.subr.mxu0 0.0
        %4044 = vmatpush1.xpose.msra.mxu0 0.0
        %4045 = vmatprep.subr.mxu0 0.0
        %4046 = vmatpush1.xpose.msra.mxu0 0.0
        %4047 = vmatprep.subr.mxu0 0.0
        %4048 = vmatpush1.xpose.msra.mxu0 0.0
        %4049 = vmatprep.subr.mxu0 0.0
        %4050 = vmatpush1.xpose.msra.mxu0 0.0
        %4051 = vmatprep.subr.mxu0 0.0
        %4052 = vmatpush1.xpose.msra.mxu0 0.0
        %4053 = vmatprep.subr.mxu0 0.0
        %4054 = vmatpush1.xpose.msra.mxu0 0.0
        %4055 = vmatprep.subr.mxu0 0.0
        %4056 = vmatpush1.xpose.msra.mxu0 0.0
        %4057 = vmatprep.subr.mxu0 0.0
        %4058 = vmatpush1.xpose.msra.mxu0 0.0
        %4059 = vmatprep.subr.mxu0 0.0
        %4060 = vmatpush1.xpose.msra.mxu0 0.0
        %4061 = vmatprep.subr.mxu0 0.0
        %v4062 = vand.u32 %v3877, 4294901760
        %v4063 = vsub.f32 %v3877, %v4062
        %4064 = vmatpush1.xpose.msra.mxu0 %v4063
        %4065 = vmatprep.subr.mxu0 0.0
        %4066 = vmatpush2.xpose.msra.mxu0 0.0
        %4067 = vmatprep.subr.mxu0 0.0
        %4068 = vmatpush2.xpose.msra.mxu0 0.0
        %4069 = vmatprep.subr.mxu0 0.0
        %4070 = vmatpush2.xpose.msra.mxu0 0.0
        %4071 = vmatprep.subr.mxu0 0.0
        %4072 = vmatpush2.xpose.msra.mxu0 0.0
        %4073 = vmatprep.subr.mxu0 0.0
        %4074 = vmatpush2.xpose.msra.mxu0 0.0
        %4075 = vmatprep.subr.mxu0 0.0
        %4076 = vmatpush2.xpose.msra.mxu0 0.0
        %4077 = vmatprep.subr.mxu0 0.0
        %4078 = vmatpush2.xpose.msra.mxu0 0.0
        %4079 = vmatprep.subr.mxu0 0.0
        %4080 = vmatpush2.xpose.msra.mxu0 0.0
        %4081 = vmatprep.subr.mxu0 0.0
        %4082 = vmatpush2.xpose.msra.mxu0 0.0
        %4083 = vmatprep.subr.mxu0 0.0
        %4084 = vmatpush2.xpose.msra.mxu0 0.0
        %4085 = vmatprep.subr.mxu0 0.0
        %4086 = vmatpush2.xpose.msra.mxu0 0.0
        %4087 = vmatprep.subr.mxu0 0.0
        %4088 = vmatpush2.xpose.msra.mxu0 0.0
        %4089 = vmatprep.subr.mxu0 0.0
        %4090 = vmatpush2.xpose.msra.mxu0 0.0
        %4091 = vmatprep.subr.mxu0 0.0
        %4092 = vmatpush2.xpose.msra.mxu0 0.0
        %4093 = vmatprep.subr.mxu0 0.0
        %4094 = vmatpush2.xpose.msra.mxu0 0.0
        %4095 = vmatprep.subr.mxu0 0.0
        %4096 = vmatpush2.xpose.msra.mxu0 0.0
        %4097 = vmatprep.mubr.f32.mxu0 0.0
        %v4098 = vand.u32 %v3875, 4294901760
        %v4099 = vsub.f32 %v3875, %v4098
        %4100 = vmatmul.mubr.f32.gmra.mxu0 %v4099
        %v4101 = vpop.f32.mrf.mxu0
        %v4102 = vadd.f32 %v4028, %v4101
        %v4103 = vpop.f32.mrf.mxu0
        %4104 = vdwg.mxu0
        %4105 = vmatprep.subr.mxu0 0.0
        %4106 = vmatpush1.xpose.msra.mxu0 0.0
        %4107 = vmatprep.subr.mxu0 0.0
        %4108 = vmatpush1.xpose.msra.mxu0 0.0
        %4109 = vmatprep.subr.mxu0 0.0
        %4110 = vmatpush1.xpose.msra.mxu0 0.0
        %4111 = vmatprep.subr.mxu0 0.0
        %4112 = vmatpush1.xpose.msra.mxu0 0.0
        %4113 = vmatprep.subr.mxu0 0.0
        %4114 = vmatpush1.xpose.msra.mxu0 0.0
        %4115 = vmatprep.subr.mxu0 0.0
        %4116 = vmatpush1.xpose.msra.mxu0 0.0
        %4117 = vmatprep.subr.mxu0 0.0
        %4118 = vmatpush1.xpose.msra.mxu0 0.0
        %4119 = vmatprep.subr.mxu0 0.0
        %4120 = vmatpush1.xpose.msra.mxu0 0.0
        %4121 = vmatprep.subr.mxu0 0.0
        %4122 = vmatpush1.xpose.msra.mxu0 0.0
        %4123 = vmatprep.subr.mxu0 0.0
        %4124 = vmatpush1.xpose.msra.mxu0 0.0
        %4125 = vmatprep.subr.mxu0 0.0
        %4126 = vmatpush1.xpose.msra.mxu0 0.0
        %4127 = vmatprep.subr.mxu0 0.0
        %4128 = vmatpush1.xpose.msra.mxu0 0.0
        %4129 = vmatprep.subr.mxu0 0.0
        %4130 = vmatpush1.xpose.msra.mxu0 0.0
        %4131 = vmatprep.subr.mxu0 0.0
        %4132 = vmatpush1.xpose.msra.mxu0 0.0
        %4133 = vmatprep.subr.mxu0 0.0
        %4134 = vmatpush1.xpose.msra.mxu0 0.0
        %4135 = vmatprep.subr.mxu0 0.0
        %v4136 = vand.u32 %v3877, 4294901760
        %4137 = vmatpush1.xpose.msra.mxu0 %v4136
        %4138 = vmatprep.subr.mxu0 0.0
        %4139 = vmatpush2.xpose.msra.mxu0 0.0
        %4140 = vmatprep.subr.mxu0 0.0
        %4141 = vmatpush2.xpose.msra.mxu0 0.0
        %4142 = vmatprep.subr.mxu0 0.0
        %4143 = vmatpush2.xpose.msra.mxu0 0.0
        %4144 = vmatprep.subr.mxu0 0.0
        %4145 = vmatpush2.xpose.msra.mxu0 0.0
        %4146 = vmatprep.subr.mxu0 0.0
        %4147 = vmatpush2.xpose.msra.mxu0 0.0
        %4148 = vmatprep.subr.mxu0 0.0
        %4149 = vmatpush2.xpose.msra.mxu0 0.0
        %4150 = vmatprep.subr.mxu0 0.0
        %4151 = vmatpush2.xpose.msra.mxu0 0.0
        %4152 = vmatprep.subr.mxu0 0.0
        %4153 = vmatpush2.xpose.msra.mxu0 0.0
        %4154 = vmatprep.subr.mxu0 0.0
        %4155 = vmatpush2.xpose.msra.mxu0 0.0
        %4156 = vmatprep.subr.mxu0 0.0
        %4157 = vmatpush2.xpose.msra.mxu0 0.0
        %4158 = vmatprep.subr.mxu0 0.0
        %4159 = vmatpush2.xpose.msra.mxu0 0.0
        %4160 = vmatprep.subr.mxu0 0.0
        %4161 = vmatpush2.xpose.msra.mxu0 0.0
        %4162 = vmatprep.subr.mxu0 0.0
        %4163 = vmatpush2.xpose.msra.mxu0 0.0
        %4164 = vmatprep.subr.mxu0 0.0
        %4165 = vmatpush2.xpose.msra.mxu0 0.0
        %4166 = vmatprep.subr.mxu0 0.0
        %4167 = vmatpush2.xpose.msra.mxu0 0.0
        %4168 = vmatprep.subr.mxu0 0.0
        %4169 = vmatpush2.xpose.msra.mxu0 0.0
        %4170 = vmatprep.mubr.f32.mxu0 0.0
        %v4171 = vand.u32 %v3875, 4294901760
        %v4172 = vsub.f32 %v3875, %v4171
        %v4173 = vand.u32 %v4172, 4294901760
        %4174 = vmatmul.mubr.f32.gmra.mxu0 %v4173
        %v4175 = vpop.f32.mrf.mxu0
        %v4176 = vadd.f32 %v4102, %v4175
        %v4177 = vpop.f32.mrf.mxu0
        %4178 = vdwg.mxu0
        %4179 = vmatprep.subr.mxu0 0.0
        %4180 = vmatpush1.xpose.msra.mxu0 0.0
        %4181 = vmatprep.subr.mxu0 0.0
        %4182 = vmatpush1.xpose.msra.mxu0 0.0
        %4183 = vmatprep.subr.mxu0 0.0
        %4184 = vmatpush1.xpose.msra.mxu0 0.0
        %4185 = vmatprep.subr.mxu0 0.0
        %4186 = vmatpush1.xpose.msra.mxu0 0.0
        %4187 = vmatprep.subr.mxu0 0.0
        %4188 = vmatpush1.xpose.msra.mxu0 0.0
        %4189 = vmatprep.subr.mxu0 0.0
        %4190 = vmatpush1.xpose.msra.mxu0 0.0
        %4191 = vmatprep.subr.mxu0 0.0
        %4192 = vmatpush1.xpose.msra.mxu0 0.0
        %4193 = vmatprep.subr.mxu0 0.0
        %4194 = vmatpush1.xpose.msra.mxu0 0.0
        %4195 = vmatprep.subr.mxu0 0.0
        %4196 = vmatpush1.xpose.msra.mxu0 0.0
        %4197 = vmatprep.subr.mxu0 0.0
        %4198 = vmatpush1.xpose.msra.mxu0 0.0
        %4199 = vmatprep.subr.mxu0 0.0
        %4200 = vmatpush1.xpose.msra.mxu0 0.0
        %4201 = vmatprep.subr.mxu0 0.0
        %4202 = vmatpush1.xpose.msra.mxu0 0.0
        %4203 = vmatprep.subr.mxu0 0.0
        %4204 = vmatpush1.xpose.msra.mxu0 0.0
        %4205 = vmatprep.subr.mxu0 0.0
        %4206 = vmatpush1.xpose.msra.mxu0 0.0
        %4207 = vmatprep.subr.mxu0 0.0
        %4208 = vmatpush1.xpose.msra.mxu0 0.0
        %4209 = vmatprep.subr.mxu0 0.0
        %v4210 = vand.u32 %v3877, 4294901760
        %v4211 = vsub.f32 %v3877, %v4210
        %v4212 = vand.u32 %v4211, 4294901760
        %4213 = vmatpush1.xpose.msra.mxu0 %v4212
        %4214 = vmatprep.subr.mxu0 0.0
        %4215 = vmatpush2.xpose.msra.mxu0 0.0
        %4216 = vmatprep.subr.mxu0 0.0
        %4217 = vmatpush2.xpose.msra.mxu0 0.0
        %4218 = vmatprep.subr.mxu0 0.0
        %4219 = vmatpush2.xpose.msra.mxu0 0.0
        %4220 = vmatprep.subr.mxu0 0.0
        %4221 = vmatpush2.xpose.msra.mxu0 0.0
        %4222 = vmatprep.subr.mxu0 0.0
        %4223 = vmatpush2.xpose.msra.mxu0 0.0
        %4224 = vmatprep.subr.mxu0 0.0
        %4225 = vmatpush2.xpose.msra.mxu0 0.0
        %4226 = vmatprep.subr.mxu0 0.0
        %4227 = vmatpush2.xpose.msra.mxu0 0.0
        %4228 = vmatprep.subr.mxu0 0.0
        %4229 = vmatpush2.xpose.msra.mxu0 0.0
        %4230 = vmatprep.subr.mxu0 0.0
        %4231 = vmatpush2.xpose.msra.mxu0 0.0
        %4232 = vmatprep.subr.mxu0 0.0
        %4233 = vmatpush2.xpose.msra.mxu0 0.0
        %4234 = vmatprep.subr.mxu0 0.0
        %4235 = vmatpush2.xpose.msra.mxu0 0.0
        %4236 = vmatprep.subr.mxu0 0.0
        %4237 = vmatpush2.xpose.msra.mxu0 0.0
        %4238 = vmatprep.subr.mxu0 0.0
        %4239 = vmatpush2.xpose.msra.mxu0 0.0
        %4240 = vmatprep.subr.mxu0 0.0
        %4241 = vmatpush2.xpose.msra.mxu0 0.0
        %4242 = vmatprep.subr.mxu0 0.0
        %4243 = vmatpush2.xpose.msra.mxu0 0.0
        %4244 = vmatprep.subr.mxu0 0.0
        %4245 = vmatpush2.xpose.msra.mxu0 0.0
        %4246 = vmatprep.mubr.f32.mxu0 0.0
        %v4247 = vand.u32 %v3875, 4294901760
        %4248 = vmatmul.mubr.f32.gmra.mxu0 %v4247
        %v4249 = vpop.f32.mrf.mxu0
        %v4250 = vadd.f32 %v4176, %v4249
        %v4251 = vpop.f32.mrf.mxu0
        %4252 = vdwg.mxu0
        %4253 = vmatprep.subr.mxu0 0.0
        %4254 = vmatpush1.xpose.msra.mxu0 0.0
        %4255 = vmatprep.subr.mxu0 0.0
        %4256 = vmatpush1.xpose.msra.mxu0 0.0
        %4257 = vmatprep.subr.mxu0 0.0
        %4258 = vmatpush1.xpose.msra.mxu0 0.0
        %4259 = vmatprep.subr.mxu0 0.0
        %4260 = vmatpush1.xpose.msra.mxu0 0.0
        %4261 = vmatprep.subr.mxu0 0.0
        %4262 = vmatpush1.xpose.msra.mxu0 0.0
        %4263 = vmatprep.subr.mxu0 0.0
        %4264 = vmatpush1.xpose.msra.mxu0 0.0
        %4265 = vmatprep.subr.mxu0 0.0
        %4266 = vmatpush1.xpose.msra.mxu0 0.0
        %4267 = vmatprep.subr.mxu0 0.0
        %4268 = vmatpush1.xpose.msra.mxu0 0.0
        %4269 = vmatprep.subr.mxu0 0.0
        %4270 = vmatpush1.xpose.msra.mxu0 0.0
        %4271 = vmatprep.subr.mxu0 0.0
        %4272 = vmatpush1.xpose.msra.mxu0 0.0
        %4273 = vmatprep.subr.mxu0 0.0
        %4274 = vmatpush1.xpose.msra.mxu0 0.0
        %4275 = vmatprep.subr.mxu0 0.0
        %4276 = vmatpush1.xpose.msra.mxu0 0.0
        %4277 = vmatprep.subr.mxu0 0.0
        %4278 = vmatpush1.xpose.msra.mxu0 0.0
        %4279 = vmatprep.subr.mxu0 0.0
        %4280 = vmatpush1.xpose.msra.mxu0 0.0
        %4281 = vmatprep.subr.mxu0 0.0
        %4282 = vmatpush1.xpose.msra.mxu0 0.0
        %4283 = vmatprep.subr.mxu0 0.0
        %v4284 = vand.u32 %v3877, 4294901760
        %4285 = vmatpush1.xpose.msra.mxu0 %v4284
        %4286 = vmatprep.subr.mxu0 0.0
        %4287 = vmatpush2.xpose.msra.mxu0 0.0
        %4288 = vmatprep.subr.mxu0 0.0
        %4289 = vmatpush2.xpose.msra.mxu0 0.0
        %4290 = vmatprep.subr.mxu0 0.0
        %4291 = vmatpush2.xpose.msra.mxu0 0.0
        %4292 = vmatprep.subr.mxu0 0.0
        %4293 = vmatpush2.xpose.msra.mxu0 0.0
        %4294 = vmatprep.subr.mxu0 0.0
        %4295 = vmatpush2.xpose.msra.mxu0 0.0
        %4296 = vmatprep.subr.mxu0 0.0
        %4297 = vmatpush2.xpose.msra.mxu0 0.0
        %4298 = vmatprep.subr.mxu0 0.0
        %4299 = vmatpush2.xpose.msra.mxu0 0.0
        %4300 = vmatprep.subr.mxu0 0.0
        %4301 = vmatpush2.xpose.msra.mxu0 0.0
        %4302 = vmatprep.subr.mxu0 0.0
        %4303 = vmatpush2.xpose.msra.mxu0 0.0
        %4304 = vmatprep.subr.mxu0 0.0
        %4305 = vmatpush2.xpose.msra.mxu0 0.0
        %4306 = vmatprep.subr.mxu0 0.0
        %4307 = vmatpush2.xpose.msra.mxu0 0.0
        %4308 = vmatprep.subr.mxu0 0.0
        %4309 = vmatpush2.xpose.msra.mxu0 0.0
        %4310 = vmatprep.subr.mxu0 0.0
        %4311 = vmatpush2.xpose.msra.mxu0 0.0
        %4312 = vmatprep.subr.mxu0 0.0
        %4313 = vmatpush2.xpose.msra.mxu0 0.0
        %4314 = vmatprep.subr.mxu0 0.0
        %4315 = vmatpush2.xpose.msra.mxu0 0.0
        %4316 = vmatprep.subr.mxu0 0.0
        %4317 = vmatpush2.xpose.msra.mxu0 0.0
        %4318 = vmatprep.mubr.f32.mxu0 0.0
        %v4319 = vand.u32 %v3875, 4294901760
        %4320 = vmatmul.mubr.f32.gmra.mxu0 %v4319
        %v4321 = vpop.f32.mrf.mxu0
        %v4322 = vadd.f32 %v4250, %v4321
        %v4323 = vpop.f32.mrf.mxu0
        %4324 = vdwg.mxu0
        %v4325 = vsel %vm2033, %v4322, -inf
        %4326 = vmax.xlane.f32.xlu0 %v4325
        %v4327 = vpop.xlane.xlu0 %4326
        %v4328 = vsub.f32 %v4322, %v4327
        %v4329 = vmul.f32 %v4328, 1.442695
        %v4330 = vpow.pop %v4329
        %v4331 = vsel %vm2033, %v4330, 0.0
        %4332 = vadd.xlane.f32.xlu0 %v4331
        %v4333 = vpop.xlane.xlu0 %4332
        %v4334 = vrcp.pop %v4333
        %4335 = vrot.lane.b32.xlu0 %v2029, 112
        %v4336 = vpop.permute.xlu0 %4335
        %v4339 = vsel %vm2033, %v4330, 0
        %4341 = vmatprep.subr.mxu0 0.0
        %4342 = vmatpush1.msra.mxu0 0.0
        %4343 = vmatprep.subr.mxu0 0.0
        %4344 = vmatpush1.msra.mxu0 0.0
        %4345 = vmatprep.subr.mxu0 0.0
        %4346 = vmatpush1.msra.mxu0 0.0
        %4347 = vmatprep.subr.mxu0 0.0
        %4348 = vmatpush1.msra.mxu0 0.0
        %4349 = vmatprep.subr.mxu0 0.0
        %4350 = vmatpush1.msra.mxu0 0.0
        %4351 = vmatprep.subr.mxu0 0.0
        %4352 = vmatpush1.msra.mxu0 0.0
        %4353 = vmatprep.subr.mxu0 0.0
        %4354 = vmatpush1.msra.mxu0 0.0
        %4355 = vmatprep.subr.mxu0 0.0
        %4356 = vmatpush1.msra.mxu0 0.0
        %4357 = vmatprep.subr.mxu0 0.0
        %4358 = vmatpush1.msra.mxu0 0.0
        %4359 = vmatprep.subr.mxu0 0.0
        %4360 = vmatpush1.msra.mxu0 0.0
        %4361 = vmatprep.subr.mxu0 0.0
        %4362 = vmatpush1.msra.mxu0 0.0
        %4363 = vmatprep.subr.mxu0 0.0
        %4364 = vmatpush1.msra.mxu0 0.0
        %4365 = vmatprep.subr.mxu0 0.0
        %4366 = vmatpush1.msra.mxu0 0.0
        %4367 = vmatprep.subr.mxu0 0.0
        %4368 = vmatpush1.msra.mxu0 0.0
        %4369 = vmatprep.subr.mxu0 0.0
        %4370 = vmatpush1.msra.mxu0 0.0
        %4371 = vmatprep.subr.mxu0 0.0
        %v4372 = vand.u32 %v4336, 4294901760
        %4373 = vmatpush1.msra.mxu0 %v4372
        %4374 = vmatprep.subr.mxu0 0.0
        %4375 = vmatpush2.msra.mxu0 0.0
        %4376 = vmatprep.subr.mxu0 0.0
        %4377 = vmatpush2.msra.mxu0 0.0
        %4378 = vmatprep.subr.mxu0 0.0
        %4379 = vmatpush2.msra.mxu0 0.0
        %4380 = vmatprep.subr.mxu0 0.0
        %4381 = vmatpush2.msra.mxu0 0.0
        %4382 = vmatprep.subr.mxu0 0.0
        %4383 = vmatpush2.msra.mxu0 0.0
        %4384 = vmatprep.subr.mxu0 0.0
        %4385 = vmatpush2.msra.mxu0 0.0
        %4386 = vmatprep.subr.mxu0 0.0
        %4387 = vmatpush2.msra.mxu0 0.0
        %4388 = vmatprep.subr.mxu0 0.0
        %4389 = vmatpush2.msra.mxu0 0.0
        %4390 = vmatprep.subr.mxu0 0.0
        %4391 = vmatpush2.msra.mxu0 0.0
        %4392 = vmatprep.subr.mxu0 0.0
        %4393 = vmatpush2.msra.mxu0 0.0
        %4394 = vmatprep.subr.mxu0 0.0
        %4395 = vmatpush2.msra.mxu0 0.0
        %4396 = vmatprep.subr.mxu0 0.0
        %4397 = vmatpush2.msra.mxu0 0.0
        %4398 = vmatprep.subr.mxu0 0.0
        %4399 = vmatpush2.msra.mxu0 0.0
        %4400 = vmatprep.subr.mxu0 0.0
        %4401 = vmatpush2.msra.mxu0 0.0
        %4402 = vmatprep.subr.mxu0 0.0
        %4403 = vmatpush2.msra.mxu0 0.0
        %4404 = vmatprep.subr.mxu0 0.0
        %4405 = vmatpush2.msra.mxu0 0.0
        %4406 = vmatprep.mubr.f32.mxu0 0.0
        %v4407 = vand.u32 %v4339, 4294901760
        %v4408 = vsub.f32 %v4339, %v4407
        %v4409 = vand.u32 %v4408, 4294901760
        %v4410 = vsub.f32 %v4408, %v4409
        %v4411 = vand.u32 %v4410, 4294901760
        %4412 = vmatmul.mubr.f32.gmra.mxu0 %v4411
        %v4413 = vpop.f32.mrf.mxu0
        %v4414 = vadd.f32 0.0, %v4413
        %v4415 = vpop.f32.mrf.mxu0
        %4416 = vdwg.mxu0
        %4417 = vmatprep.subr.mxu0 0.0
        %4418 = vmatpush1.msra.mxu0 0.0
        %4419 = vmatprep.subr.mxu0 0.0
        %4420 = vmatpush1.msra.mxu0 0.0
        %4421 = vmatprep.subr.mxu0 0.0
        %4422 = vmatpush1.msra.mxu0 0.0
        %4423 = vmatprep.subr.mxu0 0.0
        %4424 = vmatpush1.msra.mxu0 0.0
        %4425 = vmatprep.subr.mxu0 0.0
        %4426 = vmatpush1.msra.mxu0 0.0
        %4427 = vmatprep.subr.mxu0 0.0
        %4428 = vmatpush1.msra.mxu0 0.0
        %4429 = vmatprep.subr.mxu0 0.0
        %4430 = vmatpush1.msra.mxu0 0.0
        %4431 = vmatprep.subr.mxu0 0.0
        %4432 = vmatpush1.msra.mxu0 0.0
        %4433 = vmatprep.subr.mxu0 0.0
        %4434 = vmatpush1.msra.mxu0 0.0
        %4435 = vmatprep.subr.mxu0 0.0
        %4436 = vmatpush1.msra.mxu0 0.0
        %4437 = vmatprep.subr.mxu0 0.0
        %4438 = vmatpush1.msra.mxu0 0.0
        %4439 = vmatprep.subr.mxu0 0.0
        %4440 = vmatpush1.msra.mxu0 0.0
        %4441 = vmatprep.subr.mxu0 0.0
        %4442 = vmatpush1.msra.mxu0 0.0
        %4443 = vmatprep.subr.mxu0 0.0
        %4444 = vmatpush1.msra.mxu0 0.0
        %4445 = vmatprep.subr.mxu0 0.0
        %4446 = vmatpush1.msra.mxu0 0.0
        %4447 = vmatprep.subr.mxu0 0.0
        %v4448 = vand.u32 %v4336, 4294901760
        %v4449 = vsub.f32 %v4336, %v4448
        %v4450 = vand.u32 %v4449, 4294901760
        %v4451 = vsub.f32 %v4449, %v4450
        %v4452 = vand.u32 %v4451, 4294901760
        %4453 = vmatpush1.msra.mxu0 %v4452
        %4454 = vmatprep.subr.mxu0 0.0
        %4455 = vmatpush2.msra.mxu0 0.0
        %4456 = vmatprep.subr.mxu0 0.0
        %4457 = vmatpush2.msra.mxu0 0.0
        %4458 = vmatprep.subr.mxu0 0.0
        %4459 = vmatpush2.msra.mxu0 0.0
        %4460 = vmatprep.subr.mxu0 0.0
        %4461 = vmatpush2.msra.mxu0 0.0
        %4462 = vmatprep.subr.mxu0 0.0
        %4463 = vmatpush2.msra.mxu0 0.0
        %4464 = vmatprep.subr.mxu0 0.0
        %4465 = vmatpush2.msra.mxu0 0.0
        %4466 = vmatprep.subr.mxu0 0.0
        %4467 = vmatpush2.msra.mxu0 0.0
        %4468 = vmatprep.subr.mxu0 0.0
        %4469 = vmatpush2.msra.mxu0 0.0
        %4470 = vmatprep.subr.mxu0 0.0
        %4471 = vmatpush2.msra.mxu0 0.0
        %4472 = vmatprep.subr.mxu0 0.0
        %4473 = vmatpush2.msra.mxu0 0.0
        %4474 = vmatprep.subr.mxu0 0.0
        %4475 = vmatpush2.msra.mxu0 0.0
        %4476 = vmatprep.subr.mxu0 0.0
        %4477 = vmatpush2.msra.mxu0 0.0
        %4478 = vmatprep.subr.mxu0 0.0
        %4479 = vmatpush2.msra.mxu0 0.0
        %4480 = vmatprep.subr.mxu0 0.0
        %4481 = vmatpush2.msra.mxu0 0.0
        %4482 = vmatprep.subr.mxu0 0.0
        %4483 = vmatpush2.msra.mxu0 0.0
        %4484 = vmatprep.subr.mxu0 0.0
        %4485 = vmatpush2.msra.mxu0 0.0
        %4486 = vmatprep.mubr.f32.mxu0 0.0
        %v4487 = vand.u32 %v4339, 4294901760
        %4488 = vmatmul.mubr.f32.gmra.mxu0 %v4487
        %v4489 = vpop.f32.mrf.mxu0
        %v4490 = vadd.f32 %v4414, %v4489
        %v4491 = vpop.f32.mrf.mxu0
        %4492 = vdwg.mxu0
        %4493 = vmatprep.subr.mxu0 0.0
        %4494 = vmatpush1.msra.mxu0 0.0
        %4495 = vmatprep.subr.mxu0 0.0
        %4496 = vmatpush1.msra.mxu0 0.0
        %4497 = vmatprep.subr.mxu0 0.0
        %4498 = vmatpush1.msra.mxu0 0.0
        %4499 = vmatprep.subr.mxu0 0.0
        %4500 = vmatpush1.msra.mxu0 0.0
        %4501 = vmatprep.subr.mxu0 0.0
        %4502 = vmatpush1.msra.mxu0 0.0
        %4503 = vmatprep.subr.mxu0 0.0
        %4504 = vmatpush1.msra.mxu0 0.0
        %4505 = vmatprep.subr.mxu0 0.0
        %4506 = vmatpush1.msra.mxu0 0.0
        %4507 = vmatprep.subr.mxu0 0.0
        %4508 = vmatpush1.msra.mxu0 0.0
        %4509 = vmatprep.subr.mxu0 0.0
        %4510 = vmatpush1.msra.mxu0 0.0
        %4511 = vmatprep.subr.mxu0 0.0
        %4512 = vmatpush1.msra.mxu0 0.0
        %4513 = vmatprep.subr.mxu0 0.0
        %4514 = vmatpush1.msra.mxu0 0.0
        %4515 = vmatprep.subr.mxu0 0.0
        %4516 = vmatpush1.msra.mxu0 0.0
        %4517 = vmatprep.subr.mxu0 0.0
        %4518 = vmatpush1.msra.mxu0 0.0
        %4519 = vmatprep.subr.mxu0 0.0
        %4520 = vmatpush1.msra.mxu0 0.0
        %4521 = vmatprep.subr.mxu0 0.0
        %4522 = vmatpush1.msra.mxu0 0.0
        %4523 = vmatprep.subr.mxu0 0.0
        %v4524 = vand.u32 %v4336, 4294901760
        %v4525 = vsub.f32 %v4336, %v4524
        %4526 = vmatpush1.msra.mxu0 %v4525
        %4527 = vmatprep.subr.mxu0 0.0
        %4528 = vmatpush2.msra.mxu0 0.0
        %4529 = vmatprep.subr.mxu0 0.0
        %4530 = vmatpush2.msra.mxu0 0.0
        %4531 = vmatprep.subr.mxu0 0.0
        %4532 = vmatpush2.msra.mxu0 0.0
        %4533 = vmatprep.subr.mxu0 0.0
        %4534 = vmatpush2.msra.mxu0 0.0
        %4535 = vmatprep.subr.mxu0 0.0
        %4536 = vmatpush2.msra.mxu0 0.0
        %4537 = vmatprep.subr.mxu0 0.0
        %4538 = vmatpush2.msra.mxu0 0.0
        %4539 = vmatprep.subr.mxu0 0.0
        %4540 = vmatpush2.msra.mxu0 0.0
        %4541 = vmatprep.subr.mxu0 0.0
        %4542 = vmatpush2.msra.mxu0 0.0
        %4543 = vmatprep.subr.mxu0 0.0
        %4544 = vmatpush2.msra.mxu0 0.0
        %4545 = vmatprep.subr.mxu0 0.0
        %4546 = vmatpush2.msra.mxu0 0.0
        %4547 = vmatprep.subr.mxu0 0.0
        %4548 = vmatpush2.msra.mxu0 0.0
        %4549 = vmatprep.subr.mxu0 0.0
        %4550 = vmatpush2.msra.mxu0 0.0
        %4551 = vmatprep.subr.mxu0 0.0
        %4552 = vmatpush2.msra.mxu0 0.0
        %4553 = vmatprep.subr.mxu0 0.0
        %4554 = vmatpush2.msra.mxu0 0.0
        %4555 = vmatprep.subr.mxu0 0.0
        %4556 = vmatpush2.msra.mxu0 0.0
        %4557 = vmatprep.subr.mxu0 0.0
        %4558 = vmatpush2.msra.mxu0 0.0
        %4559 = vmatprep.mubr.f32.mxu0 0.0
        %v4560 = vand.u32 %v4339, 4294901760
        %v4561 = vsub.f32 %v4339, %v4560
        %4562 = vmatmul.mubr.f32.gmra.mxu0 %v4561
        %v4563 = vpop.f32.mrf.mxu0
        %v4564 = vadd.f32 %v4490, %v4563
        %v4565 = vpop.f32.mrf.mxu0
        %4566 = vdwg.mxu0
        %4567 = vmatprep.subr.mxu0 0.0
        %4568 = vmatpush1.msra.mxu0 0.0
        %4569 = vmatprep.subr.mxu0 0.0
        %4570 = vmatpush1.msra.mxu0 0.0
        %4571 = vmatprep.subr.mxu0 0.0
        %4572 = vmatpush1.msra.mxu0 0.0
        %4573 = vmatprep.subr.mxu0 0.0
        %4574 = vmatpush1.msra.mxu0 0.0
        %4575 = vmatprep.subr.mxu0 0.0
        %4576 = vmatpush1.msra.mxu0 0.0
        %4577 = vmatprep.subr.mxu0 0.0
        %4578 = vmatpush1.msra.mxu0 0.0
        %4579 = vmatprep.subr.mxu0 0.0
        %4580 = vmatpush1.msra.mxu0 0.0
        %4581 = vmatprep.subr.mxu0 0.0
        %4582 = vmatpush1.msra.mxu0 0.0
        %4583 = vmatprep.subr.mxu0 0.0
        %4584 = vmatpush1.msra.mxu0 0.0
        %4585 = vmatprep.subr.mxu0 0.0
        %4586 = vmatpush1.msra.mxu0 0.0
        %4587 = vmatprep.subr.mxu0 0.0
        %4588 = vmatpush1.msra.mxu0 0.0
        %4589 = vmatprep.subr.mxu0 0.0
        %4590 = vmatpush1.msra.mxu0 0.0
        %4591 = vmatprep.subr.mxu0 0.0
        %4592 = vmatpush1.msra.mxu0 0.0
        %4593 = vmatprep.subr.mxu0 0.0
        %4594 = vmatpush1.msra.mxu0 0.0
        %4595 = vmatprep.subr.mxu0 0.0
        %4596 = vmatpush1.msra.mxu0 0.0
        %4597 = vmatprep.subr.mxu0 0.0
        %v4598 = vand.u32 %v4336, 4294901760
        %4599 = vmatpush1.msra.mxu0 %v4598
        %4600 = vmatprep.subr.mxu0 0.0
        %4601 = vmatpush2.msra.mxu0 0.0
        %4602 = vmatprep.subr.mxu0 0.0
        %4603 = vmatpush2.msra.mxu0 0.0
        %4604 = vmatprep.subr.mxu0 0.0
        %4605 = vmatpush2.msra.mxu0 0.0
        %4606 = vmatprep.subr.mxu0 0.0
        %4607 = vmatpush2.msra.mxu0 0.0
        %4608 = vmatprep.subr.mxu0 0.0
        %4609 = vmatpush2.msra.mxu0 0.0
        %4610 = vmatprep.subr.mxu0 0.0
        %4611 = vmatpush2.msra.mxu0 0.0
        %4612 = vmatprep.subr.mxu0 0.0
        %4613 = vmatpush2.msra.mxu0 0.0
        %4614 = vmatprep.subr.mxu0 0.0
        %4615 = vmatpush2.msra.mxu0 0.0
        %4616 = vmatprep.subr.mxu0 0.0
        %4617 = vmatpush2.msra.mxu0 0.0
        %4618 = vmatprep.subr.mxu0 0.0
        %4619 = vmatpush2.msra.mxu0 0.0
        %4620 = vmatprep.subr.mxu0 0.0
        %4621 = vmatpush2.msra.mxu0 0.0
        %4622 = vmatprep.subr.mxu0 0.0
        %4623 = vmatpush2.msra.mxu0 0.0
        %4624 = vmatprep.subr.mxu0 0.0
        %4625 = vmatpush2.msra.mxu0 0.0
        %4626 = vmatprep.subr.mxu0 0.0
        %4627 = vmatpush2.msra.mxu0 0.0
        %4628 = vmatprep.subr.mxu0 0.0
        %4629 = vmatpush2.msra.mxu0 0.0
        %4630 = vmatprep.subr.mxu0 0.0
        %4631 = vmatpush2.msra.mxu0 0.0
        %4632 = vmatprep.mubr.f32.mxu0 0.0
        %v4633 = vand.u32 %v4339, 4294901760
        %v4634 = vsub.f32 %v4339, %v4633
        %v4635 = vand.u32 %v4634, 4294901760
        %4636 = vmatmul.mubr.f32.gmra.mxu0 %v4635
        %v4637 = vpop.f32.mrf.mxu0
        %v4638 = vadd.f32 %v4564, %v4637
        %v4639 = vpop.f32.mrf.mxu0
        %4640 = vdwg.mxu0
        %4641 = vmatprep.subr.mxu0 0.0
        %4642 = vmatpush1.msra.mxu0 0.0
        %4643 = vmatprep.subr.mxu0 0.0
        %4644 = vmatpush1.msra.mxu0 0.0
        %4645 = vmatprep.subr.mxu0 0.0
        %4646 = vmatpush1.msra.mxu0 0.0
        %4647 = vmatprep.subr.mxu0 0.0
        %4648 = vmatpush1.msra.mxu0 0.0
        %4649 = vmatprep.subr.mxu0 0.0
        %4650 = vmatpush1.msra.mxu0 0.0
        %4651 = vmatprep.subr.mxu0 0.0
        %4652 = vmatpush1.msra.mxu0 0.0
        %4653 = vmatprep.subr.mxu0 0.0
        %4654 = vmatpush1.msra.mxu0 0.0
        %4655 = vmatprep.subr.mxu0 0.0
        %4656 = vmatpush1.msra.mxu0 0.0
        %4657 = vmatprep.subr.mxu0 0.0
        %4658 = vmatpush1.msra.mxu0 0.0
        %4659 = vmatprep.subr.mxu0 0.0
        %4660 = vmatpush1.msra.mxu0 0.0
        %4661 = vmatprep.subr.mxu0 0.0
        %4662 = vmatpush1.msra.mxu0 0.0
        %4663 = vmatprep.subr.mxu0 0.0
        %4664 = vmatpush1.msra.mxu0 0.0
        %4665 = vmatprep.subr.mxu0 0.0
        %4666 = vmatpush1.msra.mxu0 0.0
        %4667 = vmatprep.subr.mxu0 0.0
        %4668 = vmatpush1.msra.mxu0 0.0
        %4669 = vmatprep.subr.mxu0 0.0
        %4670 = vmatpush1.msra.mxu0 0.0
        %4671 = vmatprep.subr.mxu0 0.0
        %v4672 = vand.u32 %v4336, 4294901760
        %v4673 = vsub.f32 %v4336, %v4672
        %v4674 = vand.u32 %v4673, 4294901760
        %4675 = vmatpush1.msra.mxu0 %v4674
        %4676 = vmatprep.subr.mxu0 0.0
        %4677 = vmatpush2.msra.mxu0 0.0
        %4678 = vmatprep.subr.mxu0 0.0
        %4679 = vmatpush2.msra.mxu0 0.0
        %4680 = vmatprep.subr.mxu0 0.0
        %4681 = vmatpush2.msra.mxu0 0.0
        %4682 = vmatprep.subr.mxu0 0.0
        %4683 = vmatpush2.msra.mxu0 0.0
        %4684 = vmatprep.subr.mxu0 0.0
        %4685 = vmatpush2.msra.mxu0 0.0
        %4686 = vmatprep.subr.mxu0 0.0
        %4687 = vmatpush2.msra.mxu0 0.0
        %4688 = vmatprep.subr.mxu0 0.0
        %4689 = vmatpush2.msra.mxu0 0.0
        %4690 = vmatprep.subr.mxu0 0.0
        %4691 = vmatpush2.msra.mxu0 0.0
        %4692 = vmatprep.subr.mxu0 0.0
        %4693 = vmatpush2.msra.mxu0 0.0
        %4694 = vmatprep.subr.mxu0 0.0
        %4695 = vmatpush2.msra.mxu0 0.0
        %4696 = vmatprep.subr.mxu0 0.0
        %4697 = vmatpush2.msra.mxu0 0.0
        %4698 = vmatprep.subr.mxu0 0.0
        %4699 = vmatpush2.msra.mxu0 0.0
        %4700 = vmatprep.subr.mxu0 0.0
        %4701 = vmatpush2.msra.mxu0 0.0
        %4702 = vmatprep.subr.mxu0 0.0
        %4703 = vmatpush2.msra.mxu0 0.0
        %4704 = vmatprep.subr.mxu0 0.0
        %4705 = vmatpush2.msra.mxu0 0.0
        %4706 = vmatprep.subr.mxu0 0.0
        %4707 = vmatpush2.msra.mxu0 0.0
        %4708 = vmatprep.mubr.f32.mxu0 0.0
        %v4709 = vand.u32 %v4339, 4294901760
        %4710 = vmatmul.mubr.f32.gmra.mxu0 %v4709
        %v4711 = vpop.f32.mrf.mxu0
        %v4712 = vadd.f32 %v4638, %v4711
        %v4713 = vpop.f32.mrf.mxu0
        %4714 = vdwg.mxu0
        %4715 = vmatprep.subr.mxu0 0.0
        %4716 = vmatpush1.msra.mxu0 0.0
        %4717 = vmatprep.subr.mxu0 0.0
        %4718 = vmatpush1.msra.mxu0 0.0
        %4719 = vmatprep.subr.mxu0 0.0
        %4720 = vmatpush1.msra.mxu0 0.0
        %4721 = vmatprep.subr.mxu0 0.0
        %4722 = vmatpush1.msra.mxu0 0.0
        %4723 = vmatprep.subr.mxu0 0.0
        %4724 = vmatpush1.msra.mxu0 0.0
        %4725 = vmatprep.subr.mxu0 0.0
        %4726 = vmatpush1.msra.mxu0 0.0
        %4727 = vmatprep.subr.mxu0 0.0
        %4728 = vmatpush1.msra.mxu0 0.0
        %4729 = vmatprep.subr.mxu0 0.0
        %4730 = vmatpush1.msra.mxu0 0.0
        %4731 = vmatprep.subr.mxu0 0.0
        %4732 = vmatpush1.msra.mxu0 0.0
        %4733 = vmatprep.subr.mxu0 0.0
        %4734 = vmatpush1.msra.mxu0 0.0
        %4735 = vmatprep.subr.mxu0 0.0
        %4736 = vmatpush1.msra.mxu0 0.0
        %4737 = vmatprep.subr.mxu0 0.0
        %4738 = vmatpush1.msra.mxu0 0.0
        %4739 = vmatprep.subr.mxu0 0.0
        %4740 = vmatpush1.msra.mxu0 0.0
        %4741 = vmatprep.subr.mxu0 0.0
        %4742 = vmatpush1.msra.mxu0 0.0
        %4743 = vmatprep.subr.mxu0 0.0
        %4744 = vmatpush1.msra.mxu0 0.0
        %4745 = vmatprep.subr.mxu0 0.0
        %v4746 = vand.u32 %v4336, 4294901760
        %4747 = vmatpush1.msra.mxu0 %v4746
        %4748 = vmatprep.subr.mxu0 0.0
        %4749 = vmatpush2.msra.mxu0 0.0
        %4750 = vmatprep.subr.mxu0 0.0
        %4751 = vmatpush2.msra.mxu0 0.0
        %4752 = vmatprep.subr.mxu0 0.0
        %4753 = vmatpush2.msra.mxu0 0.0
        %4754 = vmatprep.subr.mxu0 0.0
        %4755 = vmatpush2.msra.mxu0 0.0
        %4756 = vmatprep.subr.mxu0 0.0
        %4757 = vmatpush2.msra.mxu0 0.0
        %4758 = vmatprep.subr.mxu0 0.0
        %4759 = vmatpush2.msra.mxu0 0.0
        %4760 = vmatprep.subr.mxu0 0.0
        %4761 = vmatpush2.msra.mxu0 0.0
        %4762 = vmatprep.subr.mxu0 0.0
        %4763 = vmatpush2.msra.mxu0 0.0
        %4764 = vmatprep.subr.mxu0 0.0
        %4765 = vmatpush2.msra.mxu0 0.0
        %4766 = vmatprep.subr.mxu0 0.0
        %4767 = vmatpush2.msra.mxu0 0.0
        %4768 = vmatprep.subr.mxu0 0.0
        %4769 = vmatpush2.msra.mxu0 0.0
        %4770 = vmatprep.subr.mxu0 0.0
        %4771 = vmatpush2.msra.mxu0 0.0
        %4772 = vmatprep.subr.mxu0 0.0
        %4773 = vmatpush2.msra.mxu0 0.0
        %4774 = vmatprep.subr.mxu0 0.0
        %4775 = vmatpush2.msra.mxu0 0.0
        %4776 = vmatprep.subr.mxu0 0.0
        %4777 = vmatpush2.msra.mxu0 0.0
        %4778 = vmatprep.subr.mxu0 0.0
        %4779 = vmatpush2.msra.mxu0 0.0
        %4780 = vmatprep.mubr.f32.mxu0 0.0
        %v4781 = vand.u32 %v4339, 4294901760
        %4782 = vmatmul.mubr.f32.gmra.mxu0 %v4781
        %v4783 = vpop.f32.mrf.mxu0
        %v4784 = vadd.f32 %v4712, %v4783
        %v4785 = vpop.f32.mrf.mxu0
        %4786 = vdwg.mxu0
        %v4787 = vmul.f32 %v4784, %v4334
        %4789 = vrot.lane.b32.xlu0 %v4787, 16
        %v4790 = vpop.permute.xlu0 %4789
        %vm4792 = vcmask 195712
        %4793 = vst.msk [vmem:[#allocation2] sm:$0xff] %vm4792, %v4790
        %4794 = vrot.lane.b32.xlu0 %v2032, 104
        %v4795 = vpop.permute.xlu0 %4794
        %4796 = vrot.lane.b32.xlu0 %v1529, 104
        %v4797 = vpop.permute.xlu0 %4796
        %v4798 = vsel %vm2033, %v4795, 0
        %v4800 = vsel %vm2033, %v4797, 0
        %4802 = vmatprep.subr.mxu0 0.0
        %4803 = vmatpush1.xpose.msra.mxu0 0.0
        %4804 = vmatprep.subr.mxu0 0.0
        %4805 = vmatpush1.xpose.msra.mxu0 0.0
        %4806 = vmatprep.subr.mxu0 0.0
        %4807 = vmatpush1.xpose.msra.mxu0 0.0
        %4808 = vmatprep.subr.mxu0 0.0
        %4809 = vmatpush1.xpose.msra.mxu0 0.0
        %4810 = vmatprep.subr.mxu0 0.0
        %4811 = vmatpush1.xpose.msra.mxu0 0.0
        %4812 = vmatprep.subr.mxu0 0.0
        %4813 = vmatpush1.xpose.msra.mxu0 0.0
        %4814 = vmatprep.subr.mxu0 0.0
        %4815 = vmatpush1.xpose.msra.mxu0 0.0
        %4816 = vmatprep.subr.mxu0 0.0
        %4817 = vmatpush1.xpose.msra.mxu0 0.0
        %4818 = vmatprep.subr.mxu0 0.0
        %4819 = vmatpush1.xpose.msra.mxu0 0.0
        %4820 = vmatprep.subr.mxu0 0.0
        %4821 = vmatpush1.xpose.msra.mxu0 0.0
        %4822 = vmatprep.subr.mxu0 0.0
        %4823 = vmatpush1.xpose.msra.mxu0 0.0
        %4824 = vmatprep.subr.mxu0 0.0
        %4825 = vmatpush1.xpose.msra.mxu0 0.0
        %4826 = vmatprep.subr.mxu0 0.0
        %4827 = vmatpush1.xpose.msra.mxu0 0.0
        %4828 = vmatprep.subr.mxu0 0.0
        %4829 = vmatpush1.xpose.msra.mxu0 0.0
        %4830 = vmatprep.subr.mxu0 0.0
        %4831 = vmatpush1.xpose.msra.mxu0 0.0
        %4832 = vmatprep.subr.mxu0 0.0
        %v4833 = vand.u32 %v4800, 4294901760
        %4834 = vmatpush1.xpose.msra.mxu0 %v4833
        %4835 = vmatprep.subr.mxu0 0.0
        %4836 = vmatpush2.xpose.msra.mxu0 0.0
        %4837 = vmatprep.subr.mxu0 0.0
        %4838 = vmatpush2.xpose.msra.mxu0 0.0
        %4839 = vmatprep.subr.mxu0 0.0
        %4840 = vmatpush2.xpose.msra.mxu0 0.0
        %4841 = vmatprep.subr.mxu0 0.0
        %4842 = vmatpush2.xpose.msra.mxu0 0.0
        %4843 = vmatprep.subr.mxu0 0.0
        %4844 = vmatpush2.xpose.msra.mxu0 0.0
        %4845 = vmatprep.subr.mxu0 0.0
        %4846 = vmatpush2.xpose.msra.mxu0 0.0
        %4847 = vmatprep.subr.mxu0 0.0
        %4848 = vmatpush2.xpose.msra.mxu0 0.0
        %4849 = vmatprep.subr.mxu0 0.0
        %4850 = vmatpush2.xpose.msra.mxu0 0.0
        %4851 = vmatprep.subr.mxu0 0.0
        %4852 = vmatpush2.xpose.msra.mxu0 0.0
        %4853 = vmatprep.subr.mxu0 0.0
        %4854 = vmatpush2.xpose.msra.mxu0 0.0
        %4855 = vmatprep.subr.mxu0 0.0
        %4856 = vmatpush2.xpose.msra.mxu0 0.0
        %4857 = vmatprep.subr.mxu0 0.0
        %4858 = vmatpush2.xpose.msra.mxu0 0.0
        %4859 = vmatprep.subr.mxu0 0.0
        %4860 = vmatpush2.xpose.msra.mxu0 0.0
        %4861 = vmatprep.subr.mxu0 0.0
        %4862 = vmatpush2.xpose.msra.mxu0 0.0
        %4863 = vmatprep.subr.mxu0 0.0
        %4864 = vmatpush2.xpose.msra.mxu0 0.0
        %4865 = vmatprep.subr.mxu0 0.0
        %4866 = vmatpush2.xpose.msra.mxu0 0.0
        %4867 = vmatprep.mubr.f32.mxu0 0.0
        %v4868 = vand.u32 %v4798, 4294901760
        %v4869 = vsub.f32 %v4798, %v4868
        %v4870 = vand.u32 %v4869, 4294901760
        %v4871 = vsub.f32 %v4869, %v4870
        %v4872 = vand.u32 %v4871, 4294901760
        %4873 = vmatmul.mubr.f32.gmra.mxu0 %v4872
        %v4874 = vpop.f32.mrf.mxu0
        %v4875 = vadd.f32 0.0, %v4874
        %v4876 = vpop.f32.mrf.mxu0
        %4877 = vdwg.mxu0
        %4878 = vmatprep.subr.mxu0 0.0
        %4879 = vmatpush1.xpose.msra.mxu0 0.0
        %4880 = vmatprep.subr.mxu0 0.0
        %4881 = vmatpush1.xpose.msra.mxu0 0.0
        %4882 = vmatprep.subr.mxu0 0.0
        %4883 = vmatpush1.xpose.msra.mxu0 0.0
        %4884 = vmatprep.subr.mxu0 0.0
        %4885 = vmatpush1.xpose.msra.mxu0 0.0
        %4886 = vmatprep.subr.mxu0 0.0
        %4887 = vmatpush1.xpose.msra.mxu0 0.0
        %4888 = vmatprep.subr.mxu0 0.0
        %4889 = vmatpush1.xpose.msra.mxu0 0.0
        %4890 = vmatprep.subr.mxu0 0.0
        %4891 = vmatpush1.xpose.msra.mxu0 0.0
        %4892 = vmatprep.subr.mxu0 0.0
        %4893 = vmatpush1.xpose.msra.mxu0 0.0
        %4894 = vmatprep.subr.mxu0 0.0
        %4895 = vmatpush1.xpose.msra.mxu0 0.0
        %4896 = vmatprep.subr.mxu0 0.0
        %4897 = vmatpush1.xpose.msra.mxu0 0.0
        %4898 = vmatprep.subr.mxu0 0.0
        %4899 = vmatpush1.xpose.msra.mxu0 0.0
        %4900 = vmatprep.subr.mxu0 0.0
        %4901 = vmatpush1.xpose.msra.mxu0 0.0
        %4902 = vmatprep.subr.mxu0 0.0
        %4903 = vmatpush1.xpose.msra.mxu0 0.0
        %4904 = vmatprep.subr.mxu0 0.0
        %4905 = vmatpush1.xpose.msra.mxu0 0.0
        %4906 = vmatprep.subr.mxu0 0.0
        %4907 = vmatpush1.xpose.msra.mxu0 0.0
        %4908 = vmatprep.subr.mxu0 0.0
        %v4909 = vand.u32 %v4800, 4294901760
        %v4910 = vsub.f32 %v4800, %v4909
        %v4911 = vand.u32 %v4910, 4294901760
        %v4912 = vsub.f32 %v4910, %v4911
        %v4913 = vand.u32 %v4912, 4294901760
        %4914 = vmatpush1.xpose.msra.mxu0 %v4913
        %4915 = vmatprep.subr.mxu0 0.0
        %4916 = vmatpush2.xpose.msra.mxu0 0.0
        %4917 = vmatprep.subr.mxu0 0.0
        %4918 = vmatpush2.xpose.msra.mxu0 0.0
        %4919 = vmatprep.subr.mxu0 0.0
        %4920 = vmatpush2.xpose.msra.mxu0 0.0
        %4921 = vmatprep.subr.mxu0 0.0
        %4922 = vmatpush2.xpose.msra.mxu0 0.0
        %4923 = vmatprep.subr.mxu0 0.0
        %4924 = vmatpush2.xpose.msra.mxu0 0.0
        %4925 = vmatprep.subr.mxu0 0.0
        %4926 = vmatpush2.xpose.msra.mxu0 0.0
        %4927 = vmatprep.subr.mxu0 0.0
        %4928 = vmatpush2.xpose.msra.mxu0 0.0
        %4929 = vmatprep.subr.mxu0 0.0
        %4930 = vmatpush2.xpose.msra.mxu0 0.0
        %4931 = vmatprep.subr.mxu0 0.0
        %4932 = vmatpush2.xpose.msra.mxu0 0.0
        %4933 = vmatprep.subr.mxu0 0.0
        %4934 = vmatpush2.xpose.msra.mxu0 0.0
        %4935 = vmatprep.subr.mxu0 0.0
        %4936 = vmatpush2.xpose.msra.mxu0 0.0
        %4937 = vmatprep.subr.mxu0 0.0
        %4938 = vmatpush2.xpose.msra.mxu0 0.0
        %4939 = vmatprep.subr.mxu0 0.0
        %4940 = vmatpush2.xpose.msra.mxu0 0.0
        %4941 = vmatprep.subr.mxu0 0.0
        %4942 = vmatpush2.xpose.msra.mxu0 0.0
        %4943 = vmatprep.subr.mxu0 0.0
        %4944 = vmatpush2.xpose.msra.mxu0 0.0
        %4945 = vmatprep.subr.mxu0 0.0
        %4946 = vmatpush2.xpose.msra.mxu0 0.0
        %4947 = vmatprep.mubr.f32.mxu0 0.0
        %v4948 = vand.u32 %v4798, 4294901760
        %4949 = vmatmul.mubr.f32.gmra.mxu0 %v4948
        %v4950 = vpop.f32.mrf.mxu0
        %v4951 = vadd.f32 %v4875, %v4950
        %v4952 = vpop.f32.mrf.mxu0
        %4953 = vdwg.mxu0
        %4954 = vmatprep.subr.mxu0 0.0
        %4955 = vmatpush1.xpose.msra.mxu0 0.0
        %4956 = vmatprep.subr.mxu0 0.0
        %4957 = vmatpush1.xpose.msra.mxu0 0.0
        %4958 = vmatprep.subr.mxu0 0.0
        %4959 = vmatpush1.xpose.msra.mxu0 0.0
        %4960 = vmatprep.subr.mxu0 0.0
        %4961 = vmatpush1.xpose.msra.mxu0 0.0
        %4962 = vmatprep.subr.mxu0 0.0
        %4963 = vmatpush1.xpose.msra.mxu0 0.0
        %4964 = vmatprep.subr.mxu0 0.0
        %4965 = vmatpush1.xpose.msra.mxu0 0.0
        %4966 = vmatprep.subr.mxu0 0.0
        %4967 = vmatpush1.xpose.msra.mxu0 0.0
        %4968 = vmatprep.subr.mxu0 0.0
        %4969 = vmatpush1.xpose.msra.mxu0 0.0
        %4970 = vmatprep.subr.mxu0 0.0
        %4971 = vmatpush1.xpose.msra.mxu0 0.0
        %4972 = vmatprep.subr.mxu0 0.0
        %4973 = vmatpush1.xpose.msra.mxu0 0.0
        %4974 = vmatprep.subr.mxu0 0.0
        %4975 = vmatpush1.xpose.msra.mxu0 0.0
        %4976 = vmatprep.subr.mxu0 0.0
        %4977 = vmatpush1.xpose.msra.mxu0 0.0
        %4978 = vmatprep.subr.mxu0 0.0
        %4979 = vmatpush1.xpose.msra.mxu0 0.0
        %4980 = vmatprep.subr.mxu0 0.0
        %4981 = vmatpush1.xpose.msra.mxu0 0.0
        %4982 = vmatprep.subr.mxu0 0.0
        %4983 = vmatpush1.xpose.msra.mxu0 0.0
        %4984 = vmatprep.subr.mxu0 0.0
        %v4985 = vand.u32 %v4800, 4294901760
        %v4986 = vsub.f32 %v4800, %v4985
        %4987 = vmatpush1.xpose.msra.mxu0 %v4986
        %4988 = vmatprep.subr.mxu0 0.0
        %4989 = vmatpush2.xpose.msra.mxu0 0.0
        %4990 = vmatprep.subr.mxu0 0.0
        %4991 = vmatpush2.xpose.msra.mxu0 0.0
        %4992 = vmatprep.subr.mxu0 0.0
        %4993 = vmatpush2.xpose.msra.mxu0 0.0
        %4994 = vmatprep.subr.mxu0 0.0
        %4995 = vmatpush2.xpose.msra.mxu0 0.0
        %4996 = vmatprep.subr.mxu0 0.0
        %4997 = vmatpush2.xpose.msra.mxu0 0.0
        %4998 = vmatprep.subr.mxu0 0.0
        %4999 = vmatpush2.xpose.msra.mxu0 0.0
        %5000 = vmatprep.subr.mxu0 0.0
        %5001 = vmatpush2.xpose.msra.mxu0 0.0
        %5002 = vmatprep.subr.mxu0 0.0
        %5003 = vmatpush2.xpose.msra.mxu0 0.0
        %5004 = vmatprep.subr.mxu0 0.0
        %5005 = vmatpush2.xpose.msra.mxu0 0.0
        %5006 = vmatprep.subr.mxu0 0.0
        %5007 = vmatpush2.xpose.msra.mxu0 0.0
        %5008 = vmatprep.subr.mxu0 0.0
        %5009 = vmatpush2.xpose.msra.mxu0 0.0
        %5010 = vmatprep.subr.mxu0 0.0
        %5011 = vmatpush2.xpose.msra.mxu0 0.0
        %5012 = vmatprep.subr.mxu0 0.0
        %5013 = vmatpush2.xpose.msra.mxu0 0.0
        %5014 = vmatprep.subr.mxu0 0.0
        %5015 = vmatpush2.xpose.msra.mxu0 0.0
        %5016 = vmatprep.subr.mxu0 0.0
        %5017 = vmatpush2.xpose.msra.mxu0 0.0
        %5018 = vmatprep.subr.mxu0 0.0
        %5019 = vmatpush2.xpose.msra.mxu0 0.0
        %5020 = vmatprep.mubr.f32.mxu0 0.0
        %v5021 = vand.u32 %v4798, 4294901760
        %v5022 = vsub.f32 %v4798, %v5021
        %5023 = vmatmul.mubr.f32.gmra.mxu0 %v5022
        %v5024 = vpop.f32.mrf.mxu0
        %v5025 = vadd.f32 %v4951, %v5024
        %v5026 = vpop.f32.mrf.mxu0
        %5027 = vdwg.mxu0
        %5028 = vmatprep.subr.mxu0 0.0
        %5029 = vmatpush1.xpose.msra.mxu0 0.0
        %5030 = vmatprep.subr.mxu0 0.0
        %5031 = vmatpush1.xpose.msra.mxu0 0.0
        %5032 = vmatprep.subr.mxu0 0.0
        %5033 = vmatpush1.xpose.msra.mxu0 0.0
        %5034 = vmatprep.subr.mxu0 0.0
        %5035 = vmatpush1.xpose.msra.mxu0 0.0
        %5036 = vmatprep.subr.mxu0 0.0
        %5037 = vmatpush1.xpose.msra.mxu0 0.0
        %5038 = vmatprep.subr.mxu0 0.0
        %5039 = vmatpush1.xpose.msra.mxu0 0.0
        %5040 = vmatprep.subr.mxu0 0.0
        %5041 = vmatpush1.xpose.msra.mxu0 0.0
        %5042 = vmatprep.subr.mxu0 0.0
        %5043 = vmatpush1.xpose.msra.mxu0 0.0
        %5044 = vmatprep.subr.mxu0 0.0
        %5045 = vmatpush1.xpose.msra.mxu0 0.0
        %5046 = vmatprep.subr.mxu0 0.0
        %5047 = vmatpush1.xpose.msra.mxu0 0.0
        %5048 = vmatprep.subr.mxu0 0.0
        %5049 = vmatpush1.xpose.msra.mxu0 0.0
        %5050 = vmatprep.subr.mxu0 0.0
        %5051 = vmatpush1.xpose.msra.mxu0 0.0
        %5052 = vmatprep.subr.mxu0 0.0
        %5053 = vmatpush1.xpose.msra.mxu0 0.0
        %5054 = vmatprep.subr.mxu0 0.0
        %5055 = vmatpush1.xpose.msra.mxu0 0.0
        %5056 = vmatprep.subr.mxu0 0.0
        %5057 = vmatpush1.xpose.msra.mxu0 0.0
        %5058 = vmatprep.subr.mxu0 0.0
        %v5059 = vand.u32 %v4800, 4294901760
        %5060 = vmatpush1.xpose.msra.mxu0 %v5059
        %5061 = vmatprep.subr.mxu0 0.0
        %5062 = vmatpush2.xpose.msra.mxu0 0.0
        %5063 = vmatprep.subr.mxu0 0.0
        %5064 = vmatpush2.xpose.msra.mxu0 0.0
        %5065 = vmatprep.subr.mxu0 0.0
        %5066 = vmatpush2.xpose.msra.mxu0 0.0
        %5067 = vmatprep.subr.mxu0 0.0
        %5068 = vmatpush2.xpose.msra.mxu0 0.0
        %5069 = vmatprep.subr.mxu0 0.0
        %5070 = vmatpush2.xpose.msra.mxu0 0.0
        %5071 = vmatprep.subr.mxu0 0.0
        %5072 = vmatpush2.xpose.msra.mxu0 0.0
        %5073 = vmatprep.subr.mxu0 0.0
        %5074 = vmatpush2.xpose.msra.mxu0 0.0
        %5075 = vmatprep.subr.mxu0 0.0
        %5076 = vmatpush2.xpose.msra.mxu0 0.0
        %5077 = vmatprep.subr.mxu0 0.0
        %5078 = vmatpush2.xpose.msra.mxu0 0.0
        %5079 = vmatprep.subr.mxu0 0.0
        %5080 = vmatpush2.xpose.msra.mxu0 0.0
        %5081 = vmatprep.subr.mxu0 0.0
        %5082 = vmatpush2.xpose.msra.mxu0 0.0
        %5083 = vmatprep.subr.mxu0 0.0
        %5084 = vmatpush2.xpose.msra.mxu0 0.0
        %5085 = vmatprep.subr.mxu0 0.0
        %5086 = vmatpush2.xpose.msra.mxu0 0.0
        %5087 = vmatprep.subr.mxu0 0.0
        %5088 = vmatpush2.xpose.msra.mxu0 0.0
        %5089 = vmatprep.subr.mxu0 0.0
        %5090 = vmatpush2.xpose.msra.mxu0 0.0
        %5091 = vmatprep.subr.mxu0 0.0
        %5092 = vmatpush2.xpose.msra.mxu0 0.0
        %5093 = vmatprep.mubr.f32.mxu0 0.0
        %v5094 = vand.u32 %v4798, 4294901760
        %v5095 = vsub.f32 %v4798, %v5094
        %v5096 = vand.u32 %v5095, 4294901760
        %5097 = vmatmul.mubr.f32.gmra.mxu0 %v5096
        %v5098 = vpop.f32.mrf.mxu0
        %v5099 = vadd.f32 %v5025, %v5098
        %v5100 = vpop.f32.mrf.mxu0
        %5101 = vdwg.mxu0
        %5102 = vmatprep.subr.mxu0 0.0
        %5103 = vmatpush1.xpose.msra.mxu0 0.0
        %5104 = vmatprep.subr.mxu0 0.0
        %5105 = vmatpush1.xpose.msra.mxu0 0.0
        %5106 = vmatprep.subr.mxu0 0.0
        %5107 = vmatpush1.xpose.msra.mxu0 0.0
        %5108 = vmatprep.subr.mxu0 0.0
        %5109 = vmatpush1.xpose.msra.mxu0 0.0
        %5110 = vmatprep.subr.mxu0 0.0
        %5111 = vmatpush1.xpose.msra.mxu0 0.0
        %5112 = vmatprep.subr.mxu0 0.0
        %5113 = vmatpush1.xpose.msra.mxu0 0.0
        %5114 = vmatprep.subr.mxu0 0.0
        %5115 = vmatpush1.xpose.msra.mxu0 0.0
        %5116 = vmatprep.subr.mxu0 0.0
        %5117 = vmatpush1.xpose.msra.mxu0 0.0
        %5118 = vmatprep.subr.mxu0 0.0
        %5119 = vmatpush1.xpose.msra.mxu0 0.0
        %5120 = vmatprep.subr.mxu0 0.0
        %5121 = vmatpush1.xpose.msra.mxu0 0.0
        %5122 = vmatprep.subr.mxu0 0.0
        %5123 = vmatpush1.xpose.msra.mxu0 0.0
        %5124 = vmatprep.subr.mxu0 0.0
        %5125 = vmatpush1.xpose.msra.mxu0 0.0
        %5126 = vmatprep.subr.mxu0 0.0
        %5127 = vmatpush1.xpose.msra.mxu0 0.0
        %5128 = vmatprep.subr.mxu0 0.0
        %5129 = vmatpush1.xpose.msra.mxu0 0.0
        %5130 = vmatprep.subr.mxu0 0.0
        %5131 = vmatpush1.xpose.msra.mxu0 0.0
        %5132 = vmatprep.subr.mxu0 0.0
        %v5133 = vand.u32 %v4800, 4294901760
        %v5134 = vsub.f32 %v4800, %v5133
        %v5135 = vand.u32 %v5134, 4294901760
        %5136 = vmatpush1.xpose.msra.mxu0 %v5135
        %5137 = vmatprep.subr.mxu0 0.0
        %5138 = vmatpush2.xpose.msra.mxu0 0.0
        %5139 = vmatprep.subr.mxu0 0.0
        %5140 = vmatpush2.xpose.msra.mxu0 0.0
        %5141 = vmatprep.subr.mxu0 0.0
        %5142 = vmatpush2.xpose.msra.mxu0 0.0
        %5143 = vmatprep.subr.mxu0 0.0
        %5144 = vmatpush2.xpose.msra.mxu0 0.0
        %5145 = vmatprep.subr.mxu0 0.0
        %5146 = vmatpush2.xpose.msra.mxu0 0.0
        %5147 = vmatprep.subr.mxu0 0.0
        %5148 = vmatpush2.xpose.msra.mxu0 0.0
        %5149 = vmatprep.subr.mxu0 0.0
        %5150 = vmatpush2.xpose.msra.mxu0 0.0
        %5151 = vmatprep.subr.mxu0 0.0
        %5152 = vmatpush2.xpose.msra.mxu0 0.0
        %5153 = vmatprep.subr.mxu0 0.0
        %5154 = vmatpush2.xpose.msra.mxu0 0.0
        %5155 = vmatprep.subr.mxu0 0.0
        %5156 = vmatpush2.xpose.msra.mxu0 0.0
        %5157 = vmatprep.subr.mxu0 0.0
        %5158 = vmatpush2.xpose.msra.mxu0 0.0
        %5159 = vmatprep.subr.mxu0 0.0
        %5160 = vmatpush2.xpose.msra.mxu0 0.0
        %5161 = vmatprep.subr.mxu0 0.0
        %5162 = vmatpush2.xpose.msra.mxu0 0.0
        %5163 = vmatprep.subr.mxu0 0.0
        %5164 = vmatpush2.xpose.msra.mxu0 0.0
        %5165 = vmatprep.subr.mxu0 0.0
        %5166 = vmatpush2.xpose.msra.mxu0 0.0
        %5167 = vmatprep.subr.mxu0 0.0
        %5168 = vmatpush2.xpose.msra.mxu0 0.0
        %5169 = vmatprep.mubr.f32.mxu0 0.0
        %v5170 = vand.u32 %v4798, 4294901760
        %5171 = vmatmul.mubr.f32.gmra.mxu0 %v5170
        %v5172 = vpop.f32.mrf.mxu0
        %v5173 = vadd.f32 %v5099, %v5172
        %v5174 = vpop.f32.mrf.mxu0
        %5175 = vdwg.mxu0
        %5176 = vmatprep.subr.mxu0 0.0
        %5177 = vmatpush1.xpose.msra.mxu0 0.0
        %5178 = vmatprep.subr.mxu0 0.0
        %5179 = vmatpush1.xpose.msra.mxu0 0.0
        %5180 = vmatprep.subr.mxu0 0.0
        %5181 = vmatpush1.xpose.msra.mxu0 0.0
        %5182 = vmatprep.subr.mxu0 0.0
        %5183 = vmatpush1.xpose.msra.mxu0 0.0
        %5184 = vmatprep.subr.mxu0 0.0
        %5185 = vmatpush1.xpose.msra.mxu0 0.0
        %5186 = vmatprep.subr.mxu0 0.0
        %5187 = vmatpush1.xpose.msra.mxu0 0.0
        %5188 = vmatprep.subr.mxu0 0.0
        %5189 = vmatpush1.xpose.msra.mxu0 0.0
        %5190 = vmatprep.subr.mxu0 0.0
        %5191 = vmatpush1.xpose.msra.mxu0 0.0
        %5192 = vmatprep.subr.mxu0 0.0
        %5193 = vmatpush1.xpose.msra.mxu0 0.0
        %5194 = vmatprep.subr.mxu0 0.0
        %5195 = vmatpush1.xpose.msra.mxu0 0.0
        %5196 = vmatprep.subr.mxu0 0.0
        %5197 = vmatpush1.xpose.msra.mxu0 0.0
        %5198 = vmatprep.subr.mxu0 0.0
        %5199 = vmatpush1.xpose.msra.mxu0 0.0
        %5200 = vmatprep.subr.mxu0 0.0
        %5201 = vmatpush1.xpose.msra.mxu0 0.0
        %5202 = vmatprep.subr.mxu0 0.0
        %5203 = vmatpush1.xpose.msra.mxu0 0.0
        %5204 = vmatprep.subr.mxu0 0.0
        %5205 = vmatpush1.xpose.msra.mxu0 0.0
        %5206 = vmatprep.subr.mxu0 0.0
        %v5207 = vand.u32 %v4800, 4294901760
        %5208 = vmatpush1.xpose.msra.mxu0 %v5207
        %5209 = vmatprep.subr.mxu0 0.0
        %5210 = vmatpush2.xpose.msra.mxu0 0.0
        %5211 = vmatprep.subr.mxu0 0.0
        %5212 = vmatpush2.xpose.msra.mxu0 0.0
        %5213 = vmatprep.subr.mxu0 0.0
        %5214 = vmatpush2.xpose.msra.mxu0 0.0
        %5215 = vmatprep.subr.mxu0 0.0
        %5216 = vmatpush2.xpose.msra.mxu0 0.0
        %5217 = vmatprep.subr.mxu0 0.0
        %5218 = vmatpush2.xpose.msra.mxu0 0.0
        %5219 = vmatprep.subr.mxu0 0.0
        %5220 = vmatpush2.xpose.msra.mxu0 0.0
        %5221 = vmatprep.subr.mxu0 0.0
        %5222 = vmatpush2.xpose.msra.mxu0 0.0
        %5223 = vmatprep.subr.mxu0 0.0
        %5224 = vmatpush2.xpose.msra.mxu0 0.0
        %5225 = vmatprep.subr.mxu0 0.0
        %5226 = vmatpush2.xpose.msra.mxu0 0.0
        %5227 = vmatprep.subr.mxu0 0.0
        %5228 = vmatpush2.xpose.msra.mxu0 0.0
        %5229 = vmatprep.subr.mxu0 0.0
        %5230 = vmatpush2.xpose.msra.mxu0 0.0
        %5231 = vmatprep.subr.mxu0 0.0
        %5232 = vmatpush2.xpose.msra.mxu0 0.0
        %5233 = vmatprep.subr.mxu0 0.0
        %5234 = vmatpush2.xpose.msra.mxu0 0.0
        %5235 = vmatprep.subr.mxu0 0.0
        %5236 = vmatpush2.xpose.msra.mxu0 0.0
        %5237 = vmatprep.subr.mxu0 0.0
        %5238 = vmatpush2.xpose.msra.mxu0 0.0
        %5239 = vmatprep.subr.mxu0 0.0
        %5240 = vmatpush2.xpose.msra.mxu0 0.0
        %5241 = vmatprep.mubr.f32.mxu0 0.0
        %v5242 = vand.u32 %v4798, 4294901760
        %5243 = vmatmul.mubr.f32.gmra.mxu0 %v5242
        %v5244 = vpop.f32.mrf.mxu0
        %v5245 = vadd.f32 %v5173, %v5244
        %v5246 = vpop.f32.mrf.mxu0
        %5247 = vdwg.mxu0
        %v5248 = vsel %vm2033, %v5245, -inf
        %5249 = vmax.xlane.f32.xlu0 %v5248
        %v5250 = vpop.xlane.xlu0 %5249
        %v5251 = vsub.f32 %v5245, %v5250
        %v5252 = vmul.f32 %v5251, 1.442695
        %v5253 = vpow.pop %v5252
        %v5254 = vsel %vm2033, %v5253, 0.0
        %5255 = vadd.xlane.f32.xlu0 %v5254
        %v5256 = vpop.xlane.xlu0 %5255
        %v5257 = vrcp.pop %v5256
        %5258 = vrot.lane.b32.xlu0 %v2029, 104
        %v5259 = vpop.permute.xlu0 %5258
        %v5262 = vsel %vm2033, %v5253, 0
        %5264 = vmatprep.subr.mxu0 0.0
        %5265 = vmatpush1.msra.mxu0 0.0
        %5266 = vmatprep.subr.mxu0 0.0
        %5267 = vmatpush1.msra.mxu0 0.0
        %5268 = vmatprep.subr.mxu0 0.0
        %5269 = vmatpush1.msra.mxu0 0.0
        %5270 = vmatprep.subr.mxu0 0.0
        %5271 = vmatpush1.msra.mxu0 0.0
        %5272 = vmatprep.subr.mxu0 0.0
        %5273 = vmatpush1.msra.mxu0 0.0
        %5274 = vmatprep.subr.mxu0 0.0
        %5275 = vmatpush1.msra.mxu0 0.0
        %5276 = vmatprep.subr.mxu0 0.0
        %5277 = vmatpush1.msra.mxu0 0.0
        %5278 = vmatprep.subr.mxu0 0.0
        %5279 = vmatpush1.msra.mxu0 0.0
        %5280 = vmatprep.subr.mxu0 0.0
        %5281 = vmatpush1.msra.mxu0 0.0
        %5282 = vmatprep.subr.mxu0 0.0
        %5283 = vmatpush1.msra.mxu0 0.0
        %5284 = vmatprep.subr.mxu0 0.0
        %5285 = vmatpush1.msra.mxu0 0.0
        %5286 = vmatprep.subr.mxu0 0.0
        %5287 = vmatpush1.msra.mxu0 0.0
        %5288 = vmatprep.subr.mxu0 0.0
        %5289 = vmatpush1.msra.mxu0 0.0
        %5290 = vmatprep.subr.mxu0 0.0
        %5291 = vmatpush1.msra.mxu0 0.0
        %5292 = vmatprep.subr.mxu0 0.0
        %5293 = vmatpush1.msra.mxu0 0.0
        %5294 = vmatprep.subr.mxu0 0.0
        %v5295 = vand.u32 %v5259, 4294901760
        %5296 = vmatpush1.msra.mxu0 %v5295
        %5297 = vmatprep.subr.mxu0 0.0
        %5298 = vmatpush2.msra.mxu0 0.0
        %5299 = vmatprep.subr.mxu0 0.0
        %5300 = vmatpush2.msra.mxu0 0.0
        %5301 = vmatprep.subr.mxu0 0.0
        %5302 = vmatpush2.msra.mxu0 0.0
        %5303 = vmatprep.subr.mxu0 0.0
        %5304 = vmatpush2.msra.mxu0 0.0
        %5305 = vmatprep.subr.mxu0 0.0
        %5306 = vmatpush2.msra.mxu0 0.0
        %5307 = vmatprep.subr.mxu0 0.0
        %5308 = vmatpush2.msra.mxu0 0.0
        %5309 = vmatprep.subr.mxu0 0.0
        %5310 = vmatpush2.msra.mxu0 0.0
        %5311 = vmatprep.subr.mxu0 0.0
        %5312 = vmatpush2.msra.mxu0 0.0
        %5313 = vmatprep.subr.mxu0 0.0
        %5314 = vmatpush2.msra.mxu0 0.0
        %5315 = vmatprep.subr.mxu0 0.0
        %5316 = vmatpush2.msra.mxu0 0.0
        %5317 = vmatprep.subr.mxu0 0.0
        %5318 = vmatpush2.msra.mxu0 0.0
        %5319 = vmatprep.subr.mxu0 0.0
        %5320 = vmatpush2.msra.mxu0 0.0
        %5321 = vmatprep.subr.mxu0 0.0
        %5322 = vmatpush2.msra.mxu0 0.0
        %5323 = vmatprep.subr.mxu0 0.0
        %5324 = vmatpush2.msra.mxu0 0.0
        %5325 = vmatprep.subr.mxu0 0.0
        %5326 = vmatpush2.msra.mxu0 0.0
        %5327 = vmatprep.subr.mxu0 0.0
        %5328 = vmatpush2.msra.mxu0 0.0
        %5329 = vmatprep.mubr.f32.mxu0 0.0
        %v5330 = vand.u32 %v5262, 4294901760
        %v5331 = vsub.f32 %v5262, %v5330
        %v5332 = vand.u32 %v5331, 4294901760
        %v5333 = vsub.f32 %v5331, %v5332
        %v5334 = vand.u32 %v5333, 4294901760
        %5335 = vmatmul.mubr.f32.gmra.mxu0 %v5334
        %v5336 = vpop.f32.mrf.mxu0
        %v5337 = vadd.f32 0.0, %v5336
        %v5338 = vpop.f32.mrf.mxu0
        %5339 = vdwg.mxu0
        %5340 = vmatprep.subr.mxu0 0.0
        %5341 = vmatpush1.msra.mxu0 0.0
        %5342 = vmatprep.subr.mxu0 0.0
        %5343 = vmatpush1.msra.mxu0 0.0
        %5344 = vmatprep.subr.mxu0 0.0
        %5345 = vmatpush1.msra.mxu0 0.0
        %5346 = vmatprep.subr.mxu0 0.0
        %5347 = vmatpush1.msra.mxu0 0.0
        %5348 = vmatprep.subr.mxu0 0.0
        %5349 = vmatpush1.msra.mxu0 0.0
        %5350 = vmatprep.subr.mxu0 0.0
        %5351 = vmatpush1.msra.mxu0 0.0
        %5352 = vmatprep.subr.mxu0 0.0
        %5353 = vmatpush1.msra.mxu0 0.0
        %5354 = vmatprep.subr.mxu0 0.0
        %5355 = vmatpush1.msra.mxu0 0.0
        %5356 = vmatprep.subr.mxu0 0.0
        %5357 = vmatpush1.msra.mxu0 0.0
        %5358 = vmatprep.subr.mxu0 0.0
        %5359 = vmatpush1.msra.mxu0 0.0
        %5360 = vmatprep.subr.mxu0 0.0
        %5361 = vmatpush1.msra.mxu0 0.0
        %5362 = vmatprep.subr.mxu0 0.0
        %5363 = vmatpush1.msra.mxu0 0.0
        %5364 = vmatprep.subr.mxu0 0.0
        %5365 = vmatpush1.msra.mxu0 0.0
        %5366 = vmatprep.subr.mxu0 0.0
        %5367 = vmatpush1.msra.mxu0 0.0
        %5368 = vmatprep.subr.mxu0 0.0
        %5369 = vmatpush1.msra.mxu0 0.0
        %5370 = vmatprep.subr.mxu0 0.0
        %v5371 = vand.u32 %v5259, 4294901760
        %v5372 = vsub.f32 %v5259, %v5371
        %v5373 = vand.u32 %v5372, 4294901760
        %v5374 = vsub.f32 %v5372, %v5373
        %v5375 = vand.u32 %v5374, 4294901760
        %5376 = vmatpush1.msra.mxu0 %v5375
        %5377 = vmatprep.subr.mxu0 0.0
        %5378 = vmatpush2.msra.mxu0 0.0
        %5379 = vmatprep.subr.mxu0 0.0
        %5380 = vmatpush2.msra.mxu0 0.0
        %5381 = vmatprep.subr.mxu0 0.0
        %5382 = vmatpush2.msra.mxu0 0.0
        %5383 = vmatprep.subr.mxu0 0.0
        %5384 = vmatpush2.msra.mxu0 0.0
        %5385 = vmatprep.subr.mxu0 0.0
        %5386 = vmatpush2.msra.mxu0 0.0
        %5387 = vmatprep.subr.mxu0 0.0
        %5388 = vmatpush2.msra.mxu0 0.0
        %5389 = vmatprep.subr.mxu0 0.0
        %5390 = vmatpush2.msra.mxu0 0.0
        %5391 = vmatprep.subr.mxu0 0.0
        %5392 = vmatpush2.msra.mxu0 0.0
        %5393 = vmatprep.subr.mxu0 0.0
        %5394 = vmatpush2.msra.mxu0 0.0
        %5395 = vmatprep.subr.mxu0 0.0
        %5396 = vmatpush2.msra.mxu0 0.0
        %5397 = vmatprep.subr.mxu0 0.0
        %5398 = vmatpush2.msra.mxu0 0.0
        %5399 = vmatprep.subr.mxu0 0.0
        %5400 = vmatpush2.msra.mxu0 0.0
        %5401 = vmatprep.subr.mxu0 0.0
        %5402 = vmatpush2.msra.mxu0 0.0
        %5403 = vmatprep.subr.mxu0 0.0
        %5404 = vmatpush2.msra.mxu0 0.0
        %5405 = vmatprep.subr.mxu0 0.0
        %5406 = vmatpush2.msra.mxu0 0.0
        %5407 = vmatprep.subr.mxu0 0.0
        %5408 = vmatpush2.msra.mxu0 0.0
        %5409 = vmatprep.mubr.f32.mxu0 0.0
        %v5410 = vand.u32 %v5262, 4294901760
        %5411 = vmatmul.mubr.f32.gmra.mxu0 %v5410
        %v5412 = vpop.f32.mrf.mxu0
        %v5413 = vadd.f32 %v5337, %v5412
        %v5414 = vpop.f32.mrf.mxu0
        %5415 = vdwg.mxu0
        %5416 = vmatprep.subr.mxu0 0.0
        %5417 = vmatpush1.msra.mxu0 0.0
        %5418 = vmatprep.subr.mxu0 0.0
        %5419 = vmatpush1.msra.mxu0 0.0
        %5420 = vmatprep.subr.mxu0 0.0
        %5421 = vmatpush1.msra.mxu0 0.0
        %5422 = vmatprep.subr.mxu0 0.0
        %5423 = vmatpush1.msra.mxu0 0.0
        %5424 = vmatprep.subr.mxu0 0.0
        %5425 = vmatpush1.msra.mxu0 0.0
        %5426 = vmatprep.subr.mxu0 0.0
        %5427 = vmatpush1.msra.mxu0 0.0
        %5428 = vmatprep.subr.mxu0 0.0
        %5429 = vmatpush1.msra.mxu0 0.0
        %5430 = vmatprep.subr.mxu0 0.0
        %5431 = vmatpush1.msra.mxu0 0.0
        %5432 = vmatprep.subr.mxu0 0.0
        %5433 = vmatpush1.msra.mxu0 0.0
        %5434 = vmatprep.subr.mxu0 0.0
        %5435 = vmatpush1.msra.mxu0 0.0
        %5436 = vmatprep.subr.mxu0 0.0
        %5437 = vmatpush1.msra.mxu0 0.0
        %5438 = vmatprep.subr.mxu0 0.0
        %5439 = vmatpush1.msra.mxu0 0.0
        %5440 = vmatprep.subr.mxu0 0.0
        %5441 = vmatpush1.msra.mxu0 0.0
        %5442 = vmatprep.subr.mxu0 0.0
        %5443 = vmatpush1.msra.mxu0 0.0
        %5444 = vmatprep.subr.mxu0 0.0
        %5445 = vmatpush1.msra.mxu0 0.0
        %5446 = vmatprep.subr.mxu0 0.0
        %v5447 = vand.u32 %v5259, 4294901760
        %v5448 = vsub.f32 %v5259, %v5447
        %5449 = vmatpush1.msra.mxu0 %v5448
        %5450 = vmatprep.subr.mxu0 0.0
        %5451 = vmatpush2.msra.mxu0 0.0
        %5452 = vmatprep.subr.mxu0 0.0
        %5453 = vmatpush2.msra.mxu0 0.0
        %5454 = vmatprep.subr.mxu0 0.0
        %5455 = vmatpush2.msra.mxu0 0.0
        %5456 = vmatprep.subr.mxu0 0.0
        %5457 = vmatpush2.msra.mxu0 0.0
        %5458 = vmatprep.subr.mxu0 0.0
        %5459 = vmatpush2.msra.mxu0 0.0
        %5460 = vmatprep.subr.mxu0 0.0
        %5461 = vmatpush2.msra.mxu0 0.0
        %5462 = vmatprep.subr.mxu0 0.0
        %5463 = vmatpush2.msra.mxu0 0.0
        %5464 = vmatprep.subr.mxu0 0.0
        %5465 = vmatpush2.msra.mxu0 0.0
        %5466 = vmatprep.subr.mxu0 0.0
        %5467 = vmatpush2.msra.mxu0 0.0
        %5468 = vmatprep.subr.mxu0 0.0
        %5469 = vmatpush2.msra.mxu0 0.0
        %5470 = vmatprep.subr.mxu0 0.0
        %5471 = vmatpush2.msra.mxu0 0.0
        %5472 = vmatprep.subr.mxu0 0.0
        %5473 = vmatpush2.msra.mxu0 0.0
        %5474 = vmatprep.subr.mxu0 0.0
        %5475 = vmatpush2.msra.mxu0 0.0
        %5476 = vmatprep.subr.mxu0 0.0
        %5477 = vmatpush2.msra.mxu0 0.0
        %5478 = vmatprep.subr.mxu0 0.0
        %5479 = vmatpush2.msra.mxu0 0.0
        %5480 = vmatprep.subr.mxu0 0.0
        %5481 = vmatpush2.msra.mxu0 0.0
        %5482 = vmatprep.mubr.f32.mxu0 0.0
        %v5483 = vand.u32 %v5262, 4294901760
        %v5484 = vsub.f32 %v5262, %v5483
        %5485 = vmatmul.mubr.f32.gmra.mxu0 %v5484
        %v5486 = vpop.f32.mrf.mxu0
        %v5487 = vadd.f32 %v5413, %v5486
        %v5488 = vpop.f32.mrf.mxu0
        %5489 = vdwg.mxu0
        %5490 = vmatprep.subr.mxu0 0.0
        %5491 = vmatpush1.msra.mxu0 0.0
        %5492 = vmatprep.subr.mxu0 0.0
        %5493 = vmatpush1.msra.mxu0 0.0
        %5494 = vmatprep.subr.mxu0 0.0
        %5495 = vmatpush1.msra.mxu0 0.0
        %5496 = vmatprep.subr.mxu0 0.0
        %5497 = vmatpush1.msra.mxu0 0.0
        %5498 = vmatprep.subr.mxu0 0.0
        %5499 = vmatpush1.msra.mxu0 0.0
        %5500 = vmatprep.subr.mxu0 0.0
        %5501 = vmatpush1.msra.mxu0 0.0
        %5502 = vmatprep.subr.mxu0 0.0
        %5503 = vmatpush1.msra.mxu0 0.0
        %5504 = vmatprep.subr.mxu0 0.0
        %5505 = vmatpush1.msra.mxu0 0.0
        %5506 = vmatprep.subr.mxu0 0.0
        %5507 = vmatpush1.msra.mxu0 0.0
        %5508 = vmatprep.subr.mxu0 0.0
        %5509 = vmatpush1.msra.mxu0 0.0
        %5510 = vmatprep.subr.mxu0 0.0
        %5511 = vmatpush1.msra.mxu0 0.0
        %5512 = vmatprep.subr.mxu0 0.0
        %5513 = vmatpush1.msra.mxu0 0.0
        %5514 = vmatprep.subr.mxu0 0.0
        %5515 = vmatpush1.msra.mxu0 0.0
        %5516 = vmatprep.subr.mxu0 0.0
        %5517 = vmatpush1.msra.mxu0 0.0
        %5518 = vmatprep.subr.mxu0 0.0
        %5519 = vmatpush1.msra.mxu0 0.0
        %5520 = vmatprep.subr.mxu0 0.0
        %v5521 = vand.u32 %v5259, 4294901760
        %5522 = vmatpush1.msra.mxu0 %v5521
        %5523 = vmatprep.subr.mxu0 0.0
        %5524 = vmatpush2.msra.mxu0 0.0
        %5525 = vmatprep.subr.mxu0 0.0
        %5526 = vmatpush2.msra.mxu0 0.0
        %5527 = vmatprep.subr.mxu0 0.0
        %5528 = vmatpush2.msra.mxu0 0.0
        %5529 = vmatprep.subr.mxu0 0.0
        %5530 = vmatpush2.msra.mxu0 0.0
        %5531 = vmatprep.subr.mxu0 0.0
        %5532 = vmatpush2.msra.mxu0 0.0
        %5533 = vmatprep.subr.mxu0 0.0
        %5534 = vmatpush2.msra.mxu0 0.0
        %5535 = vmatprep.subr.mxu0 0.0
        %5536 = vmatpush2.msra.mxu0 0.0
        %5537 = vmatprep.subr.mxu0 0.0
        %5538 = vmatpush2.msra.mxu0 0.0
        %5539 = vmatprep.subr.mxu0 0.0
        %5540 = vmatpush2.msra.mxu0 0.0
        %5541 = vmatprep.subr.mxu0 0.0
        %5542 = vmatpush2.msra.mxu0 0.0
        %5543 = vmatprep.subr.mxu0 0.0
        %5544 = vmatpush2.msra.mxu0 0.0
        %5545 = vmatprep.subr.mxu0 0.0
        %5546 = vmatpush2.msra.mxu0 0.0
        %5547 = vmatprep.subr.mxu0 0.0
        %5548 = vmatpush2.msra.mxu0 0.0
        %5549 = vmatprep.subr.mxu0 0.0
        %5550 = vmatpush2.msra.mxu0 0.0
        %5551 = vmatprep.subr.mxu0 0.0
        %5552 = vmatpush2.msra.mxu0 0.0
        %5553 = vmatprep.subr.mxu0 0.0
        %5554 = vmatpush2.msra.mxu0 0.0
        %5555 = vmatprep.mubr.f32.mxu0 0.0
        %v5556 = vand.u32 %v5262, 4294901760
        %v5557 = vsub.f32 %v5262, %v5556
        %v5558 = vand.u32 %v5557, 4294901760
        %5559 = vmatmul.mubr.f32.gmra.mxu0 %v5558
        %v5560 = vpop.f32.mrf.mxu0
        %v5561 = vadd.f32 %v5487, %v5560
        %v5562 = vpop.f32.mrf.mxu0
        %5563 = vdwg.mxu0
        %5564 = vmatprep.subr.mxu0 0.0
        %5565 = vmatpush1.msra.mxu0 0.0
        %5566 = vmatprep.subr.mxu0 0.0
        %5567 = vmatpush1.msra.mxu0 0.0
        %5568 = vmatprep.subr.mxu0 0.0
        %5569 = vmatpush1.msra.mxu0 0.0
        %5570 = vmatprep.subr.mxu0 0.0
        %5571 = vmatpush1.msra.mxu0 0.0
        %5572 = vmatprep.subr.mxu0 0.0
        %5573 = vmatpush1.msra.mxu0 0.0
        %5574 = vmatprep.subr.mxu0 0.0
        %5575 = vmatpush1.msra.mxu0 0.0
        %5576 = vmatprep.subr.mxu0 0.0
        %5577 = vmatpush1.msra.mxu0 0.0
        %5578 = vmatprep.subr.mxu0 0.0
        %5579 = vmatpush1.msra.mxu0 0.0
        %5580 = vmatprep.subr.mxu0 0.0
        %5581 = vmatpush1.msra.mxu0 0.0
        %5582 = vmatprep.subr.mxu0 0.0
        %5583 = vmatpush1.msra.mxu0 0.0
        %5584 = vmatprep.subr.mxu0 0.0
        %5585 = vmatpush1.msra.mxu0 0.0
        %5586 = vmatprep.subr.mxu0 0.0
        %5587 = vmatpush1.msra.mxu0 0.0
        %5588 = vmatprep.subr.mxu0 0.0
        %5589 = vmatpush1.msra.mxu0 0.0
        %5590 = vmatprep.subr.mxu0 0.0
        %5591 = vmatpush1.msra.mxu0 0.0
        %5592 = vmatprep.subr.mxu0 0.0
        %5593 = vmatpush1.msra.mxu0 0.0
        %5594 = vmatprep.subr.mxu0 0.0
        %v5595 = vand.u32 %v5259, 4294901760
        %v5596 = vsub.f32 %v5259, %v5595
        %v5597 = vand.u32 %v5596, 4294901760
        %5598 = vmatpush1.msra.mxu0 %v5597
        %5599 = vmatprep.subr.mxu0 0.0
        %5600 = vmatpush2.msra.mxu0 0.0
        %5601 = vmatprep.subr.mxu0 0.0
        %5602 = vmatpush2.msra.mxu0 0.0
        %5603 = vmatprep.subr.mxu0 0.0
        %5604 = vmatpush2.msra.mxu0 0.0
        %5605 = vmatprep.subr.mxu0 0.0
        %5606 = vmatpush2.msra.mxu0 0.0
        %5607 = vmatprep.subr.mxu0 0.0
        %5608 = vmatpush2.msra.mxu0 0.0
        %5609 = vmatprep.subr.mxu0 0.0
        %5610 = vmatpush2.msra.mxu0 0.0
        %5611 = vmatprep.subr.mxu0 0.0
        %5612 = vmatpush2.msra.mxu0 0.0
        %5613 = vmatprep.subr.mxu0 0.0
        %5614 = vmatpush2.msra.mxu0 0.0
        %5615 = vmatprep.subr.mxu0 0.0
        %5616 = vmatpush2.msra.mxu0 0.0
        %5617 = vmatprep.subr.mxu0 0.0
        %5618 = vmatpush2.msra.mxu0 0.0
        %5619 = vmatprep.subr.mxu0 0.0
        %5620 = vmatpush2.msra.mxu0 0.0
        %5621 = vmatprep.subr.mxu0 0.0
        %5622 = vmatpush2.msra.mxu0 0.0
        %5623 = vmatprep.subr.mxu0 0.0
        %5624 = vmatpush2.msra.mxu0 0.0
        %5625 = vmatprep.subr.mxu0 0.0
        %5626 = vmatpush2.msra.mxu0 0.0
        %5627 = vmatprep.subr.mxu0 0.0
        %5628 = vmatpush2.msra.mxu0 0.0
        %5629 = vmatprep.subr.mxu0 0.0
        %5630 = vmatpush2.msra.mxu0 0.0
        %5631 = vmatprep.mubr.f32.mxu0 0.0
        %v5632 = vand.u32 %v5262, 4294901760
        %5633 = vmatmul.mubr.f32.gmra.mxu0 %v5632
        %v5634 = vpop.f32.mrf.mxu0
        %v5635 = vadd.f32 %v5561, %v5634
        %v5636 = vpop.f32.mrf.mxu0
        %5637 = vdwg.mxu0
        %5638 = vmatprep.subr.mxu0 0.0
        %5639 = vmatpush1.msra.mxu0 0.0
        %5640 = vmatprep.subr.mxu0 0.0
        %5641 = vmatpush1.msra.mxu0 0.0
        %5642 = vmatprep.subr.mxu0 0.0
        %5643 = vmatpush1.msra.mxu0 0.0
        %5644 = vmatprep.subr.mxu0 0.0
        %5645 = vmatpush1.msra.mxu0 0.0
        %5646 = vmatprep.subr.mxu0 0.0
        %5647 = vmatpush1.msra.mxu0 0.0
        %5648 = vmatprep.subr.mxu0 0.0
        %5649 = vmatpush1.msra.mxu0 0.0
        %5650 = vmatprep.subr.mxu0 0.0
        %5651 = vmatpush1.msra.mxu0 0.0
        %5652 = vmatprep.subr.mxu0 0.0
        %5653 = vmatpush1.msra.mxu0 0.0
        %5654 = vmatprep.subr.mxu0 0.0
        %5655 = vmatpush1.msra.mxu0 0.0
        %5656 = vmatprep.subr.mxu0 0.0
        %5657 = vmatpush1.msra.mxu0 0.0
        %5658 = vmatprep.subr.mxu0 0.0
        %5659 = vmatpush1.msra.mxu0 0.0
        %5660 = vmatprep.subr.mxu0 0.0
        %5661 = vmatpush1.msra.mxu0 0.0
        %5662 = vmatprep.subr.mxu0 0.0
        %5663 = vmatpush1.msra.mxu0 0.0
        %5664 = vmatprep.subr.mxu0 0.0
        %5665 = vmatpush1.msra.mxu0 0.0
        %5666 = vmatprep.subr.mxu0 0.0
        %5667 = vmatpush1.msra.mxu0 0.0
        %5668 = vmatprep.subr.mxu0 0.0
        %v5669 = vand.u32 %v5259, 4294901760
        %5670 = vmatpush1.msra.mxu0 %v5669
        %5671 = vmatprep.subr.mxu0 0.0
        %5672 = vmatpush2.msra.mxu0 0.0
        %5673 = vmatprep.subr.mxu0 0.0
        %5674 = vmatpush2.msra.mxu0 0.0
        %5675 = vmatprep.subr.mxu0 0.0
        %5676 = vmatpush2.msra.mxu0 0.0
        %5677 = vmatprep.subr.mxu0 0.0
        %5678 = vmatpush2.msra.mxu0 0.0
        %5679 = vmatprep.subr.mxu0 0.0
        %5680 = vmatpush2.msra.mxu0 0.0
        %5681 = vmatprep.subr.mxu0 0.0
        %5682 = vmatpush2.msra.mxu0 0.0
        %5683 = vmatprep.subr.mxu0 0.0
        %5684 = vmatpush2.msra.mxu0 0.0
        %5685 = vmatprep.subr.mxu0 0.0
        %5686 = vmatpush2.msra.mxu0 0.0
        %5687 = vmatprep.subr.mxu0 0.0
        %5688 = vmatpush2.msra.mxu0 0.0
        %5689 = vmatprep.subr.mxu0 0.0
        %5690 = vmatpush2.msra.mxu0 0.0
        %5691 = vmatprep.subr.mxu0 0.0
        %5692 = vmatpush2.msra.mxu0 0.0
        %5693 = vmatprep.subr.mxu0 0.0
        %5694 = vmatpush2.msra.mxu0 0.0
        %5695 = vmatprep.subr.mxu0 0.0
        %5696 = vmatpush2.msra.mxu0 0.0
        %5697 = vmatprep.subr.mxu0 0.0
        %5698 = vmatpush2.msra.mxu0 0.0
        %5699 = vmatprep.subr.mxu0 0.0
        %5700 = vmatpush2.msra.mxu0 0.0
        %5701 = vmatprep.subr.mxu0 0.0
        %5702 = vmatpush2.msra.mxu0 0.0
        %5703 = vmatprep.mubr.f32.mxu0 0.0
        %v5704 = vand.u32 %v5262, 4294901760
        %5705 = vmatmul.mubr.f32.gmra.mxu0 %v5704
        %v5706 = vpop.f32.mrf.mxu0
        %v5707 = vadd.f32 %v5635, %v5706
        %v5708 = vpop.f32.mrf.mxu0
        %5709 = vdwg.mxu0
        %v5710 = vmul.f32 %v5707, %v5257
        %5712 = vrot.lane.b32.xlu0 %v5710, 24
        %v5713 = vpop.permute.xlu0 %5712
        %vm5715 = vcmask 261312
        %5716 = vst.msk [vmem:[#allocation2] sm:$0xff] %vm5715, %v5713
        %v5717 = vld [vmem:[#allocation2] sm:$0xff]
        %v5718 = vld [vmem:[#allocation14] sm:$0xff]
        %v5719 = vld [vmem:[#allocation14 + $0x8] sm:$0xff]
        %v5720 = vld [vmem:[#allocation14 + $0x10] sm:$0xff]
        %v5721 = vld [vmem:[#allocation14 + $0x18] sm:$0xff]
        %v5722 = vld [vmem:[%s10] sm:$0x1]
        %v5724 = vlaneseq
        %v5725 = vshrl.u32 %v5724, 7
        %v5726 = vsub.s32 0, %v5725
        %v5727 = vrot.slane %v5722, %v5726
        %v5730 = vsel %vm543, %v5717, 0
        %5732 = vmatprep.subr.mxu0 0.0
        %5733 = vmatpush1.msra.mxu0 0.0
        %5734 = vmatprep.subr.mxu0 0.0
        %5735 = vmatpush1.msra.mxu0 0.0
        %5736 = vmatprep.subr.mxu0 0.0
        %5737 = vmatpush1.msra.mxu0 0.0
        %5738 = vmatprep.subr.mxu0 0.0
        %5739 = vmatpush1.msra.mxu0 0.0
        %5740 = vmatprep.subr.mxu0 0.0
        %5741 = vmatpush1.msra.mxu0 0.0
        %5742 = vmatprep.subr.mxu0 0.0
        %5743 = vmatpush1.msra.mxu0 0.0
        %5744 = vmatprep.subr.mxu0 0.0
        %5745 = vmatpush1.msra.mxu0 0.0
        %5746 = vmatprep.subr.mxu0 0.0
        %5747 = vmatpush1.msra.mxu0 0.0
        %5748 = vmatprep.subr.mxu0 0.0
        %5749 = vmatpush1.msra.mxu0 0.0
        %5750 = vmatprep.subr.mxu0 0.0
        %5751 = vmatpush1.msra.mxu0 0.0
        %5752 = vmatprep.subr.mxu0 0.0
        %5753 = vmatpush1.msra.mxu0 0.0
        %5754 = vmatprep.subr.mxu0 0.0
        %5755 = vmatpush1.msra.mxu0 0.0
        %5756 = vmatprep.subr.mxu0 0.0
        %v5757 = vand.u32 %v5721, 4294901760
        %5758 = vmatpush1.msra.mxu0 %v5757
        %5759 = vmatprep.subr.mxu0 0.0
        %v5760 = vand.u32 %v5720, 4294901760
        %5761 = vmatpush1.msra.mxu0 %v5760
        %5762 = vmatprep.subr.mxu0 0.0
        %v5763 = vand.u32 %v5719, 4294901760
        %5764 = vmatpush1.msra.mxu0 %v5763
        %5765 = vmatprep.subr.mxu0 0.0
        %v5766 = vand.u32 %v5718, 4294901760
        %5767 = vmatpush1.msra.mxu0 %v5766
        %5768 = vmatprep.subr.mxu0 0.0
        %5769 = vmatpush2.msra.mxu0 0.0
        %5770 = vmatprep.subr.mxu0 0.0
        %5771 = vmatpush2.msra.mxu0 0.0
        %5772 = vmatprep.subr.mxu0 0.0
        %5773 = vmatpush2.msra.mxu0 0.0
        %5774 = vmatprep.subr.mxu0 0.0
        %5775 = vmatpush2.msra.mxu0 0.0
        %5776 = vmatprep.subr.mxu0 0.0
        %5777 = vmatpush2.msra.mxu0 0.0
        %5778 = vmatprep.subr.mxu0 0.0
        %5779 = vmatpush2.msra.mxu0 0.0
        %5780 = vmatprep.subr.mxu0 0.0
        %5781 = vmatpush2.msra.mxu0 0.0
        %5782 = vmatprep.subr.mxu0 0.0
        %5783 = vmatpush2.msra.mxu0 0.0
        %5784 = vmatprep.subr.mxu0 0.0
        %5785 = vmatpush2.msra.mxu0 0.0
        %5786 = vmatprep.subr.mxu0 0.0
        %5787 = vmatpush2.msra.mxu0 0.0
        %5788 = vmatprep.subr.mxu0 0.0
        %5789 = vmatpush2.msra.mxu0 0.0
        %5790 = vmatprep.subr.mxu0 0.0
        %5791 = vmatpush2.msra.mxu0 0.0
        %5792 = vmatprep.subr.mxu0 0.0
        %5793 = vmatpush2.msra.mxu0 0.0
        %5794 = vmatprep.subr.mxu0 0.0
        %5795 = vmatpush2.msra.mxu0 0.0
        %5796 = vmatprep.subr.mxu0 0.0
        %5797 = vmatpush2.msra.mxu0 0.0
        %5798 = vmatprep.subr.mxu0 0.0
        %5799 = vmatpush2.msra.mxu0 0.0
        %5800 = vmatprep.mubr.f32.mxu0 0.0
        %v5801 = vand.u32 %v5730, 4294901760
        %v5802 = vsub.f32 %v5730, %v5801
        %v5803 = vand.u32 %v5802, 4294901760
        %v5804 = vsub.f32 %v5802, %v5803
        %v5805 = vand.u32 %v5804, 4294901760
        %5806 = vmatmul.mubr.f32.gmra.mxu0 %v5805
        %v5807 = vpop.f32.mrf.mxu0
        %v5808 = vadd.f32 %v5727, %v5807
        %v5809 = vpop.f32.mrf.mxu0
        %5810 = vdwg.mxu0
        %5811 = vmatprep.subr.mxu0 0.0
        %5812 = vmatpush1.msra.mxu0 0.0
        %5813 = vmatprep.subr.mxu0 0.0
        %5814 = vmatpush1.msra.mxu0 0.0
        %5815 = vmatprep.subr.mxu0 0.0
        %5816 = vmatpush1.msra.mxu0 0.0
        %5817 = vmatprep.subr.mxu0 0.0
        %5818 = vmatpush1.msra.mxu0 0.0
        %5819 = vmatprep.subr.mxu0 0.0
        %5820 = vmatpush1.msra.mxu0 0.0
        %5821 = vmatprep.subr.mxu0 0.0
        %5822 = vmatpush1.msra.mxu0 0.0
        %5823 = vmatprep.subr.mxu0 0.0
        %5824 = vmatpush1.msra.mxu0 0.0
        %5825 = vmatprep.subr.mxu0 0.0
        %5826 = vmatpush1.msra.mxu0 0.0
        %5827 = vmatprep.subr.mxu0 0.0
        %5828 = vmatpush1.msra.mxu0 0.0
        %5829 = vmatprep.subr.mxu0 0.0
        %5830 = vmatpush1.msra.mxu0 0.0
        %5831 = vmatprep.subr.mxu0 0.0
        %5832 = vmatpush1.msra.mxu0 0.0
        %5833 = vmatprep.subr.mxu0 0.0
        %5834 = vmatpush1.msra.mxu0 0.0
        %5835 = vmatprep.subr.mxu0 0.0
        %v5836 = vand.u32 %v5721, 4294901760
        %v5837 = vsub.f32 %v5721, %v5836
        %v5838 = vand.u32 %v5837, 4294901760
        %v5839 = vsub.f32 %v5837, %v5838
        %v5840 = vand.u32 %v5839, 4294901760
        %5841 = vmatpush1.msra.mxu0 %v5840
        %5842 = vmatprep.subr.mxu0 0.0
        %v5843 = vand.u32 %v5720, 4294901760
        %v5844 = vsub.f32 %v5720, %v5843
        %v5845 = vand.u32 %v5844, 4294901760
        %v5846 = vsub.f32 %v5844, %v5845
        %v5847 = vand.u32 %v5846, 4294901760
        %5848 = vmatpush1.msra.mxu0 %v5847
        %5849 = vmatprep.subr.mxu0 0.0
        %v5850 = vand.u32 %v5719, 4294901760
        %v5851 = vsub.f32 %v5719, %v5850
        %v5852 = vand.u32 %v5851, 4294901760
        %v5853 = vsub.f32 %v5851, %v5852
        %v5854 = vand.u32 %v5853, 4294901760
        %5855 = vmatpush1.msra.mxu0 %v5854
        %5856 = vmatprep.subr.mxu0 0.0
        %v5857 = vand.u32 %v5718, 4294901760
        %v5858 = vsub.f32 %v5718, %v5857
        %v5859 = vand.u32 %v5858, 4294901760
        %v5860 = vsub.f32 %v5858, %v5859
        %v5861 = vand.u32 %v5860, 4294901760
        %5862 = vmatpush1.msra.mxu0 %v5861
        %5863 = vmatprep.subr.mxu0 0.0
        %5864 = vmatpush2.msra.mxu0 0.0
        %5865 = vmatprep.subr.mxu0 0.0
        %5866 = vmatpush2.msra.mxu0 0.0
        %5867 = vmatprep.subr.mxu0 0.0
        %5868 = vmatpush2.msra.mxu0 0.0
        %5869 = vmatprep.subr.mxu0 0.0
        %5870 = vmatpush2.msra.mxu0 0.0
        %5871 = vmatprep.subr.mxu0 0.0
        %5872 = vmatpush2.msra.mxu0 0.0
        %5873 = vmatprep.subr.mxu0 0.0
        %5874 = vmatpush2.msra.mxu0 0.0
        %5875 = vmatprep.subr.mxu0 0.0
        %5876 = vmatpush2.msra.mxu0 0.0
        %5877 = vmatprep.subr.mxu0 0.0
        %5878 = vmatpush2.msra.mxu0 0.0
        %5879 = vmatprep.subr.mxu0 0.0
        %5880 = vmatpush2.msra.mxu0 0.0
        %5881 = vmatprep.subr.mxu0 0.0
        %5882 = vmatpush2.msra.mxu0 0.0
        %5883 = vmatprep.subr.mxu0 0.0
        %5884 = vmatpush2.msra.mxu0 0.0
        %5885 = vmatprep.subr.mxu0 0.0
        %5886 = vmatpush2.msra.mxu0 0.0
        %5887 = vmatprep.subr.mxu0 0.0
        %5888 = vmatpush2.msra.mxu0 0.0
        %5889 = vmatprep.subr.mxu0 0.0
        %5890 = vmatpush2.msra.mxu0 0.0
        %5891 = vmatprep.subr.mxu0 0.0
        %5892 = vmatpush2.msra.mxu0 0.0
        %5893 = vmatprep.subr.mxu0 0.0
        %5894 = vmatpush2.msra.mxu0 0.0
        %5895 = vmatprep.mubr.f32.mxu0 0.0
        %v5896 = vand.u32 %v5730, 4294901760
        %5897 = vmatmul.mubr.f32.gmra.mxu0 %v5896
        %v5898 = vpop.f32.mrf.mxu0
        %v5899 = vadd.f32 %v5808, %v5898
        %v5900 = vpop.f32.mrf.mxu0
        %5901 = vdwg.mxu0
        %5902 = vmatprep.subr.mxu0 0.0
        %5903 = vmatpush1.msra.mxu0 0.0
        %5904 = vmatprep.subr.mxu0 0.0
        %5905 = vmatpush1.msra.mxu0 0.0
        %5906 = vmatprep.subr.mxu0 0.0
        %5907 = vmatpush1.msra.mxu0 0.0
        %5908 = vmatprep.subr.mxu0 0.0
        %5909 = vmatpush1.msra.mxu0 0.0
        %5910 = vmatprep.subr.mxu0 0.0
        %5911 = vmatpush1.msra.mxu0 0.0
        %5912 = vmatprep.subr.mxu0 0.0
        %5913 = vmatpush1.msra.mxu0 0.0
        %5914 = vmatprep.subr.mxu0 0.0
        %5915 = vmatpush1.msra.mxu0 0.0
        %5916 = vmatprep.subr.mxu0 0.0
        %5917 = vmatpush1.msra.mxu0 0.0
        %5918 = vmatprep.subr.mxu0 0.0
        %5919 = vmatpush1.msra.mxu0 0.0
        %5920 = vmatprep.subr.mxu0 0.0
        %5921 = vmatpush1.msra.mxu0 0.0
        %5922 = vmatprep.subr.mxu0 0.0
        %5923 = vmatpush1.msra.mxu0 0.0
        %5924 = vmatprep.subr.mxu0 0.0
        %5925 = vmatpush1.msra.mxu0 0.0
        %5926 = vmatprep.subr.mxu0 0.0
        %v5927 = vand.u32 %v5721, 4294901760
        %v5928 = vsub.f32 %v5721, %v5927
        %5929 = vmatpush1.msra.mxu0 %v5928
        %5930 = vmatprep.subr.mxu0 0.0
        %v5931 = vand.u32 %v5720, 4294901760
        %v5932 = vsub.f32 %v5720, %v5931
        %5933 = vmatpush1.msra.mxu0 %v5932
        %5934 = vmatprep.subr.mxu0 0.0
        %v5935 = vand.u32 %v5719, 4294901760
        %v5936 = vsub.f32 %v5719, %v5935
        %5937 = vmatpush1.msra.mxu0 %v5936
        %5938 = vmatprep.subr.mxu0 0.0
        %v5939 = vand.u32 %v5718, 4294901760
        %v5940 = vsub.f32 %v5718, %v5939
        %5941 = vmatpush1.msra.mxu0 %v5940
        %5942 = vmatprep.subr.mxu0 0.0
        %5943 = vmatpush2.msra.mxu0 0.0
        %5944 = vmatprep.subr.mxu0 0.0
        %5945 = vmatpush2.msra.mxu0 0.0
        %5946 = vmatprep.subr.mxu0 0.0
        %5947 = vmatpush2.msra.mxu0 0.0
        %5948 = vmatprep.subr.mxu0 0.0
        %5949 = vmatpush2.msra.mxu0 0.0
        %5950 = vmatprep.subr.mxu0 0.0
        %5951 = vmatpush2.msra.mxu0 0.0
        %5952 = vmatprep.subr.mxu0 0.0
        %5953 = vmatpush2.msra.mxu0 0.0
        %5954 = vmatprep.subr.mxu0 0.0
        %5955 = vmatpush2.msra.mxu0 0.0
        %5956 = vmatprep.subr.mxu0 0.0
        %5957 = vmatpush2.msra.mxu0 0.0
        %5958 = vmatprep.subr.mxu0 0.0
        %5959 = vmatpush2.msra.mxu0 0.0
        %5960 = vmatprep.subr.mxu0 0.0
        %5961 = vmatpush2.msra.mxu0 0.0
        %5962 = vmatprep.subr.mxu0 0.0
        %5963 = vmatpush2.msra.mxu0 0.0
        %5964 = vmatprep.subr.mxu0 0.0
        %5965 = vmatpush2.msra.mxu0 0.0
        %5966 = vmatprep.subr.mxu0 0.0
        %5967 = vmatpush2.msra.mxu0 0.0
        %5968 = vmatprep.subr.mxu0 0.0
        %5969 = vmatpush2.msra.mxu0 0.0
        %5970 = vmatprep.subr.mxu0 0.0
        %5971 = vmatpush2.msra.mxu0 0.0
        %5972 = vmatprep.subr.mxu0 0.0
        %5973 = vmatpush2.msra.mxu0 0.0
        %5974 = vmatprep.mubr.f32.mxu0 0.0
        %v5975 = vand.u32 %v5730, 4294901760
        %v5976 = vsub.f32 %v5730, %v5975
        %5977 = vmatmul.mubr.f32.gmra.mxu0 %v5976
        %v5978 = vpop.f32.mrf.mxu0
        %v5979 = vadd.f32 %v5899, %v5978
        %v5980 = vpop.f32.mrf.mxu0
        %5981 = vdwg.mxu0
        %5982 = vmatprep.subr.mxu0 0.0
        %5983 = vmatpush1.msra.mxu0 0.0
        %5984 = vmatprep.subr.mxu0 0.0
        %5985 = vmatpush1.msra.mxu0 0.0
        %5986 = vmatprep.subr.mxu0 0.0
        %5987 = vmatpush1.msra.mxu0 0.0
        %5988 = vmatprep.subr.mxu0 0.0
        %5989 = vmatpush1.msra.mxu0 0.0
        %5990 = vmatprep.subr.mxu0 0.0
        %5991 = vmatpush1.msra.mxu0 0.0
        %5992 = vmatprep.subr.mxu0 0.0
        %5993 = vmatpush1.msra.mxu0 0.0
        %5994 = vmatprep.subr.mxu0 0.0
        %5995 = vmatpush1.msra.mxu0 0.0
        %5996 = vmatprep.subr.mxu0 0.0
        %5997 = vmatpush1.msra.mxu0 0.0
        %5998 = vmatprep.subr.mxu0 0.0
        %5999 = vmatpush1.msra.mxu0 0.0
        %6000 = vmatprep.subr.mxu0 0.0
        %6001 = vmatpush1.msra.mxu0 0.0
        %6002 = vmatprep.subr.mxu0 0.0
        %6003 = vmatpush1.msra.mxu0 0.0
        %6004 = vmatprep.subr.mxu0 0.0
        %6005 = vmatpush1.msra.mxu0 0.0
        %6006 = vmatprep.subr.mxu0 0.0
        %v6007 = vand.u32 %v5721, 4294901760
        %6008 = vmatpush1.msra.mxu0 %v6007
        %6009 = vmatprep.subr.mxu0 0.0
        %v6010 = vand.u32 %v5720, 4294901760
        %6011 = vmatpush1.msra.mxu0 %v6010
        %6012 = vmatprep.subr.mxu0 0.0
        %v6013 = vand.u32 %v5719, 4294901760
        %6014 = vmatpush1.msra.mxu0 %v6013
        %6015 = vmatprep.subr.mxu0 0.0
        %v6016 = vand.u32 %v5718, 4294901760
        %6017 = vmatpush1.msra.mxu0 %v6016
        %6018 = vmatprep.subr.mxu0 0.0
        %6019 = vmatpush2.msra.mxu0 0.0
        %6020 = vmatprep.subr.mxu0 0.0
        %6021 = vmatpush2.msra.mxu0 0.0
        %6022 = vmatprep.subr.mxu0 0.0
        %6023 = vmatpush2.msra.mxu0 0.0
        %6024 = vmatprep.subr.mxu0 0.0
        %6025 = vmatpush2.msra.mxu0 0.0
        %6026 = vmatprep.subr.mxu0 0.0
        %6027 = vmatpush2.msra.mxu0 0.0
        %6028 = vmatprep.subr.mxu0 0.0
        %6029 = vmatpush2.msra.mxu0 0.0
        %6030 = vmatprep.subr.mxu0 0.0
        %6031 = vmatpush2.msra.mxu0 0.0
        %6032 = vmatprep.subr.mxu0 0.0
        %6033 = vmatpush2.msra.mxu0 0.0
        %6034 = vmatprep.subr.mxu0 0.0
        %6035 = vmatpush2.msra.mxu0 0.0
        %6036 = vmatprep.subr.mxu0 0.0
        %6037 = vmatpush2.msra.mxu0 0.0
        %6038 = vmatprep.subr.mxu0 0.0
        %6039 = vmatpush2.msra.mxu0 0.0
        %6040 = vmatprep.subr.mxu0 0.0
        %6041 = vmatpush2.msra.mxu0 0.0
        %6042 = vmatprep.subr.mxu0 0.0
        %6043 = vmatpush2.msra.mxu0 0.0
        %6044 = vmatprep.subr.mxu0 0.0
        %6045 = vmatpush2.msra.mxu0 0.0
        %6046 = vmatprep.subr.mxu0 0.0
        %6047 = vmatpush2.msra.mxu0 0.0
        %6048 = vmatprep.subr.mxu0 0.0
        %6049 = vmatpush2.msra.mxu0 0.0
        %6050 = vmatprep.mubr.f32.mxu0 0.0
        %v6051 = vand.u32 %v5730, 4294901760
        %v6052 = vsub.f32 %v5730, %v6051
        %v6053 = vand.u32 %v6052, 4294901760
        %6054 = vmatmul.mubr.f32.gmra.mxu0 %v6053
        %v6055 = vpop.f32.mrf.mxu0
        %v6056 = vadd.f32 %v5979, %v6055
        %v6057 = vpop.f32.mrf.mxu0
        %6058 = vdwg.mxu0
        %6059 = vmatprep.subr.mxu0 0.0
        %6060 = vmatpush1.msra.mxu0 0.0
        %6061 = vmatprep.subr.mxu0 0.0
        %6062 = vmatpush1.msra.mxu0 0.0
        %6063 = vmatprep.subr.mxu0 0.0
        %6064 = vmatpush1.msra.mxu0 0.0
        %6065 = vmatprep.subr.mxu0 0.0
        %6066 = vmatpush1.msra.mxu0 0.0
        %6067 = vmatprep.subr.mxu0 0.0
        %6068 = vmatpush1.msra.mxu0 0.0
        %6069 = vmatprep.subr.mxu0 0.0
        %6070 = vmatpush1.msra.mxu0 0.0
        %6071 = vmatprep.subr.mxu0 0.0
        %6072 = vmatpush1.msra.mxu0 0.0
        %6073 = vmatprep.subr.mxu0 0.0
        %6074 = vmatpush1.msra.mxu0 0.0
        %6075 = vmatprep.subr.mxu0 0.0
        %6076 = vmatpush1.msra.mxu0 0.0
        %6077 = vmatprep.subr.mxu0 0.0
        %6078 = vmatpush1.msra.mxu0 0.0
        %6079 = vmatprep.subr.mxu0 0.0
        %6080 = vmatpush1.msra.mxu0 0.0
        %6081 = vmatprep.subr.mxu0 0.0
        %6082 = vmatpush1.msra.mxu0 0.0
        %6083 = vmatprep.subr.mxu0 0.0
        %v6084 = vand.u32 %v5721, 4294901760
        %v6085 = vsub.f32 %v5721, %v6084
        %v6086 = vand.u32 %v6085, 4294901760
        %6087 = vmatpush1.msra.mxu0 %v6086
        %6088 = vmatprep.subr.mxu0 0.0
        %v6089 = vand.u32 %v5720, 4294901760
        %v6090 = vsub.f32 %v5720, %v6089
        %v6091 = vand.u32 %v6090, 4294901760
        %6092 = vmatpush1.msra.mxu0 %v6091
        %6093 = vmatprep.subr.mxu0 0.0
        %v6094 = vand.u32 %v5719, 4294901760
        %v6095 = vsub.f32 %v5719, %v6094
        %v6096 = vand.u32 %v6095, 4294901760
        %6097 = vmatpush1.msra.mxu0 %v6096
        %6098 = vmatprep.subr.mxu0 0.0
        %v6099 = vand.u32 %v5718, 4294901760
        %v6100 = vsub.f32 %v5718, %v6099
        %v6101 = vand.u32 %v6100, 4294901760
        %6102 = vmatpush1.msra.mxu0 %v6101
        %6103 = vmatprep.subr.mxu0 0.0
        %6104 = vmatpush2.msra.mxu0 0.0
        %6105 = vmatprep.subr.mxu0 0.0
        %6106 = vmatpush2.msra.mxu0 0.0
        %6107 = vmatprep.subr.mxu0 0.0
        %6108 = vmatpush2.msra.mxu0 0.0
        %6109 = vmatprep.subr.mxu0 0.0
        %6110 = vmatpush2.msra.mxu0 0.0
        %6111 = vmatprep.subr.mxu0 0.0
        %6112 = vmatpush2.msra.mxu0 0.0
        %6113 = vmatprep.subr.mxu0 0.0
        %6114 = vmatpush2.msra.mxu0 0.0
        %6115 = vmatprep.subr.mxu0 0.0
        %6116 = vmatpush2.msra.mxu0 0.0
        %6117 = vmatprep.subr.mxu0 0.0
        %6118 = vmatpush2.msra.mxu0 0.0
        %6119 = vmatprep.subr.mxu0 0.0
        %6120 = vmatpush2.msra.mxu0 0.0
        %6121 = vmatprep.subr.mxu0 0.0
        %6122 = vmatpush2.msra.mxu0 0.0
        %6123 = vmatprep.subr.mxu0 0.0
        %6124 = vmatpush2.msra.mxu0 0.0
        %6125 = vmatprep.subr.mxu0 0.0
        %6126 = vmatpush2.msra.mxu0 0.0
        %6127 = vmatprep.subr.mxu0 0.0
        %6128 = vmatpush2.msra.mxu0 0.0
        %6129 = vmatprep.subr.mxu0 0.0
        %6130 = vmatpush2.msra.mxu0 0.0
        %6131 = vmatprep.subr.mxu0 0.0
        %6132 = vmatpush2.msra.mxu0 0.0
        %6133 = vmatprep.subr.mxu0 0.0
        %6134 = vmatpush2.msra.mxu0 0.0
        %6135 = vmatprep.mubr.f32.mxu0 0.0
        %v6136 = vand.u32 %v5730, 4294901760
        %6137 = vmatmul.mubr.f32.gmra.mxu0 %v6136
        %v6138 = vpop.f32.mrf.mxu0
        %v6139 = vadd.f32 %v6056, %v6138
        %v6140 = vpop.f32.mrf.mxu0
        %6141 = vdwg.mxu0
        %6142 = vmatprep.subr.mxu0 0.0
        %6143 = vmatpush1.msra.mxu0 0.0
        %6144 = vmatprep.subr.mxu0 0.0
        %6145 = vmatpush1.msra.mxu0 0.0
        %6146 = vmatprep.subr.mxu0 0.0
        %6147 = vmatpush1.msra.mxu0 0.0
        %6148 = vmatprep.subr.mxu0 0.0
        %6149 = vmatpush1.msra.mxu0 0.0
        %6150 = vmatprep.subr.mxu0 0.0
        %6151 = vmatpush1.msra.mxu0 0.0
        %6152 = vmatprep.subr.mxu0 0.0
        %6153 = vmatpush1.msra.mxu0 0.0
        %6154 = vmatprep.subr.mxu0 0.0
        %6155 = vmatpush1.msra.mxu0 0.0
        %6156 = vmatprep.subr.mxu0 0.0
        %6157 = vmatpush1.msra.mxu0 0.0
        %6158 = vmatprep.subr.mxu0 0.0
        %6159 = vmatpush1.msra.mxu0 0.0
        %6160 = vmatprep.subr.mxu0 0.0
        %6161 = vmatpush1.msra.mxu0 0.0
        %6162 = vmatprep.subr.mxu0 0.0
        %6163 = vmatpush1.msra.mxu0 0.0
        %6164 = vmatprep.subr.mxu0 0.0
        %6165 = vmatpush1.msra.mxu0 0.0
        %6166 = vmatprep.subr.mxu0 0.0
        %v6167 = vand.u32 %v5721, 4294901760
        %6168 = vmatpush1.msra.mxu0 %v6167
        %6169 = vmatprep.subr.mxu0 0.0
        %v6170 = vand.u32 %v5720, 4294901760
        %6171 = vmatpush1.msra.mxu0 %v6170
        %6172 = vmatprep.subr.mxu0 0.0
        %v6173 = vand.u32 %v5719, 4294901760
        %6174 = vmatpush1.msra.mxu0 %v6173
        %6175 = vmatprep.subr.mxu0 0.0
        %v6176 = vand.u32 %v5718, 4294901760
        %6177 = vmatpush1.msra.mxu0 %v6176
        %6178 = vmatprep.subr.mxu0 0.0
        %6179 = vmatpush2.msra.mxu0 0.0
        %6180 = vmatprep.subr.mxu0 0.0
        %6181 = vmatpush2.msra.mxu0 0.0
        %6182 = vmatprep.subr.mxu0 0.0
        %6183 = vmatpush2.msra.mxu0 0.0
        %6184 = vmatprep.subr.mxu0 0.0
        %6185 = vmatpush2.msra.mxu0 0.0
        %6186 = vmatprep.subr.mxu0 0.0
        %6187 = vmatpush2.msra.mxu0 0.0
        %6188 = vmatprep.subr.mxu0 0.0
        %6189 = vmatpush2.msra.mxu0 0.0
        %6190 = vmatprep.subr.mxu0 0.0
        %6191 = vmatpush2.msra.mxu0 0.0
        %6192 = vmatprep.subr.mxu0 0.0
        %6193 = vmatpush2.msra.mxu0 0.0
        %6194 = vmatprep.subr.mxu0 0.0
        %6195 = vmatpush2.msra.mxu0 0.0
        %6196 = vmatprep.subr.mxu0 0.0
        %6197 = vmatpush2.msra.mxu0 0.0
        %6198 = vmatprep.subr.mxu0 0.0
        %6199 = vmatpush2.msra.mxu0 0.0
        %6200 = vmatprep.subr.mxu0 0.0
        %6201 = vmatpush2.msra.mxu0 0.0
        %6202 = vmatprep.subr.mxu0 0.0
        %6203 = vmatpush2.msra.mxu0 0.0
        %6204 = vmatprep.subr.mxu0 0.0
        %6205 = vmatpush2.msra.mxu0 0.0
        %6206 = vmatprep.subr.mxu0 0.0
        %6207 = vmatpush2.msra.mxu0 0.0
        %6208 = vmatprep.subr.mxu0 0.0
        %6209 = vmatpush2.msra.mxu0 0.0
        %6210 = vmatprep.mubr.f32.mxu0 0.0
        %v6211 = vand.u32 %v5730, 4294901760
        %6212 = vmatmul.mubr.f32.gmra.mxu0 %v6211
        %v6213 = vpop.f32.mrf.mxu0
        %v6214 = vadd.f32 %v6139, %v6213
        %v6215 = vpop.f32.mrf.mxu0
        %6216 = vdwg.mxu0
        %6217 = vst.msk [vmem:[%s530] sm:$0xff] %vm543, %v6214
        %s6218 = sand.u32 %s287, 1
        %s6219 = scalar_lea.sflag [#allocation5], %s6218
        %s6220 = sand.u32 %s287, 1
        %s6221 = smul.addr %s6220, 8
        %s6222 = scalar_lea.vmem [#allocation15], %s6221
        // Predicated region
        $region93: #{tpu_custom_call.1} parent=63 // pred_check
          %p6223 = pneg %p297
        $region94: #{tpu_custom_call.1} parent=63 // pred_check_branch
          %6225 = sbr.rel (%p6223) target = $region96
        $region95: #{tpu_custom_call.1} parent=63 // pred_region
          %s6227 = ssub.s32 128, 128
          %6228 = vsyncadd %s6219, %s6227
          %s6229 = smul.addr %s33, 128
          %s6230 = scalar_lea.hbm %s11, %s6229
          %s6232 = sshll.u32 %s6222, 4
          %s6233 = int_to_ptr.vmem [resolvable:$true] %s6232
          %6235 = dma.vmem_to_hbm [thread:$0]  %s6233, 128, %s6230, %s6219
        $region96: #{tpu_custom_call.1} parent=63 // pred_fallthru
          _
      $region64: #{tpu_custom_call.1} parent=5 // pred_fallthru
        _
      %p6236 = scmp.le.s32.totalorder 2, %s28
      // Predicated region
      $region97: #{tpu_custom_call.1} parent=5 // pred_check
        %p6237 = pneg %p6236
      $region98: #{tpu_custom_call.1} parent=5 // pred_check_branch
        %6239 = sbr.rel (%p6237) target = $region100
      $region99: #{tpu_custom_call.1} parent=5 // pred_region
        %s6240 = ssub.s32 %s28, 2
        // Predicated region
        $region101: #{tpu_custom_call.1} parent=99 // pred_check
          %p6241 = pneg %p303
        $region102: #{tpu_custom_call.1} parent=99 // pred_check_branch
          %6243 = sbr.rel (%p6241) target = $region104
        $region103: #{tpu_custom_call.1} parent=99 // pred_region
          %s6244 = sand.u32 %s288, 1
          %s6245 = scalar_lea.sflag [#allocation5], %s6244
          %s6246 = sand.u32 %s288, 1
          %s6247 = smul.addr %s6246, 8
          %s6248 = scalar_lea.vmem [#allocation15], %s6247
          %6249 = dma.done %s6245, 128
        $region104: #{tpu_custom_call.1} parent=99 // pred_fallthru
          _
      $region100: #{tpu_custom_call.1} parent=5 // pred_fallthru
        _
    $region6: #{tpu_custom_call.1} parent=1 // loop_footer
      %s32 = sadd.s32 1, %s28
    $region7: #{tpu_custom_call.1} parent=1 // loop_footer_branch
      %27 = sbr.rel target = $region3
    $region8: #{tpu_custom_call.1} parent=1 // loop_exit
      _
    %6250 = vsyncpa [#allocation4], 1
    %s6251 = scalar_lea.sflag [#allocation4], 1
    %6252 = vsyncpa %s6251, 1
    %6253 = vsyncpa [#allocation7], 1
    %s6254 = scalar_lea.sflag [#allocation7], 1
    %6255 = vsyncpa %s6254, 1
    %6256 = vsyncpa [#allocation10], 1
    %6257 = vsyncpa [#allocation13], 1
    %6258 = vsyncpa [#allocation5], 1
    %s6259 = scalar_lea.sflag [#allocation5], 1
    %6260 = vsyncpa %s6259, 1

</llo_original>
